<compile_context>
chip_gen: v6e
topology: v6e:2x2x1
jax: 0.10.0
libtpu: 0.0.40
codegen_flags: <defaults>
</compile_context>

<pallas_src>
import jax
import jax.numpy as jnp
from jax.experimental import pallas as pl
from jax.experimental.pallas import tpu as pltpu

NEG_SLOPE = 0.2
_MASK = -1e30          # additive mask value for non-edges

# ----- model hyper-parameters (scaled-down versions of the PyTorch module) ---
IN_DIM = 64            # GATv2Conv(64, 8, heads=2)
INIT_OUT = 8
INIT_HEADS = 2
NUM_HEADS = 4          # module uses 16
HIDDEN = 32            # module uses 1024
NUM_CLASS = 4


def _round_up(v, m):
    return ((v + m - 1) // m) * m


def _pick_vmem_limit():
    # Generation-dependent scoped-VMEM budget: ~3/4 of physical VMEM
    # (96 MiB on 128 MiB v5e/v6e, 48 MiB on 64 MiB v7x), safe fallback 32 MiB.
    try:
        cap = pltpu.get_tpu_info().vmem_capacity_bytes
        return int(min(cap * 3 // 4, 100 * 1024 * 1024))
    except Exception:
        return 32 * 1024 * 1024


_VMEM_LIMIT = _pick_vmem_limit()


# ======================= tiled matmul (projections) ==========================

def _matmul_kernel_single(x_ref, w_ref, b_ref, o_ref):
    # Single K step: write directly, no accumulator scratch round-trip.
    o_ref[...] = jnp.dot(x_ref[...].astype(jnp.bfloat16), w_ref[...],
                         preferred_element_type=jnp.float32) + b_ref[...]


def _matmul_kernel_multi(x_ref, w_ref, b_ref, o_ref, acc_ref):
    # grid = (M//tm, N//tn, K//tk); K is the reduction ("arbitrary") axis.
    @pl.when(pl.program_id(2) == 0)
    def _():
        acc_ref[...] = jnp.zeros_like(acc_ref)

    acc_ref[...] += jnp.dot(x_ref[...].astype(jnp.bfloat16), w_ref[...],
                            preferred_element_type=jnp.float32)

    @pl.when(pl.program_id(2) == pl.num_programs(2) - 1)
    def _():
        o_ref[...] = acc_ref[...] + b_ref[...]


def _tile(dim, pref):
    """(tile, padded_dim): use the full dim when it fits (no pad, always a
    legal block because block==full-dim), otherwise the preferred tile."""
    if dim <= pref:
        return dim, dim
    return pref, _round_up(dim, pref)


def linear(x, w_bf16, b, *, tm=256, tn=256, tk=512):
    """y = x @ w + b. Weights pre-cast to bf16 at init; activation tile is
    cast to bf16 inside the kernel; f32 accumulation on the MXU."""
    m, k = x.shape
    k2, n = w_bf16.shape
    assert k == k2
    tm, mp = _tile(m, tm)
    tk, kp = _tile(k, tk)
    tn, np_ = _tile(n, tn)

    xp = x if (mp == m and kp == k) else jnp.pad(x, ((0, mp - m), (0, kp - k)))
    wp = (w_bf16 if (kp == k and np_ == n)
          else jnp.pad(w_bf16, ((0, kp - k), (0, np_ - n))))
    bp = b.reshape(1, n).astype(jnp.float32)
    if np_ != n:
        bp = jnp.pad(bp, ((0, 0), (0, np_ - n)))

    nk = kp // tk
    kernel = _matmul_kernel_single if nk == 1 else _matmul_kernel_multi
    scratch = [] if nk == 1 else [pltpu.VMEM((tm, tn), jnp.float32)]

    out = pl.pallas_call(
        kernel,
        grid=(mp // tm, np_ // tn, nk),
        in_specs=[
            pl.BlockSpec((tm, tk), lambda i, j, kk: (i, kk)),
            pl.BlockSpec((tk, tn), lambda i, j, kk: (kk, j)),
            pl.BlockSpec((1, tn), lambda i, j, kk: (0, j)),
        ],
        out_specs=pl.BlockSpec((tm, tn), lambda i, j, kk: (i, j)),
        out_shape=jax.ShapeDtypeStruct((mp, np_), jnp.float32),
        scratch_shapes=scratch,
        compiler_params=pltpu.CompilerParams(
            dimension_semantics=("parallel", "parallel", "arbitrary"),
            vmem_limit_bytes=_VMEM_LIMIT),
    )(xp, wp, bp)
    if mp != m or np_ != n:
        out = out[:m, :n]
    return out


# ====================== batched GATv2 attention kernel =======================

def _gatv2_attn_kernel(xlr_i_ref, xlr_j_ref, att_ref, bias_ref, adjb_ref,
                       o_ref, m_ref, l_ref, acc_ref):
    # grid = (ni, nj): i tiles target rows ("parallel"), j tiles neighbors
    # ("arbitrary", flash-style online-softmax reduction).
    #   xlr_i_ref : (TI, 2*G*C) fused [x_l | x_r] rows for the target tile
    #   xlr_j_ref : (TJ, 2*G*C) fused rows for the neighbor tile
    #   att_ref   : (G, 1, C)   per-group attention vector
    #   bias_ref  : (G, 1, C)   per-group output bias
    #   adjb_ref  : (TI, TJ)    bf16 additive mask (0 = edge/self-loop, -1e30)
    #   o_ref     : (TI, G*C)   concatenated output, written once at last j
    # scratch (persists across j tiles): m_ref,l_ref (G,TI,1); acc_ref (G,TI,C)
    num_groups, _, c = att_ref.shape
    gc = num_groups * c
    j = pl.program_id(1)

    @pl.when(j == 0)
    def _():
        m_ref[...] = jnp.full_like(m_ref, _MASK)
        l_ref[...] = jnp.zeros_like(l_ref)
        acc_ref[...] = jnp.zeros_like(acc_ref)

    adjb = adjb_ref[...].astype(jnp.float32)              # (TI, TJ), all groups
    xl_bf16 = xlr_j_ref[:, :gc].astype(jnp.bfloat16)      # hoisted cast (all G)

    # TODO(synk): at real scale (G=16, C=1024) replace this static unroll with
    # lax.fori_loop / a grid axis and map the C-reduction of the score onto
    # the MXU; at demo scale (G<=4, C<=32) the unrolled VPU reduce is fine.
    for g in range(num_groups):
        lo, hi = g * c, (g + 1) * c
        x_l = xlr_j_ref[:, lo:hi]                         # (TJ, C) sources (x_j)
        x_r = xlr_i_ref[:, gc + lo:gc + hi]               # (TI, C) targets (x_i)
        att = att_ref[g]                                  # (1, C)

        # GATv2 score: att . leaky_relu(x_i + x_j) for every (target, source)
        pair = x_r[:, None, :] + x_l[None, :, :]          # (TI, TJ, C)
        pair = jnp.maximum(pair, NEG_SLOPE * pair)        # leaky_relu, one max
        s = jnp.sum(pair * att[None, :, :], axis=-1)      # (TI, TJ)
        s = s + adjb                                      # additive mask

        # flash-style online softmax over neighbor tiles
        m_prev = m_ref[g]                                 # (TI, 1)
        m_new = jnp.maximum(m_prev, jnp.max(s, axis=-1, keepdims=True))
        corr = jnp.exp(m_prev - m_new)
        p = jnp.exp(s - m_new)                            # (TI, TJ)
        l_ref[g] = corr * l_ref[g] + jnp.sum(p, axis=-1, keepdims=True)
        acc_ref[g] = corr * acc_ref[g] + jnp.dot(
            p.astype(jnp.bfloat16), xl_bf16[:, lo:hi],
            preferred_element_type=jnp.float32)           # (TI, C) on the MXU
        m_ref[g] = m_new

    @pl.when(j == pl.num_programs(1) - 1)
    def _():
        # TODO(synk): lane slices are 128-aligned only when C is a multiple of
        # 128 (true at the real model's C=1024); at demo C they are masked.
        for g in range(num_groups):
            lo, hi = g * c, (g + 1) * c
            inv = pl.reciprocal(l_ref[g], approx=True)    # EUP, not a VPU div
            o_ref[:, lo:hi] = (acc_ref[g] * inv + bias_ref[g]).astype(o_ref.dtype)


def gatv2_attention(xlr, att, bias, adj_bias):
    # xlr: (N, 2*G*C) fused [x_l | x_r]; att/bias: (G, 1, C); adj_bias: (N, N)
    # bf16. Returns (N, G*C): per-group attention outputs concatenated.
    n, two_gc = xlr.shape
    g, _, c = att.shape
    gc = g * c
    assert two_gc == 2 * gc
    ti = n if n <= 128 else 128
    tj = n if n <= 128 else 128
    # TODO(synk): pad target/neighbor rows + mask columns for N not a
    # multiple of 128 once real graph sizes are used.
    assert n % ti == 0 and n % tj == 0
    ni, nj = n // ti, n // tj

    return pl.pallas_call(
        _gatv2_attn_kernel,
        grid=(ni, nj),
        in_specs=[
            pl.BlockSpec((ti, two_gc), lambda i, j: (i, 0)),   # target rows
            pl.BlockSpec((tj, two_gc), lambda i, j: (j, 0)),   # neighbor rows
            pl.BlockSpec((g, 1, c), lambda i, j: (0, 0, 0)),   # att
            pl.BlockSpec((g, 1, c), lambda i, j: (0, 0, 0)),   # bias
            pl.BlockSpec((ti, tj), lambda i, j: (i, j)),       # bf16 mask tile
        ],
        out_specs=pl.BlockSpec((ti, gc), lambda i, j: (i, 0)),
        out_shape=jax.ShapeDtypeStruct((n, gc), jnp.float32),
        scratch_shapes=[
            pltpu.VMEM((g, ti, 1), jnp.float32),   # running max
            pltpu.VMEM((g, ti, 1), jnp.float32),   # running denominator
            pltpu.VMEM((g, ti, c), jnp.float32),   # running weighted sum
        ],
        compiler_params=pltpu.CompilerParams(
            dimension_semantics=("parallel", "arbitrary"),
            vmem_limit_bytes=_VMEM_LIMIT),
    )(xlr, xlr, att, bias, adj_bias)


# ============================ JAX glue / model ===============================

def gat_layer(x, adj_bias, p):
    """One bank of GATv2 attention groups (heads of one conv, or several
    single-head convs batched together)."""
    xlr = linear(x, p["w"], p["b"])     # fused l/r projection: (N, 2*G*C)
    return gatv2_attention(xlr, p["att"], p["bias"], adj_bias)


def _glorot(key, shape, fan_in, fan_out):
    lim = (6.0 / (fan_in + fan_out)) ** 0.5
    return jax.random.uniform(key, shape, jnp.float32, -lim, lim)


def init_gat_layer(key, in_ch, out_ch, num_groups):
    # num_groups independent attention groups; each owns its private lin_l /
    # lin_r column block, attention vector and bias slice.  Laid out lane-major
    # so the attention kernel output is already the concatenated (N, G*C).
    # Projection weight stored bf16 ONCE here (no per-call cast pre-pass).
    k_l, k_r, k_a = jax.random.split(key, 3)
    gc = num_groups * out_ch
    w_l = _glorot(k_l, (in_ch, gc), in_ch, gc)
    w_r = _glorot(k_r, (in_ch, gc), in_ch, gc)
    att = _glorot(k_a, (num_groups, 1, out_ch), num_groups, out_ch)
    return {
        "w": jnp.concatenate([w_l, w_r], axis=1).astype(jnp.bfloat16),
        "b": jnp.zeros((2 * gc,), jnp.float32),
        "att": att,                                             # (G, 1, C)
        "bias": jnp.zeros((num_groups, 1, out_ch), jnp.float32),
    }


def init_net_cell_params(key):
    k_init, k_heads, k_gat, k_out = jax.random.split(key, 4)
    init_dim = INIT_OUT * INIT_HEADS                   # 16
    cat_dim = HIDDEN * NUM_HEADS
    return {
        # GATv2Conv(IN_DIM, INIT_OUT, heads=INIT_HEADS)
        "init": init_gat_layer(k_init, IN_DIM, INIT_OUT, INIT_HEADS),
        # NUM_HEADS independent GATv2Conv(init_dim, HIDDEN) modules batched as
        # NUM_HEADS groups of one fused layer (math identical per group).
        "heads": init_gat_layer(k_heads, init_dim, HIDDEN, NUM_HEADS),
        # GATv2Conv(cat_dim, HIDDEN, heads=NUM_HEADS)
        "gat": init_gat_layer(k_gat, cat_dim, HIDDEN, NUM_HEADS),
        "out_w": _glorot(k_out, (cat_dim, NUM_CLASS),
                         cat_dim, NUM_CLASS).astype(jnp.bfloat16),
        "out_b": jnp.zeros((NUM_CLASS,), jnp.float32),
    }


def build_adj_bias(edge_index, num_nodes):
    # Additive attention mask: 0 where edge j -> i (or self loop), -1e30 else.
    # Stored bf16 (same exponent range as f32) to halve the N^2 mask stream.
    src, dst = edge_index[0], edge_index[1]
    adj = jnp.zeros((num_nodes, num_nodes), jnp.float32)
    adj = adj.at[dst, src].set(1.0)
    adj = jnp.maximum(adj, jnp.eye(num_nodes, dtype=jnp.float32))  # self loops
    return jnp.where(adj > 0.5, 0.0, _MASK).astype(jnp.bfloat16)


def net_cell_forward(params, embedding, adj_bias):
    x = gat_layer(embedding, adj_bias, params["init"])     # (N, INIT_HEADS*INIT_OUT)
    h = gat_layer(x, adj_bias, params["heads"])            # (N, NUM_HEADS*HIDDEN) == cat(head_outputs)
    gat_out = gat_layer(h, adj_bias, params["gat"])        # (N, NUM_HEADS*HIDDEN)
    z = linear(gat_out, params["out_w"], params["out_b"])  # (N, NUM_CLASS)
    return z


if __name__ == "__main__":
    key = jax.random.PRNGKey(0)
    k_param, k_x, k_src, k_dst = jax.random.split(key, 4)

    N_NODES, N_EDGES = 16, 32
    embedding = jax.random.normal(k_x, (N_NODES, IN_DIM), jnp.float32)
    edge_index = jnp.stack(
        [
            jax.random.randint(k_src, (N_EDGES,), 0, N_NODES),
            jax.random.randint(k_dst, (N_EDGES,), 0, N_NODES),
        ],
        axis=0,
    )  # (2, E), int32

    params = init_net_cell_params(k_param)
    adj_bias = build_adj_bias(edge_index, N_NODES)

    cell_prediction = jax.jit(net_cell_forward)(params, embedding, adj_bias)
    cell_prediction = jax.block_until_ready(cell_prediction)
    assert cell_prediction.shape == (N_NODES, NUM_CLASS)
    assert bool(jnp.all(jnp.isfinite(cell_prediction)))
    print("KERNEL_OK")
</pallas_src>

<mosaic_0001>
module attributes {stable_mosaic.version = 11 : i64} {
  func.func @_matmul_kernel_single(%arg0: i32, %arg1: i32, %arg2: i32, %arg3: memref<16x16xf32, #tpu.memory_space<vmem>>, %arg4: memref<16x256xbf16, #tpu.memory_space<vmem>>, %arg5: memref<1x256xf32, #tpu.memory_space<vmem>>, %arg6: memref<16x256xf32, #tpu.memory_space<vmem>>) attributes {dimension_semantics = [#tpu.dimension_semantics<parallel>, #tpu.dimension_semantics<parallel>, #tpu.dimension_semantics<arbitrary>], iteration_bounds = array<i64: 1, 1, 1>, scalar_prefetch = 0 : i64, scratch_operands = 0 : i64, tpu.core_type = #tpu.core_type<tc>, window_params = [{transform_indices = @transform_0, window_bounds = array<i64: 16, 16>}, {transform_indices = @transform_1, window_bounds = array<i64: 16, 256>}, {transform_indices = @transform_2, window_bounds = array<i64: 1, 256>}, {transform_indices = @transform_3, window_bounds = array<i64: 16, 256>}]} {
    %c0 = arith.constant 0 : index
    %c0_0 = arith.constant 0 : index
    %0 = vector.load %arg3[%c0, %c0_0] : memref<16x16xf32, #tpu.memory_space<vmem>>, vector<16x16xf32>
    %1 = arith.truncf %0 : vector<16x16xf32> to vector<16x16xbf16>
    %c0_1 = arith.constant 0 : index
    %c0_2 = arith.constant 0 : index
    %2 = vector.load %arg4[%c0_1, %c0_2] : memref<16x256xbf16, #tpu.memory_space<vmem>>, vector<16x256xbf16>
    %cst = arith.constant dense<0.000000e+00> : vector<16x256xf32>
    %3 = tpu.matmul %1, %2, %cst {dimension_numbers = #tpu.dot_dimension_numbers<[1], [0], [0], [1], [0, 0, 1, 1], [], []>} : vector<16x16xbf16>, vector<16x256xbf16>, vector<16x256xf32> -> vector<16x256xf32>
    %c0_3 = arith.constant 0 : index
    %c0_4 = arith.constant 0 : index
    %4 = vector.load %arg5[%c0_3, %c0_4] : memref<1x256xf32, #tpu.memory_space<vmem>>, vector<1x256xf32>
    %5 = vector.broadcast %4 : vector<1x256xf32> to vector<16x256xf32>
    %6 = arith.addf %3, %5 : vector<16x256xf32>
    %c0_5 = arith.constant 0 : index
    %c0_6 = arith.constant 0 : index
    %7 = vector.load %arg6[%c0_5, %c0_6] : memref<16x256xf32, #tpu.memory_space<vmem>>, vector<16x256xf32>
    tpu.vector_store %arg6[%c0_5, %c0_6], %6 {strides = array<i32>} : memref<16x256xf32, #tpu.memory_space<vmem>>, vector<16x256xf32>,
    return
  }
  func.func @transform_0(%arg0: i32, %arg1: i32, %arg2: i32) -> (i32, i32) {
    %c0_i32 = arith.constant 0 : i32
    return %arg0, %arg2 : i32, i32
  }
  func.func @transform_1(%arg0: i32, %arg1: i32, %arg2: i32) -> (i32, i32) {
    %c0_i32 = arith.constant 0 : i32
    return %arg2, %arg1 : i32, i32
  }
  func.func @transform_2(%arg0: i32, %arg1: i32, %arg2: i32) -> (i32, i32) {
    %c0_i32 = arith.constant 0 : i32
    %c0_i32_0 = arith.constant 0 : i32
    return %c0_i32, %arg1 : i32, i32
  }
  func.func @transform_3(%arg0: i32, %arg1: i32, %arg2: i32) -> (i32, i32) {
    %c0_i32 = arith.constant 0 : i32
    return %arg0, %arg1 : i32, i32
  }
}

module attributes {stable_mosaic.version = 11 : i64} {
  func.func @_matmul_kernel_single(%arg0: i32, %arg1: i32, %arg2: i32, %arg3: memref<16x64xf32, #tpu.memory_space<vmem>>, %arg4: memref<64x32xbf16, #tpu.memory_space<vmem>>, %arg5: memref<1x32xf32, #tpu.memory_space<vmem>>, %arg6: memref<16x32xf32, #tpu.memory_space<vmem>>) attributes {dimension_semantics = [#tpu.dimension_semantics<parallel>, #tpu.dimension_semantics<parallel>, #tpu.dimension_semantics<arbitrary>], iteration_bounds = array<i64: 1, 1, 1>, scalar_prefetch = 0 : i64, scratch_operands = 0 : i64, tpu.core_type = #tpu.core_type<tc>, window_params = [{transform_indices = @transform_0, window_bounds = array<i64: 16, 64>}, {transform_indices = @transform_1, window_bounds = array<i64: 64, 32>}, {transform_indices = @transform_2, window_bounds = array<i64: 1, 32>}, {transform_indices = @transform_3, window_bounds = array<i64: 16, 32>}]} {
    %c0 = arith.constant 0 : index
    %c0_0 = arith.constant 0 : index
    %0 = vector.load %arg3[%c0, %c0_0] : memref<16x64xf32, #tpu.memory_space<vmem>>, vector<16x64xf32>
    %1 = arith.truncf %0 : vector<16x64xf32> to vector<16x64xbf16>
    %c0_1 = arith.constant 0 : index
    %c0_2 = arith.constant 0 : index
    %2 = vector.load %arg4[%c0_1, %c0_2] : memref<64x32xbf16, #tpu.memory_space<vmem>>, vector<64x32xbf16>
    %cst = arith.constant dense<0.000000e+00> : vector<16x32xf32>
    %3 = tpu.matmul %1, %2, %cst {dimension_numbers = #tpu.dot_dimension_numbers<[1], [0], [0], [1], [0, 0, 1, 1], [], []>} : vector<16x64xbf16>, vector<64x32xbf16>, vector<16x32xf32> -> vector<16x32xf32>
    %c0_3 = arith.constant 0 : index
    %c0_4 = arith.constant 0 : index
    %4 = vector.load %arg5[%c0_3, %c0_4] : memref<1x32xf32, #tpu.memory_space<vmem>>, vector<1x32xf32>
    %5 = vector.broadcast %4 : vector<1x32xf32> to vector<16x32xf32>
    %6 = arith.addf %3, %5 : vector<16x32xf32>
    %c0_5 = arith.constant 0 : index
    %c0_6 = arith.constant 0 : index
    %7 = vector.load %arg6[%c0_5, %c0_6] : memref<16x32xf32, #tpu.memory_space<vmem>>, vector<16x32xf32>
    tpu.vector_store %arg6[%c0_5, %c0_6], %6 {strides = array<i32>} : memref<16x32xf32, #tpu.memory_space<vmem>>, vector<16x32xf32>,
    return
  }
  func.func @transform_0(%arg0: i32, %arg1: i32, %arg2: i32) -> (i32, i32) {
    %c0_i32 = arith.constant 0 : i32
    return %arg0, %arg2 : i32, i32
  }
  func.func @transform_1(%arg0: i32, %arg1: i32, %arg2: i32) -> (i32, i32) {
    %c0_i32 = arith.constant 0 : i32
    return %arg2, %arg1 : i32, i32
  }
  func.func @transform_2(%arg0: i32, %arg1: i32, %arg2: i32) -> (i32, i32) {
    %c0_i32 = arith.constant 0 : i32
    %c0_i32_0 = arith.constant 0 : i32
    return %c0_i32, %arg1 : i32, i32
  }
  func.func @transform_3(%arg0: i32, %arg1: i32, %arg2: i32) -> (i32, i32) {
    %c0_i32 = arith.constant 0 : i32
    return %arg0, %arg1 : i32, i32
  }
}

module attributes {stable_mosaic.version = 11 : i64} {
  func.func @_gatv2_attn_kernel(%arg0: i32, %arg1: i32, %arg2: memref<16x32xf32, #tpu.memory_space<vmem>>, %arg3: memref<16x32xf32, #tpu.memory_space<vmem>>, %arg4: memref<2x1x8xf32, #tpu.memory_space<vmem>>, %arg5: memref<2x1x8xf32, #tpu.memory_space<vmem>>, %arg6: memref<16x16xbf16, #tpu.memory_space<vmem>>, %arg7: memref<16x16xf32, #tpu.memory_space<vmem>>, %arg8: memref<2x16x1xf32, #tpu.memory_space<vmem>>, %arg9: memref<2x16x1xf32, #tpu.memory_space<vmem>>, %arg10: memref<2x16x8xf32, #tpu.memory_space<vmem>>) attributes {dimension_semantics = [#tpu.dimension_semantics<parallel>, #tpu.dimension_semantics<arbitrary>], iteration_bounds = array<i64: 1, 1>, scalar_prefetch = 0 : i64, scratch_operands = 3 : i64, tpu.core_type = #tpu.core_type<tc>, window_params = [{transform_indices = @transform_0, window_bounds = array<i64: 16, 32>}, {transform_indices = @transform_1, window_bounds = array<i64: 16, 32>}, {pipeline_mode = #tpu.pipeline_mode<synchronous>, transform_indices = @transform_2, window_bounds = array<i64: 2, 1, 8>}, {pipeline_mode = #tpu.pipeline_mode<synchronous>, transform_indices = @transform_3, window_bounds = array<i64: 2, 1, 8>}, {transform_indices = @transform_4, window_bounds = array<i64: 16, 16>}, {transform_indices = @transform_5, window_bounds = array<i64: 16, 16>}]} {
    %c0_i32 = arith.constant 0 : i32
    %0 = arith.cmpi eq, %arg1, %c0_i32 : i32
    %1 = arith.extui %0 : i1 to i32
    %c0_i32_0 = arith.constant 0 : i32
    %2 = arith.cmpi ne, %1, %c0_i32_0 : i32
    scf.if %2 {
      %cst_61 = arith.constant -1.000000e+30 : f32
      %110 = vector.broadcast %cst_61 : f32 to vector<2x16x1xf32>
      %c0_62 = arith.constant 0 : index
      %c0_63 = arith.constant 0 : index
      %c0_64 = arith.constant 0 : index
      %111 = vector.load %arg8[%c0_62, %c0_63, %c0_64] : memref<2x16x1xf32, #tpu.memory_space<vmem>>, vector<2x16x1xf32>
      tpu.vector_store %arg8[%c0_62, %c0_63, %c0_64], %110 {strides = array<i32>} : memref<2x16x1xf32, #tpu.memory_space<vmem>>, vector<2x16x1xf32>,
      %cst_65 = arith.constant 0.000000e+00 : f32
      %112 = vector.broadcast %cst_65 : f32 to vector<2x16x1xf32>
      %c0_66 = arith.constant 0 : index
      %c0_67 = arith.constant 0 : index
      %c0_68 = arith.constant 0 : index
      %113 = vector.load %arg9[%c0_66, %c0_67, %c0_68] : memref<2x16x1xf32, #tpu.memory_space<vmem>>, vector<2x16x1xf32>
      tpu.vector_store %arg9[%c0_66, %c0_67, %c0_68], %112 {strides = array<i32>} : memref<2x16x1xf32, #tpu.memory_space<vmem>>, vector<2x16x1xf32>,
      %cst_69 = arith.constant 0.000000e+00 : f32
      %114 = vector.broadcast %cst_69 : f32 to vector<2x16x8xf32>
      %c0_70 = arith.constant 0 : index
      %c0_71 = arith.constant 0 : index
      %c0_72 = arith.constant 0 : index
      %115 = vector.load %arg10[%c0_70, %c0_71, %c0_72] : memref<2x16x8xf32, #tpu.memory_space<vmem>>, vector<2x16x8xf32>
      tpu.vector_store %arg10[%c0_70, %c0_71, %c0_72], %114 {strides = array<i32>} : memref<2x16x8xf32, #tpu.memory_space<vmem>>, vector<2x16x8xf32>,
    } else {
    }
    %c0 = arith.constant 0 : index
    %c0_1 = arith.constant 0 : index
    %3 = vector.load %arg6[%c0, %c0_1] : memref<16x16xbf16, #tpu.memory_space<vmem>>, vector<16x16xbf16>
    %4 = arith.extf %3 : vector<16x16xbf16> to vector<16x16xf32>
    %c0_2 = arith.constant 0 : index
    %c0_3 = arith.constant 0 : index
    %5 = vector.load %arg3[%c0_2, %c0_3] : memref<16x32xf32, #tpu.memory_space<vmem>>, vector<16x16xf32>
    %6 = arith.truncf %5 : vector<16x16xf32> to vector<16x16xbf16>
    %c0_4 = arith.constant 0 : index
    %c0_5 = arith.constant 0 : index
    %7 = vector.load %arg3[%c0_4, %c0_5] : memref<16x32xf32, #tpu.memory_space<vmem>>, vector<16x8xf32>
    %c0_6 = arith.constant 0 : index
    %c16 = arith.constant 16 : index
    %8 = vector.load %arg2[%c0_6, %c16] : memref<16x32xf32, #tpu.memory_space<vmem>>, vector<16x8xf32>
    %c0_7 = arith.constant 0 : index
    %c0_8 = arith.constant 0 : index
    %c0_9 = arith.constant 0 : index
    %9 = vector.load %arg4[%c0_7, %c0_8, %c0_9] : memref<2x1x8xf32, #tpu.memory_space<vmem>>, vector<1x1x8xf32>
    %10 = vector.shape_cast %9 : vector<1x1x8xf32> to vector<1x8xf32>
    %11 = vector.shape_cast %8 : vector<16x8xf32> to vector<16x1x8xf32>
    %12 = vector.shape_cast %7 : vector<16x8xf32> to vector<1x16x8xf32>
    %13 = vector.broadcast %11 : vector<16x1x8xf32> to vector<16x16x8xf32>
    %14 = vector.broadcast %12 : vector<1x16x8xf32> to vector<16x16x8xf32>
    %15 = arith.addf %13, %14 : vector<16x16x8xf32>
    %cst = arith.constant 2.000000e-01 : f32
    %16 = vector.broadcast %cst : f32 to vector<16x16x8xf32>
    %17 = arith.mulf %16, %15 : vector<16x16x8xf32>
    %18 = arith.maximumf %15, %17 : vector<16x16x8xf32>
    %19 = vector.shape_cast %10 : vector<1x8xf32> to vector<1x1x8xf32>
    %20 = vector.broadcast %19 : vector<1x1x8xf32> to vector<16x16x8xf32>
    %21 = arith.mulf %18, %20 : vector<16x16x8xf32>
    %cst_10 = arith.constant dense<0.000000e+00> : vector<16x16xf32>
    %22 = vector.multi_reduction <add>, %21, %cst_10 [2] : vector<16x16x8xf32> to vector<16x16xf32>
    %23 = arith.addf %22, %4 : vector<16x16xf32>
    %c0_11 = arith.constant 0 : index
    %c0_12 = arith.constant 0 : index
    %c0_13 = arith.constant 0 : index
    %24 = vector.load %arg8[%c0_11, %c0_12, %c0_13] : memref<2x16x1xf32, #tpu.memory_space<vmem>>, vector<1x16x1xf32>
    %25 = vector.shape_cast %24 : vector<1x16x1xf32> to vector<16x1xf32>
    %cst_14 = arith.constant dense<0xFF800000> : vector<16xf32>
    %26 = vector.multi_reduction <maximumf>, %23, %cst_14 [1] : vector<16x16xf32> to vector<16xf32>
    %27 = vector.shape_cast %26 : vector<16xf32> to vector<16x1xf32>
    %28 = arith.maximumf %25, %27 : vector<16x1xf32>
    %29 = arith.subf %25, %28 : vector<16x1xf32>
    %30 = math.exp %29 : vector<16x1xf32>
    %31 = vector.broadcast %28 : vector<16x1xf32> to vector<16x16xf32>
    %32 = arith.subf %23, %31 : vector<16x16xf32>
    %33 = math.exp %32 : vector<16x16xf32>
    %c0_15 = arith.constant 0 : index
    %c0_16 = arith.constant 0 : index
    %c0_17 = arith.constant 0 : index
    %34 = vector.load %arg9[%c0_15, %c0_16, %c0_17] : memref<2x16x1xf32, #tpu.memory_space<vmem>>, vector<1x16x1xf32>
    %35 = vector.shape_cast %34 : vector<1x16x1xf32> to vector<16x1xf32>
    %36 = arith.mulf %30, %35 : vector<16x1xf32>
    %cst_18 = arith.constant dense<0.000000e+00> : vector<16xf32>
    %37 = vector.multi_reduction <add>, %33, %cst_18 [1] : vector<16x16xf32> to vector<16xf32>
    %38 = vector.shape_cast %37 : vector<16xf32> to vector<16x1xf32>
    %39 = arith.addf %36, %38 : vector<16x1xf32>
    %c0_19 = arith.constant 0 : index
    %c0_20 = arith.constant 0 : index
    %c0_21 = arith.constant 0 : index
    %40 = vector.load %arg9[%c0_19, %c0_20, %c0_21] : memref<2x16x1xf32, #tpu.memory_space<vmem>>, vector<1x16x1xf32>
    %41 = vector.shape_cast %40 : vector<1x16x1xf32> to vector<16x1xf32>
    %42 = vector.shape_cast %39 : vector<16x1xf32> to vector<1x16x1xf32>
    tpu.vector_store %arg9[%c0_19, %c0_20, %c0_21], %42 {strides = array<i32>} : memref<2x16x1xf32, #tpu.memory_space<vmem>>, vector<1x16x1xf32>,
    %c0_22 = arith.constant 0 : index
    %c0_23 = arith.constant 0 : index
    %c0_24 = arith.constant 0 : index
    %43 = vector.load %arg10[%c0_22, %c0_23, %c0_24] : memref<2x16x8xf32, #tpu.memory_space<vmem>>, vector<1x16x8xf32>
    %44 = vector.shape_cast %43 : vector<1x16x8xf32> to vector<16x8xf32>
    %45 = vector.broadcast %30 : vector<16x1xf32> to vector<16x8xf32>
    %46 = arith.mulf %45, %44 : vector<16x8xf32>
    %47 = arith.truncf %33 : vector<16x16xf32> to vector<16x16xbf16>
    %48 = vector.extract_strided_slice %6 {offsets = [0, 0], sizes = [16, 8], strides = [1, 1]} : vector<16x16xbf16> to vector<16x8xbf16>
    %cst_25 = arith.constant dense<0.000000e+00> : vector<16x8xf32>
    %49 = tpu.matmul %47, %48, %cst_25 {dimension_numbers = #tpu.dot_dimension_numbers<[1], [0], [0], [1], [0, 0, 1, 1], [], []>} : vector<16x16xbf16>, vector<16x8xbf16>, vector<16x8xf32> -> vector<16x8xf32>
    %50 = arith.addf %46, %49 : vector<16x8xf32>
    %c0_26 = arith.constant 0 : index
    %c0_27 = arith.constant 0 : index
    %c0_28 = arith.constant 0 : index
    %51 = vector.load %arg10[%c0_26, %c0_27, %c0_28] : memref<2x16x8xf32, #tpu.memory_space<vmem>>, vector<1x16x8xf32>
    %52 = vector.shape_cast %51 : vector<1x16x8xf32> to vector<16x8xf32>
    %53 = vector.shape_cast %50 : vector<16x8xf32> to vector<1x16x8xf32>
    tpu.vector_store %arg10[%c0_26, %c0_27, %c0_28], %53 {strides = array<i32>} : memref<2x16x8xf32, #tpu.memory_space<vmem>>, vector<1x16x8xf32>,
    %c0_29 = arith.constant 0 : index
    %c0_30 = arith.constant 0 : index
    %c0_31 = arith.constant 0 : index
    %54 = vector.load %arg8[%c0_29, %c0_30, %c0_31] : memref<2x16x1xf32, #tpu.memory_space<vmem>>, vector<1x16x1xf32>
    %55 = vector.shape_cast %54 : vector<1x16x1xf32> to vector<16x1xf32>
    %56 = vector.shape_cast %28 : vector<16x1xf32> to vector<1x16x1xf32>
    tpu.vector_store %arg8[%c0_29, %c0_30, %c0_31], %56 {strides = array<i32>} : memref<2x16x1xf32, #tpu.memory_space<vmem>>, vector<1x16x1xf32>,
    %c0_32 = arith.constant 0 : index
    %c8 = arith.constant 8 : index
    %57 = vector.load %arg3[%c0_32, %c8] : memref<16x32xf32, #tpu.memory_space<vmem>>, vector<16x8xf32>
    %c0_33 = arith.constant 0 : index
    %c24 = arith.constant 24 : index
    %58 = vector.load %arg2[%c0_33, %c24] : memref<16x32xf32, #tpu.memory_space<vmem>>, vector<16x8xf32>
    %c1 = arith.constant 1 : index
    %c0_34 = arith.constant 0 : index
    %c0_35 = arith.constant 0 : index
    %59 = vector.load %arg4[%c1, %c0_34, %c0_35] : memref<2x1x8xf32, #tpu.memory_space<vmem>>, vector<1x1x8xf32>
    %60 = vector.shape_cast %59 : vector<1x1x8xf32> to vector<1x8xf32>
    %61 = vector.shape_cast %58 : vector<16x8xf32> to vector<16x1x8xf32>
    %62 = vector.shape_cast %57 : vector<16x8xf32> to vector<1x16x8xf32>
    %63 = vector.broadcast %61 : vector<16x1x8xf32> to vector<16x16x8xf32>
    %64 = vector.broadcast %62 : vector<1x16x8xf32> to vector<16x16x8xf32>
    %65 = arith.addf %63, %64 : vector<16x16x8xf32>
    %cst_36 = arith.constant 2.000000e-01 : f32
    %66 = vector.broadcast %cst_36 : f32 to vector<16x16x8xf32>
    %67 = arith.mulf %66, %65 : vector<16x16x8xf32>
    %68 = arith.maximumf %65, %67 : vector<16x16x8xf32>
    %69 = vector.shape_cast %60 : vector<1x8xf32> to vector<1x1x8xf32>
    %70 = vector.broadcast %69 : vector<1x1x8xf32> to vector<16x16x8xf32>
    %71 = arith.mulf %68, %70 : vector<16x16x8xf32>
    %cst_37 = arith.constant dense<0.000000e+00> : vector<16x16xf32>
    %72 = vector.multi_reduction <add>, %71, %cst_37 [2] : vector<16x16x8xf32> to vector<16x16xf32>
    %73 = arith.addf %72, %4 : vector<16x16xf32>
    %c1_38 = arith.constant 1 : index
    %c0_39 = arith.constant 0 : index
    %c0_40 = arith.constant 0 : index
    %74 = vector.load %arg8[%c1_38, %c0_39, %c0_40] : memref<2x16x1xf32, #tpu.memory_space<vmem>>, vector<1x16x1xf32>
    %75 = vector.shape_cast %74 : vector<1x16x1xf32> to vector<16x1xf32>
    %cst_41 = arith.constant dense<0xFF800000> : vector<16xf32>
    %76 = vector.multi_reduction <maximumf>, %73, %cst_41 [1] : vector<16x16xf32> to vector<16xf32>
    %77 = vector.shape_cast %76 : vector<16xf32> to vector<16x1xf32>
    %78 = arith.maximumf %75, %77 : vector<16x1xf32>
    %79 = arith.subf %75, %78 : vector<16x1xf32>
    %80 = math.exp %79 : vector<16x1xf32>
    %81 = vector.broadcast %78 : vector<16x1xf32> to vector<16x16xf32>
    %82 = arith.subf %73, %81 : vector<16x16xf32>
    %83 = math.exp %82 : vector<16x16xf32>
    %c1_42 = arith.constant 1 : index
    %c0_43 = arith.constant 0 : index
    %c0_44 = arith.constant 0 : index
    %84 = vector.load %arg9[%c1_42, %c0_43, %c0_44] : memref<2x16x1xf32, #tpu.memory_space<vmem>>, vector<1x16x1xf32>
    %85 = vector.shape_cast %84 : vector<1x16x1xf32> to vector<16x1xf32>
    %86 = arith.mulf %80, %85 : vector<16x1xf32>
    %cst_45 = arith.constant dense<0.000000e+00> : vector<16xf32>
    %87 = vector.multi_reduction <add>, %83, %cst_45 [1] : vector<16x16xf32> to vector<16xf32>
    %88 = vector.shape_cast %87 : vector<16xf32> to vector<16x1xf32>
    %89 = arith.addf %86, %88 : vector<16x1xf32>
    %c1_46 = arith.constant 1 : index
    %c0_47 = arith.constant 0 : index
    %c0_48 = arith.constant 0 : index
    %90 = vector.load %arg9[%c1_46, %c0_47, %c0_48] : memref<2x16x1xf32, #tpu.memory_space<vmem>>, vector<1x16x1xf32>
    %91 = vector.shape_cast %90 : vector<1x16x1xf32> to vector<16x1xf32>
    %92 = vector.shape_cast %89 : vector<16x1xf32> to vector<1x16x1xf32>
    tpu.vector_store %arg9[%c1_46, %c0_47, %c0_48], %92 {strides = array<i32>} : memref<2x16x1xf32, #tpu.memory_space<vmem>>, vector<1x16x1xf32>,
    %c1_49 = arith.constant 1 : index
    %c0_50 = arith.constant 0 : index
    %c0_51 = arith.constant 0 : index
    %93 = vector.load %arg10[%c1_49, %c0_50, %c0_51] : memref<2x16x8xf32, #tpu.memory_space<vmem>>, vector<1x16x8xf32>
    %94 = vector.shape_cast %93 : vector<1x16x8xf32> to vector<16x8xf32>
    %95 = vector.broadcast %80 : vector<16x1xf32> to vector<16x8xf32>
    %96 = arith.mulf %95, %94 : vector<16x8xf32>
    %97 = arith.truncf %83 : vector<16x16xf32> to vector<16x16xbf16>
    %98 = vector.extract_strided_slice %6 {offsets = [0, 8], sizes = [16, 8], strides = [1, 1]} : vector<16x16xbf16> to vector<16x8xbf16>
    %cst_52 = arith.constant dense<0.000000e+00> : vector<16x8xf32>
    %99 = tpu.matmul %97, %98, %cst_52 {dimension_numbers = #tpu.dot_dimension_numbers<[1], [0], [0], [1], [0, 0, 1, 1], [], []>} : vector<16x16xbf16>, vector<16x8xbf16>, vector<16x8xf32> -> vector<16x8xf32>
    %100 = arith.addf %96, %99 : vector<16x8xf32>
    %c1_53 = arith.constant 1 : index
    %c0_54 = arith.constant 0 : index
    %c0_55 = arith.constant 0 : index
    %101 = vector.load %arg10[%c1_53, %c0_54, %c0_55] : memref<2x16x8xf32, #tpu.memory_space<vmem>>, vector<1x16x8xf32>
    %102 = vector.shape_cast %101 : vector<1x16x8xf32> to vector<16x8xf32>
    %103 = vector.shape_cast %100 : vector<16x8xf32> to vector<1x16x8xf32>
    tpu.vector_store %arg10[%c1_53, %c0_54, %c0_55], %103 {strides = array<i32>} : memref<2x16x8xf32, #tpu.memory_space<vmem>>, vector<1x16x8xf32>,
    %c1_56 = arith.constant 1 : index
    %c0_57 = arith.constant 0 : index
    %c0_58 = arith.constant 0 : index
    %104 = vector.load %arg8[%c1_56, %c0_57, %c0_58] : memref<2x16x1xf32, #tpu.memory_space<vmem>>, vector<1x16x1xf32>
    %105 = vector.shape_cast %104 : vector<1x16x1xf32> to vector<16x1xf32>
    %106 = vector.shape_cast %78 : vector<16x1xf32> to vector<1x16x1xf32>
    tpu.vector_store %arg8[%c1_56, %c0_57, %c0_58], %106 {strides = array<i32>} : memref<2x16x1xf32, #tpu.memory_space<vmem>>, vector<1x16x1xf32>,
    %c0_i32_59 = arith.constant 0 : i32
    %107 = arith.cmpi eq, %arg1, %c0_i32_59 : i32
    %108 = arith.extui %107 : i1 to i32
    %c0_i32_60 = arith.constant 0 : i32
    %109 = arith.cmpi ne, %108, %c0_i32_60 : i32
    scf.if %109 {
      %c0_61 = arith.constant 0 : index
      %c0_62 = arith.constant 0 : index
      %c0_63 = arith.constant 0 : index
      %110 = vector.load %arg9[%c0_61, %c0_62, %c0_63] : memref<2x16x1xf32, #tpu.memory_space<vmem>>, vector<1x16x1xf32>
      %111 = vector.shape_cast %110 : vector<1x16x1xf32> to vector<16x1xf32>
      %112 = tpu.reciprocal %111 {approx = true} : vector<16x1xf32> -> vector<16x1xf32>
      %c0_64 = arith.constant 0 : index
      %c0_65 = arith.constant 0 : index
      %c0_66 = arith.constant 0 : index
      %113 = vector.load %arg10[%c0_64, %c0_65, %c0_66] : memref<2x16x8xf32, #tpu.memory_space<vmem>>, vector<1x16x8xf32>
      %114 = vector.shape_cast %113 : vector<1x16x8xf32> to vector<16x8xf32>
      %115 = vector.broadcast %112 : vector<16x1xf32> to vector<16x8xf32>
      %116 = arith.mulf %114, %115 : vector<16x8xf32>
      %c0_67 = arith.constant 0 : index
      %c0_68 = arith.constant 0 : index
      %c0_69 = arith.constant 0 : index
      %117 = vector.load %arg5[%c0_67, %c0_68, %c0_69] : memref<2x1x8xf32, #tpu.memory_space<vmem>>, vector<1x1x8xf32>
      %118 = vector.shape_cast %117 : vector<1x1x8xf32> to vector<1x8xf32>
      %119 = vector.broadcast %118 : vector<1x8xf32> to vector<16x8xf32>
      %120 = arith.addf %116, %119 : vector<16x8xf32>
      %c0_70 = arith.constant 0 : index
      %c0_71 = arith.constant 0 : index
      %121 = vector.load %arg7[%c0_70, %c0_71] : memref<16x16xf32, #tpu.memory_space<vmem>>, vector<16x8xf32>
      tpu.vector_store %arg7[%c0_70, %c0_71], %120 {strides = array<i32>} : memref<16x16xf32, #tpu.memory_space<vmem>>, vector<16x8xf32>,
      %c1_72 = arith.constant 1 : index
      %c0_73 = arith.constant 0 : index
      %c0_74 = arith.constant 0 : index
      %122 = vector.load %arg9[%c1_72, %c0_73, %c0_74] : memref<2x16x1xf32, #tpu.memory_space<vmem>>, vector<1x16x1xf32>
      %123 = vector.shape_cast %122 : vector<1x16x1xf32> to vector<16x1xf32>
      %124 = tpu.reciprocal %123 {approx = true} : vector<16x1xf32> -> vector<16x1xf32>
      %c1_75 = arith.constant 1 : index
      %c0_76 = arith.constant 0 : index
      %c0_77 = arith.constant 0 : index
      %125 = vector.load %arg10[%c1_75, %c0_76, %c0_77] : memref<2x16x8xf32, #tpu.memory_space<vmem>>, vector<1x16x8xf32>
      %126 = vector.shape_cast %125 : vector<1x16x8xf32> to vector<16x8xf32>
      %127 = vector.broadcast %124 : vector<16x1xf32> to vector<16x8xf32>
      %128 = arith.mulf %126, %127 : vector<16x8xf32>
      %c1_78 = arith.constant 1 : index
      %c0_79 = arith.constant 0 : index
      %c0_80 = arith.constant 0 : index
      %129 = vector.load %arg5[%c1_78, %c0_79, %c0_80] : memref<2x1x8xf32, #tpu.memory_space<vmem>>, vector<1x1x8xf32>
      %130 = vector.shape_cast %129 : vector<1x1x8xf32> to vector<1x8xf32>
      %131 = vector.broadcast %130 : vector<1x8xf32> to vector<16x8xf32>
      %132 = arith.addf %128, %131 : vector<16x8xf32>
      %c0_81 = arith.constant 0 : index
      %c8_82 = arith.constant 8 : index
      %133 = vector.load %arg7[%c0_81, %c8_82] : memref<16x16xf32, #tpu.memory_space<vmem>>, vector<16x8xf32>
      tpu.vector_store %arg7[%c0_81, %c8_82], %132 {strides = array<i32>} : memref<16x16xf32, #tpu.memory_space<vmem>>, vector<16x8xf32>,
    } else {
    }
    return
  }
  func.func @transform_0(%arg0: i32, %arg1: i32) -> (i32, i32) {
    %c0_i32 = arith.constant 0 : i32
    %c0_i32_0 = arith.constant 0 : i32
    return %arg0, %c0_i32 : i32, i32
  }
  func.func @transform_1(%arg0: i32, %arg1: i32) -> (i32, i32) {
    %c0_i32 = arith.constant 0 : i32
    %c0_i32_0 = arith.constant 0 : i32
    return %arg1, %c0_i32 : i32, i32
  }
  func.func @transform_2(%arg0: i32, %arg1: i32) -> (i32, i32, i32) {
    %c0_i32 = arith.constant 0 : i32
    %c0_i32_0 = arith.constant 0 : i32
    %c0_i32_1 = arith.constant 0 : i32
    %c0_i32_2 = arith.constant 0 : i32
    return %c0_i32, %c0_i32_0, %c0_i32_1 : i32, i32, i32
  }
  func.func @transform_3(%arg0: i32, %arg1: i32) -> (i32, i32, i32) {
    %c0_i32 = arith.constant 0 : i32
    %c0_i32_0 = arith.constant 0 : i32
    %c0_i32_1 = arith.constant 0 : i32
    %c0_i32_2 = arith.constant 0 : i32
    return %c0_i32, %c0_i32_0, %c0_i32_1 : i32, i32, i32
  }
  func.func @transform_4(%arg0: i32, %arg1: i32) -> (i32, i32) {
    %c0_i32 = arith.constant 0 : i32
    return %arg0, %arg1 : i32, i32
  }
  func.func @transform_5(%arg0: i32, %arg1: i32) -> (i32, i32) {
    %c0_i32 = arith.constant 0 : i32
    %c0_i32_0 = arith.constant 0 : i32
    return %arg0, %c0_i32 : i32, i32
  }
}

module attributes {stable_mosaic.version = 11 : i64} {
  func.func @_gatv2_attn_kernel(%arg0: i32, %arg1: i32, %arg2: memref<16x256xf32, #tpu.memory_space<vmem>>, %arg3: memref<16x256xf32, #tpu.memory_space<vmem>>, %arg4: memref<4x1x32xf32, #tpu.memory_space<vmem>>, %arg5: memref<4x1x32xf32, #tpu.memory_space<vmem>>, %arg6: memref<16x16xbf16, #tpu.memory_space<vmem>>, %arg7: memref<16x128xf32, #tpu.memory_space<vmem>>, %arg8: memref<4x16x1xf32, #tpu.memory_space<vmem>>, %arg9: memref<4x16x1xf32, #tpu.memory_space<vmem>>, %arg10: memref<4x16x32xf32, #tpu.memory_space<vmem>>) attributes {dimension_semantics = [#tpu.dimension_semantics<parallel>, #tpu.dimension_semantics<arbitrary>], iteration_bounds = array<i64: 1, 1>, scalar_prefetch = 0 : i64, scratch_operands = 3 : i64, tpu.core_type = #tpu.core_type<tc>, window_params = [{transform_indices = @transform_0, window_bounds = array<i64: 16, 256>}, {transform_indices = @transform_1, window_bounds = array<i64: 16, 256>}, {pipeline_mode = #tpu.pipeline_mode<synchronous>, transform_indices = @transform_2, window_bounds = array<i64: 4, 1, 32>}, {pipeline_mode = #tpu.pipeline_mode<synchronous>, transform_indices = @transform_3, window_bounds = array<i64: 4, 1, 32>}, {transform_indices = @transform_4, window_bounds = array<i64: 16, 16>}, {transform_indices = @transform_5, window_bounds = array<i64: 16, 128>}]} {
    %c0_i32 = arith.constant 0 : i32
    %0 = arith.cmpi eq, %arg1, %c0_i32 : i32
    %1 = arith.extui %0 : i1 to i32
    %c0_i32_0 = arith.constant 0 : i32
    %2 = arith.cmpi ne, %1, %c0_i32_0 : i32
    scf.if %2 {
      %cst_115 = arith.constant -1.000000e+30 : f32
      %210 = vector.broadcast %cst_115 : f32 to vector<4x16x1xf32>
      %c0_116 = arith.constant 0 : index
      %c0_117 = arith.constant 0 : index
      %c0_118 = arith.constant 0 : index
      %211 = vector.load %arg8[%c0_116, %c0_117, %c0_118] : memref<4x16x1xf32, #tpu.memory_space<vmem>>, vector<4x16x1xf32>
      tpu.vector_store %arg8[%c0_116, %c0_117, %c0_118], %210 {strides = array<i32>} : memref<4x16x1xf32, #tpu.memory_space<vmem>>, vector<4x16x1xf32>,
      %cst_119 = arith.constant 0.000000e+00 : f32
      %212 = vector.broadcast %cst_119 : f32 to vector<4x16x1xf32>
      %c0_120 = arith.constant 0 : index
      %c0_121 = arith.constant 0 : index
      %c0_122 = arith.constant 0 : index
      %213 = vector.load %arg9[%c0_120, %c0_121, %c0_122] : memref<4x16x1xf32, #tpu.memory_space<vmem>>, vector<4x16x1xf32>
      tpu.vector_store %arg9[%c0_120, %c0_121, %c0_122], %212 {strides = array<i32>} : memref<4x16x1xf32, #tpu.memory_space<vmem>>, vector<4x16x1xf32>,
      %cst_123 = arith.constant 0.000000e+00 : f32
      %214 = vector.broadcast %cst_123 : f32 to vector<4x16x32xf32>
      %c0_124 = arith.constant 0 : index
      %c0_125 = arith.constant 0 : index
      %c0_126 = arith.constant 0 : index
      %215 = vector.load %arg10[%c0_124, %c0_125, %c0_126] : memref<4x16x32xf32, #tpu.memory_space<vmem>>, vector<4x16x32xf32>
      tpu.vector_store %arg10[%c0_124, %c0_125, %c0_126], %214 {strides = array<i32>} : memref<4x16x32xf32, #tpu.memory_space<vmem>>, vector<4x16x32xf32>,
    } else {
    }
    %c0 = arith.constant 0 : index
    %c0_1 = arith.constant 0 : index
    %3 = vector.load %arg6[%c0, %c0_1] : memref<16x16xbf16, #tpu.memory_space<vmem>>, vector<16x16xbf16>
    %4 = arith.extf %3 : vector<16x16xbf16> to vector<16x16xf32>
    %c0_2 = arith.constant 0 : index
    %c0_3 = arith.constant 0 : index
    %5 = vector.load %arg3[%c0_2, %c0_3] : memref<16x256xf32, #tpu.memory_space<vmem>>, vector<16x128xf32>
    %6 = arith.truncf %5 : vector<16x128xf32> to vector<16x128xbf16>
    %c0_4 = arith.constant 0 : index
    %c0_5 = arith.constant 0 : index
    %7 = vector.load %arg3[%c0_4, %c0_5] : memref<16x256xf32, #tpu.memory_space<vmem>>, vector<16x32xf32>
    %c0_6 = arith.constant 0 : index
    %c128 = arith.constant 128 : index
    %8 = vector.load %arg2[%c0_6, %c128] : memref<16x256xf32, #tpu.memory_space<vmem>>, vector<16x32xf32>
    %c0_7 = arith.constant 0 : index
    %c0_8 = arith.constant 0 : index
    %c0_9 = arith.constant 0 : index
    %9 = vector.load %arg4[%c0_7, %c0_8, %c0_9] : memref<4x1x32xf32, #tpu.memory_space<vmem>>, vector<1x1x32xf32>
    %10 = vector.shape_cast %9 : vector<1x1x32xf32> to vector<1x32xf32>
    %11 = vector.shape_cast %8 : vector<16x32xf32> to vector<16x1x32xf32>
    %12 = vector.shape_cast %7 : vector<16x32xf32> to vector<1x16x32xf32>
    %13 = vector.broadcast %11 : vector<16x1x32xf32> to vector<16x16x32xf32>
    %14 = vector.broadcast %12 : vector<1x16x32xf32> to vector<16x16x32xf32>
    %15 = arith.addf %13, %14 : vector<16x16x32xf32>
    %cst = arith.constant 2.000000e-01 : f32
    %16 = vector.broadcast %cst : f32 to vector<16x16x32xf32>
    %17 = arith.mulf %16, %15 : vector<16x16x32xf32>
    %18 = arith.maximumf %15, %17 : vector<16x16x32xf32>
    %19 = vector.shape_cast %10 : vector<1x32xf32> to vector<1x1x32xf32>
    %20 = vector.broadcast %19 : vector<1x1x32xf32> to vector<16x16x32xf32>
    %21 = arith.mulf %18, %20 : vector<16x16x32xf32>
    %cst_10 = arith.constant dense<0.000000e+00> : vector<16x16xf32>
    %22 = vector.multi_reduction <add>, %21, %cst_10 [2] : vector<16x16x32xf32> to vector<16x16xf32>
    %23 = arith.addf %22, %4 : vector<16x16xf32>
    %c0_11 = arith.constant 0 : index
    %c0_12 = arith.constant 0 : index
    %c0_13 = arith.constant 0 : index
    %24 = vector.load %arg8[%c0_11, %c0_12, %c0_13] : memref<4x16x1xf32, #tpu.memory_space<vmem>>, vector<1x16x1xf32>
    %25 = vector.shape_cast %24 : vector<1x16x1xf32> to vector<16x1xf32>
    %cst_14 = arith.constant dense<0xFF800000> : vector<16xf32>
    %26 = vector.multi_reduction <maximumf>, %23, %cst_14 [1] : vector<16x16xf32> to vector<16xf32>
    %27 = vector.shape_cast %26 : vector<16xf32> to vector<16x1xf32>
    %28 = arith.maximumf %25, %27 : vector<16x1xf32>
    %29 = arith.subf %25, %28 : vector<16x1xf32>
    %30 = math.exp %29 : vector<16x1xf32>
    %31 = vector.broadcast %28 : vector<16x1xf32> to vector<16x16xf32>
    %32 = arith.subf %23, %31 : vector<16x16xf32>
    %33 = math.exp %32 : vector<16x16xf32>
    %c0_15 = arith.constant 0 : index
    %c0_16 = arith.constant 0 : index
    %c0_17 = arith.constant 0 : index
    %34 = vector.load %arg9[%c0_15, %c0_16, %c0_17] : memref<4x16x1xf32, #tpu.memory_space<vmem>>, vector<1x16x1xf32>
    %35 = vector.shape_cast %34 : vector<1x16x1xf32> to vector<16x1xf32>
    %36 = arith.mulf %30, %35 : vector<16x1xf32>
    %cst_18 = arith.constant dense<0.000000e+00> : vector<16xf32>
    %37 = vector.multi_reduction <add>, %33, %cst_18 [1] : vector<16x16xf32> to vector<16xf32>
    %38 = vector.shape_cast %37 : vector<16xf32> to vector<16x1xf32>
    %39 = arith.addf %36, %38 : vector<16x1xf32>
    %c0_19 = arith.constant 0 : index
    %c0_20 = arith.constant 0 : index
    %c0_21 = arith.constant 0 : index
    %40 = vector.load %arg9[%c0_19, %c0_20, %c0_21] : memref<4x16x1xf32, #tpu.memory_space<vmem>>, vector<1x16x1xf32>
    %41 = vector.shape_cast %40 : vector<1x16x1xf32> to vector<16x1xf32>
    %42 = vector.shape_cast %39 : vector<16x1xf32> to vector<1x16x1xf32>
    tpu.vector_store %arg9[%c0_19, %c0_20, %c0_21], %42 {strides = array<i32>} : memref<4x16x1xf32, #tpu.memory_space<vmem>>, vector<1x16x1xf32>,
    %c0_22 = arith.constant 0 : index
    %c0_23 = arith.constant 0 : index
    %c0_24 = arith.constant 0 : index
    %43 = vector.load %arg10[%c0_22, %c0_23, %c0_24] : memref<4x16x32xf32, #tpu.memory_space<vmem>>, vector<1x16x32xf32>
    %44 = vector.shape_cast %43 : vector<1x16x32xf32> to vector<16x32xf32>
    %45 = vector.broadcast %30 : vector<16x1xf32> to vector<16x32xf32>
    %46 = arith.mulf %45, %44 : vector<16x32xf32>
    %47 = arith.truncf %33 : vector<16x16xf32> to vector<16x16xbf16>
    %48 = vector.extract_strided_slice %6 {offsets = [0, 0], sizes = [16, 32], strides = [1, 1]} : vector<16x128xbf16> to vector<16x32xbf16>
    %cst_25 = arith.constant dense<0.000000e+00> : vector<16x32xf32>
    %49 = tpu.matmul %47, %48, %cst_25 {dimension_numbers = #tpu.dot_dimension_numbers<[1], [0], [0], [1], [0, 0, 1, 1], [], []>} : vector<16x16xbf16>, vector<16x32xbf16>, vector<16x32xf32> -> vector<16x32xf32>
    %50 = arith.addf %46, %49 : vector<16x32xf32>
    %c0_26 = arith.constant 0 : index
    %c0_27 = arith.constant 0 : index
    %c0_28 = arith.constant 0 : index
    %51 = vector.load %arg10[%c0_26, %c0_27, %c0_28] : memref<4x16x32xf32, #tpu.memory_space<vmem>>, vector<1x16x32xf32>
    %52 = vector.shape_cast %51 : vector<1x16x32xf32> to vector<16x32xf32>
    %53 = vector.shape_cast %50 : vector<16x32xf32> to vector<1x16x32xf32>
    tpu.vector_store %arg10[%c0_26, %c0_27, %c0_28], %53 {strides = array<i32>} : memref<4x16x32xf32, #tpu.memory_space<vmem>>, vector<1x16x32xf32>,
    %c0_29 = arith.constant 0 : index
    %c0_30 = arith.constant 0 : index
    %c0_31 = arith.constant 0 : index
    %54 = vector.load %arg8[%c0_29, %c0_30, %c0_31] : memref<4x16x1xf32, #tpu.memory_space<vmem>>, vector<1x16x1xf32>
    %55 = vector.shape_cast %54 : vector<1x16x1xf32> to vector<16x1xf32>
    %56 = vector.shape_cast %28 : vector<16x1xf32> to vector<1x16x1xf32>
    tpu.vector_store %arg8[%c0_29, %c0_30, %c0_31], %56 {strides = array<i32>} : memref<4x16x1xf32, #tpu.memory_space<vmem>>, vector<1x16x1xf32>,
    %c0_32 = arith.constant 0 : index
    %c32 = arith.constant 32 : index
    %57 = vector.load %arg3[%c0_32, %c32] : memref<16x256xf32, #tpu.memory_space<vmem>>, vector<16x32xf32>
    %c0_33 = arith.constant 0 : index
    %c160 = arith.constant 160 : index
    %58 = vector.load %arg2[%c0_33, %c160] : memref<16x256xf32, #tpu.memory_space<vmem>>, vector<16x32xf32>
    %c1 = arith.constant 1 : index
    %c0_34 = arith.constant 0 : index
    %c0_35 = arith.constant 0 : index
    %59 = vector.load %arg4[%c1, %c0_34, %c0_35] : memref<4x1x32xf32, #tpu.memory_space<vmem>>, vector<1x1x32xf32>
    %60 = vector.shape_cast %59 : vector<1x1x32xf32> to vector<1x32xf32>
    %61 = vector.shape_cast %58 : vector<16x32xf32> to vector<16x1x32xf32>
    %62 = vector.shape_cast %57 : vector<16x32xf32> to vector<1x16x32xf32>
    %63 = vector.broadcast %61 : vector<16x1x32xf32> to vector<16x16x32xf32>
    %64 = vector.broadcast %62 : vector<1x16x32xf32> to vector<16x16x32xf32>
    %65 = arith.addf %63, %64 : vector<16x16x32xf32>
    %cst_36 = arith.constant 2.000000e-01 : f32
    %66 = vector.broadcast %cst_36 : f32 to vector<16x16x32xf32>
    %67 = arith.mulf %66, %65 : vector<16x16x32xf32>
    %68 = arith.maximumf %65, %67 : vector<16x16x32xf32>
    %69 = vector.shape_cast %60 : vector<1x32xf32> to vector<1x1x32xf32>
    %70 = vector.broadcast %69 : vector<1x1x32xf32> to vector<16x16x32xf32>
    %71 = arith.mulf %68, %70 : vector<16x16x32xf32>
    %cst_37 = arith.constant dense<0.000000e+00> : vector<16x16xf32>
    %72 = vector.multi_reduction <add>, %71, %cst_37 [2] : vector<16x16x32xf32> to vector<16x16xf32>
    %73 = arith.addf %72, %4 : vector<16x16xf32>
    %c1_38 = arith.constant 1 : index
    %c0_39 = arith.constant 0 : index
    %c0_40 = arith.constant 0 : index
    %74 = vector.load %arg8[%c1_38, %c0_39, %c0_40] : memref<4x16x1xf32, #tpu.memory_space<vmem>>, vector<1x16x1xf32>
    %75 = vector.shape_cast %74 : vector<1x16x1xf32> to vector<16x1xf32>
    %cst_41 = arith.constant dense<0xFF800000> : vector<16xf32>
    %76 = vector.multi_reduction <maximumf>, %73, %cst_41 [1] : vector<16x16xf32> to vector<16xf32>
    %77 = vector.shape_cast %76 : vector<16xf32> to vector<16x1xf32>
    %78 = arith.maximumf %75, %77 : vector<16x1xf32>
    %79 = arith.subf %75, %78 : vector<16x1xf32>
    %80 = math.exp %79 : vector<16x1xf32>
    %81 = vector.broadcast %78 : vector<16x1xf32> to vector<16x16xf32>
    %82 = arith.subf %73, %81 : vector<16x16xf32>
    %83 = math.exp %82 : vector<16x16xf32>
    %c1_42 = arith.constant 1 : index
    %c0_43 = arith.constant 0 : index
    %c0_44 = arith.constant 0 : index
    %84 = vector.load %arg9[%c1_42, %c0_43, %c0_44] : memref<4x16x1xf32, #tpu.memory_space<vmem>>, vector<1x16x1xf32>
    %85 = vector.shape_cast %84 : vector<1x16x1xf32> to vector<16x1xf32>
    %86 = arith.mulf %80, %85 : vector<16x1xf32>
    %cst_45 = arith.constant dense<0.000000e+00> : vector<16xf32>
    %87 = vector.multi_reduction <add>, %83, %cst_45 [1] : vector<16x16xf32> to vector<16xf32>
    %88 = vector.shape_cast %87 : vector<16xf32> to vector<16x1xf32>
    %89 = arith.addf %86, %88 : vector<16x1xf32>
    %c1_46 = arith.constant 1 : index
    %c0_47 = arith.constant 0 : index
    %c0_48 = arith.constant 0 : index
    %90 = vector.load %arg9[%c1_46, %c0_47, %c0_48] : memref<4x16x1xf32, #tpu.memory_space<vmem>>, vector<1x16x1xf32>
    %91 = vector.shape_cast %90 : vector<1x16x1xf32> to vector<16x1xf32>
    %92 = vector.shape_cast %89 : vector<16x1xf32> to vector<1x16x1xf32>
    tpu.vector_store %arg9[%c1_46, %c0_47, %c0_48], %92 {strides = array<i32>} : memref<4x16x1xf32, #tpu.memory_space<vmem>>, vector<1x16x1xf32>,
    %c1_49 = arith.constant 1 : index
    %c0_50 = arith.constant 0 : index
    %c0_51 = arith.constant 0 : index
    %93 = vector.load %arg10[%c1_49, %c0_50, %c0_51] : memref<4x16x32xf32, #tpu.memory_space<vmem>>, vector<1x16x32xf32>
    %94 = vector.shape_cast %93 : vector<1x16x32xf32> to vector<16x32xf32>
    %95 = vector.broadcast %80 : vector<16x1xf32> to vector<16x32xf32>
    %96 = arith.mulf %95, %94 : vector<16x32xf32>
    %97 = arith.truncf %83 : vector<16x16xf32> to vector<16x16xbf16>
    %98 = vector.extract_strided_slice %6 {offsets = [0, 32], sizes = [16, 32], strides = [1, 1]} : vector<16x128xbf16> to vector<16x32xbf16>
    %cst_52 = arith.constant dense<0.000000e+00> : vector<16x32xf32>
    %99 = tpu.matmul %97, %98, %cst_52 {dimension_numbers = #tpu.dot_dimension_numbers<[1], [0], [0], [1], [0, 0, 1, 1], [], []>} : vector<16x16xbf16>, vector<16x32xbf16>, vector<16x32xf32> -> vector<16x32xf32>
    %100 = arith.addf %96, %99 : vector<16x32xf32>
    %c1_53 = arith.constant 1 : index
    %c0_54 = arith.constant 0 : index
    %c0_55 = arith.constant 0 : index
    %101 = vector.load %arg10[%c1_53, %c0_54, %c0_55] : memref<4x16x32xf32, #tpu.memory_space<vmem>>, vector<1x16x32xf32>
    %102 = vector.shape_cast %101 : vector<1x16x32xf32> to vector<16x32xf32>
    %103 = vector.shape_cast %100 : vector<16x32xf32> to vector<1x16x32xf32>
    tpu.vector_store %arg10[%c1_53, %c0_54, %c0_55], %103 {strides = array<i32>} : memref<4x16x32xf32, #tpu.memory_space<vmem>>, vector<1x16x32xf32>,
    %c1_56 = arith.constant 1 : index
    %c0_57 = arith.constant 0 : index
    %c0_58 = arith.constant 0 : index
    %104 = vector.load %arg8[%c1_56, %c0_57, %c0_58] : memref<4x16x1xf32, #tpu.memory_space<vmem>>, vector<1x16x1xf32>
    %105 = vector.shape_cast %104 : vector<1x16x1xf32> to vector<16x1xf32>
    %106 = vector.shape_cast %78 : vector<16x1xf32> to vector<1x16x1xf32>
    tpu.vector_store %arg8[%c1_56, %c0_57, %c0_58], %106 {strides = array<i32>} : memref<4x16x1xf32, #tpu.memory_space<vmem>>, vector<1x16x1xf32>,
    %c0_59 = arith.constant 0 : index
    %c64 = arith.constant 64 : index
    %107 = vector.load %arg3[%c0_59, %c64] : memref<16x256xf32, #tpu.memory_space<vmem>>, vector<16x32xf32>
    %c0_60 = arith.constant 0 : index
    %c192 = arith.constant 192 : index
    %108 = vector.load %arg2[%c0_60, %c192] : memref<16x256xf32, #tpu.memory_space<vmem>>, vector<16x32xf32>
    %c2 = arith.constant 2 : index
    %c0_61 = arith.constant 0 : index
    %c0_62 = arith.constant 0 : index
    %109 = vector.load %arg4[%c2, %c0_61, %c0_62] : memref<4x1x32xf32, #tpu.memory_space<vmem>>, vector<1x1x32xf32>
    %110 = vector.shape_cast %109 : vector<1x1x32xf32> to vector<1x32xf32>
    %111 = vector.shape_cast %108 : vector<16x32xf32> to vector<16x1x32xf32>
    %112 = vector.shape_cast %107 : vector<16x32xf32> to vector<1x16x32xf32>
    %113 = vector.broadcast %111 : vector<16x1x32xf32> to vector<16x16x32xf32>
    %114 = vector.broadcast %112 : vector<1x16x32xf32> to vector<16x16x32xf32>
    %115 = arith.addf %113, %114 : vector<16x16x32xf32>
    %cst_63 = arith.constant 2.000000e-01 : f32
    %116 = vector.broadcast %cst_63 : f32 to vector<16x16x32xf32>
    %117 = arith.mulf %116, %115 : vector<16x16x32xf32>
    %118 = arith.maximumf %115, %117 : vector<16x16x32xf32>
    %119 = vector.shape_cast %110 : vector<1x32xf32> to vector<1x1x32xf32>
    %120 = vector.broadcast %119 : vector<1x1x32xf32> to vector<16x16x32xf32>
    %121 = arith.mulf %118, %120 : vector<16x16x32xf32>
    %cst_64 = arith.constant dense<0.000000e+00> : vector<16x16xf32>
    %122 = vector.multi_reduction <add>, %121, %cst_64 [2] : vector<16x16x32xf32> to vector<16x16xf32>
    %123 = arith.addf %122, %4 : vector<16x16xf32>
    %c2_65 = arith.constant 2 : index
    %c0_66 = arith.constant 0 : index
    %c0_67 = arith.constant 0 : index
    %124 = vector.load %arg8[%c2_65, %c0_66, %c0_67] : memref<4x16x1xf32, #tpu.memory_space<vmem>>, vector<1x16x1xf32>
    %125 = vector.shape_cast %124 : vector<1x16x1xf32> to vector<16x1xf32>
    %cst_68 = arith.constant dense<0xFF800000> : vector<16xf32>
    %126 = vector.multi_reduction <maximumf>, %123, %cst_68 [1] : vector<16x16xf32> to vector<16xf32>
    %127 = vector.shape_cast %126 : vector<16xf32> to vector<16x1xf32>
    %128 = arith.maximumf %125, %127 : vector<16x1xf32>
    %129 = arith.subf %125, %128 : vector<16x1xf32>
    %130 = math.exp %129 : vector<16x1xf32>
    %131 = vector.broadcast %128 : vector<16x1xf32> to vector<16x16xf32>
    %132 = arith.subf %123, %131 : vector<16x16xf32>
    %133 = math.exp %132 : vector<16x16xf32>
    %c2_69 = arith.constant 2 : index
    %c0_70 = arith.constant 0 : index
    %c0_71 = arith.constant 0 : index
    %134 = vector.load %arg9[%c2_69, %c0_70, %c0_71] : memref<4x16x1xf32, #tpu.memory_space<vmem>>, vector<1x16x1xf32>
    %135 = vector.shape_cast %134 : vector<1x16x1xf32> to vector<16x1xf32>
    %136 = arith.mulf %130, %135 : vector<16x1xf32>
    %cst_72 = arith.constant dense<0.000000e+00> : vector<16xf32>
    %137 = vector.multi_reduction <add>, %133, %cst_72 [1] : vector<16x16xf32> to vector<16xf32>
    %138 = vector.shape_cast %137 : vector<16xf32> to vector<16x1xf32>
    %139 = arith.addf %136, %138 : vector<16x1xf32>
    %c2_73 = arith.constant 2 : index
    %c0_74 = arith.constant 0 : index
    %c0_75 = arith.constant 0 : index
    %140 = vector.load %arg9[%c2_73, %c0_74, %c0_75] : memref<4x16x1xf32, #tpu.memory_space<vmem>>, vector<1x16x1xf32>
    %141 = vector.shape_cast %140 : vector<1x16x1xf32> to vector<16x1xf32>
    %142 = vector.shape_cast %139 : vector<16x1xf32> to vector<1x16x1xf32>
    tpu.vector_store %arg9[%c2_73, %c0_74, %c0_75], %142 {strides = array<i32>} : memref<4x16x1xf32, #tpu.memory_space<vmem>>, vector<1x16x1xf32>,
    %c2_76 = arith.constant 2 : index
    %c0_77 = arith.constant 0 : index
    %c0_78 = arith.constant 0 : index
    %143 = vector.load %arg10[%c2_76, %c0_77, %c0_78] : memref<4x16x32xf32, #tpu.memory_space<vmem>>, vector<1x16x32xf32>
    %144 = vector.shape_cast %143 : vector<1x16x32xf32> to vector<16x32xf32>
    %145 = vector.broadcast %130 : vector<16x1xf32> to vector<16x32xf32>
    %146 = arith.mulf %145, %144 : vector<16x32xf32>
    %147 = arith.truncf %133 : vector<16x16xf32> to vector<16x16xbf16>
    %148 = vector.extract_strided_slice %6 {offsets = [0, 64], sizes = [16, 32], strides = [1, 1]} : vector<16x128xbf16> to vector<16x32xbf16>
    %cst_79 = arith.constant dense<0.000000e+00> : vector<16x32xf32>
    %149 = tpu.matmul %147, %148, %cst_79 {dimension_numbers = #tpu.dot_dimension_numbers<[1], [0], [0], [1], [0, 0, 1, 1], [], []>} : vector<16x16xbf16>, vector<16x32xbf16>, vector<16x32xf32> -> vector<16x32xf32>
    %150 = arith.addf %146, %149 : vector<16x32xf32>
    %c2_80 = arith.constant 2 : index
    %c0_81 = arith.constant 0 : index
    %c0_82 = arith.constant 0 : index
    %151 = vector.load %arg10[%c2_80, %c0_81, %c0_82] : memref<4x16x32xf32, #tpu.memory_space<vmem>>, vector<1x16x32xf32>
    %152 = vector.shape_cast %151 : vector<1x16x32xf32> to vector<16x32xf32>
    %153 = vector.shape_cast %150 : vector<16x32xf32> to vector<1x16x32xf32>
    tpu.vector_store %arg10[%c2_80, %c0_81, %c0_82], %153 {strides = array<i32>} : memref<4x16x32xf32, #tpu.memory_space<vmem>>, vector<1x16x32xf32>,
    %c2_83 = arith.constant 2 : index
    %c0_84 = arith.constant 0 : index
    %c0_85 = arith.constant 0 : index
    %154 = vector.load %arg8[%c2_83, %c0_84, %c0_85] : memref<4x16x1xf32, #tpu.memory_space<vmem>>, vector<1x16x1xf32>
    %155 = vector.shape_cast %154 : vector<1x16x1xf32> to vector<16x1xf32>
    %156 = vector.shape_cast %128 : vector<16x1xf32> to vector<1x16x1xf32>
    tpu.vector_store %arg8[%c2_83, %c0_84, %c0_85], %156 {strides = array<i32>} : memref<4x16x1xf32, #tpu.memory_space<vmem>>, vector<1x16x1xf32>,
    %c0_86 = arith.constant 0 : index
    %c96 = arith.constant 96 : index
    %157 = vector.load %arg3[%c0_86, %c96] : memref<16x256xf32, #tpu.memory_space<vmem>>, vector<16x32xf32>
    %c0_87 = arith.constant 0 : index
    %c224 = arith.constant 224 : index
    %158 = vector.load %arg2[%c0_87, %c224] : memref<16x256xf32, #tpu.memory_space<vmem>>, vector<16x32xf32>
    %c3 = arith.constant 3 : index
    %c0_88 = arith.constant 0 : index
    %c0_89 = arith.constant 0 : index
    %159 = vector.load %arg4[%c3, %c0_88, %c0_89] : memref<4x1x32xf32, #tpu.memory_space<vmem>>, vector<1x1x32xf32>
    %160 = vector.shape_cast %159 : vector<1x1x32xf32> to vector<1x32xf32>
    %161 = vector.shape_cast %158 : vector<16x32xf32> to vector<16x1x32xf32>
    %162 = vector.shape_cast %157 : vector<16x32xf32> to vector<1x16x32xf32>
    %163 = vector.broadcast %161 : vector<16x1x32xf32> to vector<16x16x32xf32>
    %164 = vector.broadcast %162 : vector<1x16x32xf32> to vector<16x16x32xf32>
    %165 = arith.addf %163, %164 : vector<16x16x32xf32>
    %cst_90 = arith.constant 2.000000e-01 : f32
    %166 = vector.broadcast %cst_90 : f32 to vector<16x16x32xf32>
    %167 = arith.mulf %166, %165 : vector<16x16x32xf32>
    %168 = arith.maximumf %165, %167 : vector<16x16x32xf32>
    %169 = vector.shape_cast %160 : vector<1x32xf32> to vector<1x1x32xf32>
    %170 = vector.broadcast %169 : vector<1x1x32xf32> to vector<16x16x32xf32>
    %171 = arith.mulf %168, %170 : vector<16x16x32xf32>
    %cst_91 = arith.constant dense<0.000000e+00> : vector<16x16xf32>
    %172 = vector.multi_reduction <add>, %171, %cst_91 [2] : vector<16x16x32xf32> to vector<16x16xf32>
    %173 = arith.addf %172, %4 : vector<16x16xf32>
    %c3_92 = arith.constant 3 : index
    %c0_93 = arith.constant 0 : index
    %c0_94 = arith.constant 0 : index
    %174 = vector.load %arg8[%c3_92, %c0_93, %c0_94] : memref<4x16x1xf32, #tpu.memory_space<vmem>>, vector<1x16x1xf32>
    %175 = vector.shape_cast %174 : vector<1x16x1xf32> to vector<16x1xf32>
    %cst_95 = arith.constant dense<0xFF800000> : vector<16xf32>
    %176 = vector.multi_reduction <maximumf>, %173, %cst_95 [1] : vector<16x16xf32> to vector<16xf32>
    %177 = vector.shape_cast %176 : vector<16xf32> to vector<16x1xf32>
    %178 = arith.maximumf %175, %177 : vector<16x1xf32>
    %179 = arith.subf %175, %178 : vector<16x1xf32>
    %180 = math.exp %179 : vector<16x1xf32>
    %181 = vector.broadcast %178 : vector<16x1xf32> to vector<16x16xf32>
    %182 = arith.subf %173, %181 : vector<16x16xf32>
    %183 = math.exp %182 : vector<16x16xf32>
    %c3_96 = arith.constant 3 : index
    %c0_97 = arith.constant 0 : index
    %c0_98 = arith.constant 0 : index
    %184 = vector.load %arg9[%c3_96, %c0_97, %c0_98] : memref<4x16x1xf32, #tpu.memory_space<vmem>>, vector<1x16x1xf32>
    %185 = vector.shape_cast %184 : vector<1x16x1xf32> to vector<16x1xf32>
    %186 = arith.mulf %180, %185 : vector<16x1xf32>
    %cst_99 = arith.constant dense<0.000000e+00> : vector<16xf32>
    %187 = vector.multi_reduction <add>, %183, %cst_99 [1] : vector<16x16xf32> to vector<16xf32>
    %188 = vector.shape_cast %187 : vector<16xf32> to vector<16x1xf32>
    %189 = arith.addf %186, %188 : vector<16x1xf32>
    %c3_100 = arith.constant 3 : index
    %c0_101 = arith.constant 0 : index
    %c0_102 = arith.constant 0 : index
    %190 = vector.load %arg9[%c3_100, %c0_101, %c0_102] : memref<4x16x1xf32, #tpu.memory_space<vmem>>, vector<1x16x1xf32>
    %191 = vector.shape_cast %190 : vector<1x16x1xf32> to vector<16x1xf32>
    %192 = vector.shape_cast %189 : vector<16x1xf32> to vector<1x16x1xf32>
    tpu.vector_store %arg9[%c3_100, %c0_101, %c0_102], %192 {strides = array<i32>} : memref<4x16x1xf32, #tpu.memory_space<vmem>>, vector<1x16x1xf32>,
    %c3_103 = arith.constant 3 : index
    %c0_104 = arith.constant 0 : index
    %c0_105 = arith.constant 0 : index
    %193 = vector.load %arg10[%c3_103, %c0_104, %c0_105] : memref<4x16x32xf32, #tpu.memory_space<vmem>>, vector<1x16x32xf32>
    %194 = vector.shape_cast %193 : vector<1x16x32xf32> to vector<16x32xf32>
    %195 = vector.broadcast %180 : vector<16x1xf32> to vector<16x32xf32>
    %196 = arith.mulf %195, %194 : vector<16x32xf32>
    %197 = arith.truncf %183 : vector<16x16xf32> to vector<16x16xbf16>
    %198 = vector.extract_strided_slice %6 {offsets = [0, 96], sizes = [16, 32], strides = [1, 1]} : vector<16x128xbf16> to vector<16x32xbf16>
    %cst_106 = arith.constant dense<0.000000e+00> : vector<16x32xf32>
    %199 = tpu.matmul %197, %198, %cst_106 {dimension_numbers = #tpu.dot_dimension_numbers<[1], [0], [0], [1], [0, 0, 1, 1], [], []>} : vector<16x16xbf16>, vector<16x32xbf16>, vector<16x32xf32> -> vector<16x32xf32>
    %200 = arith.addf %196, %199 : vector<16x32xf32>
    %c3_107 = arith.constant 3 : index
    %c0_108 = arith.constant 0 : index
    %c0_109 = arith.constant 0 : index
    %201 = vector.load %arg10[%c3_107, %c0_108, %c0_109] : memref<4x16x32xf32, #tpu.memory_space<vmem>>, vector<1x16x32xf32>
    %202 = vector.shape_cast %201 : vector<1x16x32xf32> to vector<16x32xf32>
    %203 = vector.shape_cast %200 : vector<16x32xf32> to vector<1x16x32xf32>
    tpu.vector_store %arg10[%c3_107, %c0_108, %c0_109], %203 {strides = array<i32>} : memref<4x16x32xf32, #tpu.memory_space<vmem>>, vector<1x16x32xf32>,
    %c3_110 = arith.constant 3 : index
    %c0_111 = arith.constant 0 : index
    %c0_112 = arith.constant 0 : index
    %204 = vector.load %arg8[%c3_110, %c0_111, %c0_112] : memref<4x16x1xf32, #tpu.memory_space<vmem>>, vector<1x16x1xf32>
    %205 = vector.shape_cast %204 : vector<1x16x1xf32> to vector<16x1xf32>
    %206 = vector.shape_cast %178 : vector<16x1xf32> to vector<1x16x1xf32>
    tpu.vector_store %arg8[%c3_110, %c0_111, %c0_112], %206 {strides = array<i32>} : memref<4x16x1xf32, #tpu.memory_space<vmem>>, vector<1x16x1xf32>,
    %c0_i32_113 = arith.constant 0 : i32
    %207 = arith.cmpi eq, %arg1, %c0_i32_113 : i32
    %208 = arith.extui %207 : i1 to i32
    %c0_i32_114 = arith.constant 0 : i32
    %209 = arith.cmpi ne, %208, %c0_i32_114 : i32
    scf.if %209 {
      %c0_115 = arith.constant 0 : index
      %c0_116 = arith.constant 0 : index
      %c0_117 = arith.constant 0 : index
      %210 = vector.load %arg9[%c0_115, %c0_116, %c0_117] : memref<4x16x1xf32, #tpu.memory_space<vmem>>, vector<1x16x1xf32>
      %211 = vector.shape_cast %210 : vector<1x16x1xf32> to vector<16x1xf32>
      %212 = tpu.reciprocal %211 {approx = true} : vector<16x1xf32> -> vector<16x1xf32>
      %c0_118 = arith.constant 0 : index
      %c0_119 = arith.constant 0 : index
      %c0_120 = arith.constant 0 : index
      %213 = vector.load %arg10[%c0_118, %c0_119, %c0_120] : memref<4x16x32xf32, #tpu.memory_space<vmem>>, vector<1x16x32xf32>
      %214 = vector.shape_cast %213 : vector<1x16x32xf32> to vector<16x32xf32>
      %215 = vector.broadcast %212 : vector<16x1xf32> to vector<16x32xf32>
      %216 = arith.mulf %214, %215 : vector<16x32xf32>
      %c0_121 = arith.constant 0 : index
      %c0_122 = arith.constant 0 : index
      %c0_123 = arith.constant 0 : index
      %217 = vector.load %arg5[%c0_121, %c0_122, %c0_123] : memref<4x1x32xf32, #tpu.memory_space<vmem>>, vector<1x1x32xf32>
      %218 = vector.shape_cast %217 : vector<1x1x32xf32> to vector<1x32xf32>
      %219 = vector.broadcast %218 : vector<1x32xf32> to vector<16x32xf32>
      %220 = arith.addf %216, %219 : vector<16x32xf32>
      %c0_124 = arith.constant 0 : index
      %c0_125 = arith.constant 0 : index
      %221 = vector.load %arg7[%c0_124, %c0_125] : memref<16x128xf32, #tpu.memory_space<vmem>>, vector<16x32xf32>
      tpu.vector_store %arg7[%c0_124, %c0_125], %220 {strides = array<i32>} : memref<16x128xf32, #tpu.memory_space<vmem>>, vector<16x32xf32>,
      %c1_126 = arith.constant 1 : index
      %c0_127 = arith.constant 0 : index
      %c0_128 = arith.constant 0 : index
      %222 = vector.load %arg9[%c1_126, %c0_127, %c0_128] : memref<4x16x1xf32, #tpu.memory_space<vmem>>, vector<1x16x1xf32>
      %223 = vector.shape_cast %222 : vector<1x16x1xf32> to vector<16x1xf32>
      %224 = tpu.reciprocal %223 {approx = true} : vector<16x1xf32> -> vector<16x1xf32>
      %c1_129 = arith.constant 1 : index
      %c0_130 = arith.constant 0 : index
      %c0_131 = arith.constant 0 : index
      %225 = vector.load %arg10[%c1_129, %c0_130, %c0_131] : memref<4x16x32xf32, #tpu.memory_space<vmem>>, vector<1x16x32xf32>
      %226 = vector.shape_cast %225 : vector<1x16x32xf32> to vector<16x32xf32>
      %227 = vector.broadcast %224 : vector<16x1xf32> to vector<16x32xf32>
      %228 = arith.mulf %226, %227 : vector<16x32xf32>
      %c1_132 = arith.constant 1 : index
      %c0_133 = arith.constant 0 : index
      %c0_134 = arith.constant 0 : index
      %229 = vector.load %arg5[%c1_132, %c0_133, %c0_134] : memref<4x1x32xf32, #tpu.memory_space<vmem>>, vector<1x1x32xf32>
      %230 = vector.shape_cast %229 : vector<1x1x32xf32> to vector<1x32xf32>
      %231 = vector.broadcast %230 : vector<1x32xf32> to vector<16x32xf32>
      %232 = arith.addf %228, %231 : vector<16x32xf32>
      %c0_135 = arith.constant 0 : index
      %c32_136 = arith.constant 32 : index
      %233 = vector.load %arg7[%c0_135, %c32_136] : memref<16x128xf32, #tpu.memory_space<vmem>>, vector<16x32xf32>
      tpu.vector_store %arg7[%c0_135, %c32_136], %232 {strides = array<i32>} : memref<16x128xf32, #tpu.memory_space<vmem>>, vector<16x32xf32>,
      %c2_137 = arith.constant 2 : index
      %c0_138 = arith.constant 0 : index
      %c0_139 = arith.constant 0 : index
      %234 = vector.load %arg9[%c2_137, %c0_138, %c0_139] : memref<4x16x1xf32, #tpu.memory_space<vmem>>, vector<1x16x1xf32>
      %235 = vector.shape_cast %234 : vector<1x16x1xf32> to vector<16x1xf32>
      %236 = tpu.reciprocal %235 {approx = true} : vector<16x1xf32> -> vector<16x1xf32>
      %c2_140 = arith.constant 2 : index
      %c0_141 = arith.constant 0 : index
      %c0_142 = arith.constant 0 : index
      %237 = vector.load %arg10[%c2_140, %c0_141, %c0_142] : memref<4x16x32xf32, #tpu.memory_space<vmem>>, vector<1x16x32xf32>
      %238 = vector.shape_cast %237 : vector<1x16x32xf32> to vector<16x32xf32>
      %239 = vector.broadcast %236 : vector<16x1xf32> to vector<16x32xf32>
      %240 = arith.mulf %238, %239 : vector<16x32xf32>
      %c2_143 = arith.constant 2 : index
      %c0_144 = arith.constant 0 : index
      %c0_145 = arith.constant 0 : index
      %241 = vector.load %arg5[%c2_143, %c0_144, %c0_145] : memref<4x1x32xf32, #tpu.memory_space<vmem>>, vector<1x1x32xf32>
      %242 = vector.shape_cast %241 : vector<1x1x32xf32> to vector<1x32xf32>
      %243 = vector.broadcast %242 : vector<1x32xf32> to vector<16x32xf32>
      %244 = arith.addf %240, %243 : vector<16x32xf32>
      %c0_146 = arith.constant 0 : index
      %c64_147 = arith.constant 64 : index
      %245 = vector.load %arg7[%c0_146, %c64_147] : memref<16x128xf32, #tpu.memory_space<vmem>>, vector<16x32xf32>
      tpu.vector_store %arg7[%c0_146, %c64_147], %244 {strides = array<i32>} : memref<16x128xf32, #tpu.memory_space<vmem>>, vector<16x32xf32>,
      %c3_148 = arith.constant 3 : index
      %c0_149 = arith.constant 0 : index
      %c0_150 = arith.constant 0 : index
      %246 = vector.load %arg9[%c3_148, %c0_149, %c0_150] : memref<4x16x1xf32, #tpu.memory_space<vmem>>, vector<1x16x1xf32>
      %247 = vector.shape_cast %246 : vector<1x16x1xf32> to vector<16x1xf32>
      %248 = tpu.reciprocal %247 {approx = true} : vector<16x1xf32> -> vector<16x1xf32>
      %c3_151 = arith.constant 3 : index
      %c0_152 = arith.constant 0 : index
      %c0_153 = arith.constant 0 : index
      %249 = vector.load %arg10[%c3_151, %c0_152, %c0_153] : memref<4x16x32xf32, #tpu.memory_space<vmem>>, vector<1x16x32xf32>
      %250 = vector.shape_cast %249 : vector<1x16x32xf32> to vector<16x32xf32>
      %251 = vector.broadcast %248 : vector<16x1xf32> to vector<16x32xf32>
      %252 = arith.mulf %250, %251 : vector<16x32xf32>
      %c3_154 = arith.constant 3 : index
      %c0_155 = arith.constant 0 : index
      %c0_156 = arith.constant 0 : index
      %253 = vector.load %arg5[%c3_154, %c0_155, %c0_156] : memref<4x1x32xf32, #tpu.memory_space<vmem>>, vector<1x1x32xf32>
      %254 = vector.shape_cast %253 : vector<1x1x32xf32> to vector<1x32xf32>
      %255 = vector.broadcast %254 : vector<1x32xf32> to vector<16x32xf32>
      %256 = arith.addf %252, %255 : vector<16x32xf32>
      %c0_157 = arith.constant 0 : index
      %c96_158 = arith.constant 96 : index
      %257 = vector.load %arg7[%c0_157, %c96_158] : memref<16x128xf32, #tpu.memory_space<vmem>>, vector<16x32xf32>
      tpu.vector_store %arg7[%c0_157, %c96_158], %256 {strides = array<i32>} : memref<16x128xf32, #tpu.memory_space<vmem>>, vector<16x32xf32>,
    } else {
    }
    return
  }
  func.func @transform_0(%arg0: i32, %arg1: i32) -> (i32, i32) {
    %c0_i32 = arith.constant 0 : i32
    %c0_i32_0 = arith.constant 0 : i32
    return %arg0, %c0_i32 : i32, i32
  }
  func.func @transform_1(%arg0: i32, %arg1: i32) -> (i32, i32) {
    %c0_i32 = arith.constant 0 : i32
    %c0_i32_0 = arith.constant 0 : i32
    return %arg1, %c0_i32 : i32, i32
  }
  func.func @transform_2(%arg0: i32, %arg1: i32) -> (i32, i32, i32) {
    %c0_i32 = arith.constant 0 : i32
    %c0_i32_0 = arith.constant 0 : i32
    %c0_i32_1 = arith.constant 0 : i32
    %c0_i32_2 = arith.constant 0 : i32
    return %c0_i32, %c0_i32_0, %c0_i32_1 : i32, i32, i32
  }
  func.func @transform_3(%arg0: i32, %arg1: i32) -> (i32, i32, i32) {
    %c0_i32 = arith.constant 0 : i32
    %c0_i32_0 = arith.constant 0 : i32
    %c0_i32_1 = arith.constant 0 : i32
    %c0_i32_2 = arith.constant 0 : i32
    return %c0_i32, %c0_i32_0, %c0_i32_1 : i32, i32, i32
  }
  func.func @transform_4(%arg0: i32, %arg1: i32) -> (i32, i32) {
    %c0_i32 = arith.constant 0 : i32
    return %arg0, %arg1 : i32, i32
  }
  func.func @transform_5(%arg0: i32, %arg1: i32) -> (i32, i32) {
    %c0_i32 = arith.constant 0 : i32
    %c0_i32_0 = arith.constant 0 : i32
    return %arg0, %c0_i32 : i32, i32
  }
}

module attributes {stable_mosaic.version = 11 : i64} {
  func.func @_matmul_kernel_single(%arg0: i32, %arg1: i32, %arg2: i32, %arg3: memref<16x128xf32, #tpu.memory_space<vmem>>, %arg4: memref<128x256xbf16, #tpu.memory_space<vmem>>, %arg5: memref<1x256xf32, #tpu.memory_space<vmem>>, %arg6: memref<16x256xf32, #tpu.memory_space<vmem>>) attributes {dimension_semantics = [#tpu.dimension_semantics<parallel>, #tpu.dimension_semantics<parallel>, #tpu.dimension_semantics<arbitrary>], iteration_bounds = array<i64: 1, 1, 1>, scalar_prefetch = 0 : i64, scratch_operands = 0 : i64, tpu.core_type = #tpu.core_type<tc>, window_params = [{transform_indices = @transform_0, window_bounds = array<i64: 16, 128>}, {transform_indices = @transform_1, window_bounds = array<i64: 128, 256>}, {transform_indices = @transform_2, window_bounds = array<i64: 1, 256>}, {transform_indices = @transform_3, window_bounds = array<i64: 16, 256>}]} {
    %c0 = arith.constant 0 : index
    %c0_0 = arith.constant 0 : index
    %0 = vector.load %arg3[%c0, %c0_0] : memref<16x128xf32, #tpu.memory_space<vmem>>, vector<16x128xf32>
    %1 = arith.truncf %0 : vector<16x128xf32> to vector<16x128xbf16>
    %c0_1 = arith.constant 0 : index
    %c0_2 = arith.constant 0 : index
    %2 = vector.load %arg4[%c0_1, %c0_2] : memref<128x256xbf16, #tpu.memory_space<vmem>>, vector<128x256xbf16>
    %cst = arith.constant dense<0.000000e+00> : vector<16x256xf32>
    %3 = tpu.matmul %1, %2, %cst {dimension_numbers = #tpu.dot_dimension_numbers<[1], [0], [0], [1], [0, 0, 1, 1], [], []>} : vector<16x128xbf16>, vector<128x256xbf16>, vector<16x256xf32> -> vector<16x256xf32>
    %c0_3 = arith.constant 0 : index
    %c0_4 = arith.constant 0 : index
    %4 = vector.load %arg5[%c0_3, %c0_4] : memref<1x256xf32, #tpu.memory_space<vmem>>, vector<1x256xf32>
    %5 = vector.broadcast %4 : vector<1x256xf32> to vector<16x256xf32>
    %6 = arith.addf %3, %5 : vector<16x256xf32>
    %c0_5 = arith.constant 0 : index
    %c0_6 = arith.constant 0 : index
    %7 = vector.load %arg6[%c0_5, %c0_6] : memref<16x256xf32, #tpu.memory_space<vmem>>, vector<16x256xf32>
    tpu.vector_store %arg6[%c0_5, %c0_6], %6 {strides = array<i32>} : memref<16x256xf32, #tpu.memory_space<vmem>>, vector<16x256xf32>,
    return
  }
  func.func @transform_0(%arg0: i32, %arg1: i32, %arg2: i32) -> (i32, i32) {
    %c0_i32 = arith.constant 0 : i32
    return %arg0, %arg2 : i32, i32
  }
  func.func @transform_1(%arg0: i32, %arg1: i32, %arg2: i32) -> (i32, i32) {
    %c0_i32 = arith.constant 0 : i32
    return %arg2, %arg1 : i32, i32
  }
  func.func @transform_2(%arg0: i32, %arg1: i32, %arg2: i32) -> (i32, i32) {
    %c0_i32 = arith.constant 0 : i32
    %c0_i32_0 = arith.constant 0 : i32
    return %c0_i32, %arg1 : i32, i32
  }
  func.func @transform_3(%arg0: i32, %arg1: i32, %arg2: i32) -> (i32, i32) {
    %c0_i32 = arith.constant 0 : i32
    return %arg0, %arg1 : i32, i32
  }
}

module attributes {stable_mosaic.version = 11 : i64} {
  func.func @_matmul_kernel_single(%arg0: i32, %arg1: i32, %arg2: i32, %arg3: memref<16x128xf32, #tpu.memory_space<vmem>>, %arg4: memref<128x4xbf16, #tpu.memory_space<vmem>>, %arg5: memref<1x4xf32, #tpu.memory_space<vmem>>, %arg6: memref<16x4xf32, #tpu.memory_space<vmem>>) attributes {dimension_semantics = [#tpu.dimension_semantics<parallel>, #tpu.dimension_semantics<parallel>, #tpu.dimension_semantics<arbitrary>], iteration_bounds = array<i64: 1, 1, 1>, scalar_prefetch = 0 : i64, scratch_operands = 0 : i64, tpu.core_type = #tpu.core_type<tc>, window_params = [{transform_indices = @transform_0, window_bounds = array<i64: 16, 128>}, {transform_indices = @transform_1, window_bounds = array<i64: 128, 4>}, {transform_indices = @transform_2, window_bounds = array<i64: 1, 4>}, {transform_indices = @transform_3, window_bounds = array<i64: 16, 4>}]} {
    %c0 = arith.constant 0 : index
    %c0_0 = arith.constant 0 : index
    %0 = vector.load %arg3[%c0, %c0_0] : memref<16x128xf32, #tpu.memory_space<vmem>>, vector<16x128xf32>
    %1 = arith.truncf %0 : vector<16x128xf32> to vector<16x128xbf16>
    %c0_1 = arith.constant 0 : index
    %c0_2 = arith.constant 0 : index
    %2 = vector.load %arg4[%c0_1, %c0_2] : memref<128x4xbf16, #tpu.memory_space<vmem>>, vector<128x4xbf16>
    %cst = arith.constant dense<0.000000e+00> : vector<16x4xf32>
    %3 = tpu.matmul %1, %2, %cst {dimension_numbers = #tpu.dot_dimension_numbers<[1], [0], [0], [1], [0, 0, 1, 1], [], []>} : vector<16x128xbf16>, vector<128x4xbf16>, vector<16x4xf32> -> vector<16x4xf32>
    %c0_3 = arith.constant 0 : index
    %c0_4 = arith.constant 0 : index
    %4 = vector.load %arg5[%c0_3, %c0_4] : memref<1x4xf32, #tpu.memory_space<vmem>>, vector<1x4xf32>
    %5 = vector.broadcast %4 : vector<1x4xf32> to vector<16x4xf32>
    %6 = arith.addf %3, %5 : vector<16x4xf32>
    %c0_5 = arith.constant 0 : index
    %c0_6 = arith.constant 0 : index
    %7 = vector.load %arg6[%c0_5, %c0_6] : memref<16x4xf32, #tpu.memory_space<vmem>>, vector<16x4xf32>
    tpu.vector_store %arg6[%c0_5, %c0_6], %6 {strides = array<i32>} : memref<16x4xf32, #tpu.memory_space<vmem>>, vector<16x4xf32>,
    return
  }
  func.func @transform_0(%arg0: i32, %arg1: i32, %arg2: i32) -> (i32, i32) {
    %c0_i32 = arith.constant 0 : i32
    return %arg0, %arg2 : i32, i32
  }
  func.func @transform_1(%arg0: i32, %arg1: i32, %arg2: i32) -> (i32, i32) {
    %c0_i32 = arith.constant 0 : i32
    return %arg2, %arg1 : i32, i32
  }
  func.func @transform_2(%arg0: i32, %arg1: i32, %arg2: i32) -> (i32, i32) {
    %c0_i32 = arith.constant 0 : i32
    %c0_i32_0 = arith.constant 0 : i32
    return %c0_i32, %arg1 : i32, i32
  }
  func.func @transform_3(%arg0: i32, %arg1: i32, %arg2: i32) -> (i32, i32) {
    %c0_i32 = arith.constant 0 : i32
    return %arg0, %arg1 : i32, i32
  }
}

</mosaic_0001>

<llo_original>
// kernel: net_cell_forward.7
$region0: #{net_cell_forward.7}
  #allocation0 [shape = 'u32[]', space=smem, size = 0x4, offset = 0x4, fixed_abs, tag = 'smem constant byte address 0x4 - core index']
  #allocation1 [shape = 'u32[144,128]{1,0:T(1,128)}', space=vmem, size = 0x12000, scoped, tag = 'internal scratch']
  %s0 = inlined_call_operand.vmem [shape: f32[16,64], index: 0, kind: input, shape index: {}]
  %s1 = inlined_call_operand.vmem [shape: bf16[64,32], index: 1, kind: input, shape index: {}]
  %s2 = inlined_call_operand.vmem [shape: f32[1,32], index: 2, kind: input, shape index: {}]
  %s3 = inlined_call_operand.vmem [shape: f32[16,32], index: 3, kind: output, shape index: {}]
  %s4 = sld [smem:[#allocation0]]
  $region22: #{net_cell_forward.7} parent=0
    _
  %s6 = ssub.s32 1, %s4
  %s7 = scalar_select 0, %s6, %s4
  // Predicated region
  $region2: #{net_cell_forward.7} parent=0 // pred_check
    _
  $region3: #{net_cell_forward.7} parent=0 // pred_check_branch
    %9 = sbr.rel (0) target = $region5
  $region4: #{net_cell_forward.7} parent=0 // pred_region
    _
  $region5: #{net_cell_forward.7} parent=0 // pred_fallthru
    _
  // Predicated region
  $region6: #{net_cell_forward.7} parent=0 // pred_check
    _
  $region7: #{net_cell_forward.7} parent=0 // pred_check_branch
    %11 = sbr.rel (0) target = $region9
  $region8: #{net_cell_forward.7} parent=0 // pred_region
    _
  $region9: #{net_cell_forward.7} parent=0 // pred_fallthru
    _
  // Predicated region
  $region10: #{net_cell_forward.7} parent=0 // pred_check
    _
  $region11: #{net_cell_forward.7} parent=0 // pred_check_branch
    %13 = sbr.rel (0) target = $region13
  $region12: #{net_cell_forward.7} parent=0 // pred_region
    _
  $region13: #{net_cell_forward.7} parent=0 // pred_fallthru
    _
  %v15 = vld [vmem:[%s0] sm:$0xff]
  %v16 = vld [vmem:[%s0 + $0x8] sm:$0xff]
  %v17 = vpack.c.bf16 %v16, %v15
  %v18 = vld [vmem:[%s1] sm:$0xf]
  %v19 = vld [vmem:[%s1 + $0x4] sm:$0xf]
  %v20 = vld [vmem:[%s1 + $0x8] sm:$0xf]
  %v21 = vld [vmem:[%s1 + $0xc] sm:$0xf]
  %v22 = vld [vmem:[%s1 + $0x10] sm:$0xf]
  %v23 = vld [vmem:[%s1 + $0x14] sm:$0xf]
  %v24 = vld [vmem:[%s1 + $0x18] sm:$0xf]
  %v25 = vld [vmem:[%s1 + $0x1c] sm:$0xf]
  %v26 = vld [vmem:[%s2] sm:$0x1]
  %v28 = vlaneseq
  %v29 = vshrl.u32 %v28, 7
  %v30 = vsub.s32 0, %v29
  %v31 = vrot.slane %v26, %v30
  %v41 = vunpack.c.l.b16 %v18
  %v42 = vunpack.c.l.b16 %v19
  %v43 = vunpack.c.l.b16 %v20
  %v44 = vunpack.c.l.b16 %v21
  %v45 = vunpack.c.l.b16 %v22
  %v46 = vunpack.c.l.b16 %v23
  %v47 = vunpack.c.l.b16 %v24
  %v48 = vunpack.c.l.b16 %v25
  %v49 = vpack.c.b16 %v42, %v41
  %v50 = vpack.c.b16 %v44, %v43
  %v51 = vpack.c.b16 %v46, %v45
  %v52 = vpack.c.b16 %v48, %v47
  %vm57 = vcmask 523264
  %v59 = vsel %vm57, %v17, 0
  %61 = vmatprep.subr.bf16.mxu0 0
  %62 = vmatpush1.bf16.msra.mxu0 0
  %63 = vmatprep.subr.bf16.mxu0 0
  %64 = vmatpush1.bf16.msra.mxu0 0
  %65 = vmatprep.subr.bf16.mxu0 0
  %66 = vmatpush1.bf16.msra.mxu0 0
  %67 = vmatprep.subr.bf16.mxu0 0
  %68 = vmatpush1.bf16.msra.mxu0 0
  %69 = vmatprep.subr.bf16.mxu0 0
  %70 = vmatpush1.bf16.msra.mxu0 %v52
  %71 = vmatprep.subr.bf16.mxu0 0
  %72 = vmatpush1.bf16.msra.mxu0 %v51
  %73 = vmatprep.subr.bf16.mxu0 0
  %74 = vmatpush1.bf16.msra.mxu0 %v50
  %75 = vmatprep.subr.bf16.mxu0 0
  %76 = vmatpush1.bf16.msra.mxu0 %v49
  %77 = vmatprep.subr.bf16.mxu0 0
  %78 = vmatpush2.bf16.msra.mxu0 0
  %79 = vmatprep.subr.bf16.mxu0 0
  %80 = vmatpush2.bf16.msra.mxu0 0
  %81 = vmatprep.subr.bf16.mxu0 0
  %82 = vmatpush2.bf16.msra.mxu0 0
  %83 = vmatprep.subr.bf16.mxu0 0
  %84 = vmatpush2.bf16.msra.mxu0 0
  %85 = vmatprep.subr.bf16.mxu0 0
  %86 = vmatpush2.bf16.msra.mxu0 0
  %87 = vmatprep.subr.bf16.mxu0 0
  %88 = vmatpush2.bf16.msra.mxu0 0
  %89 = vmatprep.subr.bf16.mxu0 0
  %90 = vmatpush2.bf16.msra.mxu0 0
  %91 = vmatprep.subr.bf16.mxu0 0
  %92 = vmatpush2.bf16.msra.mxu0 0
  %93 = vmatprep.mubr.bf16.mxu0 0
  %94 = vmatmul.mubr.bf16.gmra.mxu0 %v59
  %v95 = vpop.f32.mrf.mxu0
  %v96 = vadd.f32 %v31, %v95
  %v97 = vpop.f32.mrf.mxu0
  %v98 = vpop.f32.mrf.mxu0
  %v99 = vadd.f32 %v31, %v98
  %v100 = vpop.f32.mrf.mxu0
  %101 = vdwg.mxu0
  %vm102 = vcmask 261120
  %103 = vst.msk [vmem:[%s3] sm:$0xff] %vm102, %v96
  %104 = vst.msk [vmem:[%s3 + $0x8] sm:$0xff] %vm102, %v99
  // Predicated region
  $region14: #{net_cell_forward.7} parent=0 // pred_check
    _
  $region15: #{net_cell_forward.7} parent=0 // pred_check_branch
    %106 = sbr.rel (0) target = $region17
  $region16: #{net_cell_forward.7} parent=0 // pred_region
    _
  $region17: #{net_cell_forward.7} parent=0 // pred_fallthru
    _
  // Predicated region
  $region18: #{net_cell_forward.7} parent=0 // pred_check
    _
  $region19: #{net_cell_forward.7} parent=0 // pred_check_branch
    %108 = sbr.rel (0) target = $region21
  $region20: #{net_cell_forward.7} parent=0 // pred_region
    _
  $region21: #{net_cell_forward.7} parent=0 // pred_fallthru
    _

// kernel: net_cell_forward.9
$region0: #{net_cell_forward.9}
  #allocation0 [shape = 'u32[]', space=smem, size = 0x4, offset = 0x4, fixed_abs, tag = 'smem constant byte address 0x4 - core index']
  #allocation1 [shape = 'u32[144,128]{1,0:T(1,128)}', space=vmem, size = 0x12000, scoped, tag = 'internal scratch']
  %s0 = inlined_call_operand.vmem [shape: f32[16,16], index: 0, kind: input, shape index: {}]
  %s1 = inlined_call_operand.vmem [shape: bf16[16,256], index: 1, kind: input, shape index: {}]
  %s2 = inlined_call_operand.vmem [shape: f32[1,256], index: 2, kind: input, shape index: {}]
  %s3 = inlined_call_operand.vmem [shape: f32[16,256], index: 3, kind: output, shape index: {}]
  %s4 = sld [smem:[#allocation0]]
  $region22: #{net_cell_forward.9} parent=0
    _
  %s6 = ssub.s32 1, %s4
  %s7 = scalar_select 0, %s6, %s4
  // Predicated region
  $region2: #{net_cell_forward.9} parent=0 // pred_check
    _
  $region3: #{net_cell_forward.9} parent=0 // pred_check_branch
    %9 = sbr.rel (0) target = $region5
  $region4: #{net_cell_forward.9} parent=0 // pred_region
    _
  $region5: #{net_cell_forward.9} parent=0 // pred_fallthru
    _
  // Predicated region
  $region6: #{net_cell_forward.9} parent=0 // pred_check
    _
  $region7: #{net_cell_forward.9} parent=0 // pred_check_branch
    %11 = sbr.rel (0) target = $region9
  $region8: #{net_cell_forward.9} parent=0 // pred_region
    _
  $region9: #{net_cell_forward.9} parent=0 // pred_fallthru
    _
  // Predicated region
  $region10: #{net_cell_forward.9} parent=0 // pred_check
    _
  $region11: #{net_cell_forward.9} parent=0 // pred_check_branch
    %13 = sbr.rel (0) target = $region13
  $region12: #{net_cell_forward.9} parent=0 // pred_region
    _
  $region13: #{net_cell_forward.9} parent=0 // pred_fallthru
    _
  %v15 = vld [vmem:[%s0] sm:$0xff]
  %v16 = vld [vmem:[%s0 + $0x8] sm:$0xff]
  %v17 = vpack.c.bf16 %v16, %v15
  %v18 = vld [vmem:[%s1] sm:$0xff]
  %v19 = vld [vmem:[%s1 + $0x8] sm:$0xff]
  %v20 = vld [vmem:[%s2] sm:$0x3]
  %v22 = vlaneseq
  %v23 = vshrl.u32 %v22, 7
  %v24 = vsub.s32 0, %v23
  %v25 = vrot.slane %v20, %v24
  %v26 = vlaneseq
  %v27 = vshrl.u32 %v26, 7
  %v28 = vsub.s32 1, %v27
  %v29 = vrot.slane %v20, %v28
  %v34 = vunpack.c.l.b16 %v18
  %v35 = vunpack.c.h.b16 %v18
  %v36 = vunpack.c.l.b16 %v19
  %v37 = vunpack.c.h.b16 %v19
  %v38 = vpack.c.b16 %v36, %v34
  %v39 = vpack.c.b16 %v37, %v35
  %vm42 = vcmask 130048
  %v44 = vsel %vm42, %v17, 0
  %46 = vmatprep.subr.bf16.mxu0 0
  %47 = vmatpush1.bf16.msra.mxu0 0
  %48 = vmatprep.subr.bf16.mxu0 0
  %49 = vmatpush1.bf16.msra.mxu0 0
  %50 = vmatprep.subr.bf16.mxu0 0
  %51 = vmatpush1.bf16.msra.mxu0 0
  %52 = vmatprep.subr.bf16.mxu0 0
  %53 = vmatpush1.bf16.msra.mxu0 0
  %54 = vmatprep.subr.bf16.mxu0 0
  %55 = vmatpush1.bf16.msra.mxu0 0
  %56 = vmatprep.subr.bf16.mxu0 0
  %57 = vmatpush1.bf16.msra.mxu0 0
  %58 = vmatprep.subr.bf16.mxu0 0
  %59 = vmatpush1.bf16.msra.mxu0 0
  %60 = vmatprep.subr.bf16.mxu0 %v39
  %61 = vmatpush1.bf16.msra.mxu0 %v38
  %62 = vmatprep.subr.bf16.mxu0 0
  %63 = vmatpush2.bf16.msra.mxu0 0
  %64 = vmatprep.subr.bf16.mxu0 0
  %65 = vmatpush2.bf16.msra.mxu0 0
  %66 = vmatprep.subr.bf16.mxu0 0
  %67 = vmatpush2.bf16.msra.mxu0 0
  %68 = vmatprep.subr.bf16.mxu0 0
  %69 = vmatpush2.bf16.msra.mxu0 0
  %70 = vmatprep.subr.bf16.mxu0 0
  %71 = vmatpush2.bf16.msra.mxu0 0
  %72 = vmatprep.subr.bf16.mxu0 0
  %73 = vmatpush2.bf16.msra.mxu0 0
  %74 = vmatprep.subr.bf16.mxu0 0
  %75 = vmatpush2.bf16.msra.mxu0 0
  %76 = vmatprep.subr.bf16.mxu0 0
  %77 = vmatpush2.bf16.msra.mxu0 0
  %78 = vmatprep.mubr.bf16.mxu0 0
  %79 = vmatmul.mubr.bf16.gmra.mxu0 %v44
  %v80 = vpop.f32.mrf.mxu0
  %v81 = vadd.f32 %v25, %v80
  %v82 = vpop.f32.mrf.mxu0
  %v83 = vadd.f32 %v29, %v82
  %v84 = vpop.f32.mrf.mxu0
  %v85 = vadd.f32 %v25, %v84
  %v86 = vpop.f32.mrf.mxu0
  %v87 = vadd.f32 %v29, %v86
  %88 = vdwg.mxu0
  %89 = vst [vmem:[%s3] sm:$0xff] %v81
  %90 = vst [vmem:[%s3 + $0x8] sm:$0xff] %v83
  %91 = vst [vmem:[%s3 + $0x10] sm:$0xff] %v85
  %92 = vst [vmem:[%s3 + $0x18] sm:$0xff] %v87
  // Predicated region
  $region14: #{net_cell_forward.9} parent=0 // pred_check
    _
  $region15: #{net_cell_forward.9} parent=0 // pred_check_branch
    %94 = sbr.rel (0) target = $region17
  $region16: #{net_cell_forward.9} parent=0 // pred_region
    _
  $region17: #{net_cell_forward.9} parent=0 // pred_fallthru
    _
  // Predicated region
  $region18: #{net_cell_forward.9} parent=0 // pred_check
    _
  $region19: #{net_cell_forward.9} parent=0 // pred_check_branch
    %96 = sbr.rel (0) target = $region21
  $region20: #{net_cell_forward.9} parent=0 // pred_region
    _
  $region21: #{net_cell_forward.9} parent=0 // pred_fallthru
    _

// kernel: net_cell_forward.11
$region0: #{net_cell_forward.11}
  #allocation0 [shape = 'u32[]', space=smem, size = 0x4, offset = 0x4, fixed_abs, tag = 'smem constant byte address 0x4 - core index']
  #allocation1 [shape = 'u32[144,128]{1,0:T(1,128)}', space=vmem, size = 0x12000, scoped, tag = 'internal scratch']
  %s0 = inlined_call_operand.vmem [shape: f32[16,128], index: 0, kind: input, shape index: {}]
  %s1 = inlined_call_operand.vmem [shape: bf16[128,256], index: 1, kind: input, shape index: {}]
  %s2 = inlined_call_operand.vmem [shape: f32[1,256], index: 2, kind: input, shape index: {}]
  %s3 = inlined_call_operand.vmem [shape: f32[16,256], index: 3, kind: output, shape index: {}]
  %s4 = sld [smem:[#allocation0]]
  $region22: #{net_cell_forward.11} parent=0
    _
  %s6 = ssub.s32 1, %s4
  %s7 = scalar_select 0, %s6, %s4
  // Predicated region
  $region2: #{net_cell_forward.11} parent=0 // pred_check
    _
  $region3: #{net_cell_forward.11} parent=0 // pred_check_branch
    %9 = sbr.rel (0) target = $region5
  $region4: #{net_cell_forward.11} parent=0 // pred_region
    _
  $region5: #{net_cell_forward.11} parent=0 // pred_fallthru
    _
  // Predicated region
  $region6: #{net_cell_forward.11} parent=0 // pred_check
    _
  $region7: #{net_cell_forward.11} parent=0 // pred_check_branch
    %11 = sbr.rel (0) target = $region9
  $region8: #{net_cell_forward.11} parent=0 // pred_region
    _
  $region9: #{net_cell_forward.11} parent=0 // pred_fallthru
    _
  // Predicated region
  $region10: #{net_cell_forward.11} parent=0 // pred_check
    _
  $region11: #{net_cell_forward.11} parent=0 // pred_check_branch
    %13 = sbr.rel (0) target = $region13
  $region12: #{net_cell_forward.11} parent=0 // pred_region
    _
  $region13: #{net_cell_forward.11} parent=0 // pred_fallthru
    _
  %v15 = vld [vmem:[%s0] sm:$0xff]
  %v16 = vld [vmem:[%s0 + $0x8] sm:$0xff]
  %v17 = vpack.c.bf16 %v16, %v15
  %v18 = vld [vmem:[%s1] sm:$0xff]
  %v19 = vld [vmem:[%s1 + $0x8] sm:$0xff]
  %v20 = vld [vmem:[%s1 + $0x10] sm:$0xff]
  %v21 = vld [vmem:[%s1 + $0x18] sm:$0xff]
  %v22 = vld [vmem:[%s1 + $0x20] sm:$0xff]
  %v23 = vld [vmem:[%s1 + $0x28] sm:$0xff]
  %v24 = vld [vmem:[%s1 + $0x30] sm:$0xff]
  %v25 = vld [vmem:[%s1 + $0x38] sm:$0xff]
  %v26 = vld [vmem:[%s1 + $0x40] sm:$0xff]
  %v27 = vld [vmem:[%s1 + $0x48] sm:$0xff]
  %v28 = vld [vmem:[%s1 + $0x50] sm:$0xff]
  %v29 = vld [vmem:[%s1 + $0x58] sm:$0xff]
  %v30 = vld [vmem:[%s1 + $0x60] sm:$0xff]
  %v31 = vld [vmem:[%s1 + $0x68] sm:$0xff]
  %v32 = vld [vmem:[%s1 + $0x70] sm:$0xff]
  %v33 = vld [vmem:[%s1 + $0x78] sm:$0xff]
  %v34 = vld [vmem:[%s2] sm:$0x3]
  %v36 = vlaneseq
  %v37 = vshrl.u32 %v36, 7
  %v38 = vsub.s32 0, %v37
  %v39 = vrot.slane %v34, %v38
  %v40 = vlaneseq
  %v41 = vshrl.u32 %v40, 7
  %v42 = vsub.s32 1, %v41
  %v43 = vrot.slane %v34, %v42
  %v62 = vunpack.c.l.b16 %v18
  %v63 = vunpack.c.h.b16 %v18
  %v64 = vunpack.c.l.b16 %v19
  %v65 = vunpack.c.h.b16 %v19
  %v66 = vunpack.c.l.b16 %v20
  %v67 = vunpack.c.h.b16 %v20
  %v68 = vunpack.c.l.b16 %v21
  %v69 = vunpack.c.h.b16 %v21
  %v70 = vunpack.c.l.b16 %v22
  %v71 = vunpack.c.h.b16 %v22
  %v72 = vunpack.c.l.b16 %v23
  %v73 = vunpack.c.h.b16 %v23
  %v74 = vunpack.c.l.b16 %v24
  %v75 = vunpack.c.h.b16 %v24
  %v76 = vunpack.c.l.b16 %v25
  %v77 = vunpack.c.h.b16 %v25
  %v78 = vunpack.c.l.b16 %v26
  %v79 = vunpack.c.h.b16 %v26
  %v80 = vunpack.c.l.b16 %v27
  %v81 = vunpack.c.h.b16 %v27
  %v82 = vunpack.c.l.b16 %v28
  %v83 = vunpack.c.h.b16 %v28
  %v84 = vunpack.c.l.b16 %v29
  %v85 = vunpack.c.h.b16 %v29
  %v86 = vunpack.c.l.b16 %v30
  %v87 = vunpack.c.h.b16 %v30
  %v88 = vunpack.c.l.b16 %v31
  %v89 = vunpack.c.h.b16 %v31
  %v90 = vunpack.c.l.b16 %v32
  %v91 = vunpack.c.h.b16 %v32
  %v92 = vunpack.c.l.b16 %v33
  %v93 = vunpack.c.h.b16 %v33
  %v94 = vpack.c.b16 %v64, %v62
  %v95 = vpack.c.b16 %v65, %v63
  %v96 = vpack.c.b16 %v68, %v66
  %v97 = vpack.c.b16 %v69, %v67
  %v98 = vpack.c.b16 %v72, %v70
  %v99 = vpack.c.b16 %v73, %v71
  %v100 = vpack.c.b16 %v76, %v74
  %v101 = vpack.c.b16 %v77, %v75
  %v102 = vpack.c.b16 %v80, %v78
  %v103 = vpack.c.b16 %v81, %v79
  %v104 = vpack.c.b16 %v84, %v82
  %v105 = vpack.c.b16 %v85, %v83
  %v106 = vpack.c.b16 %v88, %v86
  %v107 = vpack.c.b16 %v89, %v87
  %v108 = vpack.c.b16 %v92, %v90
  %v109 = vpack.c.b16 %v93, %v91
  %126 = vmatprep.subr.bf16.mxu0 %v109
  %127 = vmatpush1.bf16.msra.mxu0 %v108
  %128 = vmatprep.subr.bf16.mxu0 %v107
  %129 = vmatpush1.bf16.msra.mxu0 %v106
  %130 = vmatprep.subr.bf16.mxu0 %v105
  %131 = vmatpush1.bf16.msra.mxu0 %v104
  %132 = vmatprep.subr.bf16.mxu0 %v103
  %133 = vmatpush1.bf16.msra.mxu0 %v102
  %134 = vmatprep.subr.bf16.mxu0 %v101
  %135 = vmatpush1.bf16.msra.mxu0 %v100
  %136 = vmatprep.subr.bf16.mxu0 %v99
  %137 = vmatpush1.bf16.msra.mxu0 %v98
  %138 = vmatprep.subr.bf16.mxu0 %v97
  %139 = vmatpush1.bf16.msra.mxu0 %v96
  %140 = vmatprep.subr.bf16.mxu0 %v95
  %141 = vmatpush1.bf16.msra.mxu0 %v94
  %142 = vmatprep.subr.bf16.mxu0 0
  %143 = vmatpush2.bf16.msra.mxu0 0
  %144 = vmatprep.subr.bf16.mxu0 0
  %145 = vmatpush2.bf16.msra.mxu0 0
  %146 = vmatprep.subr.bf16.mxu0 0
  %147 = vmatpush2.bf16.msra.mxu0 0
  %148 = vmatprep.subr.bf16.mxu0 0
  %149 = vmatpush2.bf16.msra.mxu0 0
  %150 = vmatprep.subr.bf16.mxu0 0
  %151 = vmatpush2.bf16.msra.mxu0 0
  %152 = vmatprep.subr.bf16.mxu0 0
  %153 = vmatpush2.bf16.msra.mxu0 0
  %154 = vmatprep.subr.bf16.mxu0 0
  %155 = vmatpush2.bf16.msra.mxu0 0
  %156 = vmatprep.subr.bf16.mxu0 0
  %157 = vmatpush2.bf16.msra.mxu0 0
  %158 = vmatprep.mubr.bf16.mxu0 0
  %159 = vmatmul.mubr.bf16.gmra.mxu0 %v17
  %v160 = vpop.f32.mrf.mxu0
  %v161 = vadd.f32 %v39, %v160
  %v162 = vpop.f32.mrf.mxu0
  %v163 = vadd.f32 %v43, %v162
  %v164 = vpop.f32.mrf.mxu0
  %v165 = vadd.f32 %v39, %v164
  %v166 = vpop.f32.mrf.mxu0
  %v167 = vadd.f32 %v43, %v166
  %168 = vdwg.mxu0
  %169 = vst [vmem:[%s3] sm:$0xff] %v161
  %170 = vst [vmem:[%s3 + $0x8] sm:$0xff] %v163
  %171 = vst [vmem:[%s3 + $0x10] sm:$0xff] %v165
  %172 = vst [vmem:[%s3 + $0x18] sm:$0xff] %v167
  // Predicated region
  $region14: #{net_cell_forward.11} parent=0 // pred_check
    _
  $region15: #{net_cell_forward.11} parent=0 // pred_check_branch
    %174 = sbr.rel (0) target = $region17
  $region16: #{net_cell_forward.11} parent=0 // pred_region
    _
  $region17: #{net_cell_forward.11} parent=0 // pred_fallthru
    _
  // Predicated region
  $region18: #{net_cell_forward.11} parent=0 // pred_check
    _
  $region19: #{net_cell_forward.11} parent=0 // pred_check_branch
    %176 = sbr.rel (0) target = $region21
  $region20: #{net_cell_forward.11} parent=0 // pred_region
    _
  $region21: #{net_cell_forward.11} parent=0 // pred_fallthru
    _

// kernel: net_cell_forward.13
$region0: #{net_cell_forward.13}
  #allocation0 [shape = 'u32[]', space=smem, size = 0x4, offset = 0x4, fixed_abs, tag = 'smem constant byte address 0x4 - core index']
  #allocation1 [shape = 'u32[144,128]{1,0:T(1,128)}', space=vmem, size = 0x12000, scoped, tag = 'internal scratch']
  %s0 = inlined_call_operand.vmem [shape: f32[16,128], index: 0, kind: input, shape index: {}]
  %s1 = inlined_call_operand.vmem [shape: bf16[128,4], index: 1, kind: input, shape index: {}]
  %s2 = inlined_call_operand.vmem [shape: f32[1,4], index: 2, kind: input, shape index: {}]
  %s3 = inlined_call_operand.vmem [shape: f32[16,4], index: 3, kind: output, shape index: {}]
  %s4 = sld [smem:[#allocation0]]
  $region22: #{net_cell_forward.13} parent=0
    _
  %s6 = ssub.s32 1, %s4
  %s7 = scalar_select 0, %s6, %s4
  // Predicated region
  $region2: #{net_cell_forward.13} parent=0 // pred_check
    _
  $region3: #{net_cell_forward.13} parent=0 // pred_check_branch
    %9 = sbr.rel (0) target = $region5
  $region4: #{net_cell_forward.13} parent=0 // pred_region
    _
  $region5: #{net_cell_forward.13} parent=0 // pred_fallthru
    _
  // Predicated region
  $region6: #{net_cell_forward.13} parent=0 // pred_check
    _
  $region7: #{net_cell_forward.13} parent=0 // pred_check_branch
    %11 = sbr.rel (0) target = $region9
  $region8: #{net_cell_forward.13} parent=0 // pred_region
    _
  $region9: #{net_cell_forward.13} parent=0 // pred_fallthru
    _
  // Predicated region
  $region10: #{net_cell_forward.13} parent=0 // pred_check
    _
  $region11: #{net_cell_forward.13} parent=0 // pred_check_branch
    %13 = sbr.rel (0) target = $region13
  $region12: #{net_cell_forward.13} parent=0 // pred_region
    _
  $region13: #{net_cell_forward.13} parent=0 // pred_fallthru
    _
  %v15 = vld [vmem:[%s0] sm:$0xff]
  %v16 = vld [vmem:[%s0 + $0x8] sm:$0xff]
  %v17 = vpack.c.bf16 %v16, %v15
  %v18 = vld [vmem:[%s1] sm:$0xf]
  %v19 = vld [vmem:[%s1 + $0x4] sm:$0xf]
  %v20 = vld [vmem:[%s1 + $0x8] sm:$0xf]
  %v21 = vld [vmem:[%s1 + $0xc] sm:$0xf]
  %v22 = vld [vmem:[%s1 + $0x10] sm:$0xf]
  %v23 = vld [vmem:[%s1 + $0x14] sm:$0xf]
  %v24 = vld [vmem:[%s1 + $0x18] sm:$0xf]
  %v25 = vld [vmem:[%s1 + $0x1c] sm:$0xf]
  %v26 = vld [vmem:[%s1 + $0x20] sm:$0xf]
  %v27 = vld [vmem:[%s1 + $0x24] sm:$0xf]
  %v28 = vld [vmem:[%s1 + $0x28] sm:$0xf]
  %v29 = vld [vmem:[%s1 + $0x2c] sm:$0xf]
  %v30 = vld [vmem:[%s1 + $0x30] sm:$0xf]
  %v31 = vld [vmem:[%s1 + $0x34] sm:$0xf]
  %v32 = vld [vmem:[%s1 + $0x38] sm:$0xf]
  %v33 = vld [vmem:[%s1 + $0x3c] sm:$0xf]
  %v34 = vld [vmem:[%s2] sm:$0x1]
  %v36 = vlaneseq
  %v37 = vshrl.u32 %v36, 7
  %v38 = vsub.s32 0, %v37
  %v39 = vrot.slane %v34, %v38
  %v57 = vunpack.c.l.b16 %v18
  %v58 = vunpack.c.l.b16 %v19
  %v59 = vunpack.c.l.b16 %v20
  %v60 = vunpack.c.l.b16 %v21
  %v61 = vunpack.c.l.b16 %v22
  %v62 = vunpack.c.l.b16 %v23
  %v63 = vunpack.c.l.b16 %v24
  %v64 = vunpack.c.l.b16 %v25
  %v65 = vunpack.c.l.b16 %v26
  %v66 = vunpack.c.l.b16 %v27
  %v67 = vunpack.c.l.b16 %v28
  %v68 = vunpack.c.l.b16 %v29
  %v69 = vunpack.c.l.b16 %v30
  %v70 = vunpack.c.l.b16 %v31
  %v71 = vunpack.c.l.b16 %v32
  %v72 = vunpack.c.l.b16 %v33
  %v73 = vpack.c.b16 %v58, %v57
  %v74 = vpack.c.b16 %v60, %v59
  %v75 = vpack.c.b16 %v62, %v61
  %v76 = vpack.c.b16 %v64, %v63
  %v77 = vpack.c.b16 %v66, %v65
  %v78 = vpack.c.b16 %v68, %v67
  %v79 = vpack.c.b16 %v70, %v69
  %v80 = vpack.c.b16 %v72, %v71
  %89 = vmatprep.subr.bf16.mxu0 0
  %90 = vmatpush1.bf16.msra.mxu0 %v80
  %91 = vmatprep.subr.bf16.mxu0 0
  %92 = vmatpush1.bf16.msra.mxu0 %v79
  %93 = vmatprep.subr.bf16.mxu0 0
  %94 = vmatpush1.bf16.msra.mxu0 %v78
  %95 = vmatprep.subr.bf16.mxu0 0
  %96 = vmatpush1.bf16.msra.mxu0 %v77
  %97 = vmatprep.subr.bf16.mxu0 0
  %98 = vmatpush1.bf16.msra.mxu0 %v76
  %99 = vmatprep.subr.bf16.mxu0 0
  %100 = vmatpush1.bf16.msra.mxu0 %v75
  %101 = vmatprep.subr.bf16.mxu0 0
  %102 = vmatpush1.bf16.msra.mxu0 %v74
  %103 = vmatprep.subr.bf16.mxu0 0
  %104 = vmatpush1.bf16.msra.mxu0 %v73
  %105 = vmatprep.subr.bf16.mxu0 0
  %106 = vmatpush2.bf16.msra.mxu0 0
  %107 = vmatprep.subr.bf16.mxu0 0
  %108 = vmatpush2.bf16.msra.mxu0 0
  %109 = vmatprep.subr.bf16.mxu0 0
  %110 = vmatpush2.bf16.msra.mxu0 0
  %111 = vmatprep.subr.bf16.mxu0 0
  %112 = vmatpush2.bf16.msra.mxu0 0
  %113 = vmatprep.subr.bf16.mxu0 0
  %114 = vmatpush2.bf16.msra.mxu0 0
  %115 = vmatprep.subr.bf16.mxu0 0
  %116 = vmatpush2.bf16.msra.mxu0 0
  %117 = vmatprep.subr.bf16.mxu0 0
  %118 = vmatpush2.bf16.msra.mxu0 0
  %119 = vmatprep.subr.bf16.mxu0 0
  %120 = vmatpush2.bf16.msra.mxu0 0
  %121 = vmatprep.mubr.bf16.mxu0 0
  %122 = vmatmul.mubr.bf16.gmra.mxu0 %v17
  %v123 = vpop.f32.mrf.mxu0
  %v124 = vadd.f32 %v39, %v123
  %v125 = vpop.f32.mrf.mxu0
  %v126 = vpop.f32.mrf.mxu0
  %v127 = vadd.f32 %v39, %v126
  %v128 = vpop.f32.mrf.mxu0
  %129 = vdwg.mxu0
  %vm130 = vcmask 31744
  %131 = vst.msk [vmem:[%s3] sm:$0xff] %vm130, %v124
  %132 = vst.msk [vmem:[%s3 + $0x8] sm:$0xff] %vm130, %v127
  // Predicated region
  $region14: #{net_cell_forward.13} parent=0 // pred_check
    _
  $region15: #{net_cell_forward.13} parent=0 // pred_check_branch
    %134 = sbr.rel (0) target = $region17
  $region16: #{net_cell_forward.13} parent=0 // pred_region
    _
  $region17: #{net_cell_forward.13} parent=0 // pred_fallthru
    _
  // Predicated region
  $region18: #{net_cell_forward.13} parent=0 // pred_check
    _
  $region19: #{net_cell_forward.13} parent=0 // pred_check_branch
    %136 = sbr.rel (0) target = $region21
  $region20: #{net_cell_forward.13} parent=0 // pred_region
    _
  $region21: #{net_cell_forward.13} parent=0 // pred_fallthru
    _

// kernel: net_cell_forward.8
$region0: #{net_cell_forward.8}
  #allocation0 [shape = 'u32[]', space=smem, size = 0x4, offset = 0x4, fixed_abs, tag = 'smem constant byte address 0x4 - core index']
  #allocation1 [shape = 'u32[144,128]{1,0:T(1,128)}', space=vmem, size = 0x12000, scoped, tag = 'internal scratch']
  #allocation2 [shape = 'f32[2,16,1]{2,1,0:T(8,128)}', space=vmem, size = 0x4000, scoped, tag = 'scratch operand']
  #allocation3 [shape = 'f32[2,16,1]{2,1,0:T(8,128)}', space=vmem, size = 0x4000, scoped, tag = 'scratch operand']
  #allocation4 [shape = 'f32[2,16,8]{2,1,0:T(8,128)}', space=vmem, size = 0x4000, scoped, tag = 'scratch operand']
  %s0 = inlined_call_operand.vmem [shape: f32[16,32], index: 0, kind: input, shape index: {}, may-alias: {0,1}]
  %s1 = inlined_call_operand.vmem [shape: f32[16,32], index: 1, kind: input, shape index: {}, may-alias: {0,1}]
  %s2 = inlined_call_operand.vmem [shape: f32[2,1,8], index: 2, kind: input, shape index: {}]
  %s3 = inlined_call_operand.vmem [shape: f32[2,1,8], index: 3, kind: input, shape index: {}]
  %s4 = inlined_call_operand.vmem [shape: bf16[16,16], index: 4, kind: input, shape index: {}]
  %s5 = inlined_call_operand.vmem [shape: f32[16,16], index: 5, kind: output, shape index: {}]
  %s6 = sld [smem:[#allocation0]]
  $region38: #{net_cell_forward.8} parent=0
    _
  %s8 = ssub.s32 1, %s6
  %s9 = scalar_select 0, %s8, %s6
  // Predicated region
  $region2: #{net_cell_forward.8} parent=0 // pred_check
    _
  $region3: #{net_cell_forward.8} parent=0 // pred_check_branch
    %11 = sbr.rel (0) target = $region5
  $region4: #{net_cell_forward.8} parent=0 // pred_region
    _
  $region5: #{net_cell_forward.8} parent=0 // pred_fallthru
    _
  // Predicated region
  $region6: #{net_cell_forward.8} parent=0 // pred_check
    _
  $region7: #{net_cell_forward.8} parent=0 // pred_check_branch
    %13 = sbr.rel (0) target = $region9
  $region8: #{net_cell_forward.8} parent=0 // pred_region
    _
  $region9: #{net_cell_forward.8} parent=0 // pred_fallthru
    _
  // Predicated region
  $region10: #{net_cell_forward.8} parent=0 // pred_check
    _
  $region11: #{net_cell_forward.8} parent=0 // pred_check_branch
    %15 = sbr.rel (0) target = $region13
  $region12: #{net_cell_forward.8} parent=0 // pred_region
    _
  $region13: #{net_cell_forward.8} parent=0 // pred_fallthru
    _
  // Predicated region
  $region14: #{net_cell_forward.8} parent=0 // pred_check
    _
  $region15: #{net_cell_forward.8} parent=0 // pred_check_branch
    %17 = sbr.rel (0) target = $region17
  $region16: #{net_cell_forward.8} parent=0 // pred_region
    _
  $region17: #{net_cell_forward.8} parent=0 // pred_fallthru
    _
  // Predicated region
  $region18: #{net_cell_forward.8} parent=0 // pred_check
    _
  $region19: #{net_cell_forward.8} parent=0 // pred_check_branch
    %19 = sbr.rel (0) target = $region21
  $region20: #{net_cell_forward.8} parent=0 // pred_region
    _
  $region21: #{net_cell_forward.8} parent=0 // pred_fallthru
    _
  %p21 = scmp.eq.s32.totalorder 0, 0
  // Predicated region
  $region22: #{net_cell_forward.8} parent=0 // pred_check
    %p22 = pneg %p21
  $region23: #{net_cell_forward.8} parent=0 // pred_check_branch
    %24 = sbr.rel (%p22) target = $region25
  $region24: #{net_cell_forward.8} parent=0 // pred_region
    %vm25 = vcmask 7168
    %26 = vst.msk [vmem:[#allocation2] sm:$0xff] %vm25, -1e+30
    %27 = vst.msk [vmem:[#allocation2 + $0x8] sm:$0xff] %vm25, -1e+30
    %28 = vst.msk [vmem:[#allocation2 + $0x10] sm:$0xff] %vm25, -1e+30
    %29 = vst.msk [vmem:[#allocation2 + $0x18] sm:$0xff] %vm25, -1e+30
    %30 = vst.msk [vmem:[#allocation3] sm:$0xff] %vm25, 0.0
    %31 = vst.msk [vmem:[#allocation3 + $0x8] sm:$0xff] %vm25, 0.0
    %32 = vst.msk [vmem:[#allocation3 + $0x10] sm:$0xff] %vm25, 0.0
    %33 = vst.msk [vmem:[#allocation3 + $0x18] sm:$0xff] %vm25, 0.0
    %vm34 = vcmask 64512
    %35 = vst.msk [vmem:[#allocation4] sm:$0xff] %vm34, 0.0
    %36 = vst.msk [vmem:[#allocation4 + $0x8] sm:$0xff] %vm34, 0.0
    %37 = vst.msk [vmem:[#allocation4 + $0x10] sm:$0xff] %vm34, 0.0
    %38 = vst.msk [vmem:[#allocation4 + $0x18] sm:$0xff] %vm34, 0.0
  $region25: #{net_cell_forward.8} parent=0 // pred_fallthru
    _
  %v39 = vld [vmem:[%s4] sm:$0xf]
  %v40 = vld [vmem:[%s4 + $0x4] sm:$0xf]
  %v41 = vunpack.c.l.bf16 %v39
  %v42 = vunpack.c.l.bf16 %v40
  %v43 = vld [vmem:[%s1] sm:$0xff]
  %v44 = vld [vmem:[%s1 + $0x8] sm:$0xff]
  %v45 = vpack.c.bf16 %v44, %v43
  %v46 = vld [vmem:[%s0] sm:$0xff]
  %v47 = vld [vmem:[%s0 + $0x8] sm:$0xff]
  %v48 = vld [vmem:[%s2] sm:$0x1]
  %v51 = vcombine.high %v46, %v46
  %v53 = vunpack.c.l.s4 1966171168
  %v54 = vunpack.c.0.s8 %v53
  %v55 = vlaneseq
  %v56 = vshrl.u32 %v55, 7
  %v57 = vsub.s32 %v54, %v56
  %v58 = vrot.slane %v46, %v57
  %v60 = vunpack.c.l.s4 1966171168
  %v61 = vunpack.c.0.s8 %v60
  %v62 = vlaneseq
  %v63 = vshrl.u32 %v62, 7
  %v64 = vsub.s32 %v61, %v63
  %v65 = vrot.slane %v51, %v64
  %v66 = vcombine.high %v58, %v58
  %v67 = vcombine.high %v65, %v65
  %v69 = vunpack.c.l.s4 1966171168
  %v70 = vunpack.c.0.s8 %v69
  %v71 = vlaneseq
  %v72 = vshrl.u32 %v71, 7
  %v73 = vsub.s32 %v70, %v72
  %v74 = vrot.slane %v58, %v73
  %v76 = vunpack.c.l.s4 1966171168
  %v77 = vunpack.c.0.s8 %v76
  %v78 = vlaneseq
  %v79 = vshrl.u32 %v78, 7
  %v80 = vsub.s32 %v77, %v79
  %v81 = vrot.slane %v65, %v80
  %v83 = vunpack.c.l.s4 1966171168
  %v84 = vunpack.c.0.s8 %v83
  %v85 = vlaneseq
  %v86 = vshrl.u32 %v85, 7
  %v87 = vsub.s32 %v84, %v86
  %v88 = vrot.slane %v66, %v87
  %v90 = vunpack.c.l.s4 1966171168
  %v91 = vunpack.c.0.s8 %v90
  %v92 = vlaneseq
  %v93 = vshrl.u32 %v92, 7
  %v94 = vsub.s32 %v91, %v93
  %v95 = vrot.slane %v67, %v94
  %v96 = vcombine.high %v74, %v74
  %v97 = vcombine.high %v81, %v81
  %v98 = vcombine.high %v88, %v88
  %v99 = vcombine.high %v95, %v95
  %v100 = vcombine.high %v47, %v47
  %v102 = vunpack.c.l.s4 1966171168
  %v103 = vunpack.c.0.s8 %v102
  %v104 = vlaneseq
  %v105 = vshrl.u32 %v104, 7
  %v106 = vsub.s32 %v103, %v105
  %v107 = vrot.slane %v47, %v106
  %v109 = vunpack.c.l.s4 1966171168
  %v110 = vunpack.c.0.s8 %v109
  %v111 = vlaneseq
  %v112 = vshrl.u32 %v111, 7
  %v113 = vsub.s32 %v110, %v112
  %v114 = vrot.slane %v100, %v113
  %v115 = vcombine.high %v107, %v107
  %v116 = vcombine.high %v114, %v114
  %v118 = vunpack.c.l.s4 1966171168
  %v119 = vunpack.c.0.s8 %v118
  %v120 = vlaneseq
  %v121 = vshrl.u32 %v120, 7
  %v122 = vsub.s32 %v119, %v121
  %v123 = vrot.slane %v107, %v122
  %v125 = vunpack.c.l.s4 1966171168
  %v126 = vunpack.c.0.s8 %v125
  %v127 = vlaneseq
  %v128 = vshrl.u32 %v127, 7
  %v129 = vsub.s32 %v126, %v128
  %v130 = vrot.slane %v114, %v129
  %v132 = vunpack.c.l.s4 1966171168
  %v133 = vunpack.c.0.s8 %v132
  %v134 = vlaneseq
  %v135 = vshrl.u32 %v134, 7
  %v136 = vsub.s32 %v133, %v135
  %v137 = vrot.slane %v115, %v136
  %v139 = vunpack.c.l.s4 1966171168
  %v140 = vunpack.c.0.s8 %v139
  %v141 = vlaneseq
  %v142 = vshrl.u32 %v141, 7
  %v143 = vsub.s32 %v140, %v142
  %v144 = vrot.slane %v116, %v143
  %v145 = vcombine.high %v123, %v123
  %v146 = vcombine.high %v130, %v130
  %v147 = vcombine.high %v137, %v137
  %v148 = vcombine.high %v144, %v144
  %v149 = vlaneseq
  %v150 = vshrl.u32 %v149, 7
  %v151 = vsub.s32 0, %v150
  %v152 = vrot.slane %v74, %v151
  %v153 = vlaneseq
  %v154 = vshrl.u32 %v153, 7
  %v155 = vsub.s32 0, %v154
  %v156 = vrot.slane %v88, %v155
  %v157 = vlaneseq
  %v158 = vshrl.u32 %v157, 7
  %v159 = vsub.s32 0, %v158
  %v160 = vrot.slane %v96, %v159
  %v161 = vlaneseq
  %v162 = vshrl.u32 %v161, 7
  %v163 = vsub.s32 0, %v162
  %v164 = vrot.slane %v98, %v163
  %v165 = vlaneseq
  %v166 = vshrl.u32 %v165, 7
  %v167 = vsub.s32 0, %v166
  %v168 = vrot.slane %v81, %v167
  %v169 = vlaneseq
  %v170 = vshrl.u32 %v169, 7
  %v171 = vsub.s32 0, %v170
  %v172 = vrot.slane %v95, %v171
  %v173 = vlaneseq
  %v174 = vshrl.u32 %v173, 7
  %v175 = vsub.s32 0, %v174
  %v176 = vrot.slane %v97, %v175
  %v177 = vlaneseq
  %v178 = vshrl.u32 %v177, 7
  %v179 = vsub.s32 0, %v178
  %v180 = vrot.slane %v99, %v179
  %v181 = vlaneseq
  %v182 = vshrl.u32 %v181, 7
  %v183 = vsub.s32 0, %v182
  %v184 = vrot.slane %v123, %v183
  %v185 = vlaneseq
  %v186 = vshrl.u32 %v185, 7
  %v187 = vsub.s32 0, %v186
  %v188 = vrot.slane %v137, %v187
  %v189 = vlaneseq
  %v190 = vshrl.u32 %v189, 7
  %v191 = vsub.s32 0, %v190
  %v192 = vrot.slane %v145, %v191
  %v193 = vlaneseq
  %v194 = vshrl.u32 %v193, 7
  %v195 = vsub.s32 0, %v194
  %v196 = vrot.slane %v147, %v195
  %v197 = vlaneseq
  %v198 = vshrl.u32 %v197, 7
  %v199 = vsub.s32 0, %v198
  %v200 = vrot.slane %v130, %v199
  %v201 = vlaneseq
  %v202 = vshrl.u32 %v201, 7
  %v203 = vsub.s32 0, %v202
  %v204 = vrot.slane %v144, %v203
  %v205 = vlaneseq
  %v206 = vshrl.u32 %v205, 7
  %v207 = vsub.s32 0, %v206
  %v208 = vrot.slane %v146, %v207
  %v209 = vlaneseq
  %v210 = vshrl.u32 %v209, 7
  %v211 = vsub.s32 0, %v210
  %v212 = vrot.slane %v148, %v211
  %231 = vrot.lane.b32.xlu0 %v43, 16
  %v232 = vpop.permute.xlu0 %231
  %233 = vrot.lane.b32.xlu0 %v44, 16
  %v234 = vpop.permute.xlu0 %233
  %v237 = vadd.f32 %v152, %v232
  %v238 = vadd.f32 %v152, %v234
  %v239 = vadd.f32 %v156, %v232
  %v240 = vadd.f32 %v156, %v234
  %v241 = vadd.f32 %v160, %v232
  %v242 = vadd.f32 %v160, %v234
  %v243 = vadd.f32 %v164, %v232
  %v244 = vadd.f32 %v164, %v234
  %v245 = vadd.f32 %v168, %v232
  %v246 = vadd.f32 %v168, %v234
  %v247 = vadd.f32 %v172, %v232
  %v248 = vadd.f32 %v172, %v234
  %v249 = vadd.f32 %v176, %v232
  %v250 = vadd.f32 %v176, %v234
  %v251 = vadd.f32 %v180, %v232
  %v252 = vadd.f32 %v180, %v234
  %v253 = vadd.f32 %v184, %v232
  %v254 = vadd.f32 %v184, %v234
  %v255 = vadd.f32 %v188, %v232
  %v256 = vadd.f32 %v188, %v234
  %v257 = vadd.f32 %v192, %v232
  %v258 = vadd.f32 %v192, %v234
  %v259 = vadd.f32 %v196, %v232
  %v260 = vadd.f32 %v196, %v234
  %v261 = vadd.f32 %v200, %v232
  %v262 = vadd.f32 %v200, %v234
  %v263 = vadd.f32 %v204, %v232
  %v264 = vadd.f32 %v204, %v234
  %v265 = vadd.f32 %v208, %v232
  %v266 = vadd.f32 %v208, %v234
  %v267 = vadd.f32 %v212, %v232
  %v268 = vadd.f32 %v212, %v234
  %v269 = vmul.f32 %v237, 0.2
  %v270 = vmul.f32 %v238, 0.2
  %v271 = vmul.f32 %v239, 0.2
  %v272 = vmul.f32 %v240, 0.2
  %v273 = vmul.f32 %v241, 0.2
  %v274 = vmul.f32 %v242, 0.2
  %v275 = vmul.f32 %v243, 0.2
  %v276 = vmul.f32 %v244, 0.2
  %v277 = vmul.f32 %v245, 0.2
  %v278 = vmul.f32 %v246, 0.2
  %v279 = vmul.f32 %v247, 0.2
  %v280 = vmul.f32 %v248, 0.2
  %v281 = vmul.f32 %v249, 0.2
  %v282 = vmul.f32 %v250, 0.2
  %v283 = vmul.f32 %v251, 0.2
  %v284 = vmul.f32 %v252, 0.2
  %v285 = vmul.f32 %v253, 0.2
  %v286 = vmul.f32 %v254, 0.2
  %v287 = vmul.f32 %v255, 0.2
  %v288 = vmul.f32 %v256, 0.2
  %v289 = vmul.f32 %v257, 0.2
  %v290 = vmul.f32 %v258, 0.2
  %v291 = vmul.f32 %v259, 0.2
  %v292 = vmul.f32 %v260, 0.2
  %v293 = vmul.f32 %v261, 0.2
  %v294 = vmul.f32 %v262, 0.2
  %v295 = vmul.f32 %v263, 0.2
  %v296 = vmul.f32 %v264, 0.2
  %v297 = vmul.f32 %v265, 0.2
  %v298 = vmul.f32 %v266, 0.2
  %v299 = vmul.f32 %v267, 0.2
  %v300 = vmul.f32 %v268, 0.2
  %v301 = vmax.f32 %v237, %v269
  %v302 = vmax.f32 %v238, %v270
  %v303 = vmax.f32 %v239, %v271
  %v304 = vmax.f32 %v240, %v272
  %v305 = vmax.f32 %v241, %v273
  %v306 = vmax.f32 %v242, %v274
  %v307 = vmax.f32 %v243, %v275
  %v308 = vmax.f32 %v244, %v276
  %v309 = vmax.f32 %v245, %v277
  %v310 = vmax.f32 %v246, %v278
  %v311 = vmax.f32 %v247, %v279
  %v312 = vmax.f32 %v248, %v280
  %v313 = vmax.f32 %v249, %v281
  %v314 = vmax.f32 %v250, %v282
  %v315 = vmax.f32 %v251, %v283
  %v316 = vmax.f32 %v252, %v284
  %v317 = vmax.f32 %v253, %v285
  %v318 = vmax.f32 %v254, %v286
  %v319 = vmax.f32 %v255, %v287
  %v320 = vmax.f32 %v256, %v288
  %v321 = vmax.f32 %v257, %v289
  %v322 = vmax.f32 %v258, %v290
  %v323 = vmax.f32 %v259, %v291
  %v324 = vmax.f32 %v260, %v292
  %v325 = vmax.f32 %v261, %v293
  %v326 = vmax.f32 %v262, %v294
  %v327 = vmax.f32 %v263, %v295
  %v328 = vmax.f32 %v264, %v296
  %v329 = vmax.f32 %v265, %v297
  %v330 = vmax.f32 %v266, %v298
  %v331 = vmax.f32 %v267, %v299
  %v332 = vmax.f32 %v268, %v300
  %v334 = vlaneseq
  %v335 = vshrl.u32 %v334, 7
  %v336 = vsub.s32 0, %v335
  %v337 = vrot.slane %v48, %v336
  %338 = vrot.lane.b32.xlu0 %v337, 16
  %v339 = vpop.permute.xlu0 %338
  %v341 = vmul.f32 %v301, %v339
  %v342 = vmul.f32 %v302, %v339
  %v343 = vmul.f32 %v303, %v339
  %v344 = vmul.f32 %v304, %v339
  %v345 = vmul.f32 %v305, %v339
  %v346 = vmul.f32 %v306, %v339
  %v347 = vmul.f32 %v307, %v339
  %v348 = vmul.f32 %v308, %v339
  %v349 = vmul.f32 %v309, %v339
  %v350 = vmul.f32 %v310, %v339
  %v351 = vmul.f32 %v311, %v339
  %v352 = vmul.f32 %v312, %v339
  %v353 = vmul.f32 %v313, %v339
  %v354 = vmul.f32 %v314, %v339
  %v355 = vmul.f32 %v315, %v339
  %v356 = vmul.f32 %v316, %v339
  %v357 = vmul.f32 %v317, %v339
  %v358 = vmul.f32 %v318, %v339
  %v359 = vmul.f32 %v319, %v339
  %v360 = vmul.f32 %v320, %v339
  %v361 = vmul.f32 %v321, %v339
  %v362 = vmul.f32 %v322, %v339
  %v363 = vmul.f32 %v323, %v339
  %v364 = vmul.f32 %v324, %v339
  %v365 = vmul.f32 %v325, %v339
  %v366 = vmul.f32 %v326, %v339
  %v367 = vmul.f32 %v327, %v339
  %v368 = vmul.f32 %v328, %v339
  %v369 = vmul.f32 %v329, %v339
  %v370 = vmul.f32 %v330, %v339
  %v371 = vmul.f32 %v331, %v339
  %v372 = vmul.f32 %v332, %v339
  %405 = vrot.lane.b32.xlu0 %v341, 112
  %v406 = vpop.permute.xlu0 %405
  %407 = vrot.lane.b32.xlu0 %v342, 112
  %v408 = vpop.permute.xlu0 %407
  %409 = vrot.lane.b32.xlu0 %v343, 112
  %v410 = vpop.permute.xlu0 %409
  %411 = vrot.lane.b32.xlu0 %v344, 112
  %v412 = vpop.permute.xlu0 %411
  %413 = vrot.lane.b32.xlu0 %v345, 112
  %v414 = vpop.permute.xlu0 %413
  %415 = vrot.lane.b32.xlu0 %v346, 112
  %v416 = vpop.permute.xlu0 %415
  %417 = vrot.lane.b32.xlu0 %v347, 112
  %v418 = vpop.permute.xlu0 %417
  %419 = vrot.lane.b32.xlu0 %v348, 112
  %v420 = vpop.permute.xlu0 %419
  %421 = vrot.lane.b32.xlu0 %v349, 112
  %v422 = vpop.permute.xlu0 %421
  %423 = vrot.lane.b32.xlu0 %v350, 112
  %v424 = vpop.permute.xlu0 %423
  %425 = vrot.lane.b32.xlu0 %v351, 112
  %v426 = vpop.permute.xlu0 %425
  %427 = vrot.lane.b32.xlu0 %v352, 112
  %v428 = vpop.permute.xlu0 %427
  %429 = vrot.lane.b32.xlu0 %v353, 112
  %v430 = vpop.permute.xlu0 %429
  %431 = vrot.lane.b32.xlu0 %v354, 112
  %v432 = vpop.permute.xlu0 %431
  %433 = vrot.lane.b32.xlu0 %v355, 112
  %v434 = vpop.permute.xlu0 %433
  %435 = vrot.lane.b32.xlu0 %v356, 112
  %v436 = vpop.permute.xlu0 %435
  %437 = vrot.lane.b32.xlu0 %v357, 112
  %v438 = vpop.permute.xlu0 %437
  %439 = vrot.lane.b32.xlu0 %v358, 112
  %v440 = vpop.permute.xlu0 %439
  %441 = vrot.lane.b32.xlu0 %v359, 112
  %v442 = vpop.permute.xlu0 %441
  %443 = vrot.lane.b32.xlu0 %v360, 112
  %v444 = vpop.permute.xlu0 %443
  %445 = vrot.lane.b32.xlu0 %v361, 112
  %v446 = vpop.permute.xlu0 %445
  %447 = vrot.lane.b32.xlu0 %v362, 112
  %v448 = vpop.permute.xlu0 %447
  %449 = vrot.lane.b32.xlu0 %v363, 112
  %v450 = vpop.permute.xlu0 %449
  %451 = vrot.lane.b32.xlu0 %v364, 112
  %v452 = vpop.permute.xlu0 %451
  %453 = vrot.lane.b32.xlu0 %v365, 112
  %v454 = vpop.permute.xlu0 %453
  %455 = vrot.lane.b32.xlu0 %v366, 112
  %v456 = vpop.permute.xlu0 %455
  %457 = vrot.lane.b32.xlu0 %v367, 112
  %v458 = vpop.permute.xlu0 %457
  %459 = vrot.lane.b32.xlu0 %v368, 112
  %v460 = vpop.permute.xlu0 %459
  %461 = vrot.lane.b32.xlu0 %v369, 112
  %v462 = vpop.permute.xlu0 %461
  %463 = vrot.lane.b32.xlu0 %v370, 112
  %v464 = vpop.permute.xlu0 %463
  %465 = vrot.lane.b32.xlu0 %v371, 112
  %v466 = vpop.permute.xlu0 %465
  %467 = vrot.lane.b32.xlu0 %v372, 112
  %v468 = vpop.permute.xlu0 %467
  %vm501 = vcmask 64512
  %v502 = vsel %vm501, %v406, 0.0
  %503 = vadd.xlane.f32.xlu0 %v502
  %v504 = vpop.xlane.xlu0 %503
  %v505 = vsel %vm501, %v408, 0.0
  %506 = vadd.xlane.f32.xlu0 %v505
  %v507 = vpop.xlane.xlu0 %506
  %v508 = vsel %vm501, %v410, 0.0
  %509 = vadd.xlane.f32.xlu0 %v508
  %v510 = vpop.xlane.xlu0 %509
  %v511 = vsel %vm501, %v412, 0.0
  %512 = vadd.xlane.f32.xlu0 %v511
  %v513 = vpop.xlane.xlu0 %512
  %v514 = vsel %vm501, %v414, 0.0
  %515 = vadd.xlane.f32.xlu0 %v514
  %v516 = vpop.xlane.xlu0 %515
  %v517 = vsel %vm501, %v416, 0.0
  %518 = vadd.xlane.f32.xlu0 %v517
  %v519 = vpop.xlane.xlu0 %518
  %v520 = vsel %vm501, %v418, 0.0
  %521 = vadd.xlane.f32.xlu0 %v520
  %v522 = vpop.xlane.xlu0 %521
  %v523 = vsel %vm501, %v420, 0.0
  %524 = vadd.xlane.f32.xlu0 %v523
  %v525 = vpop.xlane.xlu0 %524
  %v526 = vsel %vm501, %v422, 0.0
  %527 = vadd.xlane.f32.xlu0 %v526
  %v528 = vpop.xlane.xlu0 %527
  %v529 = vsel %vm501, %v424, 0.0
  %530 = vadd.xlane.f32.xlu0 %v529
  %v531 = vpop.xlane.xlu0 %530
  %v532 = vsel %vm501, %v426, 0.0
  %533 = vadd.xlane.f32.xlu0 %v532
  %v534 = vpop.xlane.xlu0 %533
  %v535 = vsel %vm501, %v428, 0.0
  %536 = vadd.xlane.f32.xlu0 %v535
  %v537 = vpop.xlane.xlu0 %536
  %v538 = vsel %vm501, %v430, 0.0
  %539 = vadd.xlane.f32.xlu0 %v538
  %v540 = vpop.xlane.xlu0 %539
  %v541 = vsel %vm501, %v432, 0.0
  %542 = vadd.xlane.f32.xlu0 %v541
  %v543 = vpop.xlane.xlu0 %542
  %v544 = vsel %vm501, %v434, 0.0
  %545 = vadd.xlane.f32.xlu0 %v544
  %v546 = vpop.xlane.xlu0 %545
  %v547 = vsel %vm501, %v436, 0.0
  %548 = vadd.xlane.f32.xlu0 %v547
  %v549 = vpop.xlane.xlu0 %548
  %v550 = vsel %vm501, %v438, 0.0
  %551 = vadd.xlane.f32.xlu0 %v550
  %v552 = vpop.xlane.xlu0 %551
  %v553 = vsel %vm501, %v440, 0.0
  %554 = vadd.xlane.f32.xlu0 %v553
  %v555 = vpop.xlane.xlu0 %554
  %v556 = vsel %vm501, %v442, 0.0
  %557 = vadd.xlane.f32.xlu0 %v556
  %v558 = vpop.xlane.xlu0 %557
  %v559 = vsel %vm501, %v444, 0.0
  %560 = vadd.xlane.f32.xlu0 %v559
  %v561 = vpop.xlane.xlu0 %560
  %v562 = vsel %vm501, %v446, 0.0
  %563 = vadd.xlane.f32.xlu0 %v562
  %v564 = vpop.xlane.xlu0 %563
  %v565 = vsel %vm501, %v448, 0.0
  %566 = vadd.xlane.f32.xlu0 %v565
  %v567 = vpop.xlane.xlu0 %566
  %v568 = vsel %vm501, %v450, 0.0
  %569 = vadd.xlane.f32.xlu0 %v568
  %v570 = vpop.xlane.xlu0 %569
  %v571 = vsel %vm501, %v452, 0.0
  %572 = vadd.xlane.f32.xlu0 %v571
  %v573 = vpop.xlane.xlu0 %572
  %v574 = vsel %vm501, %v454, 0.0
  %575 = vadd.xlane.f32.xlu0 %v574
  %v576 = vpop.xlane.xlu0 %575
  %v577 = vsel %vm501, %v456, 0.0
  %578 = vadd.xlane.f32.xlu0 %v577
  %v579 = vpop.xlane.xlu0 %578
  %v580 = vsel %vm501, %v458, 0.0
  %581 = vadd.xlane.f32.xlu0 %v580
  %v582 = vpop.xlane.xlu0 %581
  %v583 = vsel %vm501, %v460, 0.0
  %584 = vadd.xlane.f32.xlu0 %v583
  %v585 = vpop.xlane.xlu0 %584
  %v586 = vsel %vm501, %v462, 0.0
  %587 = vadd.xlane.f32.xlu0 %v586
  %v588 = vpop.xlane.xlu0 %587
  %v589 = vsel %vm501, %v464, 0.0
  %590 = vadd.xlane.f32.xlu0 %v589
  %v591 = vpop.xlane.xlu0 %590
  %v592 = vsel %vm501, %v466, 0.0
  %593 = vadd.xlane.f32.xlu0 %v592
  %v594 = vpop.xlane.xlu0 %593
  %v595 = vsel %vm501, %v468, 0.0
  %596 = vadd.xlane.f32.xlu0 %v595
  %v597 = vpop.xlane.xlu0 %596
  %v600 = vlaneseq
  %v601 = vshrl.u32 %v600, 7
  %v602 = vsub.s32 0, %v601
  %v603 = vrot.slane %v41, %v602
  %605 = vbcast.lane.b32.xlu0 %v603, 256
  %v606 = vpop.permute.xlu0 %605
  %s608 = sor.u32 256, 8
  %609 = vbcast.lane.b32.xlu0 %v603, %s608
  %v610 = vpop.permute.xlu0 %609
  %v611 = vlaneseq
  %v612 = vshrl.u32 %v611, 7
  %v613 = vsub.s32 1, %v612
  %v614 = vrot.slane %v41, %v613
  %616 = vbcast.lane.b32.xlu0 %v614, 256
  %v617 = vpop.permute.xlu0 %616
  %s619 = sor.u32 256, 8
  %620 = vbcast.lane.b32.xlu0 %v614, %s619
  %v621 = vpop.permute.xlu0 %620
  %v622 = vlaneseq
  %v623 = vshrl.u32 %v622, 7
  %v624 = vsub.s32 2, %v623
  %v625 = vrot.slane %v41, %v624
  %627 = vbcast.lane.b32.xlu0 %v625, 256
  %v628 = vpop.permute.xlu0 %627
  %s630 = sor.u32 256, 8
  %631 = vbcast.lane.b32.xlu0 %v625, %s630
  %v632 = vpop.permute.xlu0 %631
  %v633 = vlaneseq
  %v634 = vshrl.u32 %v633, 7
  %v635 = vsub.s32 3, %v634
  %v636 = vrot.slane %v41, %v635
  %638 = vbcast.lane.b32.xlu0 %v636, 256
  %v639 = vpop.permute.xlu0 %638
  %s641 = sor.u32 256, 8
  %642 = vbcast.lane.b32.xlu0 %v636, %s641
  %v643 = vpop.permute.xlu0 %642
  %v644 = vlaneseq
  %v645 = vshrl.u32 %v644, 7
  %v646 = vsub.s32 4, %v645
  %v647 = vrot.slane %v41, %v646
  %649 = vbcast.lane.b32.xlu0 %v647, 256
  %v650 = vpop.permute.xlu0 %649
  %s652 = sor.u32 256, 8
  %653 = vbcast.lane.b32.xlu0 %v647, %s652
  %v654 = vpop.permute.xlu0 %653
  %v655 = vlaneseq
  %v656 = vshrl.u32 %v655, 7
  %v657 = vsub.s32 5, %v656
  %v658 = vrot.slane %v41, %v657
  %660 = vbcast.lane.b32.xlu0 %v658, 256
  %v661 = vpop.permute.xlu0 %660
  %s663 = sor.u32 256, 8
  %664 = vbcast.lane.b32.xlu0 %v658, %s663
  %v665 = vpop.permute.xlu0 %664
  %v666 = vlaneseq
  %v667 = vshrl.u32 %v666, 7
  %v668 = vsub.s32 6, %v667
  %v669 = vrot.slane %v41, %v668
  %671 = vbcast.lane.b32.xlu0 %v669, 256
  %v672 = vpop.permute.xlu0 %671
  %s674 = sor.u32 256, 8
  %675 = vbcast.lane.b32.xlu0 %v669, %s674
  %v676 = vpop.permute.xlu0 %675
  %v677 = vlaneseq
  %v678 = vshrl.u32 %v677, 7
  %v679 = vsub.s32 7, %v678
  %v680 = vrot.slane %v41, %v679
  %682 = vbcast.lane.b32.xlu0 %v680, 256
  %v683 = vpop.permute.xlu0 %682
  %s685 = sor.u32 256, 8
  %686 = vbcast.lane.b32.xlu0 %v680, %s685
  %v687 = vpop.permute.xlu0 %686
  %v688 = vlaneseq
  %v689 = vshrl.u32 %v688, 7
  %v690 = vsub.s32 0, %v689
  %v691 = vrot.slane %v42, %v690
  %693 = vbcast.lane.b32.xlu0 %v691, 256
  %v694 = vpop.permute.xlu0 %693
  %s696 = sor.u32 256, 8
  %697 = vbcast.lane.b32.xlu0 %v691, %s696
  %v698 = vpop.permute.xlu0 %697
  %v699 = vlaneseq
  %v700 = vshrl.u32 %v699, 7
  %v701 = vsub.s32 1, %v700
  %v702 = vrot.slane %v42, %v701
  %704 = vbcast.lane.b32.xlu0 %v702, 256
  %v705 = vpop.permute.xlu0 %704
  %s707 = sor.u32 256, 8
  %708 = vbcast.lane.b32.xlu0 %v702, %s707
  %v709 = vpop.permute.xlu0 %708
  %v710 = vlaneseq
  %v711 = vshrl.u32 %v710, 7
  %v712 = vsub.s32 2, %v711
  %v713 = vrot.slane %v42, %v712
  %715 = vbcast.lane.b32.xlu0 %v713, 256
  %v716 = vpop.permute.xlu0 %715
  %s718 = sor.u32 256, 8
  %719 = vbcast.lane.b32.xlu0 %v713, %s718
  %v720 = vpop.permute.xlu0 %719
  %v721 = vlaneseq
  %v722 = vshrl.u32 %v721, 7
  %v723 = vsub.s32 3, %v722
  %v724 = vrot.slane %v42, %v723
  %726 = vbcast.lane.b32.xlu0 %v724, 256
  %v727 = vpop.permute.xlu0 %726
  %s729 = sor.u32 256, 8
  %730 = vbcast.lane.b32.xlu0 %v724, %s729
  %v731 = vpop.permute.xlu0 %730
  %v732 = vlaneseq
  %v733 = vshrl.u32 %v732, 7
  %v734 = vsub.s32 4, %v733
  %v735 = vrot.slane %v42, %v734
  %737 = vbcast.lane.b32.xlu0 %v735, 256
  %v738 = vpop.permute.xlu0 %737
  %s740 = sor.u32 256, 8
  %741 = vbcast.lane.b32.xlu0 %v735, %s740
  %v742 = vpop.permute.xlu0 %741
  %v743 = vlaneseq
  %v744 = vshrl.u32 %v743, 7
  %v745 = vsub.s32 5, %v744
  %v746 = vrot.slane %v42, %v745
  %748 = vbcast.lane.b32.xlu0 %v746, 256
  %v749 = vpop.permute.xlu0 %748
  %s751 = sor.u32 256, 8
  %752 = vbcast.lane.b32.xlu0 %v746, %s751
  %v753 = vpop.permute.xlu0 %752
  %v754 = vlaneseq
  %v755 = vshrl.u32 %v754, 7
  %v756 = vsub.s32 6, %v755
  %v757 = vrot.slane %v42, %v756
  %759 = vbcast.lane.b32.xlu0 %v757, 256
  %v760 = vpop.permute.xlu0 %759
  %s762 = sor.u32 256, 8
  %763 = vbcast.lane.b32.xlu0 %v757, %s762
  %v764 = vpop.permute.xlu0 %763
  %v765 = vlaneseq
  %v766 = vshrl.u32 %v765, 7
  %v767 = vsub.s32 7, %v766
  %v768 = vrot.slane %v42, %v767
  %770 = vbcast.lane.b32.xlu0 %v768, 256
  %v771 = vpop.permute.xlu0 %770
  %s773 = sor.u32 256, 8
  %774 = vbcast.lane.b32.xlu0 %v768, %s773
  %v775 = vpop.permute.xlu0 %774
  %v808 = vadd.f32 %v504, %v606
  %v809 = vadd.f32 %v507, %v610
  %v810 = vadd.f32 %v510, %v617
  %v811 = vadd.f32 %v513, %v621
  %v812 = vadd.f32 %v516, %v628
  %v813 = vadd.f32 %v519, %v632
  %v814 = vadd.f32 %v522, %v639
  %v815 = vadd.f32 %v525, %v643
  %v816 = vadd.f32 %v528, %v650
  %v817 = vadd.f32 %v531, %v654
  %v818 = vadd.f32 %v534, %v661
  %v819 = vadd.f32 %v537, %v665
  %v820 = vadd.f32 %v540, %v672
  %v821 = vadd.f32 %v543, %v676
  %v822 = vadd.f32 %v546, %v683
  %v823 = vadd.f32 %v549, %v687
  %v824 = vadd.f32 %v552, %v694
  %v825 = vadd.f32 %v555, %v698
  %v826 = vadd.f32 %v558, %v705
  %v827 = vadd.f32 %v561, %v709
  %v828 = vadd.f32 %v564, %v716
  %v829 = vadd.f32 %v567, %v720
  %v830 = vadd.f32 %v570, %v727
  %v831 = vadd.f32 %v573, %v731
  %v832 = vadd.f32 %v576, %v738
  %v833 = vadd.f32 %v579, %v742
  %v834 = vadd.f32 %v582, %v749
  %v835 = vadd.f32 %v585, %v753
  %v836 = vadd.f32 %v588, %v760
  %v837 = vadd.f32 %v591, %v764
  %v838 = vadd.f32 %v594, %v771
  %v839 = vadd.f32 %v597, %v775
  %v840 = vld [vmem:[#allocation2] sm:$0xff]
  %v841 = vld [vmem:[#allocation2 + $0x8] sm:$0xff]
  %874 = vset.pattern.permute.xlu0 0
  %875 = vperm.xlu0 %874, %v808
  %v876 = vpop.permute.xlu0 %875
  %877 = vset.pattern.permute.xlu0 0
  %878 = vperm.xlu0 %877, %v809
  %v879 = vpop.permute.xlu0 %878
  %880 = vset.pattern.permute.xlu0 0
  %881 = vperm.xlu0 %880, %v810
  %v882 = vpop.permute.xlu0 %881
  %883 = vset.pattern.permute.xlu0 0
  %884 = vperm.xlu0 %883, %v811
  %v885 = vpop.permute.xlu0 %884
  %886 = vset.pattern.permute.xlu0 0
  %887 = vperm.xlu0 %886, %v812
  %v888 = vpop.permute.xlu0 %887
  %889 = vset.pattern.permute.xlu0 0
  %890 = vperm.xlu0 %889, %v813
  %v891 = vpop.permute.xlu0 %890
  %892 = vset.pattern.permute.xlu0 0
  %893 = vperm.xlu0 %892, %v814
  %v894 = vpop.permute.xlu0 %893
  %895 = vset.pattern.permute.xlu0 0
  %896 = vperm.xlu0 %895, %v815
  %v897 = vpop.permute.xlu0 %896
  %898 = vset.pattern.permute.xlu0 0
  %899 = vperm.xlu0 %898, %v816
  %v900 = vpop.permute.xlu0 %899
  %901 = vset.pattern.permute.xlu0 0
  %902 = vperm.xlu0 %901, %v817
  %v903 = vpop.permute.xlu0 %902
  %904 = vset.pattern.permute.xlu0 0
  %905 = vperm.xlu0 %904, %v818
  %v906 = vpop.permute.xlu0 %905
  %907 = vset.pattern.permute.xlu0 0
  %908 = vperm.xlu0 %907, %v819
  %v909 = vpop.permute.xlu0 %908
  %910 = vset.pattern.permute.xlu0 0
  %911 = vperm.xlu0 %910, %v820
  %v912 = vpop.permute.xlu0 %911
  %913 = vset.pattern.permute.xlu0 0
  %914 = vperm.xlu0 %913, %v821
  %v915 = vpop.permute.xlu0 %914
  %916 = vset.pattern.permute.xlu0 0
  %917 = vperm.xlu0 %916, %v822
  %v918 = vpop.permute.xlu0 %917
  %919 = vset.pattern.permute.xlu0 0
  %920 = vperm.xlu0 %919, %v823
  %v921 = vpop.permute.xlu0 %920
  %922 = vset.pattern.permute.xlu0 0
  %923 = vperm.xlu0 %922, %v824
  %v924 = vpop.permute.xlu0 %923
  %925 = vset.pattern.permute.xlu0 0
  %926 = vperm.xlu0 %925, %v825
  %v927 = vpop.permute.xlu0 %926
  %928 = vset.pattern.permute.xlu0 0
  %929 = vperm.xlu0 %928, %v826
  %v930 = vpop.permute.xlu0 %929
  %931 = vset.pattern.permute.xlu0 0
  %932 = vperm.xlu0 %931, %v827
  %v933 = vpop.permute.xlu0 %932
  %934 = vset.pattern.permute.xlu0 0
  %935 = vperm.xlu0 %934, %v828
  %v936 = vpop.permute.xlu0 %935
  %937 = vset.pattern.permute.xlu0 0
  %938 = vperm.xlu0 %937, %v829
  %v939 = vpop.permute.xlu0 %938
  %940 = vset.pattern.permute.xlu0 0
  %941 = vperm.xlu0 %940, %v830
  %v942 = vpop.permute.xlu0 %941
  %943 = vset.pattern.permute.xlu0 0
  %944 = vperm.xlu0 %943, %v831
  %v945 = vpop.permute.xlu0 %944
  %946 = vset.pattern.permute.xlu0 0
  %947 = vperm.xlu0 %946, %v832
  %v948 = vpop.permute.xlu0 %947
  %949 = vset.pattern.permute.xlu0 0
  %950 = vperm.xlu0 %949, %v833
  %v951 = vpop.permute.xlu0 %950
  %952 = vset.pattern.permute.xlu0 0
  %953 = vperm.xlu0 %952, %v834
  %v954 = vpop.permute.xlu0 %953
  %955 = vset.pattern.permute.xlu0 0
  %956 = vperm.xlu0 %955, %v835
  %v957 = vpop.permute.xlu0 %956
  %958 = vset.pattern.permute.xlu0 0
  %959 = vperm.xlu0 %958, %v836
  %v960 = vpop.permute.xlu0 %959
  %961 = vset.pattern.permute.xlu0 0
  %962 = vperm.xlu0 %961, %v837
  %v963 = vpop.permute.xlu0 %962
  %964 = vset.pattern.permute.xlu0 0
  %965 = vperm.xlu0 %964, %v838
  %v966 = vpop.permute.xlu0 %965
  %967 = vset.pattern.permute.xlu0 0
  %968 = vperm.xlu0 %967, %v839
  %v969 = vpop.permute.xlu0 %968
  %v970 = vlaneseq
  %v971 = vand.u32 %v970, 127
  %v972 = vlaneseq
  %v973 = vshrl.u32 %v972, 7
  %v974 = vsub.s32 %v971, %v973
  %v975 = vrot.slane %v876, %v974
  %v976 = vadd.s32 %v971, 4294967288
  %v977 = vlaneseq
  %v978 = vshrl.u32 %v977, 7
  %v979 = vsub.s32 %v976, %v978
  %v980 = vrot.slane %v879, %v979
  %vm981 = vcmask 130112
  %v982 = vsel %vm981, %v980, %v975
  %v983 = vlaneseq
  %v984 = vshrl.u32 %v983, 7
  %v985 = vsub.s32 %v971, %v984
  %v986 = vrot.slane %v882, %v985
  %v987 = vlaneseq
  %v988 = vshrl.u32 %v987, 7
  %v989 = vsub.s32 %v976, %v988
  %v990 = vrot.slane %v885, %v989
  %v991 = vsel %vm981, %v990, %v986
  %v992 = vlaneseq
  %v993 = vshrl.u32 %v992, 7
  %v994 = vsub.s32 %v971, %v993
  %v995 = vrot.slane %v888, %v994
  %v996 = vlaneseq
  %v997 = vshrl.u32 %v996, 7
  %v998 = vsub.s32 %v976, %v997
  %v999 = vrot.slane %v891, %v998
  %v1000 = vsel %vm981, %v999, %v995
  %v1001 = vlaneseq
  %v1002 = vshrl.u32 %v1001, 7
  %v1003 = vsub.s32 %v971, %v1002
  %v1004 = vrot.slane %v894, %v1003
  %v1005 = vlaneseq
  %v1006 = vshrl.u32 %v1005, 7
  %v1007 = vsub.s32 %v976, %v1006
  %v1008 = vrot.slane %v897, %v1007
  %v1009 = vsel %vm981, %v1008, %v1004
  %v1010 = vlaneseq
  %v1011 = vshrl.u32 %v1010, 7
  %v1012 = vsub.s32 %v971, %v1011
  %v1013 = vrot.slane %v900, %v1012
  %v1014 = vlaneseq
  %v1015 = vshrl.u32 %v1014, 7
  %v1016 = vsub.s32 %v976, %v1015
  %v1017 = vrot.slane %v903, %v1016
  %v1018 = vsel %vm981, %v1017, %v1013
  %v1019 = vlaneseq
  %v1020 = vshrl.u32 %v1019, 7
  %v1021 = vsub.s32 %v971, %v1020
  %v1022 = vrot.slane %v906, %v1021
  %v1023 = vlaneseq
  %v1024 = vshrl.u32 %v1023, 7
  %v1025 = vsub.s32 %v976, %v1024
  %v1026 = vrot.slane %v909, %v1025
  %v1027 = vsel %vm981, %v1026, %v1022
  %v1028 = vlaneseq
  %v1029 = vshrl.u32 %v1028, 7
  %v1030 = vsub.s32 %v971, %v1029
  %v1031 = vrot.slane %v912, %v1030
  %v1032 = vlaneseq
  %v1033 = vshrl.u32 %v1032, 7
  %v1034 = vsub.s32 %v976, %v1033
  %v1035 = vrot.slane %v915, %v1034
  %v1036 = vsel %vm981, %v1035, %v1031
  %v1037 = vlaneseq
  %v1038 = vshrl.u32 %v1037, 7
  %v1039 = vsub.s32 %v971, %v1038
  %v1040 = vrot.slane %v918, %v1039
  %v1041 = vlaneseq
  %v1042 = vshrl.u32 %v1041, 7
  %v1043 = vsub.s32 %v976, %v1042
  %v1044 = vrot.slane %v921, %v1043
  %v1045 = vsel %vm981, %v1044, %v1040
  %v1046 = vlaneseq
  %v1047 = vshrl.u32 %v1046, 7
  %v1048 = vsub.s32 %v971, %v1047
  %v1049 = vrot.slane %v924, %v1048
  %v1050 = vlaneseq
  %v1051 = vshrl.u32 %v1050, 7
  %v1052 = vsub.s32 %v976, %v1051
  %v1053 = vrot.slane %v927, %v1052
  %v1054 = vsel %vm981, %v1053, %v1049
  %v1055 = vlaneseq
  %v1056 = vshrl.u32 %v1055, 7
  %v1057 = vsub.s32 %v971, %v1056
  %v1058 = vrot.slane %v930, %v1057
  %v1059 = vlaneseq
  %v1060 = vshrl.u32 %v1059, 7
  %v1061 = vsub.s32 %v976, %v1060
  %v1062 = vrot.slane %v933, %v1061
  %v1063 = vsel %vm981, %v1062, %v1058
  %v1064 = vlaneseq
  %v1065 = vshrl.u32 %v1064, 7
  %v1066 = vsub.s32 %v971, %v1065
  %v1067 = vrot.slane %v936, %v1066
  %v1068 = vlaneseq
  %v1069 = vshrl.u32 %v1068, 7
  %v1070 = vsub.s32 %v976, %v1069
  %v1071 = vrot.slane %v939, %v1070
  %v1072 = vsel %vm981, %v1071, %v1067
  %v1073 = vlaneseq
  %v1074 = vshrl.u32 %v1073, 7
  %v1075 = vsub.s32 %v971, %v1074
  %v1076 = vrot.slane %v942, %v1075
  %v1077 = vlaneseq
  %v1078 = vshrl.u32 %v1077, 7
  %v1079 = vsub.s32 %v976, %v1078
  %v1080 = vrot.slane %v945, %v1079
  %v1081 = vsel %vm981, %v1080, %v1076
  %v1082 = vlaneseq
  %v1083 = vshrl.u32 %v1082, 7
  %v1084 = vsub.s32 %v971, %v1083
  %v1085 = vrot.slane %v948, %v1084
  %v1086 = vlaneseq
  %v1087 = vshrl.u32 %v1086, 7
  %v1088 = vsub.s32 %v976, %v1087
  %v1089 = vrot.slane %v951, %v1088
  %v1090 = vsel %vm981, %v1089, %v1085
  %v1091 = vlaneseq
  %v1092 = vshrl.u32 %v1091, 7
  %v1093 = vsub.s32 %v971, %v1092
  %v1094 = vrot.slane %v954, %v1093
  %v1095 = vlaneseq
  %v1096 = vshrl.u32 %v1095, 7
  %v1097 = vsub.s32 %v976, %v1096
  %v1098 = vrot.slane %v957, %v1097
  %v1099 = vsel %vm981, %v1098, %v1094
  %v1100 = vlaneseq
  %v1101 = vshrl.u32 %v1100, 7
  %v1102 = vsub.s32 %v971, %v1101
  %v1103 = vrot.slane %v960, %v1102
  %v1104 = vlaneseq
  %v1105 = vshrl.u32 %v1104, 7
  %v1106 = vsub.s32 %v976, %v1105
  %v1107 = vrot.slane %v963, %v1106
  %v1108 = vsel %vm981, %v1107, %v1103
  %v1109 = vlaneseq
  %v1110 = vshrl.u32 %v1109, 7
  %v1111 = vsub.s32 %v971, %v1110
  %v1112 = vrot.slane %v966, %v1111
  %v1113 = vlaneseq
  %v1114 = vshrl.u32 %v1113, 7
  %v1115 = vsub.s32 %v976, %v1114
  %v1116 = vrot.slane %v969, %v1115
  %v1117 = vsel %vm981, %v1116, %v1112
  %vm1118 = vcmask 1041409
  %v1119 = vsel %vm1118, %v991, %v982
  %vm1120 = vcmask 1042434
  %v1121 = vsel %vm1120, %v1000, %v1119
  %vm1122 = vcmask 1043459
  %v1123 = vsel %vm1122, %v1009, %v1121
  %vm1124 = vcmask 1044484
  %v1125 = vsel %vm1124, %v1018, %v1123
  %vm1126 = vcmask 1045509
  %v1127 = vsel %vm1126, %v1027, %v1125
  %vm1128 = vcmask 1046534
  %v1129 = vsel %vm1128, %v1036, %v1127
  %vm1130 = vcmask 1047559
  %v1131 = vsel %vm1130, %v1045, %v1129
  %v1132 = vsel %vm1118, %v1063, %v1054
  %v1133 = vsel %vm1120, %v1072, %v1132
  %v1134 = vsel %vm1122, %v1081, %v1133
  %v1135 = vsel %vm1124, %v1090, %v1134
  %v1136 = vsel %vm1126, %v1099, %v1135
  %v1137 = vsel %vm1128, %v1108, %v1136
  %v1138 = vsel %vm1130, %v1117, %v1137
  %vm1141 = vcmask 130048
  %v1142 = vsel %vm1141, %v1131, -inf
  %1143 = vmax.xlane.f32.xlu0 %v1142
  %v1144 = vpop.xlane.xlu0 %1143
  %v1145 = vsel %vm1141, %v1138, -inf
  %1146 = vmax.xlane.f32.xlu0 %v1145
  %v1147 = vpop.xlane.xlu0 %1146
  %v1148 = vmax.f32 %v840, %v1144
  %v1149 = vmax.f32 %v841, %v1147
  %v1150 = vsub.f32 %v840, %v1148
  %v1151 = vsub.f32 %v841, %v1149
  %v1152 = vmul.f32 %v1150, 1.442695
  %v1153 = vpow.pop %v1152
  %v1154 = vmul.f32 %v1151, 1.442695
  %v1155 = vpow.pop %v1154
  %1157 = vset.pattern.permute.xlu0 0
  %1158 = vperm.xlu0 %1157, %v1148
  %v1159 = vpop.permute.xlu0 %1158
  %1161 = vset.pattern.permute.xlu0 0
  %1162 = vperm.xlu0 %1161, %v1149
  %v1163 = vpop.permute.xlu0 %1162
  %v1164 = vlaneseq
  %v1165 = vshrl.u32 %v1164, 7
  %v1166 = vsub.s32 0, %v1165
  %v1167 = vrot.slane %v1159, %v1166
  %v1168 = vlaneseq
  %v1169 = vshrl.u32 %v1168, 7
  %v1170 = vsub.s32 1, %v1169
  %v1171 = vrot.slane %v1159, %v1170
  %v1172 = vlaneseq
  %v1173 = vshrl.u32 %v1172, 7
  %v1174 = vsub.s32 2, %v1173
  %v1175 = vrot.slane %v1159, %v1174
  %v1176 = vlaneseq
  %v1177 = vshrl.u32 %v1176, 7
  %v1178 = vsub.s32 3, %v1177
  %v1179 = vrot.slane %v1159, %v1178
  %v1180 = vlaneseq
  %v1181 = vshrl.u32 %v1180, 7
  %v1182 = vsub.s32 4, %v1181
  %v1183 = vrot.slane %v1159, %v1182
  %v1184 = vlaneseq
  %v1185 = vshrl.u32 %v1184, 7
  %v1186 = vsub.s32 5, %v1185
  %v1187 = vrot.slane %v1159, %v1186
  %v1188 = vlaneseq
  %v1189 = vshrl.u32 %v1188, 7
  %v1190 = vsub.s32 6, %v1189
  %v1191 = vrot.slane %v1159, %v1190
  %v1192 = vlaneseq
  %v1193 = vshrl.u32 %v1192, 7
  %v1194 = vsub.s32 7, %v1193
  %v1195 = vrot.slane %v1159, %v1194
  %v1196 = vlaneseq
  %v1197 = vshrl.u32 %v1196, 7
  %v1198 = vsub.s32 0, %v1197
  %v1199 = vrot.slane %v1163, %v1198
  %v1200 = vlaneseq
  %v1201 = vshrl.u32 %v1200, 7
  %v1202 = vsub.s32 1, %v1201
  %v1203 = vrot.slane %v1163, %v1202
  %v1204 = vlaneseq
  %v1205 = vshrl.u32 %v1204, 7
  %v1206 = vsub.s32 2, %v1205
  %v1207 = vrot.slane %v1163, %v1206
  %v1208 = vlaneseq
  %v1209 = vshrl.u32 %v1208, 7
  %v1210 = vsub.s32 3, %v1209
  %v1211 = vrot.slane %v1163, %v1210
  %v1212 = vlaneseq
  %v1213 = vshrl.u32 %v1212, 7
  %v1214 = vsub.s32 4, %v1213
  %v1215 = vrot.slane %v1163, %v1214
  %v1216 = vlaneseq
  %v1217 = vshrl.u32 %v1216, 7
  %v1218 = vsub.s32 5, %v1217
  %v1219 = vrot.slane %v1163, %v1218
  %v1220 = vlaneseq
  %v1221 = vshrl.u32 %v1220, 7
  %v1222 = vsub.s32 6, %v1221
  %v1223 = vrot.slane %v1163, %v1222
  %v1224 = vlaneseq
  %v1225 = vshrl.u32 %v1224, 7
  %v1226 = vsub.s32 7, %v1225
  %v1227 = vrot.slane %v1163, %v1226
  %v1244 = vsub.f32 %v808, %v1167
  %v1245 = vsub.f32 %v809, %v1167
  %v1246 = vsub.f32 %v810, %v1171
  %v1247 = vsub.f32 %v811, %v1171
  %v1248 = vsub.f32 %v812, %v1175
  %v1249 = vsub.f32 %v813, %v1175
  %v1250 = vsub.f32 %v814, %v1179
  %v1251 = vsub.f32 %v815, %v1179
  %v1252 = vsub.f32 %v816, %v1183
  %v1253 = vsub.f32 %v817, %v1183
  %v1254 = vsub.f32 %v818, %v1187
  %v1255 = vsub.f32 %v819, %v1187
  %v1256 = vsub.f32 %v820, %v1191
  %v1257 = vsub.f32 %v821, %v1191
  %v1258 = vsub.f32 %v822, %v1195
  %v1259 = vsub.f32 %v823, %v1195
  %v1260 = vsub.f32 %v824, %v1199
  %v1261 = vsub.f32 %v825, %v1199
  %v1262 = vsub.f32 %v826, %v1203
  %v1263 = vsub.f32 %v827, %v1203
  %v1264 = vsub.f32 %v828, %v1207
  %v1265 = vsub.f32 %v829, %v1207
  %v1266 = vsub.f32 %v830, %v1211
  %v1267 = vsub.f32 %v831, %v1211
  %v1268 = vsub.f32 %v832, %v1215
  %v1269 = vsub.f32 %v833, %v1215
  %v1270 = vsub.f32 %v834, %v1219
  %v1271 = vsub.f32 %v835, %v1219
  %v1272 = vsub.f32 %v836, %v1223
  %v1273 = vsub.f32 %v837, %v1223
  %v1274 = vsub.f32 %v838, %v1227
  %v1275 = vsub.f32 %v839, %v1227
  %v1276 = vmul.f32 %v1244, 1.442695
  %v1277 = vpow.pop %v1276
  %v1278 = vmul.f32 %v1245, 1.442695
  %v1279 = vpow.pop %v1278
  %v1280 = vmul.f32 %v1246, 1.442695
  %v1281 = vpow.pop %v1280
  %v1282 = vmul.f32 %v1247, 1.442695
  %v1283 = vpow.pop %v1282
  %v1284 = vmul.f32 %v1248, 1.442695
  %v1285 = vpow.pop %v1284
  %v1286 = vmul.f32 %v1249, 1.442695
  %v1287 = vpow.pop %v1286
  %v1288 = vmul.f32 %v1250, 1.442695
  %v1289 = vpow.pop %v1288
  %v1290 = vmul.f32 %v1251, 1.442695
  %v1291 = vpow.pop %v1290
  %v1292 = vmul.f32 %v1252, 1.442695
  %v1293 = vpow.pop %v1292
  %v1294 = vmul.f32 %v1253, 1.442695
  %v1295 = vpow.pop %v1294
  %v1296 = vmul.f32 %v1254, 1.442695
  %v1297 = vpow.pop %v1296
  %v1298 = vmul.f32 %v1255, 1.442695
  %v1299 = vpow.pop %v1298
  %v1300 = vmul.f32 %v1256, 1.442695
  %v1301 = vpow.pop %v1300
  %v1302 = vmul.f32 %v1257, 1.442695
  %v1303 = vpow.pop %v1302
  %v1304 = vmul.f32 %v1258, 1.442695
  %v1305 = vpow.pop %v1304
  %v1306 = vmul.f32 %v1259, 1.442695
  %v1307 = vpow.pop %v1306
  %v1308 = vmul.f32 %v1260, 1.442695
  %v1309 = vpow.pop %v1308
  %v1310 = vmul.f32 %v1261, 1.442695
  %v1311 = vpow.pop %v1310
  %v1312 = vmul.f32 %v1262, 1.442695
  %v1313 = vpow.pop %v1312
  %v1314 = vmul.f32 %v1263, 1.442695
  %v1315 = vpow.pop %v1314
  %v1316 = vmul.f32 %v1264, 1.442695
  %v1317 = vpow.pop %v1316
  %v1318 = vmul.f32 %v1265, 1.442695
  %v1319 = vpow.pop %v1318
  %v1320 = vmul.f32 %v1266, 1.442695
  %v1321 = vpow.pop %v1320
  %v1322 = vmul.f32 %v1267, 1.442695
  %v1323 = vpow.pop %v1322
  %v1324 = vmul.f32 %v1268, 1.442695
  %v1325 = vpow.pop %v1324
  %v1326 = vmul.f32 %v1269, 1.442695
  %v1327 = vpow.pop %v1326
  %v1328 = vmul.f32 %v1270, 1.442695
  %v1329 = vpow.pop %v1328
  %v1330 = vmul.f32 %v1271, 1.442695
  %v1331 = vpow.pop %v1330
  %v1332 = vmul.f32 %v1272, 1.442695
  %v1333 = vpow.pop %v1332
  %v1334 = vmul.f32 %v1273, 1.442695
  %v1335 = vpow.pop %v1334
  %v1336 = vmul.f32 %v1274, 1.442695
  %v1337 = vpow.pop %v1336
  %v1338 = vmul.f32 %v1275, 1.442695
  %v1339 = vpow.pop %v1338
  %v1340 = vld [vmem:[#allocation3] sm:$0xff]
  %v1341 = vld [vmem:[#allocation3 + $0x8] sm:$0xff]
  %v1342 = vmul.f32 %v1153, %v1340
  %v1343 = vmul.f32 %v1155, %v1341
  %1376 = vset.pattern.permute.xlu0 0
  %1377 = vperm.xlu0 %1376, %v1277
  %v1378 = vpop.permute.xlu0 %1377
  %1379 = vset.pattern.permute.xlu0 0
  %1380 = vperm.xlu0 %1379, %v1279
  %v1381 = vpop.permute.xlu0 %1380
  %1382 = vset.pattern.permute.xlu0 0
  %1383 = vperm.xlu0 %1382, %v1281
  %v1384 = vpop.permute.xlu0 %1383
  %1385 = vset.pattern.permute.xlu0 0
  %1386 = vperm.xlu0 %1385, %v1283
  %v1387 = vpop.permute.xlu0 %1386
  %1388 = vset.pattern.permute.xlu0 0
  %1389 = vperm.xlu0 %1388, %v1285
  %v1390 = vpop.permute.xlu0 %1389
  %1391 = vset.pattern.permute.xlu0 0
  %1392 = vperm.xlu0 %1391, %v1287
  %v1393 = vpop.permute.xlu0 %1392
  %1394 = vset.pattern.permute.xlu0 0
  %1395 = vperm.xlu0 %1394, %v1289
  %v1396 = vpop.permute.xlu0 %1395
  %1397 = vset.pattern.permute.xlu0 0
  %1398 = vperm.xlu0 %1397, %v1291
  %v1399 = vpop.permute.xlu0 %1398
  %1400 = vset.pattern.permute.xlu0 0
  %1401 = vperm.xlu0 %1400, %v1293
  %v1402 = vpop.permute.xlu0 %1401
  %1403 = vset.pattern.permute.xlu0 0
  %1404 = vperm.xlu0 %1403, %v1295
  %v1405 = vpop.permute.xlu0 %1404
  %1406 = vset.pattern.permute.xlu0 0
  %1407 = vperm.xlu0 %1406, %v1297
  %v1408 = vpop.permute.xlu0 %1407
  %1409 = vset.pattern.permute.xlu0 0
  %1410 = vperm.xlu0 %1409, %v1299
  %v1411 = vpop.permute.xlu0 %1410
  %1412 = vset.pattern.permute.xlu0 0
  %1413 = vperm.xlu0 %1412, %v1301
  %v1414 = vpop.permute.xlu0 %1413
  %1415 = vset.pattern.permute.xlu0 0
  %1416 = vperm.xlu0 %1415, %v1303
  %v1417 = vpop.permute.xlu0 %1416
  %1418 = vset.pattern.permute.xlu0 0
  %1419 = vperm.xlu0 %1418, %v1305
  %v1420 = vpop.permute.xlu0 %1419
  %1421 = vset.pattern.permute.xlu0 0
  %1422 = vperm.xlu0 %1421, %v1307
  %v1423 = vpop.permute.xlu0 %1422
  %1424 = vset.pattern.permute.xlu0 0
  %1425 = vperm.xlu0 %1424, %v1309
  %v1426 = vpop.permute.xlu0 %1425
  %1427 = vset.pattern.permute.xlu0 0
  %1428 = vperm.xlu0 %1427, %v1311
  %v1429 = vpop.permute.xlu0 %1428
  %1430 = vset.pattern.permute.xlu0 0
  %1431 = vperm.xlu0 %1430, %v1313
  %v1432 = vpop.permute.xlu0 %1431
  %1433 = vset.pattern.permute.xlu0 0
  %1434 = vperm.xlu0 %1433, %v1315
  %v1435 = vpop.permute.xlu0 %1434
  %1436 = vset.pattern.permute.xlu0 0
  %1437 = vperm.xlu0 %1436, %v1317
  %v1438 = vpop.permute.xlu0 %1437
  %1439 = vset.pattern.permute.xlu0 0
  %1440 = vperm.xlu0 %1439, %v1319
  %v1441 = vpop.permute.xlu0 %1440
  %1442 = vset.pattern.permute.xlu0 0
  %1443 = vperm.xlu0 %1442, %v1321
  %v1444 = vpop.permute.xlu0 %1443
  %1445 = vset.pattern.permute.xlu0 0
  %1446 = vperm.xlu0 %1445, %v1323
  %v1447 = vpop.permute.xlu0 %1446
  %1448 = vset.pattern.permute.xlu0 0
  %1449 = vperm.xlu0 %1448, %v1325
  %v1450 = vpop.permute.xlu0 %1449
  %1451 = vset.pattern.permute.xlu0 0
  %1452 = vperm.xlu0 %1451, %v1327
  %v1453 = vpop.permute.xlu0 %1452
  %1454 = vset.pattern.permute.xlu0 0
  %1455 = vperm.xlu0 %1454, %v1329
  %v1456 = vpop.permute.xlu0 %1455
  %1457 = vset.pattern.permute.xlu0 0
  %1458 = vperm.xlu0 %1457, %v1331
  %v1459 = vpop.permute.xlu0 %1458
  %1460 = vset.pattern.permute.xlu0 0
  %1461 = vperm.xlu0 %1460, %v1333
  %v1462 = vpop.permute.xlu0 %1461
  %1463 = vset.pattern.permute.xlu0 0
  %1464 = vperm.xlu0 %1463, %v1335
  %v1465 = vpop.permute.xlu0 %1464
  %1466 = vset.pattern.permute.xlu0 0
  %1467 = vperm.xlu0 %1466, %v1337
  %v1468 = vpop.permute.xlu0 %1467
  %1469 = vset.pattern.permute.xlu0 0
  %1470 = vperm.xlu0 %1469, %v1339
  %v1471 = vpop.permute.xlu0 %1470
  %v1472 = vlaneseq
  %v1473 = vshrl.u32 %v1472, 7
  %v1474 = vsub.s32 %v971, %v1473
  %v1475 = vrot.slane %v1378, %v1474
  %v1476 = vlaneseq
  %v1477 = vshrl.u32 %v1476, 7
  %v1478 = vsub.s32 %v976, %v1477
  %v1479 = vrot.slane %v1381, %v1478
  %v1480 = vsel %vm981, %v1479, %v1475
  %v1481 = vlaneseq
  %v1482 = vshrl.u32 %v1481, 7
  %v1483 = vsub.s32 %v971, %v1482
  %v1484 = vrot.slane %v1384, %v1483
  %v1485 = vlaneseq
  %v1486 = vshrl.u32 %v1485, 7
  %v1487 = vsub.s32 %v976, %v1486
  %v1488 = vrot.slane %v1387, %v1487
  %v1489 = vsel %vm981, %v1488, %v1484
  %v1490 = vlaneseq
  %v1491 = vshrl.u32 %v1490, 7
  %v1492 = vsub.s32 %v971, %v1491
  %v1493 = vrot.slane %v1390, %v1492
  %v1494 = vlaneseq
  %v1495 = vshrl.u32 %v1494, 7
  %v1496 = vsub.s32 %v976, %v1495
  %v1497 = vrot.slane %v1393, %v1496
  %v1498 = vsel %vm981, %v1497, %v1493
  %v1499 = vlaneseq
  %v1500 = vshrl.u32 %v1499, 7
  %v1501 = vsub.s32 %v971, %v1500
  %v1502 = vrot.slane %v1396, %v1501
  %v1503 = vlaneseq
  %v1504 = vshrl.u32 %v1503, 7
  %v1505 = vsub.s32 %v976, %v1504
  %v1506 = vrot.slane %v1399, %v1505
  %v1507 = vsel %vm981, %v1506, %v1502
  %v1508 = vlaneseq
  %v1509 = vshrl.u32 %v1508, 7
  %v1510 = vsub.s32 %v971, %v1509
  %v1511 = vrot.slane %v1402, %v1510
  %v1512 = vlaneseq
  %v1513 = vshrl.u32 %v1512, 7
  %v1514 = vsub.s32 %v976, %v1513
  %v1515 = vrot.slane %v1405, %v1514
  %v1516 = vsel %vm981, %v1515, %v1511
  %v1517 = vlaneseq
  %v1518 = vshrl.u32 %v1517, 7
  %v1519 = vsub.s32 %v971, %v1518
  %v1520 = vrot.slane %v1408, %v1519
  %v1521 = vlaneseq
  %v1522 = vshrl.u32 %v1521, 7
  %v1523 = vsub.s32 %v976, %v1522
  %v1524 = vrot.slane %v1411, %v1523
  %v1525 = vsel %vm981, %v1524, %v1520
  %v1526 = vlaneseq
  %v1527 = vshrl.u32 %v1526, 7
  %v1528 = vsub.s32 %v971, %v1527
  %v1529 = vrot.slane %v1414, %v1528
  %v1530 = vlaneseq
  %v1531 = vshrl.u32 %v1530, 7
  %v1532 = vsub.s32 %v976, %v1531
  %v1533 = vrot.slane %v1417, %v1532
  %v1534 = vsel %vm981, %v1533, %v1529
  %v1535 = vlaneseq
  %v1536 = vshrl.u32 %v1535, 7
  %v1537 = vsub.s32 %v971, %v1536
  %v1538 = vrot.slane %v1420, %v1537
  %v1539 = vlaneseq
  %v1540 = vshrl.u32 %v1539, 7
  %v1541 = vsub.s32 %v976, %v1540
  %v1542 = vrot.slane %v1423, %v1541
  %v1543 = vsel %vm981, %v1542, %v1538
  %v1544 = vlaneseq
  %v1545 = vshrl.u32 %v1544, 7
  %v1546 = vsub.s32 %v971, %v1545
  %v1547 = vrot.slane %v1426, %v1546
  %v1548 = vlaneseq
  %v1549 = vshrl.u32 %v1548, 7
  %v1550 = vsub.s32 %v976, %v1549
  %v1551 = vrot.slane %v1429, %v1550
  %v1552 = vsel %vm981, %v1551, %v1547
  %v1553 = vlaneseq
  %v1554 = vshrl.u32 %v1553, 7
  %v1555 = vsub.s32 %v971, %v1554
  %v1556 = vrot.slane %v1432, %v1555
  %v1557 = vlaneseq
  %v1558 = vshrl.u32 %v1557, 7
  %v1559 = vsub.s32 %v976, %v1558
  %v1560 = vrot.slane %v1435, %v1559
  %v1561 = vsel %vm981, %v1560, %v1556
  %v1562 = vlaneseq
  %v1563 = vshrl.u32 %v1562, 7
  %v1564 = vsub.s32 %v971, %v1563
  %v1565 = vrot.slane %v1438, %v1564
  %v1566 = vlaneseq
  %v1567 = vshrl.u32 %v1566, 7
  %v1568 = vsub.s32 %v976, %v1567
  %v1569 = vrot.slane %v1441, %v1568
  %v1570 = vsel %vm981, %v1569, %v1565
  %v1571 = vlaneseq
  %v1572 = vshrl.u32 %v1571, 7
  %v1573 = vsub.s32 %v971, %v1572
  %v1574 = vrot.slane %v1444, %v1573
  %v1575 = vlaneseq
  %v1576 = vshrl.u32 %v1575, 7
  %v1577 = vsub.s32 %v976, %v1576
  %v1578 = vrot.slane %v1447, %v1577
  %v1579 = vsel %vm981, %v1578, %v1574
  %v1580 = vlaneseq
  %v1581 = vshrl.u32 %v1580, 7
  %v1582 = vsub.s32 %v971, %v1581
  %v1583 = vrot.slane %v1450, %v1582
  %v1584 = vlaneseq
  %v1585 = vshrl.u32 %v1584, 7
  %v1586 = vsub.s32 %v976, %v1585
  %v1587 = vrot.slane %v1453, %v1586
  %v1588 = vsel %vm981, %v1587, %v1583
  %v1589 = vlaneseq
  %v1590 = vshrl.u32 %v1589, 7
  %v1591 = vsub.s32 %v971, %v1590
  %v1592 = vrot.slane %v1456, %v1591
  %v1593 = vlaneseq
  %v1594 = vshrl.u32 %v1593, 7
  %v1595 = vsub.s32 %v976, %v1594
  %v1596 = vrot.slane %v1459, %v1595
  %v1597 = vsel %vm981, %v1596, %v1592
  %v1598 = vlaneseq
  %v1599 = vshrl.u32 %v1598, 7
  %v1600 = vsub.s32 %v971, %v1599
  %v1601 = vrot.slane %v1462, %v1600
  %v1602 = vlaneseq
  %v1603 = vshrl.u32 %v1602, 7
  %v1604 = vsub.s32 %v976, %v1603
  %v1605 = vrot.slane %v1465, %v1604
  %v1606 = vsel %vm981, %v1605, %v1601
  %v1607 = vlaneseq
  %v1608 = vshrl.u32 %v1607, 7
  %v1609 = vsub.s32 %v971, %v1608
  %v1610 = vrot.slane %v1468, %v1609
  %v1611 = vlaneseq
  %v1612 = vshrl.u32 %v1611, 7
  %v1613 = vsub.s32 %v976, %v1612
  %v1614 = vrot.slane %v1471, %v1613
  %v1615 = vsel %vm981, %v1614, %v1610
  %v1616 = vsel %vm1118, %v1489, %v1480
  %v1617 = vsel %vm1120, %v1498, %v1616
  %v1618 = vsel %vm1122, %v1507, %v1617
  %v1619 = vsel %vm1124, %v1516, %v1618
  %v1620 = vsel %vm1126, %v1525, %v1619
  %v1621 = vsel %vm1128, %v1534, %v1620
  %v1622 = vsel %vm1130, %v1543, %v1621
  %v1623 = vsel %vm1118, %v1561, %v1552
  %v1624 = vsel %vm1120, %v1570, %v1623
  %v1625 = vsel %vm1122, %v1579, %v1624
  %v1626 = vsel %vm1124, %v1588, %v1625
  %v1627 = vsel %vm1126, %v1597, %v1626
  %v1628 = vsel %vm1128, %v1606, %v1627
  %v1629 = vsel %vm1130, %v1615, %v1628
  %v1632 = vsel %vm1141, %v1622, 0.0
  %1633 = vadd.xlane.f32.xlu0 %v1632
  %v1634 = vpop.xlane.xlu0 %1633
  %v1635 = vsel %vm1141, %v1629, 0.0
  %1636 = vadd.xlane.f32.xlu0 %v1635
  %v1637 = vpop.xlane.xlu0 %1636
  %v1638 = vadd.f32 %v1342, %v1634
  %v1639 = vadd.f32 %v1343, %v1637
  %vm1640 = vcmask 7168
  %1641 = vst.msk [vmem:[#allocation3] sm:$0xff] %vm1640, %v1638
  %1642 = vst.msk [vmem:[#allocation3 + $0x8] sm:$0xff] %vm1640, %v1639
  %v1643 = vld [vmem:[#allocation4] sm:$0xff]
  %v1644 = vld [vmem:[#allocation4 + $0x8] sm:$0xff]
  %1646 = vset.pattern.permute.xlu0 0
  %1647 = vperm.xlu0 %1646, %v1153
  %v1648 = vpop.permute.xlu0 %1647
  %1651 = vset.pattern.permute.xlu0 0
  %1652 = vperm.xlu0 %1651, %v1155
  %v1653 = vpop.permute.xlu0 %1652
  %v1655 = vmul.f32 %v1648, %v1643
  %v1656 = vmul.f32 %v1653, %v1644
  %v1657 = vpack.c.bf16 %v1279, %v1277
  %v1658 = vpack.c.bf16 %v1283, %v1281
  %v1659 = vpack.c.bf16 %v1287, %v1285
  %v1660 = vpack.c.bf16 %v1291, %v1289
  %v1661 = vpack.c.bf16 %v1295, %v1293
  %v1662 = vpack.c.bf16 %v1299, %v1297
  %v1663 = vpack.c.bf16 %v1303, %v1301
  %v1664 = vpack.c.bf16 %v1307, %v1305
  %v1665 = vpack.c.bf16 %v1311, %v1309
  %v1666 = vpack.c.bf16 %v1315, %v1313
  %v1667 = vpack.c.bf16 %v1319, %v1317
  %v1668 = vpack.c.bf16 %v1323, %v1321
  %v1669 = vpack.c.bf16 %v1327, %v1325
  %v1670 = vpack.c.bf16 %v1331, %v1329
  %v1671 = vpack.c.bf16 %v1335, %v1333
  %v1672 = vpack.c.bf16 %v1339, %v1337
  %v1689 = vunpack.c.l.b16 %v1657
  %v1690 = vunpack.c.h.b16 %v1657
  %v1691 = vunpack.c.l.b16 %v1658
  %v1692 = vunpack.c.h.b16 %v1658
  %v1693 = vunpack.c.l.b16 %v1659
  %v1694 = vunpack.c.h.b16 %v1659
  %v1695 = vunpack.c.l.b16 %v1660
  %v1696 = vunpack.c.h.b16 %v1660
  %v1697 = vunpack.c.l.b16 %v1661
  %v1698 = vunpack.c.h.b16 %v1661
  %v1699 = vunpack.c.l.b16 %v1662
  %v1700 = vunpack.c.h.b16 %v1662
  %v1701 = vunpack.c.l.b16 %v1663
  %v1702 = vunpack.c.h.b16 %v1663
  %v1703 = vunpack.c.l.b16 %v1664
  %v1704 = vunpack.c.h.b16 %v1664
  %v1705 = vunpack.c.l.b16 %v1665
  %v1706 = vunpack.c.h.b16 %v1665
  %v1707 = vunpack.c.l.b16 %v1666
  %v1708 = vunpack.c.h.b16 %v1666
  %v1709 = vunpack.c.l.b16 %v1667
  %v1710 = vunpack.c.h.b16 %v1667
  %v1711 = vunpack.c.l.b16 %v1668
  %v1712 = vunpack.c.h.b16 %v1668
  %v1713 = vunpack.c.l.b16 %v1669
  %v1714 = vunpack.c.h.b16 %v1669
  %v1715 = vunpack.c.l.b16 %v1670
  %v1716 = vunpack.c.h.b16 %v1670
  %v1717 = vunpack.c.l.b16 %v1671
  %v1718 = vunpack.c.h.b16 %v1671
  %v1719 = vunpack.c.l.b16 %v1672
  %v1720 = vunpack.c.h.b16 %v1672
  %1721 = vset.pattern.permute.xlu0 0
  %1722 = vperm.xlu0 %1721, %v1689
  %v1723 = vpop.permute.xlu0 %1722
  %1724 = vset.pattern.permute.xlu0 0
  %1725 = vperm.xlu0 %1724, %v1690
  %v1726 = vpop.permute.xlu0 %1725
  %1727 = vset.pattern.permute.xlu0 0
  %1728 = vperm.xlu0 %1727, %v1691
  %v1729 = vpop.permute.xlu0 %1728
  %1730 = vset.pattern.permute.xlu0 0
  %1731 = vperm.xlu0 %1730, %v1692
  %v1732 = vpop.permute.xlu0 %1731
  %1733 = vset.pattern.permute.xlu0 0
  %1734 = vperm.xlu0 %1733, %v1693
  %v1735 = vpop.permute.xlu0 %1734
  %1736 = vset.pattern.permute.xlu0 0
  %1737 = vperm.xlu0 %1736, %v1694
  %v1738 = vpop.permute.xlu0 %1737
  %1739 = vset.pattern.permute.xlu0 0
  %1740 = vperm.xlu0 %1739, %v1695
  %v1741 = vpop.permute.xlu0 %1740
  %1742 = vset.pattern.permute.xlu0 0
  %1743 = vperm.xlu0 %1742, %v1696
  %v1744 = vpop.permute.xlu0 %1743
  %1745 = vset.pattern.permute.xlu0 0
  %1746 = vperm.xlu0 %1745, %v1697
  %v1747 = vpop.permute.xlu0 %1746
  %1748 = vset.pattern.permute.xlu0 0
  %1749 = vperm.xlu0 %1748, %v1698
  %v1750 = vpop.permute.xlu0 %1749
  %1751 = vset.pattern.permute.xlu0 0
  %1752 = vperm.xlu0 %1751, %v1699
  %v1753 = vpop.permute.xlu0 %1752
  %1754 = vset.pattern.permute.xlu0 0
  %1755 = vperm.xlu0 %1754, %v1700
  %v1756 = vpop.permute.xlu0 %1755
  %1757 = vset.pattern.permute.xlu0 0
  %1758 = vperm.xlu0 %1757, %v1701
  %v1759 = vpop.permute.xlu0 %1758
  %1760 = vset.pattern.permute.xlu0 0
  %1761 = vperm.xlu0 %1760, %v1702
  %v1762 = vpop.permute.xlu0 %1761
  %1763 = vset.pattern.permute.xlu0 0
  %1764 = vperm.xlu0 %1763, %v1703
  %v1765 = vpop.permute.xlu0 %1764
  %1766 = vset.pattern.permute.xlu0 0
  %1767 = vperm.xlu0 %1766, %v1704
  %v1768 = vpop.permute.xlu0 %1767
  %1769 = vset.pattern.permute.xlu0 0
  %1770 = vperm.xlu0 %1769, %v1705
  %v1771 = vpop.permute.xlu0 %1770
  %1772 = vset.pattern.permute.xlu0 0
  %1773 = vperm.xlu0 %1772, %v1706
  %v1774 = vpop.permute.xlu0 %1773
  %1775 = vset.pattern.permute.xlu0 0
  %1776 = vperm.xlu0 %1775, %v1707
  %v1777 = vpop.permute.xlu0 %1776
  %1778 = vset.pattern.permute.xlu0 0
  %1779 = vperm.xlu0 %1778, %v1708
  %v1780 = vpop.permute.xlu0 %1779
  %1781 = vset.pattern.permute.xlu0 0
  %1782 = vperm.xlu0 %1781, %v1709
  %v1783 = vpop.permute.xlu0 %1782
  %1784 = vset.pattern.permute.xlu0 0
  %1785 = vperm.xlu0 %1784, %v1710
  %v1786 = vpop.permute.xlu0 %1785
  %1787 = vset.pattern.permute.xlu0 0
  %1788 = vperm.xlu0 %1787, %v1711
  %v1789 = vpop.permute.xlu0 %1788
  %1790 = vset.pattern.permute.xlu0 0
  %1791 = vperm.xlu0 %1790, %v1712
  %v1792 = vpop.permute.xlu0 %1791
  %1793 = vset.pattern.permute.xlu0 0
  %1794 = vperm.xlu0 %1793, %v1713
  %v1795 = vpop.permute.xlu0 %1794
  %1796 = vset.pattern.permute.xlu0 0
  %1797 = vperm.xlu0 %1796, %v1714
  %v1798 = vpop.permute.xlu0 %1797
  %1799 = vset.pattern.permute.xlu0 0
  %1800 = vperm.xlu0 %1799, %v1715
  %v1801 = vpop.permute.xlu0 %1800
  %1802 = vset.pattern.permute.xlu0 0
  %1803 = vperm.xlu0 %1802, %v1716
  %v1804 = vpop.permute.xlu0 %1803
  %1805 = vset.pattern.permute.xlu0 0
  %1806 = vperm.xlu0 %1805, %v1717
  %v1807 = vpop.permute.xlu0 %1806
  %1808 = vset.pattern.permute.xlu0 0
  %1809 = vperm.xlu0 %1808, %v1718
  %v1810 = vpop.permute.xlu0 %1809
  %1811 = vset.pattern.permute.xlu0 0
  %1812 = vperm.xlu0 %1811, %v1719
  %v1813 = vpop.permute.xlu0 %1812
  %1814 = vset.pattern.permute.xlu0 0
  %1815 = vperm.xlu0 %1814, %v1720
  %v1816 = vpop.permute.xlu0 %1815
  %v1817 = vlaneseq
  %v1818 = vshrl.u32 %v1817, 7
  %v1819 = vsub.s32 %v971, %v1818
  %v1820 = vrot.slane %v1723, %v1819
  %v1821 = vlaneseq
  %v1822 = vshrl.u32 %v1821, 7
  %v1823 = vsub.s32 %v976, %v1822
  %v1824 = vrot.slane %v1726, %v1823
  %v1825 = vsel %vm981, %v1824, %v1820
  %v1826 = vlaneseq
  %v1827 = vshrl.u32 %v1826, 7
  %v1828 = vsub.s32 %v971, %v1827
  %v1829 = vrot.slane %v1729, %v1828
  %v1830 = vlaneseq
  %v1831 = vshrl.u32 %v1830, 7
  %v1832 = vsub.s32 %v976, %v1831
  %v1833 = vrot.slane %v1732, %v1832
  %v1834 = vsel %vm981, %v1833, %v1829
  %v1835 = vlaneseq
  %v1836 = vshrl.u32 %v1835, 7
  %v1837 = vsub.s32 %v971, %v1836
  %v1838 = vrot.slane %v1735, %v1837
  %v1839 = vlaneseq
  %v1840 = vshrl.u32 %v1839, 7
  %v1841 = vsub.s32 %v976, %v1840
  %v1842 = vrot.slane %v1738, %v1841
  %v1843 = vsel %vm981, %v1842, %v1838
  %v1844 = vlaneseq
  %v1845 = vshrl.u32 %v1844, 7
  %v1846 = vsub.s32 %v971, %v1845
  %v1847 = vrot.slane %v1741, %v1846
  %v1848 = vlaneseq
  %v1849 = vshrl.u32 %v1848, 7
  %v1850 = vsub.s32 %v976, %v1849
  %v1851 = vrot.slane %v1744, %v1850
  %v1852 = vsel %vm981, %v1851, %v1847
  %v1853 = vlaneseq
  %v1854 = vshrl.u32 %v1853, 7
  %v1855 = vsub.s32 %v971, %v1854
  %v1856 = vrot.slane %v1747, %v1855
  %v1857 = vlaneseq
  %v1858 = vshrl.u32 %v1857, 7
  %v1859 = vsub.s32 %v976, %v1858
  %v1860 = vrot.slane %v1750, %v1859
  %v1861 = vsel %vm981, %v1860, %v1856
  %v1862 = vlaneseq
  %v1863 = vshrl.u32 %v1862, 7
  %v1864 = vsub.s32 %v971, %v1863
  %v1865 = vrot.slane %v1753, %v1864
  %v1866 = vlaneseq
  %v1867 = vshrl.u32 %v1866, 7
  %v1868 = vsub.s32 %v976, %v1867
  %v1869 = vrot.slane %v1756, %v1868
  %v1870 = vsel %vm981, %v1869, %v1865
  %v1871 = vlaneseq
  %v1872 = vshrl.u32 %v1871, 7
  %v1873 = vsub.s32 %v971, %v1872
  %v1874 = vrot.slane %v1759, %v1873
  %v1875 = vlaneseq
  %v1876 = vshrl.u32 %v1875, 7
  %v1877 = vsub.s32 %v976, %v1876
  %v1878 = vrot.slane %v1762, %v1877
  %v1879 = vsel %vm981, %v1878, %v1874
  %v1880 = vlaneseq
  %v1881 = vshrl.u32 %v1880, 7
  %v1882 = vsub.s32 %v971, %v1881
  %v1883 = vrot.slane %v1765, %v1882
  %v1884 = vlaneseq
  %v1885 = vshrl.u32 %v1884, 7
  %v1886 = vsub.s32 %v976, %v1885
  %v1887 = vrot.slane %v1768, %v1886
  %v1888 = vsel %vm981, %v1887, %v1883
  %v1889 = vlaneseq
  %v1890 = vshrl.u32 %v1889, 7
  %v1891 = vsub.s32 %v971, %v1890
  %v1892 = vrot.slane %v1771, %v1891
  %v1893 = vlaneseq
  %v1894 = vshrl.u32 %v1893, 7
  %v1895 = vsub.s32 %v976, %v1894
  %v1896 = vrot.slane %v1774, %v1895
  %v1897 = vsel %vm981, %v1896, %v1892
  %v1898 = vlaneseq
  %v1899 = vshrl.u32 %v1898, 7
  %v1900 = vsub.s32 %v971, %v1899
  %v1901 = vrot.slane %v1777, %v1900
  %v1902 = vlaneseq
  %v1903 = vshrl.u32 %v1902, 7
  %v1904 = vsub.s32 %v976, %v1903
  %v1905 = vrot.slane %v1780, %v1904
  %v1906 = vsel %vm981, %v1905, %v1901
  %v1907 = vlaneseq
  %v1908 = vshrl.u32 %v1907, 7
  %v1909 = vsub.s32 %v971, %v1908
  %v1910 = vrot.slane %v1783, %v1909
  %v1911 = vlaneseq
  %v1912 = vshrl.u32 %v1911, 7
  %v1913 = vsub.s32 %v976, %v1912
  %v1914 = vrot.slane %v1786, %v1913
  %v1915 = vsel %vm981, %v1914, %v1910
  %v1916 = vlaneseq
  %v1917 = vshrl.u32 %v1916, 7
  %v1918 = vsub.s32 %v971, %v1917
  %v1919 = vrot.slane %v1789, %v1918
  %v1920 = vlaneseq
  %v1921 = vshrl.u32 %v1920, 7
  %v1922 = vsub.s32 %v976, %v1921
  %v1923 = vrot.slane %v1792, %v1922
  %v1924 = vsel %vm981, %v1923, %v1919
  %v1925 = vlaneseq
  %v1926 = vshrl.u32 %v1925, 7
  %v1927 = vsub.s32 %v971, %v1926
  %v1928 = vrot.slane %v1795, %v1927
  %v1929 = vlaneseq
  %v1930 = vshrl.u32 %v1929, 7
  %v1931 = vsub.s32 %v976, %v1930
  %v1932 = vrot.slane %v1798, %v1931
  %v1933 = vsel %vm981, %v1932, %v1928
  %v1934 = vlaneseq
  %v1935 = vshrl.u32 %v1934, 7
  %v1936 = vsub.s32 %v971, %v1935
  %v1937 = vrot.slane %v1801, %v1936
  %v1938 = vlaneseq
  %v1939 = vshrl.u32 %v1938, 7
  %v1940 = vsub.s32 %v976, %v1939
  %v1941 = vrot.slane %v1804, %v1940
  %v1942 = vsel %vm981, %v1941, %v1937
  %v1943 = vlaneseq
  %v1944 = vshrl.u32 %v1943, 7
  %v1945 = vsub.s32 %v971, %v1944
  %v1946 = vrot.slane %v1807, %v1945
  %v1947 = vlaneseq
  %v1948 = vshrl.u32 %v1947, 7
  %v1949 = vsub.s32 %v976, %v1948
  %v1950 = vrot.slane %v1810, %v1949
  %v1951 = vsel %vm981, %v1950, %v1946
  %v1952 = vlaneseq
  %v1953 = vshrl.u32 %v1952, 7
  %v1954 = vsub.s32 %v971, %v1953
  %v1955 = vrot.slane %v1813, %v1954
  %v1956 = vlaneseq
  %v1957 = vshrl.u32 %v1956, 7
  %v1958 = vsub.s32 %v976, %v1957
  %v1959 = vrot.slane %v1816, %v1958
  %v1960 = vsel %vm981, %v1959, %v1955
  %v1961 = vsel %vm1118, %v1834, %v1825
  %v1962 = vsel %vm1120, %v1843, %v1961
  %v1963 = vsel %vm1122, %v1852, %v1962
  %v1964 = vsel %vm1124, %v1861, %v1963
  %v1965 = vsel %vm1126, %v1870, %v1964
  %v1966 = vsel %vm1128, %v1879, %v1965
  %v1967 = vsel %vm1130, %v1888, %v1966
  %v1968 = vsel %vm1118, %v1906, %v1897
  %v1969 = vsel %vm1120, %v1915, %v1968
  %v1970 = vsel %vm1122, %v1924, %v1969
  %v1971 = vsel %vm1124, %v1933, %v1970
  %v1972 = vsel %vm1126, %v1942, %v1971
  %v1973 = vsel %vm1128, %v1951, %v1972
  %v1974 = vsel %vm1130, %v1960, %v1973
  %v1975 = vpack.c.b16 %v1974, %v1967
  %v1977 = vsel %vm1141, %v1975, 0
  %1979 = vmatprep.subr.bf16.mxu0 0
  %1980 = vmatpush1.bf16.msra.mxu0 0
  %1981 = vmatprep.subr.bf16.mxu0 0
  %1982 = vmatpush1.bf16.msra.mxu0 0
  %1983 = vmatprep.subr.bf16.mxu0 0
  %1984 = vmatpush1.bf16.msra.mxu0 0
  %1985 = vmatprep.subr.bf16.mxu0 0
  %1986 = vmatpush1.bf16.msra.mxu0 0
  %1987 = vmatprep.subr.bf16.mxu0 0
  %1988 = vmatpush1.bf16.msra.mxu0 0
  %1989 = vmatprep.subr.bf16.mxu0 0
  %1990 = vmatpush1.bf16.msra.mxu0 0
  %1991 = vmatprep.subr.bf16.mxu0 0
  %1992 = vmatpush1.bf16.msra.mxu0 0
  %1993 = vmatprep.subr.bf16.mxu0 0
  %1994 = vmatpush1.bf16.msra.mxu0 %v45
  %1995 = vmatprep.subr.bf16.mxu0 0
  %1996 = vmatpush2.bf16.msra.mxu0 0
  %1997 = vmatprep.subr.bf16.mxu0 0
  %1998 = vmatpush2.bf16.msra.mxu0 0
  %1999 = vmatprep.subr.bf16.mxu0 0
  %2000 = vmatpush2.bf16.msra.mxu0 0
  %2001 = vmatprep.subr.bf16.mxu0 0
  %2002 = vmatpush2.bf16.msra.mxu0 0
  %2003 = vmatprep.subr.bf16.mxu0 0
  %2004 = vmatpush2.bf16.msra.mxu0 0
  %2005 = vmatprep.subr.bf16.mxu0 0
  %2006 = vmatpush2.bf16.msra.mxu0 0
  %2007 = vmatprep.subr.bf16.mxu0 0
  %2008 = vmatpush2.bf16.msra.mxu0 0
  %2009 = vmatprep.subr.bf16.mxu0 0
  %2010 = vmatpush2.bf16.msra.mxu0 0
  %2011 = vmatprep.mubr.bf16.mxu0 0
  %2012 = vmatmul.mubr.bf16.gmra.mxu0 %v1977
  %v2013 = vpop.f32.mrf.mxu0
  %v2014 = vadd.f32 0.0, %v2013
  %v2015 = vpop.f32.mrf.mxu0
  %v2016 = vpop.f32.mrf.mxu0
  %v2017 = vadd.f32 0.0, %v2016
  %v2018 = vpop.f32.mrf.mxu0
  %2019 = vdwg.mxu0
  %v2020 = vadd.f32 %v1655, %v2014
  %v2021 = vadd.f32 %v1656, %v2017
  %2022 = vst.msk [vmem:[#allocation4] sm:$0xff] %vm501, %v2020
  %2023 = vst.msk [vmem:[#allocation4 + $0x8] sm:$0xff] %vm501, %v2021
  %2024 = vst.msk [vmem:[#allocation2] sm:$0xff] %vm1640, %v1148
  %2025 = vst.msk [vmem:[#allocation2 + $0x8] sm:$0xff] %vm1640, %v1149
  %v2026 = vld [vmem:[%s1] sm:$0xff]
  %v2027 = vld [vmem:[%s1 + $0x8] sm:$0xff]
  %v2028 = vld [vmem:[%s0] sm:$0xff]
  %v2029 = vld [vmem:[%s0 + $0x8] sm:$0xff]
  %s2030 = scalar_lea.vmem %s2, 1
  %v2031 = vld [vmem:[%s2030] sm:$0x1]
  %v2034 = vcombine.high %v2028, %v2028
  %v2036 = vunpack.c.l.s4 1966171168
  %v2037 = vunpack.c.0.s8 %v2036
  %v2038 = vlaneseq
  %v2039 = vshrl.u32 %v2038, 7
  %v2040 = vsub.s32 %v2037, %v2039
  %v2041 = vrot.slane %v2028, %v2040
  %v2043 = vunpack.c.l.s4 1966171168
  %v2044 = vunpack.c.0.s8 %v2043
  %v2045 = vlaneseq
  %v2046 = vshrl.u32 %v2045, 7
  %v2047 = vsub.s32 %v2044, %v2046
  %v2048 = vrot.slane %v2034, %v2047
  %v2049 = vcombine.high %v2041, %v2041
  %v2050 = vcombine.high %v2048, %v2048
  %v2052 = vunpack.c.l.s4 1966171168
  %v2053 = vunpack.c.0.s8 %v2052
  %v2054 = vlaneseq
  %v2055 = vshrl.u32 %v2054, 7
  %v2056 = vsub.s32 %v2053, %v2055
  %v2057 = vrot.slane %v2041, %v2056
  %v2059 = vunpack.c.l.s4 1966171168
  %v2060 = vunpack.c.0.s8 %v2059
  %v2061 = vlaneseq
  %v2062 = vshrl.u32 %v2061, 7
  %v2063 = vsub.s32 %v2060, %v2062
  %v2064 = vrot.slane %v2048, %v2063
  %v2066 = vunpack.c.l.s4 1966171168
  %v2067 = vunpack.c.0.s8 %v2066
  %v2068 = vlaneseq
  %v2069 = vshrl.u32 %v2068, 7
  %v2070 = vsub.s32 %v2067, %v2069
  %v2071 = vrot.slane %v2049, %v2070
  %v2073 = vunpack.c.l.s4 1966171168
  %v2074 = vunpack.c.0.s8 %v2073
  %v2075 = vlaneseq
  %v2076 = vshrl.u32 %v2075, 7
  %v2077 = vsub.s32 %v2074, %v2076
  %v2078 = vrot.slane %v2050, %v2077
  %v2079 = vcombine.high %v2057, %v2057
  %v2080 = vcombine.high %v2064, %v2064
  %v2081 = vcombine.high %v2071, %v2071
  %v2082 = vcombine.high %v2078, %v2078
  %v2083 = vcombine.high %v2029, %v2029
  %v2085 = vunpack.c.l.s4 1966171168
  %v2086 = vunpack.c.0.s8 %v2085
  %v2087 = vlaneseq
  %v2088 = vshrl.u32 %v2087, 7
  %v2089 = vsub.s32 %v2086, %v2088
  %v2090 = vrot.slane %v2029, %v2089
  %v2092 = vunpack.c.l.s4 1966171168
  %v2093 = vunpack.c.0.s8 %v2092
  %v2094 = vlaneseq
  %v2095 = vshrl.u32 %v2094, 7
  %v2096 = vsub.s32 %v2093, %v2095
  %v2097 = vrot.slane %v2083, %v2096
  %v2098 = vcombine.high %v2090, %v2090
  %v2099 = vcombine.high %v2097, %v2097
  %v2101 = vunpack.c.l.s4 1966171168
  %v2102 = vunpack.c.0.s8 %v2101
  %v2103 = vlaneseq
  %v2104 = vshrl.u32 %v2103, 7
  %v2105 = vsub.s32 %v2102, %v2104
  %v2106 = vrot.slane %v2090, %v2105
  %v2108 = vunpack.c.l.s4 1966171168
  %v2109 = vunpack.c.0.s8 %v2108
  %v2110 = vlaneseq
  %v2111 = vshrl.u32 %v2110, 7
  %v2112 = vsub.s32 %v2109, %v2111
  %v2113 = vrot.slane %v2097, %v2112
  %v2115 = vunpack.c.l.s4 1966171168
  %v2116 = vunpack.c.0.s8 %v2115
  %v2117 = vlaneseq
  %v2118 = vshrl.u32 %v2117, 7
  %v2119 = vsub.s32 %v2116, %v2118
  %v2120 = vrot.slane %v2098, %v2119
  %v2122 = vunpack.c.l.s4 1966171168
  %v2123 = vunpack.c.0.s8 %v2122
  %v2124 = vlaneseq
  %v2125 = vshrl.u32 %v2124, 7
  %v2126 = vsub.s32 %v2123, %v2125
  %v2127 = vrot.slane %v2099, %v2126
  %v2128 = vcombine.high %v2106, %v2106
  %v2129 = vcombine.high %v2113, %v2113
  %v2130 = vcombine.high %v2120, %v2120
  %v2131 = vcombine.high %v2127, %v2127
  %v2132 = vlaneseq
  %v2133 = vshrl.u32 %v2132, 7
  %v2134 = vsub.s32 0, %v2133
  %v2135 = vrot.slane %v2057, %v2134
  %v2136 = vlaneseq
  %v2137 = vshrl.u32 %v2136, 7
  %v2138 = vsub.s32 0, %v2137
  %v2139 = vrot.slane %v2071, %v2138
  %v2140 = vlaneseq
  %v2141 = vshrl.u32 %v2140, 7
  %v2142 = vsub.s32 0, %v2141
  %v2143 = vrot.slane %v2079, %v2142
  %v2144 = vlaneseq
  %v2145 = vshrl.u32 %v2144, 7
  %v2146 = vsub.s32 0, %v2145
  %v2147 = vrot.slane %v2081, %v2146
  %v2148 = vlaneseq
  %v2149 = vshrl.u32 %v2148, 7
  %v2150 = vsub.s32 0, %v2149
  %v2151 = vrot.slane %v2064, %v2150
  %v2152 = vlaneseq
  %v2153 = vshrl.u32 %v2152, 7
  %v2154 = vsub.s32 0, %v2153
  %v2155 = vrot.slane %v2078, %v2154
  %v2156 = vlaneseq
  %v2157 = vshrl.u32 %v2156, 7
  %v2158 = vsub.s32 0, %v2157
  %v2159 = vrot.slane %v2080, %v2158
  %v2160 = vlaneseq
  %v2161 = vshrl.u32 %v2160, 7
  %v2162 = vsub.s32 0, %v2161
  %v2163 = vrot.slane %v2082, %v2162
  %v2164 = vlaneseq
  %v2165 = vshrl.u32 %v2164, 7
  %v2166 = vsub.s32 0, %v2165
  %v2167 = vrot.slane %v2106, %v2166
  %v2168 = vlaneseq
  %v2169 = vshrl.u32 %v2168, 7
  %v2170 = vsub.s32 0, %v2169
  %v2171 = vrot.slane %v2120, %v2170
  %v2172 = vlaneseq
  %v2173 = vshrl.u32 %v2172, 7
  %v2174 = vsub.s32 0, %v2173
  %v2175 = vrot.slane %v2128, %v2174
  %v2176 = vlaneseq
  %v2177 = vshrl.u32 %v2176, 7
  %v2178 = vsub.s32 0, %v2177
  %v2179 = vrot.slane %v2130, %v2178
  %v2180 = vlaneseq
  %v2181 = vshrl.u32 %v2180, 7
  %v2182 = vsub.s32 0, %v2181
  %v2183 = vrot.slane %v2113, %v2182
  %v2184 = vlaneseq
  %v2185 = vshrl.u32 %v2184, 7
  %v2186 = vsub.s32 0, %v2185
  %v2187 = vrot.slane %v2127, %v2186
  %v2188 = vlaneseq
  %v2189 = vshrl.u32 %v2188, 7
  %v2190 = vsub.s32 0, %v2189
  %v2191 = vrot.slane %v2129, %v2190
  %v2192 = vlaneseq
  %v2193 = vshrl.u32 %v2192, 7
  %v2194 = vsub.s32 0, %v2193
  %v2195 = vrot.slane %v2131, %v2194
  %2214 = vrot.lane.b32.xlu0 %v2026, 16
  %v2215 = vpop.permute.xlu0 %2214
  %2216 = vrot.lane.b32.xlu0 %v2027, 16
  %v2217 = vpop.permute.xlu0 %2216
  %v2220 = vadd.f32 %v2135, %v2215
  %v2221 = vadd.f32 %v2135, %v2217
  %v2222 = vadd.f32 %v2139, %v2215
  %v2223 = vadd.f32 %v2139, %v2217
  %v2224 = vadd.f32 %v2143, %v2215
  %v2225 = vadd.f32 %v2143, %v2217
  %v2226 = vadd.f32 %v2147, %v2215
  %v2227 = vadd.f32 %v2147, %v2217
  %v2228 = vadd.f32 %v2151, %v2215
  %v2229 = vadd.f32 %v2151, %v2217
  %v2230 = vadd.f32 %v2155, %v2215
  %v2231 = vadd.f32 %v2155, %v2217
  %v2232 = vadd.f32 %v2159, %v2215
  %v2233 = vadd.f32 %v2159, %v2217
  %v2234 = vadd.f32 %v2163, %v2215
  %v2235 = vadd.f32 %v2163, %v2217
  %v2236 = vadd.f32 %v2167, %v2215
  %v2237 = vadd.f32 %v2167, %v2217
  %v2238 = vadd.f32 %v2171, %v2215
  %v2239 = vadd.f32 %v2171, %v2217
  %v2240 = vadd.f32 %v2175, %v2215
  %v2241 = vadd.f32 %v2175, %v2217
  %v2242 = vadd.f32 %v2179, %v2215
  %v2243 = vadd.f32 %v2179, %v2217
  %v2244 = vadd.f32 %v2183, %v2215
  %v2245 = vadd.f32 %v2183, %v2217
  %v2246 = vadd.f32 %v2187, %v2215
  %v2247 = vadd.f32 %v2187, %v2217
  %v2248 = vadd.f32 %v2191, %v2215
  %v2249 = vadd.f32 %v2191, %v2217
  %v2250 = vadd.f32 %v2195, %v2215
  %v2251 = vadd.f32 %v2195, %v2217
  %v2252 = vmul.f32 %v2220, 0.2
  %v2253 = vmul.f32 %v2221, 0.2
  %v2254 = vmul.f32 %v2222, 0.2
  %v2255 = vmul.f32 %v2223, 0.2
  %v2256 = vmul.f32 %v2224, 0.2
  %v2257 = vmul.f32 %v2225, 0.2
  %v2258 = vmul.f32 %v2226, 0.2
  %v2259 = vmul.f32 %v2227, 0.2
  %v2260 = vmul.f32 %v2228, 0.2
  %v2261 = vmul.f32 %v2229, 0.2
  %v2262 = vmul.f32 %v2230, 0.2
  %v2263 = vmul.f32 %v2231, 0.2
  %v2264 = vmul.f32 %v2232, 0.2
  %v2265 = vmul.f32 %v2233, 0.2
  %v2266 = vmul.f32 %v2234, 0.2
  %v2267 = vmul.f32 %v2235, 0.2
  %v2268 = vmul.f32 %v2236, 0.2
  %v2269 = vmul.f32 %v2237, 0.2
  %v2270 = vmul.f32 %v2238, 0.2
  %v2271 = vmul.f32 %v2239, 0.2
  %v2272 = vmul.f32 %v2240, 0.2
  %v2273 = vmul.f32 %v2241, 0.2
  %v2274 = vmul.f32 %v2242, 0.2
  %v2275 = vmul.f32 %v2243, 0.2
  %v2276 = vmul.f32 %v2244, 0.2
  %v2277 = vmul.f32 %v2245, 0.2
  %v2278 = vmul.f32 %v2246, 0.2
  %v2279 = vmul.f32 %v2247, 0.2
  %v2280 = vmul.f32 %v2248, 0.2
  %v2281 = vmul.f32 %v2249, 0.2
  %v2282 = vmul.f32 %v2250, 0.2
  %v2283 = vmul.f32 %v2251, 0.2
  %v2284 = vmax.f32 %v2220, %v2252
  %v2285 = vmax.f32 %v2221, %v2253
  %v2286 = vmax.f32 %v2222, %v2254
  %v2287 = vmax.f32 %v2223, %v2255
  %v2288 = vmax.f32 %v2224, %v2256
  %v2289 = vmax.f32 %v2225, %v2257
  %v2290 = vmax.f32 %v2226, %v2258
  %v2291 = vmax.f32 %v2227, %v2259
  %v2292 = vmax.f32 %v2228, %v2260
  %v2293 = vmax.f32 %v2229, %v2261
  %v2294 = vmax.f32 %v2230, %v2262
  %v2295 = vmax.f32 %v2231, %v2263
  %v2296 = vmax.f32 %v2232, %v2264
  %v2297 = vmax.f32 %v2233, %v2265
  %v2298 = vmax.f32 %v2234, %v2266
  %v2299 = vmax.f32 %v2235, %v2267
  %v2300 = vmax.f32 %v2236, %v2268
  %v2301 = vmax.f32 %v2237, %v2269
  %v2302 = vmax.f32 %v2238, %v2270
  %v2303 = vmax.f32 %v2239, %v2271
  %v2304 = vmax.f32 %v2240, %v2272
  %v2305 = vmax.f32 %v2241, %v2273
  %v2306 = vmax.f32 %v2242, %v2274
  %v2307 = vmax.f32 %v2243, %v2275
  %v2308 = vmax.f32 %v2244, %v2276
  %v2309 = vmax.f32 %v2245, %v2277
  %v2310 = vmax.f32 %v2246, %v2278
  %v2311 = vmax.f32 %v2247, %v2279
  %v2312 = vmax.f32 %v2248, %v2280
  %v2313 = vmax.f32 %v2249, %v2281
  %v2314 = vmax.f32 %v2250, %v2282
  %v2315 = vmax.f32 %v2251, %v2283
  %v2317 = vlaneseq
  %v2318 = vshrl.u32 %v2317, 7
  %v2319 = vsub.s32 0, %v2318
  %v2320 = vrot.slane %v2031, %v2319
  %2321 = vrot.lane.b32.xlu0 %v2320, 24
  %v2322 = vpop.permute.xlu0 %2321
  %v2324 = vmul.f32 %v2284, %v2322
  %v2325 = vmul.f32 %v2285, %v2322
  %v2326 = vmul.f32 %v2286, %v2322
  %v2327 = vmul.f32 %v2287, %v2322
  %v2328 = vmul.f32 %v2288, %v2322
  %v2329 = vmul.f32 %v2289, %v2322
  %v2330 = vmul.f32 %v2290, %v2322
  %v2331 = vmul.f32 %v2291, %v2322
  %v2332 = vmul.f32 %v2292, %v2322
  %v2333 = vmul.f32 %v2293, %v2322
  %v2334 = vmul.f32 %v2294, %v2322
  %v2335 = vmul.f32 %v2295, %v2322
  %v2336 = vmul.f32 %v2296, %v2322
  %v2337 = vmul.f32 %v2297, %v2322
  %v2338 = vmul.f32 %v2298, %v2322
  %v2339 = vmul.f32 %v2299, %v2322
  %v2340 = vmul.f32 %v2300, %v2322
  %v2341 = vmul.f32 %v2301, %v2322
  %v2342 = vmul.f32 %v2302, %v2322
  %v2343 = vmul.f32 %v2303, %v2322
  %v2344 = vmul.f32 %v2304, %v2322
  %v2345 = vmul.f32 %v2305, %v2322
  %v2346 = vmul.f32 %v2306, %v2322
  %v2347 = vmul.f32 %v2307, %v2322
  %v2348 = vmul.f32 %v2308, %v2322
  %v2349 = vmul.f32 %v2309, %v2322
  %v2350 = vmul.f32 %v2310, %v2322
  %v2351 = vmul.f32 %v2311, %v2322
  %v2352 = vmul.f32 %v2312, %v2322
  %v2353 = vmul.f32 %v2313, %v2322
  %v2354 = vmul.f32 %v2314, %v2322
  %v2355 = vmul.f32 %v2315, %v2322
  %2388 = vrot.lane.b32.xlu0 %v2324, 104
  %v2389 = vpop.permute.xlu0 %2388
  %2390 = vrot.lane.b32.xlu0 %v2325, 104
  %v2391 = vpop.permute.xlu0 %2390
  %2392 = vrot.lane.b32.xlu0 %v2326, 104
  %v2393 = vpop.permute.xlu0 %2392
  %2394 = vrot.lane.b32.xlu0 %v2327, 104
  %v2395 = vpop.permute.xlu0 %2394
  %2396 = vrot.lane.b32.xlu0 %v2328, 104
  %v2397 = vpop.permute.xlu0 %2396
  %2398 = vrot.lane.b32.xlu0 %v2329, 104
  %v2399 = vpop.permute.xlu0 %2398
  %2400 = vrot.lane.b32.xlu0 %v2330, 104
  %v2401 = vpop.permute.xlu0 %2400
  %2402 = vrot.lane.b32.xlu0 %v2331, 104
  %v2403 = vpop.permute.xlu0 %2402
  %2404 = vrot.lane.b32.xlu0 %v2332, 104
  %v2405 = vpop.permute.xlu0 %2404
  %2406 = vrot.lane.b32.xlu0 %v2333, 104
  %v2407 = vpop.permute.xlu0 %2406
  %2408 = vrot.lane.b32.xlu0 %v2334, 104
  %v2409 = vpop.permute.xlu0 %2408
  %2410 = vrot.lane.b32.xlu0 %v2335, 104
  %v2411 = vpop.permute.xlu0 %2410
  %2412 = vrot.lane.b32.xlu0 %v2336, 104
  %v2413 = vpop.permute.xlu0 %2412
  %2414 = vrot.lane.b32.xlu0 %v2337, 104
  %v2415 = vpop.permute.xlu0 %2414
  %2416 = vrot.lane.b32.xlu0 %v2338, 104
  %v2417 = vpop.permute.xlu0 %2416
  %2418 = vrot.lane.b32.xlu0 %v2339, 104
  %v2419 = vpop.permute.xlu0 %2418
  %2420 = vrot.lane.b32.xlu0 %v2340, 104
  %v2421 = vpop.permute.xlu0 %2420
  %2422 = vrot.lane.b32.xlu0 %v2341, 104
  %v2423 = vpop.permute.xlu0 %2422
  %2424 = vrot.lane.b32.xlu0 %v2342, 104
  %v2425 = vpop.permute.xlu0 %2424
  %2426 = vrot.lane.b32.xlu0 %v2343, 104
  %v2427 = vpop.permute.xlu0 %2426
  %2428 = vrot.lane.b32.xlu0 %v2344, 104
  %v2429 = vpop.permute.xlu0 %2428
  %2430 = vrot.lane.b32.xlu0 %v2345, 104
  %v2431 = vpop.permute.xlu0 %2430
  %2432 = vrot.lane.b32.xlu0 %v2346, 104
  %v2433 = vpop.permute.xlu0 %2432
  %2434 = vrot.lane.b32.xlu0 %v2347, 104
  %v2435 = vpop.permute.xlu0 %2434
  %2436 = vrot.lane.b32.xlu0 %v2348, 104
  %v2437 = vpop.permute.xlu0 %2436
  %2438 = vrot.lane.b32.xlu0 %v2349, 104
  %v2439 = vpop.permute.xlu0 %2438
  %2440 = vrot.lane.b32.xlu0 %v2350, 104
  %v2441 = vpop.permute.xlu0 %2440
  %2442 = vrot.lane.b32.xlu0 %v2351, 104
  %v2443 = vpop.permute.xlu0 %2442
  %2444 = vrot.lane.b32.xlu0 %v2352, 104
  %v2445 = vpop.permute.xlu0 %2444
  %2446 = vrot.lane.b32.xlu0 %v2353, 104
  %v2447 = vpop.permute.xlu0 %2446
  %2448 = vrot.lane.b32.xlu0 %v2354, 104
  %v2449 = vpop.permute.xlu0 %2448
  %2450 = vrot.lane.b32.xlu0 %v2355, 104
  %v2451 = vpop.permute.xlu0 %2450
  %v2484 = vsel %vm501, %v2389, 0.0
  %2485 = vadd.xlane.f32.xlu0 %v2484
  %v2486 = vpop.xlane.xlu0 %2485
  %v2487 = vsel %vm501, %v2391, 0.0
  %2488 = vadd.xlane.f32.xlu0 %v2487
  %v2489 = vpop.xlane.xlu0 %2488
  %v2490 = vsel %vm501, %v2393, 0.0
  %2491 = vadd.xlane.f32.xlu0 %v2490
  %v2492 = vpop.xlane.xlu0 %2491
  %v2493 = vsel %vm501, %v2395, 0.0
  %2494 = vadd.xlane.f32.xlu0 %v2493
  %v2495 = vpop.xlane.xlu0 %2494
  %v2496 = vsel %vm501, %v2397, 0.0
  %2497 = vadd.xlane.f32.xlu0 %v2496
  %v2498 = vpop.xlane.xlu0 %2497
  %v2499 = vsel %vm501, %v2399, 0.0
  %2500 = vadd.xlane.f32.xlu0 %v2499
  %v2501 = vpop.xlane.xlu0 %2500
  %v2502 = vsel %vm501, %v2401, 0.0
  %2503 = vadd.xlane.f32.xlu0 %v2502
  %v2504 = vpop.xlane.xlu0 %2503
  %v2505 = vsel %vm501, %v2403, 0.0
  %2506 = vadd.xlane.f32.xlu0 %v2505
  %v2507 = vpop.xlane.xlu0 %2506
  %v2508 = vsel %vm501, %v2405, 0.0
  %2509 = vadd.xlane.f32.xlu0 %v2508
  %v2510 = vpop.xlane.xlu0 %2509
  %v2511 = vsel %vm501, %v2407, 0.0
  %2512 = vadd.xlane.f32.xlu0 %v2511
  %v2513 = vpop.xlane.xlu0 %2512
  %v2514 = vsel %vm501, %v2409, 0.0
  %2515 = vadd.xlane.f32.xlu0 %v2514
  %v2516 = vpop.xlane.xlu0 %2515
  %v2517 = vsel %vm501, %v2411, 0.0
  %2518 = vadd.xlane.f32.xlu0 %v2517
  %v2519 = vpop.xlane.xlu0 %2518
  %v2520 = vsel %vm501, %v2413, 0.0
  %2521 = vadd.xlane.f32.xlu0 %v2520
  %v2522 = vpop.xlane.xlu0 %2521
  %v2523 = vsel %vm501, %v2415, 0.0
  %2524 = vadd.xlane.f32.xlu0 %v2523
  %v2525 = vpop.xlane.xlu0 %2524
  %v2526 = vsel %vm501, %v2417, 0.0
  %2527 = vadd.xlane.f32.xlu0 %v2526
  %v2528 = vpop.xlane.xlu0 %2527
  %v2529 = vsel %vm501, %v2419, 0.0
  %2530 = vadd.xlane.f32.xlu0 %v2529
  %v2531 = vpop.xlane.xlu0 %2530
  %v2532 = vsel %vm501, %v2421, 0.0
  %2533 = vadd.xlane.f32.xlu0 %v2532
  %v2534 = vpop.xlane.xlu0 %2533
  %v2535 = vsel %vm501, %v2423, 0.0
  %2536 = vadd.xlane.f32.xlu0 %v2535
  %v2537 = vpop.xlane.xlu0 %2536
  %v2538 = vsel %vm501, %v2425, 0.0
  %2539 = vadd.xlane.f32.xlu0 %v2538
  %v2540 = vpop.xlane.xlu0 %2539
  %v2541 = vsel %vm501, %v2427, 0.0
  %2542 = vadd.xlane.f32.xlu0 %v2541
  %v2543 = vpop.xlane.xlu0 %2542
  %v2544 = vsel %vm501, %v2429, 0.0
  %2545 = vadd.xlane.f32.xlu0 %v2544
  %v2546 = vpop.xlane.xlu0 %2545
  %v2547 = vsel %vm501, %v2431, 0.0
  %2548 = vadd.xlane.f32.xlu0 %v2547
  %v2549 = vpop.xlane.xlu0 %2548
  %v2550 = vsel %vm501, %v2433, 0.0
  %2551 = vadd.xlane.f32.xlu0 %v2550
  %v2552 = vpop.xlane.xlu0 %2551
  %v2553 = vsel %vm501, %v2435, 0.0
  %2554 = vadd.xlane.f32.xlu0 %v2553
  %v2555 = vpop.xlane.xlu0 %2554
  %v2556 = vsel %vm501, %v2437, 0.0
  %2557 = vadd.xlane.f32.xlu0 %v2556
  %v2558 = vpop.xlane.xlu0 %2557
  %v2559 = vsel %vm501, %v2439, 0.0
  %2560 = vadd.xlane.f32.xlu0 %v2559
  %v2561 = vpop.xlane.xlu0 %2560
  %v2562 = vsel %vm501, %v2441, 0.0
  %2563 = vadd.xlane.f32.xlu0 %v2562
  %v2564 = vpop.xlane.xlu0 %2563
  %v2565 = vsel %vm501, %v2443, 0.0
  %2566 = vadd.xlane.f32.xlu0 %v2565
  %v2567 = vpop.xlane.xlu0 %2566
  %v2568 = vsel %vm501, %v2445, 0.0
  %2569 = vadd.xlane.f32.xlu0 %v2568
  %v2570 = vpop.xlane.xlu0 %2569
  %v2571 = vsel %vm501, %v2447, 0.0
  %2572 = vadd.xlane.f32.xlu0 %v2571
  %v2573 = vpop.xlane.xlu0 %2572
  %v2574 = vsel %vm501, %v2449, 0.0
  %2575 = vadd.xlane.f32.xlu0 %v2574
  %v2576 = vpop.xlane.xlu0 %2575
  %v2577 = vsel %vm501, %v2451, 0.0
  %2578 = vadd.xlane.f32.xlu0 %v2577
  %v2579 = vpop.xlane.xlu0 %2578
  %v2580 = vadd.f32 %v2486, %v606
  %v2581 = vadd.f32 %v2489, %v610
  %v2582 = vadd.f32 %v2492, %v617
  %v2583 = vadd.f32 %v2495, %v621
  %v2584 = vadd.f32 %v2498, %v628
  %v2585 = vadd.f32 %v2501, %v632
  %v2586 = vadd.f32 %v2504, %v639
  %v2587 = vadd.f32 %v2507, %v643
  %v2588 = vadd.f32 %v2510, %v650
  %v2589 = vadd.f32 %v2513, %v654
  %v2590 = vadd.f32 %v2516, %v661
  %v2591 = vadd.f32 %v2519, %v665
  %v2592 = vadd.f32 %v2522, %v672
  %v2593 = vadd.f32 %v2525, %v676
  %v2594 = vadd.f32 %v2528, %v683
  %v2595 = vadd.f32 %v2531, %v687
  %v2596 = vadd.f32 %v2534, %v694
  %v2597 = vadd.f32 %v2537, %v698
  %v2598 = vadd.f32 %v2540, %v705
  %v2599 = vadd.f32 %v2543, %v709
  %v2600 = vadd.f32 %v2546, %v716
  %v2601 = vadd.f32 %v2549, %v720
  %v2602 = vadd.f32 %v2552, %v727
  %v2603 = vadd.f32 %v2555, %v731
  %v2604 = vadd.f32 %v2558, %v738
  %v2605 = vadd.f32 %v2561, %v742
  %v2606 = vadd.f32 %v2564, %v749
  %v2607 = vadd.f32 %v2567, %v753
  %v2608 = vadd.f32 %v2570, %v760
  %v2609 = vadd.f32 %v2573, %v764
  %v2610 = vadd.f32 %v2576, %v771
  %v2611 = vadd.f32 %v2579, %v775
  %s2612 = scalar_lea.vmem [#allocation2], 16
  %v2613 = vld [vmem:[%s2612] sm:$0xff]
  %v2614 = vld [vmem:[%s2612 + $0x8] sm:$0xff]
  %2647 = vset.pattern.permute.xlu0 0
  %2648 = vperm.xlu0 %2647, %v2580
  %v2649 = vpop.permute.xlu0 %2648
  %2650 = vset.pattern.permute.xlu0 0
  %2651 = vperm.xlu0 %2650, %v2581
  %v2652 = vpop.permute.xlu0 %2651
  %2653 = vset.pattern.permute.xlu0 0
  %2654 = vperm.xlu0 %2653, %v2582
  %v2655 = vpop.permute.xlu0 %2654
  %2656 = vset.pattern.permute.xlu0 0
  %2657 = vperm.xlu0 %2656, %v2583
  %v2658 = vpop.permute.xlu0 %2657
  %2659 = vset.pattern.permute.xlu0 0
  %2660 = vperm.xlu0 %2659, %v2584
  %v2661 = vpop.permute.xlu0 %2660
  %2662 = vset.pattern.permute.xlu0 0
  %2663 = vperm.xlu0 %2662, %v2585
  %v2664 = vpop.permute.xlu0 %2663
  %2665 = vset.pattern.permute.xlu0 0
  %2666 = vperm.xlu0 %2665, %v2586
  %v2667 = vpop.permute.xlu0 %2666
  %2668 = vset.pattern.permute.xlu0 0
  %2669 = vperm.xlu0 %2668, %v2587
  %v2670 = vpop.permute.xlu0 %2669
  %2671 = vset.pattern.permute.xlu0 0
  %2672 = vperm.xlu0 %2671, %v2588
  %v2673 = vpop.permute.xlu0 %2672
  %2674 = vset.pattern.permute.xlu0 0
  %2675 = vperm.xlu0 %2674, %v2589
  %v2676 = vpop.permute.xlu0 %2675
  %2677 = vset.pattern.permute.xlu0 0
  %2678 = vperm.xlu0 %2677, %v2590
  %v2679 = vpop.permute.xlu0 %2678
  %2680 = vset.pattern.permute.xlu0 0
  %2681 = vperm.xlu0 %2680, %v2591
  %v2682 = vpop.permute.xlu0 %2681
  %2683 = vset.pattern.permute.xlu0 0
  %2684 = vperm.xlu0 %2683, %v2592
  %v2685 = vpop.permute.xlu0 %2684
  %2686 = vset.pattern.permute.xlu0 0
  %2687 = vperm.xlu0 %2686, %v2593
  %v2688 = vpop.permute.xlu0 %2687
  %2689 = vset.pattern.permute.xlu0 0
  %2690 = vperm.xlu0 %2689, %v2594
  %v2691 = vpop.permute.xlu0 %2690
  %2692 = vset.pattern.permute.xlu0 0
  %2693 = vperm.xlu0 %2692, %v2595
  %v2694 = vpop.permute.xlu0 %2693
  %2695 = vset.pattern.permute.xlu0 0
  %2696 = vperm.xlu0 %2695, %v2596
  %v2697 = vpop.permute.xlu0 %2696
  %2698 = vset.pattern.permute.xlu0 0
  %2699 = vperm.xlu0 %2698, %v2597
  %v2700 = vpop.permute.xlu0 %2699
  %2701 = vset.pattern.permute.xlu0 0
  %2702 = vperm.xlu0 %2701, %v2598
  %v2703 = vpop.permute.xlu0 %2702
  %2704 = vset.pattern.permute.xlu0 0
  %2705 = vperm.xlu0 %2704, %v2599
  %v2706 = vpop.permute.xlu0 %2705
  %2707 = vset.pattern.permute.xlu0 0
  %2708 = vperm.xlu0 %2707, %v2600
  %v2709 = vpop.permute.xlu0 %2708
  %2710 = vset.pattern.permute.xlu0 0
  %2711 = vperm.xlu0 %2710, %v2601
  %v2712 = vpop.permute.xlu0 %2711
  %2713 = vset.pattern.permute.xlu0 0
  %2714 = vperm.xlu0 %2713, %v2602
  %v2715 = vpop.permute.xlu0 %2714
  %2716 = vset.pattern.permute.xlu0 0
  %2717 = vperm.xlu0 %2716, %v2603
  %v2718 = vpop.permute.xlu0 %2717
  %2719 = vset.pattern.permute.xlu0 0
  %2720 = vperm.xlu0 %2719, %v2604
  %v2721 = vpop.permute.xlu0 %2720
  %2722 = vset.pattern.permute.xlu0 0
  %2723 = vperm.xlu0 %2722, %v2605
  %v2724 = vpop.permute.xlu0 %2723
  %2725 = vset.pattern.permute.xlu0 0
  %2726 = vperm.xlu0 %2725, %v2606
  %v2727 = vpop.permute.xlu0 %2726
  %2728 = vset.pattern.permute.xlu0 0
  %2729 = vperm.xlu0 %2728, %v2607
  %v2730 = vpop.permute.xlu0 %2729
  %2731 = vset.pattern.permute.xlu0 0
  %2732 = vperm.xlu0 %2731, %v2608
  %v2733 = vpop.permute.xlu0 %2732
  %2734 = vset.pattern.permute.xlu0 0
  %2735 = vperm.xlu0 %2734, %v2609
  %v2736 = vpop.permute.xlu0 %2735
  %2737 = vset.pattern.permute.xlu0 0
  %2738 = vperm.xlu0 %2737, %v2610
  %v2739 = vpop.permute.xlu0 %2738
  %2740 = vset.pattern.permute.xlu0 0
  %2741 = vperm.xlu0 %2740, %v2611
  %v2742 = vpop.permute.xlu0 %2741
  %v2743 = vlaneseq
  %v2744 = vshrl.u32 %v2743, 7
  %v2745 = vsub.s32 %v971, %v2744
  %v2746 = vrot.slane %v2649, %v2745
  %v2747 = vlaneseq
  %v2748 = vshrl.u32 %v2747, 7
  %v2749 = vsub.s32 %v976, %v2748
  %v2750 = vrot.slane %v2652, %v2749
  %v2751 = vsel %vm981, %v2750, %v2746
  %v2752 = vlaneseq
  %v2753 = vshrl.u32 %v2752, 7
  %v2754 = vsub.s32 %v971, %v2753
  %v2755 = vrot.slane %v2655, %v2754
  %v2756 = vlaneseq
  %v2757 = vshrl.u32 %v2756, 7
  %v2758 = vsub.s32 %v976, %v2757
  %v2759 = vrot.slane %v2658, %v2758
  %v2760 = vsel %vm981, %v2759, %v2755
  %v2761 = vlaneseq
  %v2762 = vshrl.u32 %v2761, 7
  %v2763 = vsub.s32 %v971, %v2762
  %v2764 = vrot.slane %v2661, %v2763
  %v2765 = vlaneseq
  %v2766 = vshrl.u32 %v2765, 7
  %v2767 = vsub.s32 %v976, %v2766
  %v2768 = vrot.slane %v2664, %v2767
  %v2769 = vsel %vm981, %v2768, %v2764
  %v2770 = vlaneseq
  %v2771 = vshrl.u32 %v2770, 7
  %v2772 = vsub.s32 %v971, %v2771
  %v2773 = vrot.slane %v2667, %v2772
  %v2774 = vlaneseq
  %v2775 = vshrl.u32 %v2774, 7
  %v2776 = vsub.s32 %v976, %v2775
  %v2777 = vrot.slane %v2670, %v2776
  %v2778 = vsel %vm981, %v2777, %v2773
  %v2779 = vlaneseq
  %v2780 = vshrl.u32 %v2779, 7
  %v2781 = vsub.s32 %v971, %v2780
  %v2782 = vrot.slane %v2673, %v2781
  %v2783 = vlaneseq
  %v2784 = vshrl.u32 %v2783, 7
  %v2785 = vsub.s32 %v976, %v2784
  %v2786 = vrot.slane %v2676, %v2785
  %v2787 = vsel %vm981, %v2786, %v2782
  %v2788 = vlaneseq
  %v2789 = vshrl.u32 %v2788, 7
  %v2790 = vsub.s32 %v971, %v2789
  %v2791 = vrot.slane %v2679, %v2790
  %v2792 = vlaneseq
  %v2793 = vshrl.u32 %v2792, 7
  %v2794 = vsub.s32 %v976, %v2793
  %v2795 = vrot.slane %v2682, %v2794
  %v2796 = vsel %vm981, %v2795, %v2791
  %v2797 = vlaneseq
  %v2798 = vshrl.u32 %v2797, 7
  %v2799 = vsub.s32 %v971, %v2798
  %v2800 = vrot.slane %v2685, %v2799
  %v2801 = vlaneseq
  %v2802 = vshrl.u32 %v2801, 7
  %v2803 = vsub.s32 %v976, %v2802
  %v2804 = vrot.slane %v2688, %v2803
  %v2805 = vsel %vm981, %v2804, %v2800
  %v2806 = vlaneseq
  %v2807 = vshrl.u32 %v2806, 7
  %v2808 = vsub.s32 %v971, %v2807
  %v2809 = vrot.slane %v2691, %v2808
  %v2810 = vlaneseq
  %v2811 = vshrl.u32 %v2810, 7
  %v2812 = vsub.s32 %v976, %v2811
  %v2813 = vrot.slane %v2694, %v2812
  %v2814 = vsel %vm981, %v2813, %v2809
  %v2815 = vlaneseq
  %v2816 = vshrl.u32 %v2815, 7
  %v2817 = vsub.s32 %v971, %v2816
  %v2818 = vrot.slane %v2697, %v2817
  %v2819 = vlaneseq
  %v2820 = vshrl.u32 %v2819, 7
  %v2821 = vsub.s32 %v976, %v2820
  %v2822 = vrot.slane %v2700, %v2821
  %v2823 = vsel %vm981, %v2822, %v2818
  %v2824 = vlaneseq
  %v2825 = vshrl.u32 %v2824, 7
  %v2826 = vsub.s32 %v971, %v2825
  %v2827 = vrot.slane %v2703, %v2826
  %v2828 = vlaneseq
  %v2829 = vshrl.u32 %v2828, 7
  %v2830 = vsub.s32 %v976, %v2829
  %v2831 = vrot.slane %v2706, %v2830
  %v2832 = vsel %vm981, %v2831, %v2827
  %v2833 = vlaneseq
  %v2834 = vshrl.u32 %v2833, 7
  %v2835 = vsub.s32 %v971, %v2834
  %v2836 = vrot.slane %v2709, %v2835
  %v2837 = vlaneseq
  %v2838 = vshrl.u32 %v2837, 7
  %v2839 = vsub.s32 %v976, %v2838
  %v2840 = vrot.slane %v2712, %v2839
  %v2841 = vsel %vm981, %v2840, %v2836
  %v2842 = vlaneseq
  %v2843 = vshrl.u32 %v2842, 7
  %v2844 = vsub.s32 %v971, %v2843
  %v2845 = vrot.slane %v2715, %v2844
  %v2846 = vlaneseq
  %v2847 = vshrl.u32 %v2846, 7
  %v2848 = vsub.s32 %v976, %v2847
  %v2849 = vrot.slane %v2718, %v2848
  %v2850 = vsel %vm981, %v2849, %v2845
  %v2851 = vlaneseq
  %v2852 = vshrl.u32 %v2851, 7
  %v2853 = vsub.s32 %v971, %v2852
  %v2854 = vrot.slane %v2721, %v2853
  %v2855 = vlaneseq
  %v2856 = vshrl.u32 %v2855, 7
  %v2857 = vsub.s32 %v976, %v2856
  %v2858 = vrot.slane %v2724, %v2857
  %v2859 = vsel %vm981, %v2858, %v2854
  %v2860 = vlaneseq
  %v2861 = vshrl.u32 %v2860, 7
  %v2862 = vsub.s32 %v971, %v2861
  %v2863 = vrot.slane %v2727, %v2862
  %v2864 = vlaneseq
  %v2865 = vshrl.u32 %v2864, 7
  %v2866 = vsub.s32 %v976, %v2865
  %v2867 = vrot.slane %v2730, %v2866
  %v2868 = vsel %vm981, %v2867, %v2863
  %v2869 = vlaneseq
  %v2870 = vshrl.u32 %v2869, 7
  %v2871 = vsub.s32 %v971, %v2870
  %v2872 = vrot.slane %v2733, %v2871
  %v2873 = vlaneseq
  %v2874 = vshrl.u32 %v2873, 7
  %v2875 = vsub.s32 %v976, %v2874
  %v2876 = vrot.slane %v2736, %v2875
  %v2877 = vsel %vm981, %v2876, %v2872
  %v2878 = vlaneseq
  %v2879 = vshrl.u32 %v2878, 7
  %v2880 = vsub.s32 %v971, %v2879
  %v2881 = vrot.slane %v2739, %v2880
  %v2882 = vlaneseq
  %v2883 = vshrl.u32 %v2882, 7
  %v2884 = vsub.s32 %v976, %v2883
  %v2885 = vrot.slane %v2742, %v2884
  %v2886 = vsel %vm981, %v2885, %v2881
  %v2887 = vsel %vm1118, %v2760, %v2751
  %v2888 = vsel %vm1120, %v2769, %v2887
  %v2889 = vsel %vm1122, %v2778, %v2888
  %v2890 = vsel %vm1124, %v2787, %v2889
  %v2891 = vsel %vm1126, %v2796, %v2890
  %v2892 = vsel %vm1128, %v2805, %v2891
  %v2893 = vsel %vm1130, %v2814, %v2892
  %v2894 = vsel %vm1118, %v2832, %v2823
  %v2895 = vsel %vm1120, %v2841, %v2894
  %v2896 = vsel %vm1122, %v2850, %v2895
  %v2897 = vsel %vm1124, %v2859, %v2896
  %v2898 = vsel %vm1126, %v2868, %v2897
  %v2899 = vsel %vm1128, %v2877, %v2898
  %v2900 = vsel %vm1130, %v2886, %v2899
  %v2903 = vsel %vm1141, %v2893, -inf
  %2904 = vmax.xlane.f32.xlu0 %v2903
  %v2905 = vpop.xlane.xlu0 %2904
  %v2906 = vsel %vm1141, %v2900, -inf
  %2907 = vmax.xlane.f32.xlu0 %v2906
  %v2908 = vpop.xlane.xlu0 %2907
  %v2909 = vmax.f32 %v2613, %v2905
  %v2910 = vmax.f32 %v2614, %v2908
  %v2911 = vsub.f32 %v2613, %v2909
  %v2912 = vsub.f32 %v2614, %v2910
  %v2913 = vmul.f32 %v2911, 1.442695
  %v2914 = vpow.pop %v2913
  %v2915 = vmul.f32 %v2912, 1.442695
  %v2916 = vpow.pop %v2915
  %2918 = vset.pattern.permute.xlu0 0
  %2919 = vperm.xlu0 %2918, %v2909
  %v2920 = vpop.permute.xlu0 %2919
  %2922 = vset.pattern.permute.xlu0 0
  %2923 = vperm.xlu0 %2922, %v2910
  %v2924 = vpop.permute.xlu0 %2923
  %v2925 = vlaneseq
  %v2926 = vshrl.u32 %v2925, 7
  %v2927 = vsub.s32 0, %v2926
  %v2928 = vrot.slane %v2920, %v2927
  %v2929 = vlaneseq
  %v2930 = vshrl.u32 %v2929, 7
  %v2931 = vsub.s32 1, %v2930
  %v2932 = vrot.slane %v2920, %v2931
  %v2933 = vlaneseq
  %v2934 = vshrl.u32 %v2933, 7
  %v2935 = vsub.s32 2, %v2934
  %v2936 = vrot.slane %v2920, %v2935
  %v2937 = vlaneseq
  %v2938 = vshrl.u32 %v2937, 7
  %v2939 = vsub.s32 3, %v2938
  %v2940 = vrot.slane %v2920, %v2939
  %v2941 = vlaneseq
  %v2942 = vshrl.u32 %v2941, 7
  %v2943 = vsub.s32 4, %v2942
  %v2944 = vrot.slane %v2920, %v2943
  %v2945 = vlaneseq
  %v2946 = vshrl.u32 %v2945, 7
  %v2947 = vsub.s32 5, %v2946
  %v2948 = vrot.slane %v2920, %v2947
  %v2949 = vlaneseq
  %v2950 = vshrl.u32 %v2949, 7
  %v2951 = vsub.s32 6, %v2950
  %v2952 = vrot.slane %v2920, %v2951
  %v2953 = vlaneseq
  %v2954 = vshrl.u32 %v2953, 7
  %v2955 = vsub.s32 7, %v2954
  %v2956 = vrot.slane %v2920, %v2955
  %v2957 = vlaneseq
  %v2958 = vshrl.u32 %v2957, 7
  %v2959 = vsub.s32 0, %v2958
  %v2960 = vrot.slane %v2924, %v2959
  %v2961 = vlaneseq
  %v2962 = vshrl.u32 %v2961, 7
  %v2963 = vsub.s32 1, %v2962
  %v2964 = vrot.slane %v2924, %v2963
  %v2965 = vlaneseq
  %v2966 = vshrl.u32 %v2965, 7
  %v2967 = vsub.s32 2, %v2966
  %v2968 = vrot.slane %v2924, %v2967
  %v2969 = vlaneseq
  %v2970 = vshrl.u32 %v2969, 7
  %v2971 = vsub.s32 3, %v2970
  %v2972 = vrot.slane %v2924, %v2971
  %v2973 = vlaneseq
  %v2974 = vshrl.u32 %v2973, 7
  %v2975 = vsub.s32 4, %v2974
  %v2976 = vrot.slane %v2924, %v2975
  %v2977 = vlaneseq
  %v2978 = vshrl.u32 %v2977, 7
  %v2979 = vsub.s32 5, %v2978
  %v2980 = vrot.slane %v2924, %v2979
  %v2981 = vlaneseq
  %v2982 = vshrl.u32 %v2981, 7
  %v2983 = vsub.s32 6, %v2982
  %v2984 = vrot.slane %v2924, %v2983
  %v2985 = vlaneseq
  %v2986 = vshrl.u32 %v2985, 7
  %v2987 = vsub.s32 7, %v2986
  %v2988 = vrot.slane %v2924, %v2987
  %v3005 = vsub.f32 %v2580, %v2928
  %v3006 = vsub.f32 %v2581, %v2928
  %v3007 = vsub.f32 %v2582, %v2932
  %v3008 = vsub.f32 %v2583, %v2932
  %v3009 = vsub.f32 %v2584, %v2936
  %v3010 = vsub.f32 %v2585, %v2936
  %v3011 = vsub.f32 %v2586, %v2940
  %v3012 = vsub.f32 %v2587, %v2940
  %v3013 = vsub.f32 %v2588, %v2944
  %v3014 = vsub.f32 %v2589, %v2944
  %v3015 = vsub.f32 %v2590, %v2948
  %v3016 = vsub.f32 %v2591, %v2948
  %v3017 = vsub.f32 %v2592, %v2952
  %v3018 = vsub.f32 %v2593, %v2952
  %v3019 = vsub.f32 %v2594, %v2956
  %v3020 = vsub.f32 %v2595, %v2956
  %v3021 = vsub.f32 %v2596, %v2960
  %v3022 = vsub.f32 %v2597, %v2960
  %v3023 = vsub.f32 %v2598, %v2964
  %v3024 = vsub.f32 %v2599, %v2964
  %v3025 = vsub.f32 %v2600, %v2968
  %v3026 = vsub.f32 %v2601, %v2968
  %v3027 = vsub.f32 %v2602, %v2972
  %v3028 = vsub.f32 %v2603, %v2972
  %v3029 = vsub.f32 %v2604, %v2976
  %v3030 = vsub.f32 %v2605, %v2976
  %v3031 = vsub.f32 %v2606, %v2980
  %v3032 = vsub.f32 %v2607, %v2980
  %v3033 = vsub.f32 %v2608, %v2984
  %v3034 = vsub.f32 %v2609, %v2984
  %v3035 = vsub.f32 %v2610, %v2988
  %v3036 = vsub.f32 %v2611, %v2988
  %v3037 = vmul.f32 %v3005, 1.442695
  %v3038 = vpow.pop %v3037
  %v3039 = vmul.f32 %v3006, 1.442695
  %v3040 = vpow.pop %v3039
  %v3041 = vmul.f32 %v3007, 1.442695
  %v3042 = vpow.pop %v3041
  %v3043 = vmul.f32 %v3008, 1.442695
  %v3044 = vpow.pop %v3043
  %v3045 = vmul.f32 %v3009, 1.442695
  %v3046 = vpow.pop %v3045
  %v3047 = vmul.f32 %v3010, 1.442695
  %v3048 = vpow.pop %v3047
  %v3049 = vmul.f32 %v3011, 1.442695
  %v3050 = vpow.pop %v3049
  %v3051 = vmul.f32 %v3012, 1.442695
  %v3052 = vpow.pop %v3051
  %v3053 = vmul.f32 %v3013, 1.442695
  %v3054 = vpow.pop %v3053
  %v3055 = vmul.f32 %v3014, 1.442695
  %v3056 = vpow.pop %v3055
  %v3057 = vmul.f32 %v3015, 1.442695
  %v3058 = vpow.pop %v3057
  %v3059 = vmul.f32 %v3016, 1.442695
  %v3060 = vpow.pop %v3059
  %v3061 = vmul.f32 %v3017, 1.442695
  %v3062 = vpow.pop %v3061
  %v3063 = vmul.f32 %v3018, 1.442695
  %v3064 = vpow.pop %v3063
  %v3065 = vmul.f32 %v3019, 1.442695
  %v3066 = vpow.pop %v3065
  %v3067 = vmul.f32 %v3020, 1.442695
  %v3068 = vpow.pop %v3067
  %v3069 = vmul.f32 %v3021, 1.442695
  %v3070 = vpow.pop %v3069
  %v3071 = vmul.f32 %v3022, 1.442695
  %v3072 = vpow.pop %v3071
  %v3073 = vmul.f32 %v3023, 1.442695
  %v3074 = vpow.pop %v3073
  %v3075 = vmul.f32 %v3024, 1.442695
  %v3076 = vpow.pop %v3075
  %v3077 = vmul.f32 %v3025, 1.442695
  %v3078 = vpow.pop %v3077
  %v3079 = vmul.f32 %v3026, 1.442695
  %v3080 = vpow.pop %v3079
  %v3081 = vmul.f32 %v3027, 1.442695
  %v3082 = vpow.pop %v3081
  %v3083 = vmul.f32 %v3028, 1.442695
  %v3084 = vpow.pop %v3083
  %v3085 = vmul.f32 %v3029, 1.442695
  %v3086 = vpow.pop %v3085
  %v3087 = vmul.f32 %v3030, 1.442695
  %v3088 = vpow.pop %v3087
  %v3089 = vmul.f32 %v3031, 1.442695
  %v3090 = vpow.pop %v3089
  %v3091 = vmul.f32 %v3032, 1.442695
  %v3092 = vpow.pop %v3091
  %v3093 = vmul.f32 %v3033, 1.442695
  %v3094 = vpow.pop %v3093
  %v3095 = vmul.f32 %v3034, 1.442695
  %v3096 = vpow.pop %v3095
  %v3097 = vmul.f32 %v3035, 1.442695
  %v3098 = vpow.pop %v3097
  %v3099 = vmul.f32 %v3036, 1.442695
  %v3100 = vpow.pop %v3099
  %s3101 = scalar_lea.vmem [#allocation3], 16
  %v3102 = vld [vmem:[%s3101] sm:$0xff]
  %v3103 = vld [vmem:[%s3101 + $0x8] sm:$0xff]
  %v3104 = vmul.f32 %v2914, %v3102
  %v3105 = vmul.f32 %v2916, %v3103
  %3138 = vset.pattern.permute.xlu0 0
  %3139 = vperm.xlu0 %3138, %v3038
  %v3140 = vpop.permute.xlu0 %3139
  %3141 = vset.pattern.permute.xlu0 0
  %3142 = vperm.xlu0 %3141, %v3040
  %v3143 = vpop.permute.xlu0 %3142
  %3144 = vset.pattern.permute.xlu0 0
  %3145 = vperm.xlu0 %3144, %v3042
  %v3146 = vpop.permute.xlu0 %3145
  %3147 = vset.pattern.permute.xlu0 0
  %3148 = vperm.xlu0 %3147, %v3044
  %v3149 = vpop.permute.xlu0 %3148
  %3150 = vset.pattern.permute.xlu0 0
  %3151 = vperm.xlu0 %3150, %v3046
  %v3152 = vpop.permute.xlu0 %3151
  %3153 = vset.pattern.permute.xlu0 0
  %3154 = vperm.xlu0 %3153, %v3048
  %v3155 = vpop.permute.xlu0 %3154
  %3156 = vset.pattern.permute.xlu0 0
  %3157 = vperm.xlu0 %3156, %v3050
  %v3158 = vpop.permute.xlu0 %3157
  %3159 = vset.pattern.permute.xlu0 0
  %3160 = vperm.xlu0 %3159, %v3052
  %v3161 = vpop.permute.xlu0 %3160
  %3162 = vset.pattern.permute.xlu0 0
  %3163 = vperm.xlu0 %3162, %v3054
  %v3164 = vpop.permute.xlu0 %3163
  %3165 = vset.pattern.permute.xlu0 0
  %3166 = vperm.xlu0 %3165, %v3056
  %v3167 = vpop.permute.xlu0 %3166
  %3168 = vset.pattern.permute.xlu0 0
  %3169 = vperm.xlu0 %3168, %v3058
  %v3170 = vpop.permute.xlu0 %3169
  %3171 = vset.pattern.permute.xlu0 0
  %3172 = vperm.xlu0 %3171, %v3060
  %v3173 = vpop.permute.xlu0 %3172
  %3174 = vset.pattern.permute.xlu0 0
  %3175 = vperm.xlu0 %3174, %v3062
  %v3176 = vpop.permute.xlu0 %3175
  %3177 = vset.pattern.permute.xlu0 0
  %3178 = vperm.xlu0 %3177, %v3064
  %v3179 = vpop.permute.xlu0 %3178
  %3180 = vset.pattern.permute.xlu0 0
  %3181 = vperm.xlu0 %3180, %v3066
  %v3182 = vpop.permute.xlu0 %3181
  %3183 = vset.pattern.permute.xlu0 0
  %3184 = vperm.xlu0 %3183, %v3068
  %v3185 = vpop.permute.xlu0 %3184
  %3186 = vset.pattern.permute.xlu0 0
  %3187 = vperm.xlu0 %3186, %v3070
  %v3188 = vpop.permute.xlu0 %3187
  %3189 = vset.pattern.permute.xlu0 0
  %3190 = vperm.xlu0 %3189, %v3072
  %v3191 = vpop.permute.xlu0 %3190
  %3192 = vset.pattern.permute.xlu0 0
  %3193 = vperm.xlu0 %3192, %v3074
  %v3194 = vpop.permute.xlu0 %3193
  %3195 = vset.pattern.permute.xlu0 0
  %3196 = vperm.xlu0 %3195, %v3076
  %v3197 = vpop.permute.xlu0 %3196
  %3198 = vset.pattern.permute.xlu0 0
  %3199 = vperm.xlu0 %3198, %v3078
  %v3200 = vpop.permute.xlu0 %3199
  %3201 = vset.pattern.permute.xlu0 0
  %3202 = vperm.xlu0 %3201, %v3080
  %v3203 = vpop.permute.xlu0 %3202
  %3204 = vset.pattern.permute.xlu0 0
  %3205 = vperm.xlu0 %3204, %v3082
  %v3206 = vpop.permute.xlu0 %3205
  %3207 = vset.pattern.permute.xlu0 0
  %3208 = vperm.xlu0 %3207, %v3084
  %v3209 = vpop.permute.xlu0 %3208
  %3210 = vset.pattern.permute.xlu0 0
  %3211 = vperm.xlu0 %3210, %v3086
  %v3212 = vpop.permute.xlu0 %3211
  %3213 = vset.pattern.permute.xlu0 0
  %3214 = vperm.xlu0 %3213, %v3088
  %v3215 = vpop.permute.xlu0 %3214
  %3216 = vset.pattern.permute.xlu0 0
  %3217 = vperm.xlu0 %3216, %v3090
  %v3218 = vpop.permute.xlu0 %3217
  %3219 = vset.pattern.permute.xlu0 0
  %3220 = vperm.xlu0 %3219, %v3092
  %v3221 = vpop.permute.xlu0 %3220
  %3222 = vset.pattern.permute.xlu0 0
  %3223 = vperm.xlu0 %3222, %v3094
  %v3224 = vpop.permute.xlu0 %3223
  %3225 = vset.pattern.permute.xlu0 0
  %3226 = vperm.xlu0 %3225, %v3096
  %v3227 = vpop.permute.xlu0 %3226
  %3228 = vset.pattern.permute.xlu0 0
  %3229 = vperm.xlu0 %3228, %v3098
  %v3230 = vpop.permute.xlu0 %3229
  %3231 = vset.pattern.permute.xlu0 0
  %3232 = vperm.xlu0 %3231, %v3100
  %v3233 = vpop.permute.xlu0 %3232
  %v3234 = vlaneseq
  %v3235 = vshrl.u32 %v3234, 7
  %v3236 = vsub.s32 %v971, %v3235
  %v3237 = vrot.slane %v3140, %v3236
  %v3238 = vlaneseq
  %v3239 = vshrl.u32 %v3238, 7
  %v3240 = vsub.s32 %v976, %v3239
  %v3241 = vrot.slane %v3143, %v3240
  %v3242 = vsel %vm981, %v3241, %v3237
  %v3243 = vlaneseq
  %v3244 = vshrl.u32 %v3243, 7
  %v3245 = vsub.s32 %v971, %v3244
  %v3246 = vrot.slane %v3146, %v3245
  %v3247 = vlaneseq
  %v3248 = vshrl.u32 %v3247, 7
  %v3249 = vsub.s32 %v976, %v3248
  %v3250 = vrot.slane %v3149, %v3249
  %v3251 = vsel %vm981, %v3250, %v3246
  %v3252 = vlaneseq
  %v3253 = vshrl.u32 %v3252, 7
  %v3254 = vsub.s32 %v971, %v3253
  %v3255 = vrot.slane %v3152, %v3254
  %v3256 = vlaneseq
  %v3257 = vshrl.u32 %v3256, 7
  %v3258 = vsub.s32 %v976, %v3257
  %v3259 = vrot.slane %v3155, %v3258
  %v3260 = vsel %vm981, %v3259, %v3255
  %v3261 = vlaneseq
  %v3262 = vshrl.u32 %v3261, 7
  %v3263 = vsub.s32 %v971, %v3262
  %v3264 = vrot.slane %v3158, %v3263
  %v3265 = vlaneseq
  %v3266 = vshrl.u32 %v3265, 7
  %v3267 = vsub.s32 %v976, %v3266
  %v3268 = vrot.slane %v3161, %v3267
  %v3269 = vsel %vm981, %v3268, %v3264
  %v3270 = vlaneseq
  %v3271 = vshrl.u32 %v3270, 7
  %v3272 = vsub.s32 %v971, %v3271
  %v3273 = vrot.slane %v3164, %v3272
  %v3274 = vlaneseq
  %v3275 = vshrl.u32 %v3274, 7
  %v3276 = vsub.s32 %v976, %v3275
  %v3277 = vrot.slane %v3167, %v3276
  %v3278 = vsel %vm981, %v3277, %v3273
  %v3279 = vlaneseq
  %v3280 = vshrl.u32 %v3279, 7
  %v3281 = vsub.s32 %v971, %v3280
  %v3282 = vrot.slane %v3170, %v3281
  %v3283 = vlaneseq
  %v3284 = vshrl.u32 %v3283, 7
  %v3285 = vsub.s32 %v976, %v3284
  %v3286 = vrot.slane %v3173, %v3285
  %v3287 = vsel %vm981, %v3286, %v3282
  %v3288 = vlaneseq
  %v3289 = vshrl.u32 %v3288, 7
  %v3290 = vsub.s32 %v971, %v3289
  %v3291 = vrot.slane %v3176, %v3290
  %v3292 = vlaneseq
  %v3293 = vshrl.u32 %v3292, 7
  %v3294 = vsub.s32 %v976, %v3293
  %v3295 = vrot.slane %v3179, %v3294
  %v3296 = vsel %vm981, %v3295, %v3291
  %v3297 = vlaneseq
  %v3298 = vshrl.u32 %v3297, 7
  %v3299 = vsub.s32 %v971, %v3298
  %v3300 = vrot.slane %v3182, %v3299
  %v3301 = vlaneseq
  %v3302 = vshrl.u32 %v3301, 7
  %v3303 = vsub.s32 %v976, %v3302
  %v3304 = vrot.slane %v3185, %v3303
  %v3305 = vsel %vm981, %v3304, %v3300
  %v3306 = vlaneseq
  %v3307 = vshrl.u32 %v3306, 7
  %v3308 = vsub.s32 %v971, %v3307
  %v3309 = vrot.slane %v3188, %v3308
  %v3310 = vlaneseq
  %v3311 = vshrl.u32 %v3310, 7
  %v3312 = vsub.s32 %v976, %v3311
  %v3313 = vrot.slane %v3191, %v3312
  %v3314 = vsel %vm981, %v3313, %v3309
  %v3315 = vlaneseq
  %v3316 = vshrl.u32 %v3315, 7
  %v3317 = vsub.s32 %v971, %v3316
  %v3318 = vrot.slane %v3194, %v3317
  %v3319 = vlaneseq
  %v3320 = vshrl.u32 %v3319, 7
  %v3321 = vsub.s32 %v976, %v3320
  %v3322 = vrot.slane %v3197, %v3321
  %v3323 = vsel %vm981, %v3322, %v3318
  %v3324 = vlaneseq
  %v3325 = vshrl.u32 %v3324, 7
  %v3326 = vsub.s32 %v971, %v3325
  %v3327 = vrot.slane %v3200, %v3326
  %v3328 = vlaneseq
  %v3329 = vshrl.u32 %v3328, 7
  %v3330 = vsub.s32 %v976, %v3329
  %v3331 = vrot.slane %v3203, %v3330
  %v3332 = vsel %vm981, %v3331, %v3327
  %v3333 = vlaneseq
  %v3334 = vshrl.u32 %v3333, 7
  %v3335 = vsub.s32 %v971, %v3334
  %v3336 = vrot.slane %v3206, %v3335
  %v3337 = vlaneseq
  %v3338 = vshrl.u32 %v3337, 7
  %v3339 = vsub.s32 %v976, %v3338
  %v3340 = vrot.slane %v3209, %v3339
  %v3341 = vsel %vm981, %v3340, %v3336
  %v3342 = vlaneseq
  %v3343 = vshrl.u32 %v3342, 7
  %v3344 = vsub.s32 %v971, %v3343
  %v3345 = vrot.slane %v3212, %v3344
  %v3346 = vlaneseq
  %v3347 = vshrl.u32 %v3346, 7
  %v3348 = vsub.s32 %v976, %v3347
  %v3349 = vrot.slane %v3215, %v3348
  %v3350 = vsel %vm981, %v3349, %v3345
  %v3351 = vlaneseq
  %v3352 = vshrl.u32 %v3351, 7
  %v3353 = vsub.s32 %v971, %v3352
  %v3354 = vrot.slane %v3218, %v3353
  %v3355 = vlaneseq
  %v3356 = vshrl.u32 %v3355, 7
  %v3357 = vsub.s32 %v976, %v3356
  %v3358 = vrot.slane %v3221, %v3357
  %v3359 = vsel %vm981, %v3358, %v3354
  %v3360 = vlaneseq
  %v3361 = vshrl.u32 %v3360, 7
  %v3362 = vsub.s32 %v971, %v3361
  %v3363 = vrot.slane %v3224, %v3362
  %v3364 = vlaneseq
  %v3365 = vshrl.u32 %v3364, 7
  %v3366 = vsub.s32 %v976, %v3365
  %v3367 = vrot.slane %v3227, %v3366
  %v3368 = vsel %vm981, %v3367, %v3363
  %v3369 = vlaneseq
  %v3370 = vshrl.u32 %v3369, 7
  %v3371 = vsub.s32 %v971, %v3370
  %v3372 = vrot.slane %v3230, %v3371
  %v3373 = vlaneseq
  %v3374 = vshrl.u32 %v3373, 7
  %v3375 = vsub.s32 %v976, %v3374
  %v3376 = vrot.slane %v3233, %v3375
  %v3377 = vsel %vm981, %v3376, %v3372
  %v3378 = vsel %vm1118, %v3251, %v3242
  %v3379 = vsel %vm1120, %v3260, %v3378
  %v3380 = vsel %vm1122, %v3269, %v3379
  %v3381 = vsel %vm1124, %v3278, %v3380
  %v3382 = vsel %vm1126, %v3287, %v3381
  %v3383 = vsel %vm1128, %v3296, %v3382
  %v3384 = vsel %vm1130, %v3305, %v3383
  %v3385 = vsel %vm1118, %v3323, %v3314
  %v3386 = vsel %vm1120, %v3332, %v3385
  %v3387 = vsel %vm1122, %v3341, %v3386
  %v3388 = vsel %vm1124, %v3350, %v3387
  %v3389 = vsel %vm1126, %v3359, %v3388
  %v3390 = vsel %vm1128, %v3368, %v3389
  %v3391 = vsel %vm1130, %v3377, %v3390
  %v3394 = vsel %vm1141, %v3384, 0.0
  %3395 = vadd.xlane.f32.xlu0 %v3394
  %v3396 = vpop.xlane.xlu0 %3395
  %v3397 = vsel %vm1141, %v3391, 0.0
  %3398 = vadd.xlane.f32.xlu0 %v3397
  %v3399 = vpop.xlane.xlu0 %3398
  %v3400 = vadd.f32 %v3104, %v3396
  %v3401 = vadd.f32 %v3105, %v3399
  %3402 = vst.msk [vmem:[%s3101] sm:$0xff] %vm1640, %v3400
  %3403 = vst.msk [vmem:[%s3101 + $0x8] sm:$0xff] %vm1640, %v3401
  %s3404 = scalar_lea.vmem [#allocation4], 16
  %v3405 = vld [vmem:[%s3404] sm:$0xff]
  %v3406 = vld [vmem:[%s3404 + $0x8] sm:$0xff]
  %3408 = vset.pattern.permute.xlu0 0
  %3409 = vperm.xlu0 %3408, %v2914
  %v3410 = vpop.permute.xlu0 %3409
  %3413 = vset.pattern.permute.xlu0 0
  %3414 = vperm.xlu0 %3413, %v2916
  %v3415 = vpop.permute.xlu0 %3414
  %v3417 = vmul.f32 %v3410, %v3405
  %v3418 = vmul.f32 %v3415, %v3406
  %v3419 = vpack.c.bf16 %v3040, %v3038
  %v3420 = vpack.c.bf16 %v3044, %v3042
  %v3421 = vpack.c.bf16 %v3048, %v3046
  %v3422 = vpack.c.bf16 %v3052, %v3050
  %v3423 = vpack.c.bf16 %v3056, %v3054
  %v3424 = vpack.c.bf16 %v3060, %v3058
  %v3425 = vpack.c.bf16 %v3064, %v3062
  %v3426 = vpack.c.bf16 %v3068, %v3066
  %v3427 = vpack.c.bf16 %v3072, %v3070
  %v3428 = vpack.c.bf16 %v3076, %v3074
  %v3429 = vpack.c.bf16 %v3080, %v3078
  %v3430 = vpack.c.bf16 %v3084, %v3082
  %v3431 = vpack.c.bf16 %v3088, %v3086
  %v3432 = vpack.c.bf16 %v3092, %v3090
  %v3433 = vpack.c.bf16 %v3096, %v3094
  %v3434 = vpack.c.bf16 %v3100, %v3098
  %v3451 = vunpack.c.l.b16 %v3419
  %v3452 = vunpack.c.h.b16 %v3419
  %v3453 = vunpack.c.l.b16 %v3420
  %v3454 = vunpack.c.h.b16 %v3420
  %v3455 = vunpack.c.l.b16 %v3421
  %v3456 = vunpack.c.h.b16 %v3421
  %v3457 = vunpack.c.l.b16 %v3422
  %v3458 = vunpack.c.h.b16 %v3422
  %v3459 = vunpack.c.l.b16 %v3423
  %v3460 = vunpack.c.h.b16 %v3423
  %v3461 = vunpack.c.l.b16 %v3424
  %v3462 = vunpack.c.h.b16 %v3424
  %v3463 = vunpack.c.l.b16 %v3425
  %v3464 = vunpack.c.h.b16 %v3425
  %v3465 = vunpack.c.l.b16 %v3426
  %v3466 = vunpack.c.h.b16 %v3426
  %v3467 = vunpack.c.l.b16 %v3427
  %v3468 = vunpack.c.h.b16 %v3427
  %v3469 = vunpack.c.l.b16 %v3428
  %v3470 = vunpack.c.h.b16 %v3428
  %v3471 = vunpack.c.l.b16 %v3429
  %v3472 = vunpack.c.h.b16 %v3429
  %v3473 = vunpack.c.l.b16 %v3430
  %v3474 = vunpack.c.h.b16 %v3430
  %v3475 = vunpack.c.l.b16 %v3431
  %v3476 = vunpack.c.h.b16 %v3431
  %v3477 = vunpack.c.l.b16 %v3432
  %v3478 = vunpack.c.h.b16 %v3432
  %v3479 = vunpack.c.l.b16 %v3433
  %v3480 = vunpack.c.h.b16 %v3433
  %v3481 = vunpack.c.l.b16 %v3434
  %v3482 = vunpack.c.h.b16 %v3434
  %3483 = vset.pattern.permute.xlu0 0
  %3484 = vperm.xlu0 %3483, %v3451
  %v3485 = vpop.permute.xlu0 %3484
  %3486 = vset.pattern.permute.xlu0 0
  %3487 = vperm.xlu0 %3486, %v3452
  %v3488 = vpop.permute.xlu0 %3487
  %3489 = vset.pattern.permute.xlu0 0
  %3490 = vperm.xlu0 %3489, %v3453
  %v3491 = vpop.permute.xlu0 %3490
  %3492 = vset.pattern.permute.xlu0 0
  %3493 = vperm.xlu0 %3492, %v3454
  %v3494 = vpop.permute.xlu0 %3493
  %3495 = vset.pattern.permute.xlu0 0
  %3496 = vperm.xlu0 %3495, %v3455
  %v3497 = vpop.permute.xlu0 %3496
  %3498 = vset.pattern.permute.xlu0 0
  %3499 = vperm.xlu0 %3498, %v3456
  %v3500 = vpop.permute.xlu0 %3499
  %3501 = vset.pattern.permute.xlu0 0
  %3502 = vperm.xlu0 %3501, %v3457
  %v3503 = vpop.permute.xlu0 %3502
  %3504 = vset.pattern.permute.xlu0 0
  %3505 = vperm.xlu0 %3504, %v3458
  %v3506 = vpop.permute.xlu0 %3505
  %3507 = vset.pattern.permute.xlu0 0
  %3508 = vperm.xlu0 %3507, %v3459
  %v3509 = vpop.permute.xlu0 %3508
  %3510 = vset.pattern.permute.xlu0 0
  %3511 = vperm.xlu0 %3510, %v3460
  %v3512 = vpop.permute.xlu0 %3511
  %3513 = vset.pattern.permute.xlu0 0
  %3514 = vperm.xlu0 %3513, %v3461
  %v3515 = vpop.permute.xlu0 %3514
  %3516 = vset.pattern.permute.xlu0 0
  %3517 = vperm.xlu0 %3516, %v3462
  %v3518 = vpop.permute.xlu0 %3517
  %3519 = vset.pattern.permute.xlu0 0
  %3520 = vperm.xlu0 %3519, %v3463
  %v3521 = vpop.permute.xlu0 %3520
  %3522 = vset.pattern.permute.xlu0 0
  %3523 = vperm.xlu0 %3522, %v3464
  %v3524 = vpop.permute.xlu0 %3523
  %3525 = vset.pattern.permute.xlu0 0
  %3526 = vperm.xlu0 %3525, %v3465
  %v3527 = vpop.permute.xlu0 %3526
  %3528 = vset.pattern.permute.xlu0 0
  %3529 = vperm.xlu0 %3528, %v3466
  %v3530 = vpop.permute.xlu0 %3529
  %3531 = vset.pattern.permute.xlu0 0
  %3532 = vperm.xlu0 %3531, %v3467
  %v3533 = vpop.permute.xlu0 %3532
  %3534 = vset.pattern.permute.xlu0 0
  %3535 = vperm.xlu0 %3534, %v3468
  %v3536 = vpop.permute.xlu0 %3535
  %3537 = vset.pattern.permute.xlu0 0
  %3538 = vperm.xlu0 %3537, %v3469
  %v3539 = vpop.permute.xlu0 %3538
  %3540 = vset.pattern.permute.xlu0 0
  %3541 = vperm.xlu0 %3540, %v3470
  %v3542 = vpop.permute.xlu0 %3541
  %3543 = vset.pattern.permute.xlu0 0
  %3544 = vperm.xlu0 %3543, %v3471
  %v3545 = vpop.permute.xlu0 %3544
  %3546 = vset.pattern.permute.xlu0 0
  %3547 = vperm.xlu0 %3546, %v3472
  %v3548 = vpop.permute.xlu0 %3547
  %3549 = vset.pattern.permute.xlu0 0
  %3550 = vperm.xlu0 %3549, %v3473
  %v3551 = vpop.permute.xlu0 %3550
  %3552 = vset.pattern.permute.xlu0 0
  %3553 = vperm.xlu0 %3552, %v3474
  %v3554 = vpop.permute.xlu0 %3553
  %3555 = vset.pattern.permute.xlu0 0
  %3556 = vperm.xlu0 %3555, %v3475
  %v3557 = vpop.permute.xlu0 %3556
  %3558 = vset.pattern.permute.xlu0 0
  %3559 = vperm.xlu0 %3558, %v3476
  %v3560 = vpop.permute.xlu0 %3559
  %3561 = vset.pattern.permute.xlu0 0
  %3562 = vperm.xlu0 %3561, %v3477
  %v3563 = vpop.permute.xlu0 %3562
  %3564 = vset.pattern.permute.xlu0 0
  %3565 = vperm.xlu0 %3564, %v3478
  %v3566 = vpop.permute.xlu0 %3565
  %3567 = vset.pattern.permute.xlu0 0
  %3568 = vperm.xlu0 %3567, %v3479
  %v3569 = vpop.permute.xlu0 %3568
  %3570 = vset.pattern.permute.xlu0 0
  %3571 = vperm.xlu0 %3570, %v3480
  %v3572 = vpop.permute.xlu0 %3571
  %3573 = vset.pattern.permute.xlu0 0
  %3574 = vperm.xlu0 %3573, %v3481
  %v3575 = vpop.permute.xlu0 %3574
  %3576 = vset.pattern.permute.xlu0 0
  %3577 = vperm.xlu0 %3576, %v3482
  %v3578 = vpop.permute.xlu0 %3577
  %v3579 = vlaneseq
  %v3580 = vshrl.u32 %v3579, 7
  %v3581 = vsub.s32 %v971, %v3580
  %v3582 = vrot.slane %v3485, %v3581
  %v3583 = vlaneseq
  %v3584 = vshrl.u32 %v3583, 7
  %v3585 = vsub.s32 %v976, %v3584
  %v3586 = vrot.slane %v3488, %v3585
  %v3587 = vsel %vm981, %v3586, %v3582
  %v3588 = vlaneseq
  %v3589 = vshrl.u32 %v3588, 7
  %v3590 = vsub.s32 %v971, %v3589
  %v3591 = vrot.slane %v3491, %v3590
  %v3592 = vlaneseq
  %v3593 = vshrl.u32 %v3592, 7
  %v3594 = vsub.s32 %v976, %v3593
  %v3595 = vrot.slane %v3494, %v3594
  %v3596 = vsel %vm981, %v3595, %v3591
  %v3597 = vlaneseq
  %v3598 = vshrl.u32 %v3597, 7
  %v3599 = vsub.s32 %v971, %v3598
  %v3600 = vrot.slane %v3497, %v3599
  %v3601 = vlaneseq
  %v3602 = vshrl.u32 %v3601, 7
  %v3603 = vsub.s32 %v976, %v3602
  %v3604 = vrot.slane %v3500, %v3603
  %v3605 = vsel %vm981, %v3604, %v3600
  %v3606 = vlaneseq
  %v3607 = vshrl.u32 %v3606, 7
  %v3608 = vsub.s32 %v971, %v3607
  %v3609 = vrot.slane %v3503, %v3608
  %v3610 = vlaneseq
  %v3611 = vshrl.u32 %v3610, 7
  %v3612 = vsub.s32 %v976, %v3611
  %v3613 = vrot.slane %v3506, %v3612
  %v3614 = vsel %vm981, %v3613, %v3609
  %v3615 = vlaneseq
  %v3616 = vshrl.u32 %v3615, 7
  %v3617 = vsub.s32 %v971, %v3616
  %v3618 = vrot.slane %v3509, %v3617
  %v3619 = vlaneseq
  %v3620 = vshrl.u32 %v3619, 7
  %v3621 = vsub.s32 %v976, %v3620
  %v3622 = vrot.slane %v3512, %v3621
  %v3623 = vsel %vm981, %v3622, %v3618
  %v3624 = vlaneseq
  %v3625 = vshrl.u32 %v3624, 7
  %v3626 = vsub.s32 %v971, %v3625
  %v3627 = vrot.slane %v3515, %v3626
  %v3628 = vlaneseq
  %v3629 = vshrl.u32 %v3628, 7
  %v3630 = vsub.s32 %v976, %v3629
  %v3631 = vrot.slane %v3518, %v3630
  %v3632 = vsel %vm981, %v3631, %v3627
  %v3633 = vlaneseq
  %v3634 = vshrl.u32 %v3633, 7
  %v3635 = vsub.s32 %v971, %v3634
  %v3636 = vrot.slane %v3521, %v3635
  %v3637 = vlaneseq
  %v3638 = vshrl.u32 %v3637, 7
  %v3639 = vsub.s32 %v976, %v3638
  %v3640 = vrot.slane %v3524, %v3639
  %v3641 = vsel %vm981, %v3640, %v3636
  %v3642 = vlaneseq
  %v3643 = vshrl.u32 %v3642, 7
  %v3644 = vsub.s32 %v971, %v3643
  %v3645 = vrot.slane %v3527, %v3644
  %v3646 = vlaneseq
  %v3647 = vshrl.u32 %v3646, 7
  %v3648 = vsub.s32 %v976, %v3647
  %v3649 = vrot.slane %v3530, %v3648
  %v3650 = vsel %vm981, %v3649, %v3645
  %v3651 = vlaneseq
  %v3652 = vshrl.u32 %v3651, 7
  %v3653 = vsub.s32 %v971, %v3652
  %v3654 = vrot.slane %v3533, %v3653
  %v3655 = vlaneseq
  %v3656 = vshrl.u32 %v3655, 7
  %v3657 = vsub.s32 %v976, %v3656
  %v3658 = vrot.slane %v3536, %v3657
  %v3659 = vsel %vm981, %v3658, %v3654
  %v3660 = vlaneseq
  %v3661 = vshrl.u32 %v3660, 7
  %v3662 = vsub.s32 %v971, %v3661
  %v3663 = vrot.slane %v3539, %v3662
  %v3664 = vlaneseq
  %v3665 = vshrl.u32 %v3664, 7
  %v3666 = vsub.s32 %v976, %v3665
  %v3667 = vrot.slane %v3542, %v3666
  %v3668 = vsel %vm981, %v3667, %v3663
  %v3669 = vlaneseq
  %v3670 = vshrl.u32 %v3669, 7
  %v3671 = vsub.s32 %v971, %v3670
  %v3672 = vrot.slane %v3545, %v3671
  %v3673 = vlaneseq
  %v3674 = vshrl.u32 %v3673, 7
  %v3675 = vsub.s32 %v976, %v3674
  %v3676 = vrot.slane %v3548, %v3675
  %v3677 = vsel %vm981, %v3676, %v3672
  %v3678 = vlaneseq
  %v3679 = vshrl.u32 %v3678, 7
  %v3680 = vsub.s32 %v971, %v3679
  %v3681 = vrot.slane %v3551, %v3680
  %v3682 = vlaneseq
  %v3683 = vshrl.u32 %v3682, 7
  %v3684 = vsub.s32 %v976, %v3683
  %v3685 = vrot.slane %v3554, %v3684
  %v3686 = vsel %vm981, %v3685, %v3681
  %v3687 = vlaneseq
  %v3688 = vshrl.u32 %v3687, 7
  %v3689 = vsub.s32 %v971, %v3688
  %v3690 = vrot.slane %v3557, %v3689
  %v3691 = vlaneseq
  %v3692 = vshrl.u32 %v3691, 7
  %v3693 = vsub.s32 %v976, %v3692
  %v3694 = vrot.slane %v3560, %v3693
  %v3695 = vsel %vm981, %v3694, %v3690
  %v3696 = vlaneseq
  %v3697 = vshrl.u32 %v3696, 7
  %v3698 = vsub.s32 %v971, %v3697
  %v3699 = vrot.slane %v3563, %v3698
  %v3700 = vlaneseq
  %v3701 = vshrl.u32 %v3700, 7
  %v3702 = vsub.s32 %v976, %v3701
  %v3703 = vrot.slane %v3566, %v3702
  %v3704 = vsel %vm981, %v3703, %v3699
  %v3705 = vlaneseq
  %v3706 = vshrl.u32 %v3705, 7
  %v3707 = vsub.s32 %v971, %v3706
  %v3708 = vrot.slane %v3569, %v3707
  %v3709 = vlaneseq
  %v3710 = vshrl.u32 %v3709, 7
  %v3711 = vsub.s32 %v976, %v3710
  %v3712 = vrot.slane %v3572, %v3711
  %v3713 = vsel %vm981, %v3712, %v3708
  %v3714 = vlaneseq
  %v3715 = vshrl.u32 %v3714, 7
  %v3716 = vsub.s32 %v971, %v3715
  %v3717 = vrot.slane %v3575, %v3716
  %v3718 = vlaneseq
  %v3719 = vshrl.u32 %v3718, 7
  %v3720 = vsub.s32 %v976, %v3719
  %v3721 = vrot.slane %v3578, %v3720
  %v3722 = vsel %vm981, %v3721, %v3717
  %v3723 = vsel %vm1118, %v3596, %v3587
  %v3724 = vsel %vm1120, %v3605, %v3723
  %v3725 = vsel %vm1122, %v3614, %v3724
  %v3726 = vsel %vm1124, %v3623, %v3725
  %v3727 = vsel %vm1126, %v3632, %v3726
  %v3728 = vsel %vm1128, %v3641, %v3727
  %v3729 = vsel %vm1130, %v3650, %v3728
  %v3730 = vsel %vm1118, %v3668, %v3659
  %v3731 = vsel %vm1120, %v3677, %v3730
  %v3732 = vsel %vm1122, %v3686, %v3731
  %v3733 = vsel %vm1124, %v3695, %v3732
  %v3734 = vsel %vm1126, %v3704, %v3733
  %v3735 = vsel %vm1128, %v3713, %v3734
  %v3736 = vsel %vm1130, %v3722, %v3735
  %v3737 = vpack.c.b16 %v3736, %v3729
  %3739 = vrot.lane.b32.xlu0 %v45, 120
  %v3740 = vpop.permute.xlu0 %3739
  %v3743 = vsel %vm1141, %v3737, 0
  %3745 = vmatprep.subr.bf16.mxu0 0
  %3746 = vmatpush1.bf16.msra.mxu0 0
  %3747 = vmatprep.subr.bf16.mxu0 0
  %3748 = vmatpush1.bf16.msra.mxu0 0
  %3749 = vmatprep.subr.bf16.mxu0 0
  %3750 = vmatpush1.bf16.msra.mxu0 0
  %3751 = vmatprep.subr.bf16.mxu0 0
  %3752 = vmatpush1.bf16.msra.mxu0 0
  %3753 = vmatprep.subr.bf16.mxu0 0
  %3754 = vmatpush1.bf16.msra.mxu0 0
  %3755 = vmatprep.subr.bf16.mxu0 0
  %3756 = vmatpush1.bf16.msra.mxu0 0
  %3757 = vmatprep.subr.bf16.mxu0 0
  %3758 = vmatpush1.bf16.msra.mxu0 0
  %3759 = vmatprep.subr.bf16.mxu0 0
  %3760 = vmatpush1.bf16.msra.mxu0 %v3740
  %3761 = vmatprep.subr.bf16.mxu0 0
  %3762 = vmatpush2.bf16.msra.mxu0 0
  %3763 = vmatprep.subr.bf16.mxu0 0
  %3764 = vmatpush2.bf16.msra.mxu0 0
  %3765 = vmatprep.subr.bf16.mxu0 0
  %3766 = vmatpush2.bf16.msra.mxu0 0
  %3767 = vmatprep.subr.bf16.mxu0 0
  %3768 = vmatpush2.bf16.msra.mxu0 0
  %3769 = vmatprep.subr.bf16.mxu0 0
  %3770 = vmatpush2.bf16.msra.mxu0 0
  %3771 = vmatprep.subr.bf16.mxu0 0
  %3772 = vmatpush2.bf16.msra.mxu0 0
  %3773 = vmatprep.subr.bf16.mxu0 0
  %3774 = vmatpush2.bf16.msra.mxu0 0
  %3775 = vmatprep.subr.bf16.mxu0 0
  %3776 = vmatpush2.bf16.msra.mxu0 0
  %3777 = vmatprep.mubr.bf16.mxu0 0
  %3778 = vmatmul.mubr.bf16.gmra.mxu0 %v3743
  %v3779 = vpop.f32.mrf.mxu0
  %v3780 = vadd.f32 0.0, %v3779
  %v3781 = vpop.f32.mrf.mxu0
  %v3782 = vpop.f32.mrf.mxu0
  %v3783 = vadd.f32 0.0, %v3782
  %v3784 = vpop.f32.mrf.mxu0
  %3785 = vdwg.mxu0
  %v3786 = vadd.f32 %v3417, %v3780
  %v3787 = vadd.f32 %v3418, %v3783
  %3788 = vst.msk [vmem:[%s3404] sm:$0xff] %vm501, %v3786
  %3789 = vst.msk [vmem:[%s3404 + $0x8] sm:$0xff] %vm501, %v3787
  %3790 = vst.msk [vmem:[%s2612] sm:$0xff] %vm1640, %v2909
  %3791 = vst.msk [vmem:[%s2612 + $0x8] sm:$0xff] %vm1640, %v2910
  // Predicated region
  $region26: #{net_cell_forward.8} parent=0 // pred_check
    %p3792 = pneg %p21
  $region27: #{net_cell_forward.8} parent=0 // pred_check_branch
    %3794 = sbr.rel (%p3792) target = $region29
  $region28: #{net_cell_forward.8} parent=0 // pred_region
    %v3795 = vld [vmem:[#allocation3] sm:$0xff]
    %v3796 = vld [vmem:[#allocation3 + $0x8] sm:$0xff]
    %v3797 = vrcp.pop %v3795
    %v3798 = vrcp.pop %v3796
    %v3799 = vld [vmem:[#allocation4] sm:$0xff]
    %v3800 = vld [vmem:[#allocation4 + $0x8] sm:$0xff]
    %3802 = vset.pattern.permute.xlu0 0
    %3803 = vperm.xlu0 %3802, %v3797
    %v3804 = vpop.permute.xlu0 %3803
    %3807 = vset.pattern.permute.xlu0 0
    %3808 = vperm.xlu0 %3807, %v3798
    %v3809 = vpop.permute.xlu0 %3808
    %v3811 = vmul.f32 %v3799, %v3804
    %v3812 = vmul.f32 %v3800, %v3809
    %v3813 = vld [vmem:[%s3] sm:$0x1]
    %v3815 = vlaneseq
    %v3816 = vshrl.u32 %v3815, 7
    %v3817 = vsub.s32 0, %v3816
    %v3818 = vrot.slane %v3813, %v3817
    %v3820 = vadd.f32 %v3811, %v3818
    %v3821 = vadd.f32 %v3812, %v3818
    %3822 = vst.msk [vmem:[%s5] sm:$0xff] %vm501, %v3820
    %3823 = vst.msk [vmem:[%s5 + $0x8] sm:$0xff] %vm501, %v3821
    %v3824 = vld [vmem:[%s3101] sm:$0xff]
    %v3825 = vld [vmem:[%s3101 + $0x8] sm:$0xff]
    %v3826 = vrcp.pop %v3824
    %v3827 = vrcp.pop %v3825
    %v3828 = vld [vmem:[%s3404] sm:$0xff]
    %v3829 = vld [vmem:[%s3404 + $0x8] sm:$0xff]
    %3831 = vset.pattern.permute.xlu0 0
    %3832 = vperm.xlu0 %3831, %v3826
    %v3833 = vpop.permute.xlu0 %3832
    %3836 = vset.pattern.permute.xlu0 0
    %3837 = vperm.xlu0 %3836, %v3827
    %v3838 = vpop.permute.xlu0 %3837
    %v3840 = vmul.f32 %v3828, %v3833
    %v3841 = vmul.f32 %v3829, %v3838
    %s3842 = scalar_lea.vmem %s3, 1
    %v3843 = vld [vmem:[%s3842] sm:$0x1]
    %v3845 = vlaneseq
    %v3846 = vshrl.u32 %v3845, 7
    %v3847 = vsub.s32 0, %v3846
    %v3848 = vrot.slane %v3843, %v3847
    %v3850 = vadd.f32 %v3840, %v3848
    %v3851 = vadd.f32 %v3841, %v3848
    %3854 = vrot.lane.b32.xlu0 %v3850, 8
    %v3855 = vpop.permute.xlu0 %3854
    %3856 = vrot.lane.b32.xlu0 %v3851, 8
    %v3857 = vpop.permute.xlu0 %3856
    %3860 = vst.msk [vmem:[%s5] sm:$0xff] %vm981, %v3855
    %3861 = vst.msk [vmem:[%s5 + $0x8] sm:$0xff] %vm981, %v3857
  $region29: #{net_cell_forward.8} parent=0 // pred_fallthru
    _
  // Predicated region
  $region30: #{net_cell_forward.8} parent=0 // pred_check
    _
  $region31: #{net_cell_forward.8} parent=0 // pred_check_branch
    %3863 = sbr.rel (0) target = $region33
  $region32: #{net_cell_forward.8} parent=0 // pred_region
    _
  $region33: #{net_cell_forward.8} parent=0 // pred_fallthru
    _
  // Predicated region
  $region34: #{net_cell_forward.8} parent=0 // pred_check
    _
  $region35: #{net_cell_forward.8} parent=0 // pred_check_branch
    %3865 = sbr.rel (0) target = $region37
  $region36: #{net_cell_forward.8} parent=0 // pred_region
    _
  $region37: #{net_cell_forward.8} parent=0 // pred_fallthru
    _

// kernel: net_cell_forward.10
$region0: #{net_cell_forward.10}
  #allocation0 [shape = 'u32[]', space=smem, size = 0x4, offset = 0x4, fixed_abs, tag = 'smem constant byte address 0x4 - core index']
  #allocation1 [shape = 'u32[144,128]{1,0:T(1,128)}', space=vmem, size = 0x12000, scoped, tag = 'internal scratch']
  #allocation2 [shape = 'f32[4,16,1]{2,1,0:T(8,128)}', space=vmem, size = 0x8000, scoped, tag = 'scratch operand']
  #allocation3 [shape = 'f32[4,16,1]{2,1,0:T(8,128)}', space=vmem, size = 0x8000, scoped, tag = 'scratch operand']
  #allocation4 [shape = 'f32[4,16,32]{2,1,0:T(8,128)}', space=vmem, size = 0x8000, scoped, tag = 'scratch operand']
  %s0 = inlined_call_operand.vmem [shape: f32[16,256], index: 0, kind: input, shape index: {}, may-alias: {0,1}]
  %s1 = inlined_call_operand.vmem [shape: f32[16,256], index: 1, kind: input, shape index: {}, may-alias: {0,1}]
  %s2 = inlined_call_operand.vmem [shape: f32[4,1,32], index: 2, kind: input, shape index: {}]
  %s3 = inlined_call_operand.vmem [shape: f32[4,1,32], index: 3, kind: input, shape index: {}]
  %s4 = inlined_call_operand.vmem [shape: bf16[16,16], index: 4, kind: input, shape index: {}]
  %s5 = inlined_call_operand.vmem [shape: f32[16,128], index: 5, kind: output, shape index: {}]
  %s6 = sld [smem:[#allocation0]]
  $region38: #{net_cell_forward.10} parent=0
    _
  %s8 = ssub.s32 1, %s6
  %s9 = scalar_select 0, %s8, %s6
  // Predicated region
  $region2: #{net_cell_forward.10} parent=0 // pred_check
    _
  $region3: #{net_cell_forward.10} parent=0 // pred_check_branch
    %11 = sbr.rel (0) target = $region5
  $region4: #{net_cell_forward.10} parent=0 // pred_region
    _
  $region5: #{net_cell_forward.10} parent=0 // pred_fallthru
    _
  // Predicated region
  $region6: #{net_cell_forward.10} parent=0 // pred_check
    _
  $region7: #{net_cell_forward.10} parent=0 // pred_check_branch
    %13 = sbr.rel (0) target = $region9
  $region8: #{net_cell_forward.10} parent=0 // pred_region
    _
  $region9: #{net_cell_forward.10} parent=0 // pred_fallthru
    _
  // Predicated region
  $region10: #{net_cell_forward.10} parent=0 // pred_check
    _
  $region11: #{net_cell_forward.10} parent=0 // pred_check_branch
    %15 = sbr.rel (0) target = $region13
  $region12: #{net_cell_forward.10} parent=0 // pred_region
    _
  $region13: #{net_cell_forward.10} parent=0 // pred_fallthru
    _
  // Predicated region
  $region14: #{net_cell_forward.10} parent=0 // pred_check
    _
  $region15: #{net_cell_forward.10} parent=0 // pred_check_branch
    %17 = sbr.rel (0) target = $region17
  $region16: #{net_cell_forward.10} parent=0 // pred_region
    _
  $region17: #{net_cell_forward.10} parent=0 // pred_fallthru
    _
  // Predicated region
  $region18: #{net_cell_forward.10} parent=0 // pred_check
    _
  $region19: #{net_cell_forward.10} parent=0 // pred_check_branch
    %19 = sbr.rel (0) target = $region21
  $region20: #{net_cell_forward.10} parent=0 // pred_region
    _
  $region21: #{net_cell_forward.10} parent=0 // pred_fallthru
    _
  %p21 = scmp.eq.s32.totalorder 0, 0
  // Predicated region
  $region22: #{net_cell_forward.10} parent=0 // pred_check
    %p22 = pneg %p21
  $region23: #{net_cell_forward.10} parent=0 // pred_check_branch
    %24 = sbr.rel (%p22) target = $region25
  $region24: #{net_cell_forward.10} parent=0 // pred_region
    %vm25 = vcmask 7168
    %26 = vst.msk [vmem:[#allocation2] sm:$0xff] %vm25, -1e+30
    %27 = vst.msk [vmem:[#allocation2 + $0x8] sm:$0xff] %vm25, -1e+30
    %28 = vst.msk [vmem:[#allocation2 + $0x10] sm:$0xff] %vm25, -1e+30
    %29 = vst.msk [vmem:[#allocation2 + $0x18] sm:$0xff] %vm25, -1e+30
    %30 = vst.msk [vmem:[#allocation2 + $0x20] sm:$0xff] %vm25, -1e+30
    %31 = vst.msk [vmem:[#allocation2 + $0x28] sm:$0xff] %vm25, -1e+30
    %32 = vst.msk [vmem:[#allocation2 + $0x30] sm:$0xff] %vm25, -1e+30
    %33 = vst.msk [vmem:[#allocation2 + $0x38] sm:$0xff] %vm25, -1e+30
    %34 = vst.msk [vmem:[#allocation3] sm:$0xff] %vm25, 0.0
    %35 = vst.msk [vmem:[#allocation3 + $0x8] sm:$0xff] %vm25, 0.0
    %36 = vst.msk [vmem:[#allocation3 + $0x10] sm:$0xff] %vm25, 0.0
    %37 = vst.msk [vmem:[#allocation3 + $0x18] sm:$0xff] %vm25, 0.0
    %38 = vst.msk [vmem:[#allocation3 + $0x20] sm:$0xff] %vm25, 0.0
    %39 = vst.msk [vmem:[#allocation3 + $0x28] sm:$0xff] %vm25, 0.0
    %40 = vst.msk [vmem:[#allocation3 + $0x30] sm:$0xff] %vm25, 0.0
    %41 = vst.msk [vmem:[#allocation3 + $0x38] sm:$0xff] %vm25, 0.0
    %vm42 = vcmask 261120
    %43 = vst.msk [vmem:[#allocation4] sm:$0xff] %vm42, 0.0
    %44 = vst.msk [vmem:[#allocation4 + $0x8] sm:$0xff] %vm42, 0.0
    %45 = vst.msk [vmem:[#allocation4 + $0x10] sm:$0xff] %vm42, 0.0
    %46 = vst.msk [vmem:[#allocation4 + $0x18] sm:$0xff] %vm42, 0.0
    %47 = vst.msk [vmem:[#allocation4 + $0x20] sm:$0xff] %vm42, 0.0
    %48 = vst.msk [vmem:[#allocation4 + $0x28] sm:$0xff] %vm42, 0.0
    %49 = vst.msk [vmem:[#allocation4 + $0x30] sm:$0xff] %vm42, 0.0
    %50 = vst.msk [vmem:[#allocation4 + $0x38] sm:$0xff] %vm42, 0.0
  $region25: #{net_cell_forward.10} parent=0 // pred_fallthru
    _
  %v51 = vld [vmem:[%s4] sm:$0xf]
  %v52 = vld [vmem:[%s4 + $0x4] sm:$0xf]
  %v53 = vunpack.c.l.bf16 %v51
  %v54 = vunpack.c.l.bf16 %v52
  %v55 = vld [vmem:[%s1] sm:$0xff]
  %v56 = vld [vmem:[%s1 + $0x10] sm:$0xff]
  %v57 = vpack.c.bf16 %v56, %v55
  %v58 = vld [vmem:[%s0 + $0x8] sm:$0xff]
  %v59 = vld [vmem:[%s0 + $0x18] sm:$0xff]
  %v60 = vld [vmem:[%s2] sm:$0x1]
  %v63 = vcombine.high %v58, %v58
  %v65 = vunpack.c.l.s4 1966171168
  %v66 = vunpack.c.0.s8 %v65
  %v67 = vlaneseq
  %v68 = vshrl.u32 %v67, 7
  %v69 = vsub.s32 %v66, %v68
  %v70 = vrot.slane %v58, %v69
  %v72 = vunpack.c.l.s4 1966171168
  %v73 = vunpack.c.0.s8 %v72
  %v74 = vlaneseq
  %v75 = vshrl.u32 %v74, 7
  %v76 = vsub.s32 %v73, %v75
  %v77 = vrot.slane %v63, %v76
  %v78 = vcombine.high %v70, %v70
  %v79 = vcombine.high %v77, %v77
  %v81 = vunpack.c.l.s4 1966171168
  %v82 = vunpack.c.0.s8 %v81
  %v83 = vlaneseq
  %v84 = vshrl.u32 %v83, 7
  %v85 = vsub.s32 %v82, %v84
  %v86 = vrot.slane %v70, %v85
  %v88 = vunpack.c.l.s4 1966171168
  %v89 = vunpack.c.0.s8 %v88
  %v90 = vlaneseq
  %v91 = vshrl.u32 %v90, 7
  %v92 = vsub.s32 %v89, %v91
  %v93 = vrot.slane %v77, %v92
  %v95 = vunpack.c.l.s4 1966171168
  %v96 = vunpack.c.0.s8 %v95
  %v97 = vlaneseq
  %v98 = vshrl.u32 %v97, 7
  %v99 = vsub.s32 %v96, %v98
  %v100 = vrot.slane %v78, %v99
  %v102 = vunpack.c.l.s4 1966171168
  %v103 = vunpack.c.0.s8 %v102
  %v104 = vlaneseq
  %v105 = vshrl.u32 %v104, 7
  %v106 = vsub.s32 %v103, %v105
  %v107 = vrot.slane %v79, %v106
  %v108 = vcombine.high %v86, %v86
  %v109 = vcombine.high %v93, %v93
  %v110 = vcombine.high %v100, %v100
  %v111 = vcombine.high %v107, %v107
  %v112 = vcombine.high %v59, %v59
  %v114 = vunpack.c.l.s4 1966171168
  %v115 = vunpack.c.0.s8 %v114
  %v116 = vlaneseq
  %v117 = vshrl.u32 %v116, 7
  %v118 = vsub.s32 %v115, %v117
  %v119 = vrot.slane %v59, %v118
  %v121 = vunpack.c.l.s4 1966171168
  %v122 = vunpack.c.0.s8 %v121
  %v123 = vlaneseq
  %v124 = vshrl.u32 %v123, 7
  %v125 = vsub.s32 %v122, %v124
  %v126 = vrot.slane %v112, %v125
  %v127 = vcombine.high %v119, %v119
  %v128 = vcombine.high %v126, %v126
  %v130 = vunpack.c.l.s4 1966171168
  %v131 = vunpack.c.0.s8 %v130
  %v132 = vlaneseq
  %v133 = vshrl.u32 %v132, 7
  %v134 = vsub.s32 %v131, %v133
  %v135 = vrot.slane %v119, %v134
  %v137 = vunpack.c.l.s4 1966171168
  %v138 = vunpack.c.0.s8 %v137
  %v139 = vlaneseq
  %v140 = vshrl.u32 %v139, 7
  %v141 = vsub.s32 %v138, %v140
  %v142 = vrot.slane %v126, %v141
  %v144 = vunpack.c.l.s4 1966171168
  %v145 = vunpack.c.0.s8 %v144
  %v146 = vlaneseq
  %v147 = vshrl.u32 %v146, 7
  %v148 = vsub.s32 %v145, %v147
  %v149 = vrot.slane %v127, %v148
  %v151 = vunpack.c.l.s4 1966171168
  %v152 = vunpack.c.0.s8 %v151
  %v153 = vlaneseq
  %v154 = vshrl.u32 %v153, 7
  %v155 = vsub.s32 %v152, %v154
  %v156 = vrot.slane %v128, %v155
  %v157 = vcombine.high %v135, %v135
  %v158 = vcombine.high %v142, %v142
  %v159 = vcombine.high %v149, %v149
  %v160 = vcombine.high %v156, %v156
  %v161 = vlaneseq
  %v162 = vshrl.u32 %v161, 7
  %v163 = vsub.s32 0, %v162
  %v164 = vrot.slane %v86, %v163
  %v165 = vlaneseq
  %v166 = vshrl.u32 %v165, 7
  %v167 = vsub.s32 0, %v166
  %v168 = vrot.slane %v100, %v167
  %v169 = vlaneseq
  %v170 = vshrl.u32 %v169, 7
  %v171 = vsub.s32 0, %v170
  %v172 = vrot.slane %v108, %v171
  %v173 = vlaneseq
  %v174 = vshrl.u32 %v173, 7
  %v175 = vsub.s32 0, %v174
  %v176 = vrot.slane %v110, %v175
  %v177 = vlaneseq
  %v178 = vshrl.u32 %v177, 7
  %v179 = vsub.s32 0, %v178
  %v180 = vrot.slane %v93, %v179
  %v181 = vlaneseq
  %v182 = vshrl.u32 %v181, 7
  %v183 = vsub.s32 0, %v182
  %v184 = vrot.slane %v107, %v183
  %v185 = vlaneseq
  %v186 = vshrl.u32 %v185, 7
  %v187 = vsub.s32 0, %v186
  %v188 = vrot.slane %v109, %v187
  %v189 = vlaneseq
  %v190 = vshrl.u32 %v189, 7
  %v191 = vsub.s32 0, %v190
  %v192 = vrot.slane %v111, %v191
  %v193 = vlaneseq
  %v194 = vshrl.u32 %v193, 7
  %v195 = vsub.s32 0, %v194
  %v196 = vrot.slane %v135, %v195
  %v197 = vlaneseq
  %v198 = vshrl.u32 %v197, 7
  %v199 = vsub.s32 0, %v198
  %v200 = vrot.slane %v149, %v199
  %v201 = vlaneseq
  %v202 = vshrl.u32 %v201, 7
  %v203 = vsub.s32 0, %v202
  %v204 = vrot.slane %v157, %v203
  %v205 = vlaneseq
  %v206 = vshrl.u32 %v205, 7
  %v207 = vsub.s32 0, %v206
  %v208 = vrot.slane %v159, %v207
  %v209 = vlaneseq
  %v210 = vshrl.u32 %v209, 7
  %v211 = vsub.s32 0, %v210
  %v212 = vrot.slane %v142, %v211
  %v213 = vlaneseq
  %v214 = vshrl.u32 %v213, 7
  %v215 = vsub.s32 0, %v214
  %v216 = vrot.slane %v156, %v215
  %v217 = vlaneseq
  %v218 = vshrl.u32 %v217, 7
  %v219 = vsub.s32 0, %v218
  %v220 = vrot.slane %v158, %v219
  %v221 = vlaneseq
  %v222 = vshrl.u32 %v221, 7
  %v223 = vsub.s32 0, %v222
  %v224 = vrot.slane %v160, %v223
  %v241 = vadd.f32 %v164, %v55
  %v242 = vadd.f32 %v164, %v56
  %v243 = vadd.f32 %v168, %v55
  %v244 = vadd.f32 %v168, %v56
  %v245 = vadd.f32 %v172, %v55
  %v246 = vadd.f32 %v172, %v56
  %v247 = vadd.f32 %v176, %v55
  %v248 = vadd.f32 %v176, %v56
  %v249 = vadd.f32 %v180, %v55
  %v250 = vadd.f32 %v180, %v56
  %v251 = vadd.f32 %v184, %v55
  %v252 = vadd.f32 %v184, %v56
  %v253 = vadd.f32 %v188, %v55
  %v254 = vadd.f32 %v188, %v56
  %v255 = vadd.f32 %v192, %v55
  %v256 = vadd.f32 %v192, %v56
  %v257 = vadd.f32 %v196, %v55
  %v258 = vadd.f32 %v196, %v56
  %v259 = vadd.f32 %v200, %v55
  %v260 = vadd.f32 %v200, %v56
  %v261 = vadd.f32 %v204, %v55
  %v262 = vadd.f32 %v204, %v56
  %v263 = vadd.f32 %v208, %v55
  %v264 = vadd.f32 %v208, %v56
  %v265 = vadd.f32 %v212, %v55
  %v266 = vadd.f32 %v212, %v56
  %v267 = vadd.f32 %v216, %v55
  %v268 = vadd.f32 %v216, %v56
  %v269 = vadd.f32 %v220, %v55
  %v270 = vadd.f32 %v220, %v56
  %v271 = vadd.f32 %v224, %v55
  %v272 = vadd.f32 %v224, %v56
  %v273 = vmul.f32 %v241, 0.2
  %v274 = vmul.f32 %v242, 0.2
  %v275 = vmul.f32 %v243, 0.2
  %v276 = vmul.f32 %v244, 0.2
  %v277 = vmul.f32 %v245, 0.2
  %v278 = vmul.f32 %v246, 0.2
  %v279 = vmul.f32 %v247, 0.2
  %v280 = vmul.f32 %v248, 0.2
  %v281 = vmul.f32 %v249, 0.2
  %v282 = vmul.f32 %v250, 0.2
  %v283 = vmul.f32 %v251, 0.2
  %v284 = vmul.f32 %v252, 0.2
  %v285 = vmul.f32 %v253, 0.2
  %v286 = vmul.f32 %v254, 0.2
  %v287 = vmul.f32 %v255, 0.2
  %v288 = vmul.f32 %v256, 0.2
  %v289 = vmul.f32 %v257, 0.2
  %v290 = vmul.f32 %v258, 0.2
  %v291 = vmul.f32 %v259, 0.2
  %v292 = vmul.f32 %v260, 0.2
  %v293 = vmul.f32 %v261, 0.2
  %v294 = vmul.f32 %v262, 0.2
  %v295 = vmul.f32 %v263, 0.2
  %v296 = vmul.f32 %v264, 0.2
  %v297 = vmul.f32 %v265, 0.2
  %v298 = vmul.f32 %v266, 0.2
  %v299 = vmul.f32 %v267, 0.2
  %v300 = vmul.f32 %v268, 0.2
  %v301 = vmul.f32 %v269, 0.2
  %v302 = vmul.f32 %v270, 0.2
  %v303 = vmul.f32 %v271, 0.2
  %v304 = vmul.f32 %v272, 0.2
  %v305 = vmax.f32 %v241, %v273
  %v306 = vmax.f32 %v242, %v274
  %v307 = vmax.f32 %v243, %v275
  %v308 = vmax.f32 %v244, %v276
  %v309 = vmax.f32 %v245, %v277
  %v310 = vmax.f32 %v246, %v278
  %v311 = vmax.f32 %v247, %v279
  %v312 = vmax.f32 %v248, %v280
  %v313 = vmax.f32 %v249, %v281
  %v314 = vmax.f32 %v250, %v282
  %v315 = vmax.f32 %v251, %v283
  %v316 = vmax.f32 %v252, %v284
  %v317 = vmax.f32 %v253, %v285
  %v318 = vmax.f32 %v254, %v286
  %v319 = vmax.f32 %v255, %v287
  %v320 = vmax.f32 %v256, %v288
  %v321 = vmax.f32 %v257, %v289
  %v322 = vmax.f32 %v258, %v290
  %v323 = vmax.f32 %v259, %v291
  %v324 = vmax.f32 %v260, %v292
  %v325 = vmax.f32 %v261, %v293
  %v326 = vmax.f32 %v262, %v294
  %v327 = vmax.f32 %v263, %v295
  %v328 = vmax.f32 %v264, %v296
  %v329 = vmax.f32 %v265, %v297
  %v330 = vmax.f32 %v266, %v298
  %v331 = vmax.f32 %v267, %v299
  %v332 = vmax.f32 %v268, %v300
  %v333 = vmax.f32 %v269, %v301
  %v334 = vmax.f32 %v270, %v302
  %v335 = vmax.f32 %v271, %v303
  %v336 = vmax.f32 %v272, %v304
  %v338 = vlaneseq
  %v339 = vshrl.u32 %v338, 7
  %v340 = vsub.s32 0, %v339
  %v341 = vrot.slane %v60, %v340
  %v343 = vmul.f32 %v305, %v341
  %v344 = vmul.f32 %v306, %v341
  %v345 = vmul.f32 %v307, %v341
  %v346 = vmul.f32 %v308, %v341
  %v347 = vmul.f32 %v309, %v341
  %v348 = vmul.f32 %v310, %v341
  %v349 = vmul.f32 %v311, %v341
  %v350 = vmul.f32 %v312, %v341
  %v351 = vmul.f32 %v313, %v341
  %v352 = vmul.f32 %v314, %v341
  %v353 = vmul.f32 %v315, %v341
  %v354 = vmul.f32 %v316, %v341
  %v355 = vmul.f32 %v317, %v341
  %v356 = vmul.f32 %v318, %v341
  %v357 = vmul.f32 %v319, %v341
  %v358 = vmul.f32 %v320, %v341
  %v359 = vmul.f32 %v321, %v341
  %v360 = vmul.f32 %v322, %v341
  %v361 = vmul.f32 %v323, %v341
  %v362 = vmul.f32 %v324, %v341
  %v363 = vmul.f32 %v325, %v341
  %v364 = vmul.f32 %v326, %v341
  %v365 = vmul.f32 %v327, %v341
  %v366 = vmul.f32 %v328, %v341
  %v367 = vmul.f32 %v329, %v341
  %v368 = vmul.f32 %v330, %v341
  %v369 = vmul.f32 %v331, %v341
  %v370 = vmul.f32 %v332, %v341
  %v371 = vmul.f32 %v333, %v341
  %v372 = vmul.f32 %v334, %v341
  %v373 = vmul.f32 %v335, %v341
  %v374 = vmul.f32 %v336, %v341
  %vm375 = vcmask 261120
  %v376 = vsel %vm375, %v343, 0.0
  %377 = vadd.xlane.f32.xlu0 %v376
  %v378 = vpop.xlane.xlu0 %377
  %v379 = vsel %vm375, %v344, 0.0
  %380 = vadd.xlane.f32.xlu0 %v379
  %v381 = vpop.xlane.xlu0 %380
  %v382 = vsel %vm375, %v345, 0.0
  %383 = vadd.xlane.f32.xlu0 %v382
  %v384 = vpop.xlane.xlu0 %383
  %v385 = vsel %vm375, %v346, 0.0
  %386 = vadd.xlane.f32.xlu0 %v385
  %v387 = vpop.xlane.xlu0 %386
  %v388 = vsel %vm375, %v347, 0.0
  %389 = vadd.xlane.f32.xlu0 %v388
  %v390 = vpop.xlane.xlu0 %389
  %v391 = vsel %vm375, %v348, 0.0
  %392 = vadd.xlane.f32.xlu0 %v391
  %v393 = vpop.xlane.xlu0 %392
  %v394 = vsel %vm375, %v349, 0.0
  %395 = vadd.xlane.f32.xlu0 %v394
  %v396 = vpop.xlane.xlu0 %395
  %v397 = vsel %vm375, %v350, 0.0
  %398 = vadd.xlane.f32.xlu0 %v397
  %v399 = vpop.xlane.xlu0 %398
  %v400 = vsel %vm375, %v351, 0.0
  %401 = vadd.xlane.f32.xlu0 %v400
  %v402 = vpop.xlane.xlu0 %401
  %v403 = vsel %vm375, %v352, 0.0
  %404 = vadd.xlane.f32.xlu0 %v403
  %v405 = vpop.xlane.xlu0 %404
  %v406 = vsel %vm375, %v353, 0.0
  %407 = vadd.xlane.f32.xlu0 %v406
  %v408 = vpop.xlane.xlu0 %407
  %v409 = vsel %vm375, %v354, 0.0
  %410 = vadd.xlane.f32.xlu0 %v409
  %v411 = vpop.xlane.xlu0 %410
  %v412 = vsel %vm375, %v355, 0.0
  %413 = vadd.xlane.f32.xlu0 %v412
  %v414 = vpop.xlane.xlu0 %413
  %v415 = vsel %vm375, %v356, 0.0
  %416 = vadd.xlane.f32.xlu0 %v415
  %v417 = vpop.xlane.xlu0 %416
  %v418 = vsel %vm375, %v357, 0.0
  %419 = vadd.xlane.f32.xlu0 %v418
  %v420 = vpop.xlane.xlu0 %419
  %v421 = vsel %vm375, %v358, 0.0
  %422 = vadd.xlane.f32.xlu0 %v421
  %v423 = vpop.xlane.xlu0 %422
  %v424 = vsel %vm375, %v359, 0.0
  %425 = vadd.xlane.f32.xlu0 %v424
  %v426 = vpop.xlane.xlu0 %425
  %v427 = vsel %vm375, %v360, 0.0
  %428 = vadd.xlane.f32.xlu0 %v427
  %v429 = vpop.xlane.xlu0 %428
  %v430 = vsel %vm375, %v361, 0.0
  %431 = vadd.xlane.f32.xlu0 %v430
  %v432 = vpop.xlane.xlu0 %431
  %v433 = vsel %vm375, %v362, 0.0
  %434 = vadd.xlane.f32.xlu0 %v433
  %v435 = vpop.xlane.xlu0 %434
  %v436 = vsel %vm375, %v363, 0.0
  %437 = vadd.xlane.f32.xlu0 %v436
  %v438 = vpop.xlane.xlu0 %437
  %v439 = vsel %vm375, %v364, 0.0
  %440 = vadd.xlane.f32.xlu0 %v439
  %v441 = vpop.xlane.xlu0 %440
  %v442 = vsel %vm375, %v365, 0.0
  %443 = vadd.xlane.f32.xlu0 %v442
  %v444 = vpop.xlane.xlu0 %443
  %v445 = vsel %vm375, %v366, 0.0
  %446 = vadd.xlane.f32.xlu0 %v445
  %v447 = vpop.xlane.xlu0 %446
  %v448 = vsel %vm375, %v367, 0.0
  %449 = vadd.xlane.f32.xlu0 %v448
  %v450 = vpop.xlane.xlu0 %449
  %v451 = vsel %vm375, %v368, 0.0
  %452 = vadd.xlane.f32.xlu0 %v451
  %v453 = vpop.xlane.xlu0 %452
  %v454 = vsel %vm375, %v369, 0.0
  %455 = vadd.xlane.f32.xlu0 %v454
  %v456 = vpop.xlane.xlu0 %455
  %v457 = vsel %vm375, %v370, 0.0
  %458 = vadd.xlane.f32.xlu0 %v457
  %v459 = vpop.xlane.xlu0 %458
  %v460 = vsel %vm375, %v371, 0.0
  %461 = vadd.xlane.f32.xlu0 %v460
  %v462 = vpop.xlane.xlu0 %461
  %v463 = vsel %vm375, %v372, 0.0
  %464 = vadd.xlane.f32.xlu0 %v463
  %v465 = vpop.xlane.xlu0 %464
  %v466 = vsel %vm375, %v373, 0.0
  %467 = vadd.xlane.f32.xlu0 %v466
  %v468 = vpop.xlane.xlu0 %467
  %v469 = vsel %vm375, %v374, 0.0
  %470 = vadd.xlane.f32.xlu0 %v469
  %v471 = vpop.xlane.xlu0 %470
  %v474 = vlaneseq
  %v475 = vshrl.u32 %v474, 7
  %v476 = vsub.s32 0, %v475
  %v477 = vrot.slane %v53, %v476
  %479 = vbcast.lane.b32.xlu0 %v477, 256
  %v480 = vpop.permute.xlu0 %479
  %s482 = sor.u32 256, 8
  %483 = vbcast.lane.b32.xlu0 %v477, %s482
  %v484 = vpop.permute.xlu0 %483
  %v485 = vlaneseq
  %v486 = vshrl.u32 %v485, 7
  %v487 = vsub.s32 1, %v486
  %v488 = vrot.slane %v53, %v487
  %490 = vbcast.lane.b32.xlu0 %v488, 256
  %v491 = vpop.permute.xlu0 %490
  %s493 = sor.u32 256, 8
  %494 = vbcast.lane.b32.xlu0 %v488, %s493
  %v495 = vpop.permute.xlu0 %494
  %v496 = vlaneseq
  %v497 = vshrl.u32 %v496, 7
  %v498 = vsub.s32 2, %v497
  %v499 = vrot.slane %v53, %v498
  %501 = vbcast.lane.b32.xlu0 %v499, 256
  %v502 = vpop.permute.xlu0 %501
  %s504 = sor.u32 256, 8
  %505 = vbcast.lane.b32.xlu0 %v499, %s504
  %v506 = vpop.permute.xlu0 %505
  %v507 = vlaneseq
  %v508 = vshrl.u32 %v507, 7
  %v509 = vsub.s32 3, %v508
  %v510 = vrot.slane %v53, %v509
  %512 = vbcast.lane.b32.xlu0 %v510, 256
  %v513 = vpop.permute.xlu0 %512
  %s515 = sor.u32 256, 8
  %516 = vbcast.lane.b32.xlu0 %v510, %s515
  %v517 = vpop.permute.xlu0 %516
  %v518 = vlaneseq
  %v519 = vshrl.u32 %v518, 7
  %v520 = vsub.s32 4, %v519
  %v521 = vrot.slane %v53, %v520
  %523 = vbcast.lane.b32.xlu0 %v521, 256
  %v524 = vpop.permute.xlu0 %523
  %s526 = sor.u32 256, 8
  %527 = vbcast.lane.b32.xlu0 %v521, %s526
  %v528 = vpop.permute.xlu0 %527
  %v529 = vlaneseq
  %v530 = vshrl.u32 %v529, 7
  %v531 = vsub.s32 5, %v530
  %v532 = vrot.slane %v53, %v531
  %534 = vbcast.lane.b32.xlu0 %v532, 256
  %v535 = vpop.permute.xlu0 %534
  %s537 = sor.u32 256, 8
  %538 = vbcast.lane.b32.xlu0 %v532, %s537
  %v539 = vpop.permute.xlu0 %538
  %v540 = vlaneseq
  %v541 = vshrl.u32 %v540, 7
  %v542 = vsub.s32 6, %v541
  %v543 = vrot.slane %v53, %v542
  %545 = vbcast.lane.b32.xlu0 %v543, 256
  %v546 = vpop.permute.xlu0 %545
  %s548 = sor.u32 256, 8
  %549 = vbcast.lane.b32.xlu0 %v543, %s548
  %v550 = vpop.permute.xlu0 %549
  %v551 = vlaneseq
  %v552 = vshrl.u32 %v551, 7
  %v553 = vsub.s32 7, %v552
  %v554 = vrot.slane %v53, %v553
  %556 = vbcast.lane.b32.xlu0 %v554, 256
  %v557 = vpop.permute.xlu0 %556
  %s559 = sor.u32 256, 8
  %560 = vbcast.lane.b32.xlu0 %v554, %s559
  %v561 = vpop.permute.xlu0 %560
  %v562 = vlaneseq
  %v563 = vshrl.u32 %v562, 7
  %v564 = vsub.s32 0, %v563
  %v565 = vrot.slane %v54, %v564
  %567 = vbcast.lane.b32.xlu0 %v565, 256
  %v568 = vpop.permute.xlu0 %567
  %s570 = sor.u32 256, 8
  %571 = vbcast.lane.b32.xlu0 %v565, %s570
  %v572 = vpop.permute.xlu0 %571
  %v573 = vlaneseq
  %v574 = vshrl.u32 %v573, 7
  %v575 = vsub.s32 1, %v574
  %v576 = vrot.slane %v54, %v575
  %578 = vbcast.lane.b32.xlu0 %v576, 256
  %v579 = vpop.permute.xlu0 %578
  %s581 = sor.u32 256, 8
  %582 = vbcast.lane.b32.xlu0 %v576, %s581
  %v583 = vpop.permute.xlu0 %582
  %v584 = vlaneseq
  %v585 = vshrl.u32 %v584, 7
  %v586 = vsub.s32 2, %v585
  %v587 = vrot.slane %v54, %v586
  %589 = vbcast.lane.b32.xlu0 %v587, 256
  %v590 = vpop.permute.xlu0 %589
  %s592 = sor.u32 256, 8
  %593 = vbcast.lane.b32.xlu0 %v587, %s592
  %v594 = vpop.permute.xlu0 %593
  %v595 = vlaneseq
  %v596 = vshrl.u32 %v595, 7
  %v597 = vsub.s32 3, %v596
  %v598 = vrot.slane %v54, %v597
  %600 = vbcast.lane.b32.xlu0 %v598, 256
  %v601 = vpop.permute.xlu0 %600
  %s603 = sor.u32 256, 8
  %604 = vbcast.lane.b32.xlu0 %v598, %s603
  %v605 = vpop.permute.xlu0 %604
  %v606 = vlaneseq
  %v607 = vshrl.u32 %v606, 7
  %v608 = vsub.s32 4, %v607
  %v609 = vrot.slane %v54, %v608
  %611 = vbcast.lane.b32.xlu0 %v609, 256
  %v612 = vpop.permute.xlu0 %611
  %s614 = sor.u32 256, 8
  %615 = vbcast.lane.b32.xlu0 %v609, %s614
  %v616 = vpop.permute.xlu0 %615
  %v617 = vlaneseq
  %v618 = vshrl.u32 %v617, 7
  %v619 = vsub.s32 5, %v618
  %v620 = vrot.slane %v54, %v619
  %622 = vbcast.lane.b32.xlu0 %v620, 256
  %v623 = vpop.permute.xlu0 %622
  %s625 = sor.u32 256, 8
  %626 = vbcast.lane.b32.xlu0 %v620, %s625
  %v627 = vpop.permute.xlu0 %626
  %v628 = vlaneseq
  %v629 = vshrl.u32 %v628, 7
  %v630 = vsub.s32 6, %v629
  %v631 = vrot.slane %v54, %v630
  %633 = vbcast.lane.b32.xlu0 %v631, 256
  %v634 = vpop.permute.xlu0 %633
  %s636 = sor.u32 256, 8
  %637 = vbcast.lane.b32.xlu0 %v631, %s636
  %v638 = vpop.permute.xlu0 %637
  %v639 = vlaneseq
  %v640 = vshrl.u32 %v639, 7
  %v641 = vsub.s32 7, %v640
  %v642 = vrot.slane %v54, %v641
  %644 = vbcast.lane.b32.xlu0 %v642, 256
  %v645 = vpop.permute.xlu0 %644
  %s647 = sor.u32 256, 8
  %648 = vbcast.lane.b32.xlu0 %v642, %s647
  %v649 = vpop.permute.xlu0 %648
  %v682 = vadd.f32 %v378, %v480
  %v683 = vadd.f32 %v381, %v484
  %v684 = vadd.f32 %v384, %v491
  %v685 = vadd.f32 %v387, %v495
  %v686 = vadd.f32 %v390, %v502
  %v687 = vadd.f32 %v393, %v506
  %v688 = vadd.f32 %v396, %v513
  %v689 = vadd.f32 %v399, %v517
  %v690 = vadd.f32 %v402, %v524
  %v691 = vadd.f32 %v405, %v528
  %v692 = vadd.f32 %v408, %v535
  %v693 = vadd.f32 %v411, %v539
  %v694 = vadd.f32 %v414, %v546
  %v695 = vadd.f32 %v417, %v550
  %v696 = vadd.f32 %v420, %v557
  %v697 = vadd.f32 %v423, %v561
  %v698 = vadd.f32 %v426, %v568
  %v699 = vadd.f32 %v429, %v572
  %v700 = vadd.f32 %v432, %v579
  %v701 = vadd.f32 %v435, %v583
  %v702 = vadd.f32 %v438, %v590
  %v703 = vadd.f32 %v441, %v594
  %v704 = vadd.f32 %v444, %v601
  %v705 = vadd.f32 %v447, %v605
  %v706 = vadd.f32 %v450, %v612
  %v707 = vadd.f32 %v453, %v616
  %v708 = vadd.f32 %v456, %v623
  %v709 = vadd.f32 %v459, %v627
  %v710 = vadd.f32 %v462, %v634
  %v711 = vadd.f32 %v465, %v638
  %v712 = vadd.f32 %v468, %v645
  %v713 = vadd.f32 %v471, %v649
  %v714 = vld [vmem:[#allocation2] sm:$0xff]
  %v715 = vld [vmem:[#allocation2 + $0x8] sm:$0xff]
  %748 = vset.pattern.permute.xlu0 0
  %749 = vperm.xlu0 %748, %v682
  %v750 = vpop.permute.xlu0 %749
  %751 = vset.pattern.permute.xlu0 0
  %752 = vperm.xlu0 %751, %v683
  %v753 = vpop.permute.xlu0 %752
  %754 = vset.pattern.permute.xlu0 0
  %755 = vperm.xlu0 %754, %v684
  %v756 = vpop.permute.xlu0 %755
  %757 = vset.pattern.permute.xlu0 0
  %758 = vperm.xlu0 %757, %v685
  %v759 = vpop.permute.xlu0 %758
  %760 = vset.pattern.permute.xlu0 0
  %761 = vperm.xlu0 %760, %v686
  %v762 = vpop.permute.xlu0 %761
  %763 = vset.pattern.permute.xlu0 0
  %764 = vperm.xlu0 %763, %v687
  %v765 = vpop.permute.xlu0 %764
  %766 = vset.pattern.permute.xlu0 0
  %767 = vperm.xlu0 %766, %v688
  %v768 = vpop.permute.xlu0 %767
  %769 = vset.pattern.permute.xlu0 0
  %770 = vperm.xlu0 %769, %v689
  %v771 = vpop.permute.xlu0 %770
  %772 = vset.pattern.permute.xlu0 0
  %773 = vperm.xlu0 %772, %v690
  %v774 = vpop.permute.xlu0 %773
  %775 = vset.pattern.permute.xlu0 0
  %776 = vperm.xlu0 %775, %v691
  %v777 = vpop.permute.xlu0 %776
  %778 = vset.pattern.permute.xlu0 0
  %779 = vperm.xlu0 %778, %v692
  %v780 = vpop.permute.xlu0 %779
  %781 = vset.pattern.permute.xlu0 0
  %782 = vperm.xlu0 %781, %v693
  %v783 = vpop.permute.xlu0 %782
  %784 = vset.pattern.permute.xlu0 0
  %785 = vperm.xlu0 %784, %v694
  %v786 = vpop.permute.xlu0 %785
  %787 = vset.pattern.permute.xlu0 0
  %788 = vperm.xlu0 %787, %v695
  %v789 = vpop.permute.xlu0 %788
  %790 = vset.pattern.permute.xlu0 0
  %791 = vperm.xlu0 %790, %v696
  %v792 = vpop.permute.xlu0 %791
  %793 = vset.pattern.permute.xlu0 0
  %794 = vperm.xlu0 %793, %v697
  %v795 = vpop.permute.xlu0 %794
  %796 = vset.pattern.permute.xlu0 0
  %797 = vperm.xlu0 %796, %v698
  %v798 = vpop.permute.xlu0 %797
  %799 = vset.pattern.permute.xlu0 0
  %800 = vperm.xlu0 %799, %v699
  %v801 = vpop.permute.xlu0 %800
  %802 = vset.pattern.permute.xlu0 0
  %803 = vperm.xlu0 %802, %v700
  %v804 = vpop.permute.xlu0 %803
  %805 = vset.pattern.permute.xlu0 0
  %806 = vperm.xlu0 %805, %v701
  %v807 = vpop.permute.xlu0 %806
  %808 = vset.pattern.permute.xlu0 0
  %809 = vperm.xlu0 %808, %v702
  %v810 = vpop.permute.xlu0 %809
  %811 = vset.pattern.permute.xlu0 0
  %812 = vperm.xlu0 %811, %v703
  %v813 = vpop.permute.xlu0 %812
  %814 = vset.pattern.permute.xlu0 0
  %815 = vperm.xlu0 %814, %v704
  %v816 = vpop.permute.xlu0 %815
  %817 = vset.pattern.permute.xlu0 0
  %818 = vperm.xlu0 %817, %v705
  %v819 = vpop.permute.xlu0 %818
  %820 = vset.pattern.permute.xlu0 0
  %821 = vperm.xlu0 %820, %v706
  %v822 = vpop.permute.xlu0 %821
  %823 = vset.pattern.permute.xlu0 0
  %824 = vperm.xlu0 %823, %v707
  %v825 = vpop.permute.xlu0 %824
  %826 = vset.pattern.permute.xlu0 0
  %827 = vperm.xlu0 %826, %v708
  %v828 = vpop.permute.xlu0 %827
  %829 = vset.pattern.permute.xlu0 0
  %830 = vperm.xlu0 %829, %v709
  %v831 = vpop.permute.xlu0 %830
  %832 = vset.pattern.permute.xlu0 0
  %833 = vperm.xlu0 %832, %v710
  %v834 = vpop.permute.xlu0 %833
  %835 = vset.pattern.permute.xlu0 0
  %836 = vperm.xlu0 %835, %v711
  %v837 = vpop.permute.xlu0 %836
  %838 = vset.pattern.permute.xlu0 0
  %839 = vperm.xlu0 %838, %v712
  %v840 = vpop.permute.xlu0 %839
  %841 = vset.pattern.permute.xlu0 0
  %842 = vperm.xlu0 %841, %v713
  %v843 = vpop.permute.xlu0 %842
  %v844 = vlaneseq
  %v845 = vand.u32 %v844, 127
  %v846 = vlaneseq
  %v847 = vshrl.u32 %v846, 7
  %v848 = vsub.s32 %v845, %v847
  %v849 = vrot.slane %v750, %v848
  %v850 = vadd.s32 %v845, 4294967288
  %v851 = vlaneseq
  %v852 = vshrl.u32 %v851, 7
  %v853 = vsub.s32 %v850, %v852
  %v854 = vrot.slane %v753, %v853
  %vm855 = vcmask 130112
  %v856 = vsel %vm855, %v854, %v849
  %v857 = vlaneseq
  %v858 = vshrl.u32 %v857, 7
  %v859 = vsub.s32 %v845, %v858
  %v860 = vrot.slane %v756, %v859
  %v861 = vlaneseq
  %v862 = vshrl.u32 %v861, 7
  %v863 = vsub.s32 %v850, %v862
  %v864 = vrot.slane %v759, %v863
  %v865 = vsel %vm855, %v864, %v860
  %v866 = vlaneseq
  %v867 = vshrl.u32 %v866, 7
  %v868 = vsub.s32 %v845, %v867
  %v869 = vrot.slane %v762, %v868
  %v870 = vlaneseq
  %v871 = vshrl.u32 %v870, 7
  %v872 = vsub.s32 %v850, %v871
  %v873 = vrot.slane %v765, %v872
  %v874 = vsel %vm855, %v873, %v869
  %v875 = vlaneseq
  %v876 = vshrl.u32 %v875, 7
  %v877 = vsub.s32 %v845, %v876
  %v878 = vrot.slane %v768, %v877
  %v879 = vlaneseq
  %v880 = vshrl.u32 %v879, 7
  %v881 = vsub.s32 %v850, %v880
  %v882 = vrot.slane %v771, %v881
  %v883 = vsel %vm855, %v882, %v878
  %v884 = vlaneseq
  %v885 = vshrl.u32 %v884, 7
  %v886 = vsub.s32 %v845, %v885
  %v887 = vrot.slane %v774, %v886
  %v888 = vlaneseq
  %v889 = vshrl.u32 %v888, 7
  %v890 = vsub.s32 %v850, %v889
  %v891 = vrot.slane %v777, %v890
  %v892 = vsel %vm855, %v891, %v887
  %v893 = vlaneseq
  %v894 = vshrl.u32 %v893, 7
  %v895 = vsub.s32 %v845, %v894
  %v896 = vrot.slane %v780, %v895
  %v897 = vlaneseq
  %v898 = vshrl.u32 %v897, 7
  %v899 = vsub.s32 %v850, %v898
  %v900 = vrot.slane %v783, %v899
  %v901 = vsel %vm855, %v900, %v896
  %v902 = vlaneseq
  %v903 = vshrl.u32 %v902, 7
  %v904 = vsub.s32 %v845, %v903
  %v905 = vrot.slane %v786, %v904
  %v906 = vlaneseq
  %v907 = vshrl.u32 %v906, 7
  %v908 = vsub.s32 %v850, %v907
  %v909 = vrot.slane %v789, %v908
  %v910 = vsel %vm855, %v909, %v905
  %v911 = vlaneseq
  %v912 = vshrl.u32 %v911, 7
  %v913 = vsub.s32 %v845, %v912
  %v914 = vrot.slane %v792, %v913
  %v915 = vlaneseq
  %v916 = vshrl.u32 %v915, 7
  %v917 = vsub.s32 %v850, %v916
  %v918 = vrot.slane %v795, %v917
  %v919 = vsel %vm855, %v918, %v914
  %v920 = vlaneseq
  %v921 = vshrl.u32 %v920, 7
  %v922 = vsub.s32 %v845, %v921
  %v923 = vrot.slane %v798, %v922
  %v924 = vlaneseq
  %v925 = vshrl.u32 %v924, 7
  %v926 = vsub.s32 %v850, %v925
  %v927 = vrot.slane %v801, %v926
  %v928 = vsel %vm855, %v927, %v923
  %v929 = vlaneseq
  %v930 = vshrl.u32 %v929, 7
  %v931 = vsub.s32 %v845, %v930
  %v932 = vrot.slane %v804, %v931
  %v933 = vlaneseq
  %v934 = vshrl.u32 %v933, 7
  %v935 = vsub.s32 %v850, %v934
  %v936 = vrot.slane %v807, %v935
  %v937 = vsel %vm855, %v936, %v932
  %v938 = vlaneseq
  %v939 = vshrl.u32 %v938, 7
  %v940 = vsub.s32 %v845, %v939
  %v941 = vrot.slane %v810, %v940
  %v942 = vlaneseq
  %v943 = vshrl.u32 %v942, 7
  %v944 = vsub.s32 %v850, %v943
  %v945 = vrot.slane %v813, %v944
  %v946 = vsel %vm855, %v945, %v941
  %v947 = vlaneseq
  %v948 = vshrl.u32 %v947, 7
  %v949 = vsub.s32 %v845, %v948
  %v950 = vrot.slane %v816, %v949
  %v951 = vlaneseq
  %v952 = vshrl.u32 %v951, 7
  %v953 = vsub.s32 %v850, %v952
  %v954 = vrot.slane %v819, %v953
  %v955 = vsel %vm855, %v954, %v950
  %v956 = vlaneseq
  %v957 = vshrl.u32 %v956, 7
  %v958 = vsub.s32 %v845, %v957
  %v959 = vrot.slane %v822, %v958
  %v960 = vlaneseq
  %v961 = vshrl.u32 %v960, 7
  %v962 = vsub.s32 %v850, %v961
  %v963 = vrot.slane %v825, %v962
  %v964 = vsel %vm855, %v963, %v959
  %v965 = vlaneseq
  %v966 = vshrl.u32 %v965, 7
  %v967 = vsub.s32 %v845, %v966
  %v968 = vrot.slane %v828, %v967
  %v969 = vlaneseq
  %v970 = vshrl.u32 %v969, 7
  %v971 = vsub.s32 %v850, %v970
  %v972 = vrot.slane %v831, %v971
  %v973 = vsel %vm855, %v972, %v968
  %v974 = vlaneseq
  %v975 = vshrl.u32 %v974, 7
  %v976 = vsub.s32 %v845, %v975
  %v977 = vrot.slane %v834, %v976
  %v978 = vlaneseq
  %v979 = vshrl.u32 %v978, 7
  %v980 = vsub.s32 %v850, %v979
  %v981 = vrot.slane %v837, %v980
  %v982 = vsel %vm855, %v981, %v977
  %v983 = vlaneseq
  %v984 = vshrl.u32 %v983, 7
  %v985 = vsub.s32 %v845, %v984
  %v986 = vrot.slane %v840, %v985
  %v987 = vlaneseq
  %v988 = vshrl.u32 %v987, 7
  %v989 = vsub.s32 %v850, %v988
  %v990 = vrot.slane %v843, %v989
  %v991 = vsel %vm855, %v990, %v986
  %vm992 = vcmask 1041409
  %v993 = vsel %vm992, %v865, %v856
  %vm994 = vcmask 1042434
  %v995 = vsel %vm994, %v874, %v993
  %vm996 = vcmask 1043459
  %v997 = vsel %vm996, %v883, %v995
  %vm998 = vcmask 1044484
  %v999 = vsel %vm998, %v892, %v997
  %vm1000 = vcmask 1045509
  %v1001 = vsel %vm1000, %v901, %v999
  %vm1002 = vcmask 1046534
  %v1003 = vsel %vm1002, %v910, %v1001
  %vm1004 = vcmask 1047559
  %v1005 = vsel %vm1004, %v919, %v1003
  %v1006 = vsel %vm992, %v937, %v928
  %v1007 = vsel %vm994, %v946, %v1006
  %v1008 = vsel %vm996, %v955, %v1007
  %v1009 = vsel %vm998, %v964, %v1008
  %v1010 = vsel %vm1000, %v973, %v1009
  %v1011 = vsel %vm1002, %v982, %v1010
  %v1012 = vsel %vm1004, %v991, %v1011
  %vm1015 = vcmask 130048
  %v1016 = vsel %vm1015, %v1005, -inf
  %1017 = vmax.xlane.f32.xlu0 %v1016
  %v1018 = vpop.xlane.xlu0 %1017
  %v1019 = vsel %vm1015, %v1012, -inf
  %1020 = vmax.xlane.f32.xlu0 %v1019
  %v1021 = vpop.xlane.xlu0 %1020
  %v1022 = vmax.f32 %v714, %v1018
  %v1023 = vmax.f32 %v715, %v1021
  %v1024 = vsub.f32 %v714, %v1022
  %v1025 = vsub.f32 %v715, %v1023
  %v1026 = vmul.f32 %v1024, 1.442695
  %v1027 = vpow.pop %v1026
  %v1028 = vmul.f32 %v1025, 1.442695
  %v1029 = vpow.pop %v1028
  %1031 = vset.pattern.permute.xlu0 0
  %1032 = vperm.xlu0 %1031, %v1022
  %v1033 = vpop.permute.xlu0 %1032
  %1035 = vset.pattern.permute.xlu0 0
  %1036 = vperm.xlu0 %1035, %v1023
  %v1037 = vpop.permute.xlu0 %1036
  %v1038 = vlaneseq
  %v1039 = vshrl.u32 %v1038, 7
  %v1040 = vsub.s32 0, %v1039
  %v1041 = vrot.slane %v1033, %v1040
  %v1042 = vlaneseq
  %v1043 = vshrl.u32 %v1042, 7
  %v1044 = vsub.s32 1, %v1043
  %v1045 = vrot.slane %v1033, %v1044
  %v1046 = vlaneseq
  %v1047 = vshrl.u32 %v1046, 7
  %v1048 = vsub.s32 2, %v1047
  %v1049 = vrot.slane %v1033, %v1048
  %v1050 = vlaneseq
  %v1051 = vshrl.u32 %v1050, 7
  %v1052 = vsub.s32 3, %v1051
  %v1053 = vrot.slane %v1033, %v1052
  %v1054 = vlaneseq
  %v1055 = vshrl.u32 %v1054, 7
  %v1056 = vsub.s32 4, %v1055
  %v1057 = vrot.slane %v1033, %v1056
  %v1058 = vlaneseq
  %v1059 = vshrl.u32 %v1058, 7
  %v1060 = vsub.s32 5, %v1059
  %v1061 = vrot.slane %v1033, %v1060
  %v1062 = vlaneseq
  %v1063 = vshrl.u32 %v1062, 7
  %v1064 = vsub.s32 6, %v1063
  %v1065 = vrot.slane %v1033, %v1064
  %v1066 = vlaneseq
  %v1067 = vshrl.u32 %v1066, 7
  %v1068 = vsub.s32 7, %v1067
  %v1069 = vrot.slane %v1033, %v1068
  %v1070 = vlaneseq
  %v1071 = vshrl.u32 %v1070, 7
  %v1072 = vsub.s32 0, %v1071
  %v1073 = vrot.slane %v1037, %v1072
  %v1074 = vlaneseq
  %v1075 = vshrl.u32 %v1074, 7
  %v1076 = vsub.s32 1, %v1075
  %v1077 = vrot.slane %v1037, %v1076
  %v1078 = vlaneseq
  %v1079 = vshrl.u32 %v1078, 7
  %v1080 = vsub.s32 2, %v1079
  %v1081 = vrot.slane %v1037, %v1080
  %v1082 = vlaneseq
  %v1083 = vshrl.u32 %v1082, 7
  %v1084 = vsub.s32 3, %v1083
  %v1085 = vrot.slane %v1037, %v1084
  %v1086 = vlaneseq
  %v1087 = vshrl.u32 %v1086, 7
  %v1088 = vsub.s32 4, %v1087
  %v1089 = vrot.slane %v1037, %v1088
  %v1090 = vlaneseq
  %v1091 = vshrl.u32 %v1090, 7
  %v1092 = vsub.s32 5, %v1091
  %v1093 = vrot.slane %v1037, %v1092
  %v1094 = vlaneseq
  %v1095 = vshrl.u32 %v1094, 7
  %v1096 = vsub.s32 6, %v1095
  %v1097 = vrot.slane %v1037, %v1096
  %v1098 = vlaneseq
  %v1099 = vshrl.u32 %v1098, 7
  %v1100 = vsub.s32 7, %v1099
  %v1101 = vrot.slane %v1037, %v1100
  %v1118 = vsub.f32 %v682, %v1041
  %v1119 = vsub.f32 %v683, %v1041
  %v1120 = vsub.f32 %v684, %v1045
  %v1121 = vsub.f32 %v685, %v1045
  %v1122 = vsub.f32 %v686, %v1049
  %v1123 = vsub.f32 %v687, %v1049
  %v1124 = vsub.f32 %v688, %v1053
  %v1125 = vsub.f32 %v689, %v1053
  %v1126 = vsub.f32 %v690, %v1057
  %v1127 = vsub.f32 %v691, %v1057
  %v1128 = vsub.f32 %v692, %v1061
  %v1129 = vsub.f32 %v693, %v1061
  %v1130 = vsub.f32 %v694, %v1065
  %v1131 = vsub.f32 %v695, %v1065
  %v1132 = vsub.f32 %v696, %v1069
  %v1133 = vsub.f32 %v697, %v1069
  %v1134 = vsub.f32 %v698, %v1073
  %v1135 = vsub.f32 %v699, %v1073
  %v1136 = vsub.f32 %v700, %v1077
  %v1137 = vsub.f32 %v701, %v1077
  %v1138 = vsub.f32 %v702, %v1081
  %v1139 = vsub.f32 %v703, %v1081
  %v1140 = vsub.f32 %v704, %v1085
  %v1141 = vsub.f32 %v705, %v1085
  %v1142 = vsub.f32 %v706, %v1089
  %v1143 = vsub.f32 %v707, %v1089
  %v1144 = vsub.f32 %v708, %v1093
  %v1145 = vsub.f32 %v709, %v1093
  %v1146 = vsub.f32 %v710, %v1097
  %v1147 = vsub.f32 %v711, %v1097
  %v1148 = vsub.f32 %v712, %v1101
  %v1149 = vsub.f32 %v713, %v1101
  %v1150 = vmul.f32 %v1118, 1.442695
  %v1151 = vpow.pop %v1150
  %v1152 = vmul.f32 %v1119, 1.442695
  %v1153 = vpow.pop %v1152
  %v1154 = vmul.f32 %v1120, 1.442695
  %v1155 = vpow.pop %v1154
  %v1156 = vmul.f32 %v1121, 1.442695
  %v1157 = vpow.pop %v1156
  %v1158 = vmul.f32 %v1122, 1.442695
  %v1159 = vpow.pop %v1158
  %v1160 = vmul.f32 %v1123, 1.442695
  %v1161 = vpow.pop %v1160
  %v1162 = vmul.f32 %v1124, 1.442695
  %v1163 = vpow.pop %v1162
  %v1164 = vmul.f32 %v1125, 1.442695
  %v1165 = vpow.pop %v1164
  %v1166 = vmul.f32 %v1126, 1.442695
  %v1167 = vpow.pop %v1166
  %v1168 = vmul.f32 %v1127, 1.442695
  %v1169 = vpow.pop %v1168
  %v1170 = vmul.f32 %v1128, 1.442695
  %v1171 = vpow.pop %v1170
  %v1172 = vmul.f32 %v1129, 1.442695
  %v1173 = vpow.pop %v1172
  %v1174 = vmul.f32 %v1130, 1.442695
  %v1175 = vpow.pop %v1174
  %v1176 = vmul.f32 %v1131, 1.442695
  %v1177 = vpow.pop %v1176
  %v1178 = vmul.f32 %v1132, 1.442695
  %v1179 = vpow.pop %v1178
  %v1180 = vmul.f32 %v1133, 1.442695
  %v1181 = vpow.pop %v1180
  %v1182 = vmul.f32 %v1134, 1.442695
  %v1183 = vpow.pop %v1182
  %v1184 = vmul.f32 %v1135, 1.442695
  %v1185 = vpow.pop %v1184
  %v1186 = vmul.f32 %v1136, 1.442695
  %v1187 = vpow.pop %v1186
  %v1188 = vmul.f32 %v1137, 1.442695
  %v1189 = vpow.pop %v1188
  %v1190 = vmul.f32 %v1138, 1.442695
  %v1191 = vpow.pop %v1190
  %v1192 = vmul.f32 %v1139, 1.442695
  %v1193 = vpow.pop %v1192
  %v1194 = vmul.f32 %v1140, 1.442695
  %v1195 = vpow.pop %v1194
  %v1196 = vmul.f32 %v1141, 1.442695
  %v1197 = vpow.pop %v1196
  %v1198 = vmul.f32 %v1142, 1.442695
  %v1199 = vpow.pop %v1198
  %v1200 = vmul.f32 %v1143, 1.442695
  %v1201 = vpow.pop %v1200
  %v1202 = vmul.f32 %v1144, 1.442695
  %v1203 = vpow.pop %v1202
  %v1204 = vmul.f32 %v1145, 1.442695
  %v1205 = vpow.pop %v1204
  %v1206 = vmul.f32 %v1146, 1.442695
  %v1207 = vpow.pop %v1206
  %v1208 = vmul.f32 %v1147, 1.442695
  %v1209 = vpow.pop %v1208
  %v1210 = vmul.f32 %v1148, 1.442695
  %v1211 = vpow.pop %v1210
  %v1212 = vmul.f32 %v1149, 1.442695
  %v1213 = vpow.pop %v1212
  %v1214 = vld [vmem:[#allocation3] sm:$0xff]
  %v1215 = vld [vmem:[#allocation3 + $0x8] sm:$0xff]
  %v1216 = vmul.f32 %v1027, %v1214
  %v1217 = vmul.f32 %v1029, %v1215
  %1250 = vset.pattern.permute.xlu0 0
  %1251 = vperm.xlu0 %1250, %v1151
  %v1252 = vpop.permute.xlu0 %1251
  %1253 = vset.pattern.permute.xlu0 0
  %1254 = vperm.xlu0 %1253, %v1153
  %v1255 = vpop.permute.xlu0 %1254
  %1256 = vset.pattern.permute.xlu0 0
  %1257 = vperm.xlu0 %1256, %v1155
  %v1258 = vpop.permute.xlu0 %1257
  %1259 = vset.pattern.permute.xlu0 0
  %1260 = vperm.xlu0 %1259, %v1157
  %v1261 = vpop.permute.xlu0 %1260
  %1262 = vset.pattern.permute.xlu0 0
  %1263 = vperm.xlu0 %1262, %v1159
  %v1264 = vpop.permute.xlu0 %1263
  %1265 = vset.pattern.permute.xlu0 0
  %1266 = vperm.xlu0 %1265, %v1161
  %v1267 = vpop.permute.xlu0 %1266
  %1268 = vset.pattern.permute.xlu0 0
  %1269 = vperm.xlu0 %1268, %v1163
  %v1270 = vpop.permute.xlu0 %1269
  %1271 = vset.pattern.permute.xlu0 0
  %1272 = vperm.xlu0 %1271, %v1165
  %v1273 = vpop.permute.xlu0 %1272
  %1274 = vset.pattern.permute.xlu0 0
  %1275 = vperm.xlu0 %1274, %v1167
  %v1276 = vpop.permute.xlu0 %1275
  %1277 = vset.pattern.permute.xlu0 0
  %1278 = vperm.xlu0 %1277, %v1169
  %v1279 = vpop.permute.xlu0 %1278
  %1280 = vset.pattern.permute.xlu0 0
  %1281 = vperm.xlu0 %1280, %v1171
  %v1282 = vpop.permute.xlu0 %1281
  %1283 = vset.pattern.permute.xlu0 0
  %1284 = vperm.xlu0 %1283, %v1173
  %v1285 = vpop.permute.xlu0 %1284
  %1286 = vset.pattern.permute.xlu0 0
  %1287 = vperm.xlu0 %1286, %v1175
  %v1288 = vpop.permute.xlu0 %1287
  %1289 = vset.pattern.permute.xlu0 0
  %1290 = vperm.xlu0 %1289, %v1177
  %v1291 = vpop.permute.xlu0 %1290
  %1292 = vset.pattern.permute.xlu0 0
  %1293 = vperm.xlu0 %1292, %v1179
  %v1294 = vpop.permute.xlu0 %1293
  %1295 = vset.pattern.permute.xlu0 0
  %1296 = vperm.xlu0 %1295, %v1181
  %v1297 = vpop.permute.xlu0 %1296
  %1298 = vset.pattern.permute.xlu0 0
  %1299 = vperm.xlu0 %1298, %v1183
  %v1300 = vpop.permute.xlu0 %1299
  %1301 = vset.pattern.permute.xlu0 0
  %1302 = vperm.xlu0 %1301, %v1185
  %v1303 = vpop.permute.xlu0 %1302
  %1304 = vset.pattern.permute.xlu0 0
  %1305 = vperm.xlu0 %1304, %v1187
  %v1306 = vpop.permute.xlu0 %1305
  %1307 = vset.pattern.permute.xlu0 0
  %1308 = vperm.xlu0 %1307, %v1189
  %v1309 = vpop.permute.xlu0 %1308
  %1310 = vset.pattern.permute.xlu0 0
  %1311 = vperm.xlu0 %1310, %v1191
  %v1312 = vpop.permute.xlu0 %1311
  %1313 = vset.pattern.permute.xlu0 0
  %1314 = vperm.xlu0 %1313, %v1193
  %v1315 = vpop.permute.xlu0 %1314
  %1316 = vset.pattern.permute.xlu0 0
  %1317 = vperm.xlu0 %1316, %v1195
  %v1318 = vpop.permute.xlu0 %1317
  %1319 = vset.pattern.permute.xlu0 0
  %1320 = vperm.xlu0 %1319, %v1197
  %v1321 = vpop.permute.xlu0 %1320
  %1322 = vset.pattern.permute.xlu0 0
  %1323 = vperm.xlu0 %1322, %v1199
  %v1324 = vpop.permute.xlu0 %1323
  %1325 = vset.pattern.permute.xlu0 0
  %1326 = vperm.xlu0 %1325, %v1201
  %v1327 = vpop.permute.xlu0 %1326
  %1328 = vset.pattern.permute.xlu0 0
  %1329 = vperm.xlu0 %1328, %v1203
  %v1330 = vpop.permute.xlu0 %1329
  %1331 = vset.pattern.permute.xlu0 0
  %1332 = vperm.xlu0 %1331, %v1205
  %v1333 = vpop.permute.xlu0 %1332
  %1334 = vset.pattern.permute.xlu0 0
  %1335 = vperm.xlu0 %1334, %v1207
  %v1336 = vpop.permute.xlu0 %1335
  %1337 = vset.pattern.permute.xlu0 0
  %1338 = vperm.xlu0 %1337, %v1209
  %v1339 = vpop.permute.xlu0 %1338
  %1340 = vset.pattern.permute.xlu0 0
  %1341 = vperm.xlu0 %1340, %v1211
  %v1342 = vpop.permute.xlu0 %1341
  %1343 = vset.pattern.permute.xlu0 0
  %1344 = vperm.xlu0 %1343, %v1213
  %v1345 = vpop.permute.xlu0 %1344
  %v1346 = vlaneseq
  %v1347 = vshrl.u32 %v1346, 7
  %v1348 = vsub.s32 %v845, %v1347
  %v1349 = vrot.slane %v1252, %v1348
  %v1350 = vlaneseq
  %v1351 = vshrl.u32 %v1350, 7
  %v1352 = vsub.s32 %v850, %v1351
  %v1353 = vrot.slane %v1255, %v1352
  %v1354 = vsel %vm855, %v1353, %v1349
  %v1355 = vlaneseq
  %v1356 = vshrl.u32 %v1355, 7
  %v1357 = vsub.s32 %v845, %v1356
  %v1358 = vrot.slane %v1258, %v1357
  %v1359 = vlaneseq
  %v1360 = vshrl.u32 %v1359, 7
  %v1361 = vsub.s32 %v850, %v1360
  %v1362 = vrot.slane %v1261, %v1361
  %v1363 = vsel %vm855, %v1362, %v1358
  %v1364 = vlaneseq
  %v1365 = vshrl.u32 %v1364, 7
  %v1366 = vsub.s32 %v845, %v1365
  %v1367 = vrot.slane %v1264, %v1366
  %v1368 = vlaneseq
  %v1369 = vshrl.u32 %v1368, 7
  %v1370 = vsub.s32 %v850, %v1369
  %v1371 = vrot.slane %v1267, %v1370
  %v1372 = vsel %vm855, %v1371, %v1367
  %v1373 = vlaneseq
  %v1374 = vshrl.u32 %v1373, 7
  %v1375 = vsub.s32 %v845, %v1374
  %v1376 = vrot.slane %v1270, %v1375
  %v1377 = vlaneseq
  %v1378 = vshrl.u32 %v1377, 7
  %v1379 = vsub.s32 %v850, %v1378
  %v1380 = vrot.slane %v1273, %v1379
  %v1381 = vsel %vm855, %v1380, %v1376
  %v1382 = vlaneseq
  %v1383 = vshrl.u32 %v1382, 7
  %v1384 = vsub.s32 %v845, %v1383
  %v1385 = vrot.slane %v1276, %v1384
  %v1386 = vlaneseq
  %v1387 = vshrl.u32 %v1386, 7
  %v1388 = vsub.s32 %v850, %v1387
  %v1389 = vrot.slane %v1279, %v1388
  %v1390 = vsel %vm855, %v1389, %v1385
  %v1391 = vlaneseq
  %v1392 = vshrl.u32 %v1391, 7
  %v1393 = vsub.s32 %v845, %v1392
  %v1394 = vrot.slane %v1282, %v1393
  %v1395 = vlaneseq
  %v1396 = vshrl.u32 %v1395, 7
  %v1397 = vsub.s32 %v850, %v1396
  %v1398 = vrot.slane %v1285, %v1397
  %v1399 = vsel %vm855, %v1398, %v1394
  %v1400 = vlaneseq
  %v1401 = vshrl.u32 %v1400, 7
  %v1402 = vsub.s32 %v845, %v1401
  %v1403 = vrot.slane %v1288, %v1402
  %v1404 = vlaneseq
  %v1405 = vshrl.u32 %v1404, 7
  %v1406 = vsub.s32 %v850, %v1405
  %v1407 = vrot.slane %v1291, %v1406
  %v1408 = vsel %vm855, %v1407, %v1403
  %v1409 = vlaneseq
  %v1410 = vshrl.u32 %v1409, 7
  %v1411 = vsub.s32 %v845, %v1410
  %v1412 = vrot.slane %v1294, %v1411
  %v1413 = vlaneseq
  %v1414 = vshrl.u32 %v1413, 7
  %v1415 = vsub.s32 %v850, %v1414
  %v1416 = vrot.slane %v1297, %v1415
  %v1417 = vsel %vm855, %v1416, %v1412
  %v1418 = vlaneseq
  %v1419 = vshrl.u32 %v1418, 7
  %v1420 = vsub.s32 %v845, %v1419
  %v1421 = vrot.slane %v1300, %v1420
  %v1422 = vlaneseq
  %v1423 = vshrl.u32 %v1422, 7
  %v1424 = vsub.s32 %v850, %v1423
  %v1425 = vrot.slane %v1303, %v1424
  %v1426 = vsel %vm855, %v1425, %v1421
  %v1427 = vlaneseq
  %v1428 = vshrl.u32 %v1427, 7
  %v1429 = vsub.s32 %v845, %v1428
  %v1430 = vrot.slane %v1306, %v1429
  %v1431 = vlaneseq
  %v1432 = vshrl.u32 %v1431, 7
  %v1433 = vsub.s32 %v850, %v1432
  %v1434 = vrot.slane %v1309, %v1433
  %v1435 = vsel %vm855, %v1434, %v1430
  %v1436 = vlaneseq
  %v1437 = vshrl.u32 %v1436, 7
  %v1438 = vsub.s32 %v845, %v1437
  %v1439 = vrot.slane %v1312, %v1438
  %v1440 = vlaneseq
  %v1441 = vshrl.u32 %v1440, 7
  %v1442 = vsub.s32 %v850, %v1441
  %v1443 = vrot.slane %v1315, %v1442
  %v1444 = vsel %vm855, %v1443, %v1439
  %v1445 = vlaneseq
  %v1446 = vshrl.u32 %v1445, 7
  %v1447 = vsub.s32 %v845, %v1446
  %v1448 = vrot.slane %v1318, %v1447
  %v1449 = vlaneseq
  %v1450 = vshrl.u32 %v1449, 7
  %v1451 = vsub.s32 %v850, %v1450
  %v1452 = vrot.slane %v1321, %v1451
  %v1453 = vsel %vm855, %v1452, %v1448
  %v1454 = vlaneseq
  %v1455 = vshrl.u32 %v1454, 7
  %v1456 = vsub.s32 %v845, %v1455
  %v1457 = vrot.slane %v1324, %v1456
  %v1458 = vlaneseq
  %v1459 = vshrl.u32 %v1458, 7
  %v1460 = vsub.s32 %v850, %v1459
  %v1461 = vrot.slane %v1327, %v1460
  %v1462 = vsel %vm855, %v1461, %v1457
  %v1463 = vlaneseq
  %v1464 = vshrl.u32 %v1463, 7
  %v1465 = vsub.s32 %v845, %v1464
  %v1466 = vrot.slane %v1330, %v1465
  %v1467 = vlaneseq
  %v1468 = vshrl.u32 %v1467, 7
  %v1469 = vsub.s32 %v850, %v1468
  %v1470 = vrot.slane %v1333, %v1469
  %v1471 = vsel %vm855, %v1470, %v1466
  %v1472 = vlaneseq
  %v1473 = vshrl.u32 %v1472, 7
  %v1474 = vsub.s32 %v845, %v1473
  %v1475 = vrot.slane %v1336, %v1474
  %v1476 = vlaneseq
  %v1477 = vshrl.u32 %v1476, 7
  %v1478 = vsub.s32 %v850, %v1477
  %v1479 = vrot.slane %v1339, %v1478
  %v1480 = vsel %vm855, %v1479, %v1475
  %v1481 = vlaneseq
  %v1482 = vshrl.u32 %v1481, 7
  %v1483 = vsub.s32 %v845, %v1482
  %v1484 = vrot.slane %v1342, %v1483
  %v1485 = vlaneseq
  %v1486 = vshrl.u32 %v1485, 7
  %v1487 = vsub.s32 %v850, %v1486
  %v1488 = vrot.slane %v1345, %v1487
  %v1489 = vsel %vm855, %v1488, %v1484
  %v1490 = vsel %vm992, %v1363, %v1354
  %v1491 = vsel %vm994, %v1372, %v1490
  %v1492 = vsel %vm996, %v1381, %v1491
  %v1493 = vsel %vm998, %v1390, %v1492
  %v1494 = vsel %vm1000, %v1399, %v1493
  %v1495 = vsel %vm1002, %v1408, %v1494
  %v1496 = vsel %vm1004, %v1417, %v1495
  %v1497 = vsel %vm992, %v1435, %v1426
  %v1498 = vsel %vm994, %v1444, %v1497
  %v1499 = vsel %vm996, %v1453, %v1498
  %v1500 = vsel %vm998, %v1462, %v1499
  %v1501 = vsel %vm1000, %v1471, %v1500
  %v1502 = vsel %vm1002, %v1480, %v1501
  %v1503 = vsel %vm1004, %v1489, %v1502
  %v1506 = vsel %vm1015, %v1496, 0.0
  %1507 = vadd.xlane.f32.xlu0 %v1506
  %v1508 = vpop.xlane.xlu0 %1507
  %v1509 = vsel %vm1015, %v1503, 0.0
  %1510 = vadd.xlane.f32.xlu0 %v1509
  %v1511 = vpop.xlane.xlu0 %1510
  %v1512 = vadd.f32 %v1216, %v1508
  %v1513 = vadd.f32 %v1217, %v1511
  %vm1514 = vcmask 7168
  %1515 = vst.msk [vmem:[#allocation3] sm:$0xff] %vm1514, %v1512
  %1516 = vst.msk [vmem:[#allocation3 + $0x8] sm:$0xff] %vm1514, %v1513
  %v1517 = vld [vmem:[#allocation4] sm:$0xff]
  %v1518 = vld [vmem:[#allocation4 + $0x8] sm:$0xff]
  %1520 = vset.pattern.permute.xlu0 0
  %1521 = vperm.xlu0 %1520, %v1027
  %v1522 = vpop.permute.xlu0 %1521
  %1525 = vset.pattern.permute.xlu0 0
  %1526 = vperm.xlu0 %1525, %v1029
  %v1527 = vpop.permute.xlu0 %1526
  %v1529 = vmul.f32 %v1522, %v1517
  %v1530 = vmul.f32 %v1527, %v1518
  %v1531 = vpack.c.bf16 %v1153, %v1151
  %v1532 = vpack.c.bf16 %v1157, %v1155
  %v1533 = vpack.c.bf16 %v1161, %v1159
  %v1534 = vpack.c.bf16 %v1165, %v1163
  %v1535 = vpack.c.bf16 %v1169, %v1167
  %v1536 = vpack.c.bf16 %v1173, %v1171
  %v1537 = vpack.c.bf16 %v1177, %v1175
  %v1538 = vpack.c.bf16 %v1181, %v1179
  %v1539 = vpack.c.bf16 %v1185, %v1183
  %v1540 = vpack.c.bf16 %v1189, %v1187
  %v1541 = vpack.c.bf16 %v1193, %v1191
  %v1542 = vpack.c.bf16 %v1197, %v1195
  %v1543 = vpack.c.bf16 %v1201, %v1199
  %v1544 = vpack.c.bf16 %v1205, %v1203
  %v1545 = vpack.c.bf16 %v1209, %v1207
  %v1546 = vpack.c.bf16 %v1213, %v1211
  %v1563 = vunpack.c.l.b16 %v1531
  %v1564 = vunpack.c.h.b16 %v1531
  %v1565 = vunpack.c.l.b16 %v1532
  %v1566 = vunpack.c.h.b16 %v1532
  %v1567 = vunpack.c.l.b16 %v1533
  %v1568 = vunpack.c.h.b16 %v1533
  %v1569 = vunpack.c.l.b16 %v1534
  %v1570 = vunpack.c.h.b16 %v1534
  %v1571 = vunpack.c.l.b16 %v1535
  %v1572 = vunpack.c.h.b16 %v1535
  %v1573 = vunpack.c.l.b16 %v1536
  %v1574 = vunpack.c.h.b16 %v1536
  %v1575 = vunpack.c.l.b16 %v1537
  %v1576 = vunpack.c.h.b16 %v1537
  %v1577 = vunpack.c.l.b16 %v1538
  %v1578 = vunpack.c.h.b16 %v1538
  %v1579 = vunpack.c.l.b16 %v1539
  %v1580 = vunpack.c.h.b16 %v1539
  %v1581 = vunpack.c.l.b16 %v1540
  %v1582 = vunpack.c.h.b16 %v1540
  %v1583 = vunpack.c.l.b16 %v1541
  %v1584 = vunpack.c.h.b16 %v1541
  %v1585 = vunpack.c.l.b16 %v1542
  %v1586 = vunpack.c.h.b16 %v1542
  %v1587 = vunpack.c.l.b16 %v1543
  %v1588 = vunpack.c.h.b16 %v1543
  %v1589 = vunpack.c.l.b16 %v1544
  %v1590 = vunpack.c.h.b16 %v1544
  %v1591 = vunpack.c.l.b16 %v1545
  %v1592 = vunpack.c.h.b16 %v1545
  %v1593 = vunpack.c.l.b16 %v1546
  %v1594 = vunpack.c.h.b16 %v1546
  %1595 = vset.pattern.permute.xlu0 0
  %1596 = vperm.xlu0 %1595, %v1563
  %v1597 = vpop.permute.xlu0 %1596
  %1598 = vset.pattern.permute.xlu0 0
  %1599 = vperm.xlu0 %1598, %v1564
  %v1600 = vpop.permute.xlu0 %1599
  %1601 = vset.pattern.permute.xlu0 0
  %1602 = vperm.xlu0 %1601, %v1565
  %v1603 = vpop.permute.xlu0 %1602
  %1604 = vset.pattern.permute.xlu0 0
  %1605 = vperm.xlu0 %1604, %v1566
  %v1606 = vpop.permute.xlu0 %1605
  %1607 = vset.pattern.permute.xlu0 0
  %1608 = vperm.xlu0 %1607, %v1567
  %v1609 = vpop.permute.xlu0 %1608
  %1610 = vset.pattern.permute.xlu0 0
  %1611 = vperm.xlu0 %1610, %v1568
  %v1612 = vpop.permute.xlu0 %1611
  %1613 = vset.pattern.permute.xlu0 0
  %1614 = vperm.xlu0 %1613, %v1569
  %v1615 = vpop.permute.xlu0 %1614
  %1616 = vset.pattern.permute.xlu0 0
  %1617 = vperm.xlu0 %1616, %v1570
  %v1618 = vpop.permute.xlu0 %1617
  %1619 = vset.pattern.permute.xlu0 0
  %1620 = vperm.xlu0 %1619, %v1571
  %v1621 = vpop.permute.xlu0 %1620
  %1622 = vset.pattern.permute.xlu0 0
  %1623 = vperm.xlu0 %1622, %v1572
  %v1624 = vpop.permute.xlu0 %1623
  %1625 = vset.pattern.permute.xlu0 0
  %1626 = vperm.xlu0 %1625, %v1573
  %v1627 = vpop.permute.xlu0 %1626
  %1628 = vset.pattern.permute.xlu0 0
  %1629 = vperm.xlu0 %1628, %v1574
  %v1630 = vpop.permute.xlu0 %1629
  %1631 = vset.pattern.permute.xlu0 0
  %1632 = vperm.xlu0 %1631, %v1575
  %v1633 = vpop.permute.xlu0 %1632
  %1634 = vset.pattern.permute.xlu0 0
  %1635 = vperm.xlu0 %1634, %v1576
  %v1636 = vpop.permute.xlu0 %1635
  %1637 = vset.pattern.permute.xlu0 0
  %1638 = vperm.xlu0 %1637, %v1577
  %v1639 = vpop.permute.xlu0 %1638
  %1640 = vset.pattern.permute.xlu0 0
  %1641 = vperm.xlu0 %1640, %v1578
  %v1642 = vpop.permute.xlu0 %1641
  %1643 = vset.pattern.permute.xlu0 0
  %1644 = vperm.xlu0 %1643, %v1579
  %v1645 = vpop.permute.xlu0 %1644
  %1646 = vset.pattern.permute.xlu0 0
  %1647 = vperm.xlu0 %1646, %v1580
  %v1648 = vpop.permute.xlu0 %1647
  %1649 = vset.pattern.permute.xlu0 0
  %1650 = vperm.xlu0 %1649, %v1581
  %v1651 = vpop.permute.xlu0 %1650
  %1652 = vset.pattern.permute.xlu0 0
  %1653 = vperm.xlu0 %1652, %v1582
  %v1654 = vpop.permute.xlu0 %1653
  %1655 = vset.pattern.permute.xlu0 0
  %1656 = vperm.xlu0 %1655, %v1583
  %v1657 = vpop.permute.xlu0 %1656
  %1658 = vset.pattern.permute.xlu0 0
  %1659 = vperm.xlu0 %1658, %v1584
  %v1660 = vpop.permute.xlu0 %1659
  %1661 = vset.pattern.permute.xlu0 0
  %1662 = vperm.xlu0 %1661, %v1585
  %v1663 = vpop.permute.xlu0 %1662
  %1664 = vset.pattern.permute.xlu0 0
  %1665 = vperm.xlu0 %1664, %v1586
  %v1666 = vpop.permute.xlu0 %1665
  %1667 = vset.pattern.permute.xlu0 0
  %1668 = vperm.xlu0 %1667, %v1587
  %v1669 = vpop.permute.xlu0 %1668
  %1670 = vset.pattern.permute.xlu0 0
  %1671 = vperm.xlu0 %1670, %v1588
  %v1672 = vpop.permute.xlu0 %1671
  %1673 = vset.pattern.permute.xlu0 0
  %1674 = vperm.xlu0 %1673, %v1589
  %v1675 = vpop.permute.xlu0 %1674
  %1676 = vset.pattern.permute.xlu0 0
  %1677 = vperm.xlu0 %1676, %v1590
  %v1678 = vpop.permute.xlu0 %1677
  %1679 = vset.pattern.permute.xlu0 0
  %1680 = vperm.xlu0 %1679, %v1591
  %v1681 = vpop.permute.xlu0 %1680
  %1682 = vset.pattern.permute.xlu0 0
  %1683 = vperm.xlu0 %1682, %v1592
  %v1684 = vpop.permute.xlu0 %1683
  %1685 = vset.pattern.permute.xlu0 0
  %1686 = vperm.xlu0 %1685, %v1593
  %v1687 = vpop.permute.xlu0 %1686
  %1688 = vset.pattern.permute.xlu0 0
  %1689 = vperm.xlu0 %1688, %v1594
  %v1690 = vpop.permute.xlu0 %1689
  %v1691 = vlaneseq
  %v1692 = vshrl.u32 %v1691, 7
  %v1693 = vsub.s32 %v845, %v1692
  %v1694 = vrot.slane %v1597, %v1693
  %v1695 = vlaneseq
  %v1696 = vshrl.u32 %v1695, 7
  %v1697 = vsub.s32 %v850, %v1696
  %v1698 = vrot.slane %v1600, %v1697
  %v1699 = vsel %vm855, %v1698, %v1694
  %v1700 = vlaneseq
  %v1701 = vshrl.u32 %v1700, 7
  %v1702 = vsub.s32 %v845, %v1701
  %v1703 = vrot.slane %v1603, %v1702
  %v1704 = vlaneseq
  %v1705 = vshrl.u32 %v1704, 7
  %v1706 = vsub.s32 %v850, %v1705
  %v1707 = vrot.slane %v1606, %v1706
  %v1708 = vsel %vm855, %v1707, %v1703
  %v1709 = vlaneseq
  %v1710 = vshrl.u32 %v1709, 7
  %v1711 = vsub.s32 %v845, %v1710
  %v1712 = vrot.slane %v1609, %v1711
  %v1713 = vlaneseq
  %v1714 = vshrl.u32 %v1713, 7
  %v1715 = vsub.s32 %v850, %v1714
  %v1716 = vrot.slane %v1612, %v1715
  %v1717 = vsel %vm855, %v1716, %v1712
  %v1718 = vlaneseq
  %v1719 = vshrl.u32 %v1718, 7
  %v1720 = vsub.s32 %v845, %v1719
  %v1721 = vrot.slane %v1615, %v1720
  %v1722 = vlaneseq
  %v1723 = vshrl.u32 %v1722, 7
  %v1724 = vsub.s32 %v850, %v1723
  %v1725 = vrot.slane %v1618, %v1724
  %v1726 = vsel %vm855, %v1725, %v1721
  %v1727 = vlaneseq
  %v1728 = vshrl.u32 %v1727, 7
  %v1729 = vsub.s32 %v845, %v1728
  %v1730 = vrot.slane %v1621, %v1729
  %v1731 = vlaneseq
  %v1732 = vshrl.u32 %v1731, 7
  %v1733 = vsub.s32 %v850, %v1732
  %v1734 = vrot.slane %v1624, %v1733
  %v1735 = vsel %vm855, %v1734, %v1730
  %v1736 = vlaneseq
  %v1737 = vshrl.u32 %v1736, 7
  %v1738 = vsub.s32 %v845, %v1737
  %v1739 = vrot.slane %v1627, %v1738
  %v1740 = vlaneseq
  %v1741 = vshrl.u32 %v1740, 7
  %v1742 = vsub.s32 %v850, %v1741
  %v1743 = vrot.slane %v1630, %v1742
  %v1744 = vsel %vm855, %v1743, %v1739
  %v1745 = vlaneseq
  %v1746 = vshrl.u32 %v1745, 7
  %v1747 = vsub.s32 %v845, %v1746
  %v1748 = vrot.slane %v1633, %v1747
  %v1749 = vlaneseq
  %v1750 = vshrl.u32 %v1749, 7
  %v1751 = vsub.s32 %v850, %v1750
  %v1752 = vrot.slane %v1636, %v1751
  %v1753 = vsel %vm855, %v1752, %v1748
  %v1754 = vlaneseq
  %v1755 = vshrl.u32 %v1754, 7
  %v1756 = vsub.s32 %v845, %v1755
  %v1757 = vrot.slane %v1639, %v1756
  %v1758 = vlaneseq
  %v1759 = vshrl.u32 %v1758, 7
  %v1760 = vsub.s32 %v850, %v1759
  %v1761 = vrot.slane %v1642, %v1760
  %v1762 = vsel %vm855, %v1761, %v1757
  %v1763 = vlaneseq
  %v1764 = vshrl.u32 %v1763, 7
  %v1765 = vsub.s32 %v845, %v1764
  %v1766 = vrot.slane %v1645, %v1765
  %v1767 = vlaneseq
  %v1768 = vshrl.u32 %v1767, 7
  %v1769 = vsub.s32 %v850, %v1768
  %v1770 = vrot.slane %v1648, %v1769
  %v1771 = vsel %vm855, %v1770, %v1766
  %v1772 = vlaneseq
  %v1773 = vshrl.u32 %v1772, 7
  %v1774 = vsub.s32 %v845, %v1773
  %v1775 = vrot.slane %v1651, %v1774
  %v1776 = vlaneseq
  %v1777 = vshrl.u32 %v1776, 7
  %v1778 = vsub.s32 %v850, %v1777
  %v1779 = vrot.slane %v1654, %v1778
  %v1780 = vsel %vm855, %v1779, %v1775
  %v1781 = vlaneseq
  %v1782 = vshrl.u32 %v1781, 7
  %v1783 = vsub.s32 %v845, %v1782
  %v1784 = vrot.slane %v1657, %v1783
  %v1785 = vlaneseq
  %v1786 = vshrl.u32 %v1785, 7
  %v1787 = vsub.s32 %v850, %v1786
  %v1788 = vrot.slane %v1660, %v1787
  %v1789 = vsel %vm855, %v1788, %v1784
  %v1790 = vlaneseq
  %v1791 = vshrl.u32 %v1790, 7
  %v1792 = vsub.s32 %v845, %v1791
  %v1793 = vrot.slane %v1663, %v1792
  %v1794 = vlaneseq
  %v1795 = vshrl.u32 %v1794, 7
  %v1796 = vsub.s32 %v850, %v1795
  %v1797 = vrot.slane %v1666, %v1796
  %v1798 = vsel %vm855, %v1797, %v1793
  %v1799 = vlaneseq
  %v1800 = vshrl.u32 %v1799, 7
  %v1801 = vsub.s32 %v845, %v1800
  %v1802 = vrot.slane %v1669, %v1801
  %v1803 = vlaneseq
  %v1804 = vshrl.u32 %v1803, 7
  %v1805 = vsub.s32 %v850, %v1804
  %v1806 = vrot.slane %v1672, %v1805
  %v1807 = vsel %vm855, %v1806, %v1802
  %v1808 = vlaneseq
  %v1809 = vshrl.u32 %v1808, 7
  %v1810 = vsub.s32 %v845, %v1809
  %v1811 = vrot.slane %v1675, %v1810
  %v1812 = vlaneseq
  %v1813 = vshrl.u32 %v1812, 7
  %v1814 = vsub.s32 %v850, %v1813
  %v1815 = vrot.slane %v1678, %v1814
  %v1816 = vsel %vm855, %v1815, %v1811
  %v1817 = vlaneseq
  %v1818 = vshrl.u32 %v1817, 7
  %v1819 = vsub.s32 %v845, %v1818
  %v1820 = vrot.slane %v1681, %v1819
  %v1821 = vlaneseq
  %v1822 = vshrl.u32 %v1821, 7
  %v1823 = vsub.s32 %v850, %v1822
  %v1824 = vrot.slane %v1684, %v1823
  %v1825 = vsel %vm855, %v1824, %v1820
  %v1826 = vlaneseq
  %v1827 = vshrl.u32 %v1826, 7
  %v1828 = vsub.s32 %v845, %v1827
  %v1829 = vrot.slane %v1687, %v1828
  %v1830 = vlaneseq
  %v1831 = vshrl.u32 %v1830, 7
  %v1832 = vsub.s32 %v850, %v1831
  %v1833 = vrot.slane %v1690, %v1832
  %v1834 = vsel %vm855, %v1833, %v1829
  %v1835 = vsel %vm992, %v1708, %v1699
  %v1836 = vsel %vm994, %v1717, %v1835
  %v1837 = vsel %vm996, %v1726, %v1836
  %v1838 = vsel %vm998, %v1735, %v1837
  %v1839 = vsel %vm1000, %v1744, %v1838
  %v1840 = vsel %vm1002, %v1753, %v1839
  %v1841 = vsel %vm1004, %v1762, %v1840
  %v1842 = vsel %vm992, %v1780, %v1771
  %v1843 = vsel %vm994, %v1789, %v1842
  %v1844 = vsel %vm996, %v1798, %v1843
  %v1845 = vsel %vm998, %v1807, %v1844
  %v1846 = vsel %vm1000, %v1816, %v1845
  %v1847 = vsel %vm1002, %v1825, %v1846
  %v1848 = vsel %vm1004, %v1834, %v1847
  %v1849 = vpack.c.b16 %v1848, %v1841
  %v1851 = vsel %vm1015, %v1849, 0
  %1853 = vmatprep.subr.bf16.mxu0 0
  %1854 = vmatpush1.bf16.msra.mxu0 0
  %1855 = vmatprep.subr.bf16.mxu0 0
  %1856 = vmatpush1.bf16.msra.mxu0 0
  %1857 = vmatprep.subr.bf16.mxu0 0
  %1858 = vmatpush1.bf16.msra.mxu0 0
  %1859 = vmatprep.subr.bf16.mxu0 0
  %1860 = vmatpush1.bf16.msra.mxu0 0
  %1861 = vmatprep.subr.bf16.mxu0 0
  %1862 = vmatpush1.bf16.msra.mxu0 0
  %1863 = vmatprep.subr.bf16.mxu0 0
  %1864 = vmatpush1.bf16.msra.mxu0 0
  %1865 = vmatprep.subr.bf16.mxu0 0
  %1866 = vmatpush1.bf16.msra.mxu0 0
  %1867 = vmatprep.subr.bf16.mxu0 0
  %1868 = vmatpush1.bf16.msra.mxu0 %v57
  %1869 = vmatprep.subr.bf16.mxu0 0
  %1870 = vmatpush2.bf16.msra.mxu0 0
  %1871 = vmatprep.subr.bf16.mxu0 0
  %1872 = vmatpush2.bf16.msra.mxu0 0
  %1873 = vmatprep.subr.bf16.mxu0 0
  %1874 = vmatpush2.bf16.msra.mxu0 0
  %1875 = vmatprep.subr.bf16.mxu0 0
  %1876 = vmatpush2.bf16.msra.mxu0 0
  %1877 = vmatprep.subr.bf16.mxu0 0
  %1878 = vmatpush2.bf16.msra.mxu0 0
  %1879 = vmatprep.subr.bf16.mxu0 0
  %1880 = vmatpush2.bf16.msra.mxu0 0
  %1881 = vmatprep.subr.bf16.mxu0 0
  %1882 = vmatpush2.bf16.msra.mxu0 0
  %1883 = vmatprep.subr.bf16.mxu0 0
  %1884 = vmatpush2.bf16.msra.mxu0 0
  %1885 = vmatprep.mubr.bf16.mxu0 0
  %1886 = vmatmul.mubr.bf16.gmra.mxu0 %v1851
  %v1887 = vpop.f32.mrf.mxu0
  %v1888 = vadd.f32 0.0, %v1887
  %v1889 = vpop.f32.mrf.mxu0
  %v1890 = vpop.f32.mrf.mxu0
  %v1891 = vadd.f32 0.0, %v1890
  %v1892 = vpop.f32.mrf.mxu0
  %1893 = vdwg.mxu0
  %v1894 = vadd.f32 %v1529, %v1888
  %v1895 = vadd.f32 %v1530, %v1891
  %1896 = vst.msk [vmem:[#allocation4] sm:$0xff] %vm375, %v1894
  %1897 = vst.msk [vmem:[#allocation4 + $0x8] sm:$0xff] %vm375, %v1895
  %1898 = vst.msk [vmem:[#allocation2] sm:$0xff] %vm1514, %v1022
  %1899 = vst.msk [vmem:[#allocation2 + $0x8] sm:$0xff] %vm1514, %v1023
  %v1900 = vld [vmem:[%s1] sm:$0xff]
  %v1901 = vld [vmem:[%s1 + $0x10] sm:$0xff]
  %v1902 = vld [vmem:[%s0 + $0x8] sm:$0xff]
  %v1903 = vld [vmem:[%s0 + $0x18] sm:$0xff]
  %s1904 = scalar_lea.vmem %s2, 1
  %v1905 = vld [vmem:[%s1904] sm:$0x1]
  %v1908 = vcombine.high %v1902, %v1902
  %v1910 = vunpack.c.l.s4 1966171168
  %v1911 = vunpack.c.0.s8 %v1910
  %v1912 = vlaneseq
  %v1913 = vshrl.u32 %v1912, 7
  %v1914 = vsub.s32 %v1911, %v1913
  %v1915 = vrot.slane %v1902, %v1914
  %v1917 = vunpack.c.l.s4 1966171168
  %v1918 = vunpack.c.0.s8 %v1917
  %v1919 = vlaneseq
  %v1920 = vshrl.u32 %v1919, 7
  %v1921 = vsub.s32 %v1918, %v1920
  %v1922 = vrot.slane %v1908, %v1921
  %v1923 = vcombine.high %v1915, %v1915
  %v1924 = vcombine.high %v1922, %v1922
  %v1926 = vunpack.c.l.s4 1966171168
  %v1927 = vunpack.c.0.s8 %v1926
  %v1928 = vlaneseq
  %v1929 = vshrl.u32 %v1928, 7
  %v1930 = vsub.s32 %v1927, %v1929
  %v1931 = vrot.slane %v1915, %v1930
  %v1933 = vunpack.c.l.s4 1966171168
  %v1934 = vunpack.c.0.s8 %v1933
  %v1935 = vlaneseq
  %v1936 = vshrl.u32 %v1935, 7
  %v1937 = vsub.s32 %v1934, %v1936
  %v1938 = vrot.slane %v1922, %v1937
  %v1940 = vunpack.c.l.s4 1966171168
  %v1941 = vunpack.c.0.s8 %v1940
  %v1942 = vlaneseq
  %v1943 = vshrl.u32 %v1942, 7
  %v1944 = vsub.s32 %v1941, %v1943
  %v1945 = vrot.slane %v1923, %v1944
  %v1947 = vunpack.c.l.s4 1966171168
  %v1948 = vunpack.c.0.s8 %v1947
  %v1949 = vlaneseq
  %v1950 = vshrl.u32 %v1949, 7
  %v1951 = vsub.s32 %v1948, %v1950
  %v1952 = vrot.slane %v1924, %v1951
  %v1953 = vcombine.high %v1931, %v1931
  %v1954 = vcombine.high %v1938, %v1938
  %v1955 = vcombine.high %v1945, %v1945
  %v1956 = vcombine.high %v1952, %v1952
  %v1957 = vcombine.high %v1903, %v1903
  %v1959 = vunpack.c.l.s4 1966171168
  %v1960 = vunpack.c.0.s8 %v1959
  %v1961 = vlaneseq
  %v1962 = vshrl.u32 %v1961, 7
  %v1963 = vsub.s32 %v1960, %v1962
  %v1964 = vrot.slane %v1903, %v1963
  %v1966 = vunpack.c.l.s4 1966171168
  %v1967 = vunpack.c.0.s8 %v1966
  %v1968 = vlaneseq
  %v1969 = vshrl.u32 %v1968, 7
  %v1970 = vsub.s32 %v1967, %v1969
  %v1971 = vrot.slane %v1957, %v1970
  %v1972 = vcombine.high %v1964, %v1964
  %v1973 = vcombine.high %v1971, %v1971
  %v1975 = vunpack.c.l.s4 1966171168
  %v1976 = vunpack.c.0.s8 %v1975
  %v1977 = vlaneseq
  %v1978 = vshrl.u32 %v1977, 7
  %v1979 = vsub.s32 %v1976, %v1978
  %v1980 = vrot.slane %v1964, %v1979
  %v1982 = vunpack.c.l.s4 1966171168
  %v1983 = vunpack.c.0.s8 %v1982
  %v1984 = vlaneseq
  %v1985 = vshrl.u32 %v1984, 7
  %v1986 = vsub.s32 %v1983, %v1985
  %v1987 = vrot.slane %v1971, %v1986
  %v1989 = vunpack.c.l.s4 1966171168
  %v1990 = vunpack.c.0.s8 %v1989
  %v1991 = vlaneseq
  %v1992 = vshrl.u32 %v1991, 7
  %v1993 = vsub.s32 %v1990, %v1992
  %v1994 = vrot.slane %v1972, %v1993
  %v1996 = vunpack.c.l.s4 1966171168
  %v1997 = vunpack.c.0.s8 %v1996
  %v1998 = vlaneseq
  %v1999 = vshrl.u32 %v1998, 7
  %v2000 = vsub.s32 %v1997, %v1999
  %v2001 = vrot.slane %v1973, %v2000
  %v2002 = vcombine.high %v1980, %v1980
  %v2003 = vcombine.high %v1987, %v1987
  %v2004 = vcombine.high %v1994, %v1994
  %v2005 = vcombine.high %v2001, %v2001
  %v2006 = vlaneseq
  %v2007 = vshrl.u32 %v2006, 7
  %v2008 = vsub.s32 0, %v2007
  %v2009 = vrot.slane %v1931, %v2008
  %v2010 = vlaneseq
  %v2011 = vshrl.u32 %v2010, 7
  %v2012 = vsub.s32 0, %v2011
  %v2013 = vrot.slane %v1945, %v2012
  %v2014 = vlaneseq
  %v2015 = vshrl.u32 %v2014, 7
  %v2016 = vsub.s32 0, %v2015
  %v2017 = vrot.slane %v1953, %v2016
  %v2018 = vlaneseq
  %v2019 = vshrl.u32 %v2018, 7
  %v2020 = vsub.s32 0, %v2019
  %v2021 = vrot.slane %v1955, %v2020
  %v2022 = vlaneseq
  %v2023 = vshrl.u32 %v2022, 7
  %v2024 = vsub.s32 0, %v2023
  %v2025 = vrot.slane %v1938, %v2024
  %v2026 = vlaneseq
  %v2027 = vshrl.u32 %v2026, 7
  %v2028 = vsub.s32 0, %v2027
  %v2029 = vrot.slane %v1952, %v2028
  %v2030 = vlaneseq
  %v2031 = vshrl.u32 %v2030, 7
  %v2032 = vsub.s32 0, %v2031
  %v2033 = vrot.slane %v1954, %v2032
  %v2034 = vlaneseq
  %v2035 = vshrl.u32 %v2034, 7
  %v2036 = vsub.s32 0, %v2035
  %v2037 = vrot.slane %v1956, %v2036
  %v2038 = vlaneseq
  %v2039 = vshrl.u32 %v2038, 7
  %v2040 = vsub.s32 0, %v2039
  %v2041 = vrot.slane %v1980, %v2040
  %v2042 = vlaneseq
  %v2043 = vshrl.u32 %v2042, 7
  %v2044 = vsub.s32 0, %v2043
  %v2045 = vrot.slane %v1994, %v2044
  %v2046 = vlaneseq
  %v2047 = vshrl.u32 %v2046, 7
  %v2048 = vsub.s32 0, %v2047
  %v2049 = vrot.slane %v2002, %v2048
  %v2050 = vlaneseq
  %v2051 = vshrl.u32 %v2050, 7
  %v2052 = vsub.s32 0, %v2051
  %v2053 = vrot.slane %v2004, %v2052
  %v2054 = vlaneseq
  %v2055 = vshrl.u32 %v2054, 7
  %v2056 = vsub.s32 0, %v2055
  %v2057 = vrot.slane %v1987, %v2056
  %v2058 = vlaneseq
  %v2059 = vshrl.u32 %v2058, 7
  %v2060 = vsub.s32 0, %v2059
  %v2061 = vrot.slane %v2001, %v2060
  %v2062 = vlaneseq
  %v2063 = vshrl.u32 %v2062, 7
  %v2064 = vsub.s32 0, %v2063
  %v2065 = vrot.slane %v2003, %v2064
  %v2066 = vlaneseq
  %v2067 = vshrl.u32 %v2066, 7
  %v2068 = vsub.s32 0, %v2067
  %v2069 = vrot.slane %v2005, %v2068
  %v2086 = vadd.f32 %v2009, %v1900
  %v2087 = vadd.f32 %v2009, %v1901
  %v2088 = vadd.f32 %v2013, %v1900
  %v2089 = vadd.f32 %v2013, %v1901
  %v2090 = vadd.f32 %v2017, %v1900
  %v2091 = vadd.f32 %v2017, %v1901
  %v2092 = vadd.f32 %v2021, %v1900
  %v2093 = vadd.f32 %v2021, %v1901
  %v2094 = vadd.f32 %v2025, %v1900
  %v2095 = vadd.f32 %v2025, %v1901
  %v2096 = vadd.f32 %v2029, %v1900
  %v2097 = vadd.f32 %v2029, %v1901
  %v2098 = vadd.f32 %v2033, %v1900
  %v2099 = vadd.f32 %v2033, %v1901
  %v2100 = vadd.f32 %v2037, %v1900
  %v2101 = vadd.f32 %v2037, %v1901
  %v2102 = vadd.f32 %v2041, %v1900
  %v2103 = vadd.f32 %v2041, %v1901
  %v2104 = vadd.f32 %v2045, %v1900
  %v2105 = vadd.f32 %v2045, %v1901
  %v2106 = vadd.f32 %v2049, %v1900
  %v2107 = vadd.f32 %v2049, %v1901
  %v2108 = vadd.f32 %v2053, %v1900
  %v2109 = vadd.f32 %v2053, %v1901
  %v2110 = vadd.f32 %v2057, %v1900
  %v2111 = vadd.f32 %v2057, %v1901
  %v2112 = vadd.f32 %v2061, %v1900
  %v2113 = vadd.f32 %v2061, %v1901
  %v2114 = vadd.f32 %v2065, %v1900
  %v2115 = vadd.f32 %v2065, %v1901
  %v2116 = vadd.f32 %v2069, %v1900
  %v2117 = vadd.f32 %v2069, %v1901
  %v2118 = vmul.f32 %v2086, 0.2
  %v2119 = vmul.f32 %v2087, 0.2
  %v2120 = vmul.f32 %v2088, 0.2
  %v2121 = vmul.f32 %v2089, 0.2
  %v2122 = vmul.f32 %v2090, 0.2
  %v2123 = vmul.f32 %v2091, 0.2
  %v2124 = vmul.f32 %v2092, 0.2
  %v2125 = vmul.f32 %v2093, 0.2
  %v2126 = vmul.f32 %v2094, 0.2
  %v2127 = vmul.f32 %v2095, 0.2
  %v2128 = vmul.f32 %v2096, 0.2
  %v2129 = vmul.f32 %v2097, 0.2
  %v2130 = vmul.f32 %v2098, 0.2
  %v2131 = vmul.f32 %v2099, 0.2
  %v2132 = vmul.f32 %v2100, 0.2
  %v2133 = vmul.f32 %v2101, 0.2
  %v2134 = vmul.f32 %v2102, 0.2
  %v2135 = vmul.f32 %v2103, 0.2
  %v2136 = vmul.f32 %v2104, 0.2
  %v2137 = vmul.f32 %v2105, 0.2
  %v2138 = vmul.f32 %v2106, 0.2
  %v2139 = vmul.f32 %v2107, 0.2
  %v2140 = vmul.f32 %v2108, 0.2
  %v2141 = vmul.f32 %v2109, 0.2
  %v2142 = vmul.f32 %v2110, 0.2
  %v2143 = vmul.f32 %v2111, 0.2
  %v2144 = vmul.f32 %v2112, 0.2
  %v2145 = vmul.f32 %v2113, 0.2
  %v2146 = vmul.f32 %v2114, 0.2
  %v2147 = vmul.f32 %v2115, 0.2
  %v2148 = vmul.f32 %v2116, 0.2
  %v2149 = vmul.f32 %v2117, 0.2
  %v2150 = vmax.f32 %v2086, %v2118
  %v2151 = vmax.f32 %v2087, %v2119
  %v2152 = vmax.f32 %v2088, %v2120
  %v2153 = vmax.f32 %v2089, %v2121
  %v2154 = vmax.f32 %v2090, %v2122
  %v2155 = vmax.f32 %v2091, %v2123
  %v2156 = vmax.f32 %v2092, %v2124
  %v2157 = vmax.f32 %v2093, %v2125
  %v2158 = vmax.f32 %v2094, %v2126
  %v2159 = vmax.f32 %v2095, %v2127
  %v2160 = vmax.f32 %v2096, %v2128
  %v2161 = vmax.f32 %v2097, %v2129
  %v2162 = vmax.f32 %v2098, %v2130
  %v2163 = vmax.f32 %v2099, %v2131
  %v2164 = vmax.f32 %v2100, %v2132
  %v2165 = vmax.f32 %v2101, %v2133
  %v2166 = vmax.f32 %v2102, %v2134
  %v2167 = vmax.f32 %v2103, %v2135
  %v2168 = vmax.f32 %v2104, %v2136
  %v2169 = vmax.f32 %v2105, %v2137
  %v2170 = vmax.f32 %v2106, %v2138
  %v2171 = vmax.f32 %v2107, %v2139
  %v2172 = vmax.f32 %v2108, %v2140
  %v2173 = vmax.f32 %v2109, %v2141
  %v2174 = vmax.f32 %v2110, %v2142
  %v2175 = vmax.f32 %v2111, %v2143
  %v2176 = vmax.f32 %v2112, %v2144
  %v2177 = vmax.f32 %v2113, %v2145
  %v2178 = vmax.f32 %v2114, %v2146
  %v2179 = vmax.f32 %v2115, %v2147
  %v2180 = vmax.f32 %v2116, %v2148
  %v2181 = vmax.f32 %v2117, %v2149
  %v2183 = vlaneseq
  %v2184 = vshrl.u32 %v2183, 7
  %v2185 = vsub.s32 0, %v2184
  %v2186 = vrot.slane %v1905, %v2185
  %2187 = vrot.lane.b32.xlu0 %v2186, 32
  %v2188 = vpop.permute.xlu0 %2187
  %v2190 = vmul.f32 %v2150, %v2188
  %v2191 = vmul.f32 %v2151, %v2188
  %v2192 = vmul.f32 %v2152, %v2188
  %v2193 = vmul.f32 %v2153, %v2188
  %v2194 = vmul.f32 %v2154, %v2188
  %v2195 = vmul.f32 %v2155, %v2188
  %v2196 = vmul.f32 %v2156, %v2188
  %v2197 = vmul.f32 %v2157, %v2188
  %v2198 = vmul.f32 %v2158, %v2188
  %v2199 = vmul.f32 %v2159, %v2188
  %v2200 = vmul.f32 %v2160, %v2188
  %v2201 = vmul.f32 %v2161, %v2188
  %v2202 = vmul.f32 %v2162, %v2188
  %v2203 = vmul.f32 %v2163, %v2188
  %v2204 = vmul.f32 %v2164, %v2188
  %v2205 = vmul.f32 %v2165, %v2188
  %v2206 = vmul.f32 %v2166, %v2188
  %v2207 = vmul.f32 %v2167, %v2188
  %v2208 = vmul.f32 %v2168, %v2188
  %v2209 = vmul.f32 %v2169, %v2188
  %v2210 = vmul.f32 %v2170, %v2188
  %v2211 = vmul.f32 %v2171, %v2188
  %v2212 = vmul.f32 %v2172, %v2188
  %v2213 = vmul.f32 %v2173, %v2188
  %v2214 = vmul.f32 %v2174, %v2188
  %v2215 = vmul.f32 %v2175, %v2188
  %v2216 = vmul.f32 %v2176, %v2188
  %v2217 = vmul.f32 %v2177, %v2188
  %v2218 = vmul.f32 %v2178, %v2188
  %v2219 = vmul.f32 %v2179, %v2188
  %v2220 = vmul.f32 %v2180, %v2188
  %v2221 = vmul.f32 %v2181, %v2188
  %2254 = vrot.lane.b32.xlu0 %v2190, 96
  %v2255 = vpop.permute.xlu0 %2254
  %2256 = vrot.lane.b32.xlu0 %v2191, 96
  %v2257 = vpop.permute.xlu0 %2256
  %2258 = vrot.lane.b32.xlu0 %v2192, 96
  %v2259 = vpop.permute.xlu0 %2258
  %2260 = vrot.lane.b32.xlu0 %v2193, 96
  %v2261 = vpop.permute.xlu0 %2260
  %2262 = vrot.lane.b32.xlu0 %v2194, 96
  %v2263 = vpop.permute.xlu0 %2262
  %2264 = vrot.lane.b32.xlu0 %v2195, 96
  %v2265 = vpop.permute.xlu0 %2264
  %2266 = vrot.lane.b32.xlu0 %v2196, 96
  %v2267 = vpop.permute.xlu0 %2266
  %2268 = vrot.lane.b32.xlu0 %v2197, 96
  %v2269 = vpop.permute.xlu0 %2268
  %2270 = vrot.lane.b32.xlu0 %v2198, 96
  %v2271 = vpop.permute.xlu0 %2270
  %2272 = vrot.lane.b32.xlu0 %v2199, 96
  %v2273 = vpop.permute.xlu0 %2272
  %2274 = vrot.lane.b32.xlu0 %v2200, 96
  %v2275 = vpop.permute.xlu0 %2274
  %2276 = vrot.lane.b32.xlu0 %v2201, 96
  %v2277 = vpop.permute.xlu0 %2276
  %2278 = vrot.lane.b32.xlu0 %v2202, 96
  %v2279 = vpop.permute.xlu0 %2278
  %2280 = vrot.lane.b32.xlu0 %v2203, 96
  %v2281 = vpop.permute.xlu0 %2280
  %2282 = vrot.lane.b32.xlu0 %v2204, 96
  %v2283 = vpop.permute.xlu0 %2282
  %2284 = vrot.lane.b32.xlu0 %v2205, 96
  %v2285 = vpop.permute.xlu0 %2284
  %2286 = vrot.lane.b32.xlu0 %v2206, 96
  %v2287 = vpop.permute.xlu0 %2286
  %2288 = vrot.lane.b32.xlu0 %v2207, 96
  %v2289 = vpop.permute.xlu0 %2288
  %2290 = vrot.lane.b32.xlu0 %v2208, 96
  %v2291 = vpop.permute.xlu0 %2290
  %2292 = vrot.lane.b32.xlu0 %v2209, 96
  %v2293 = vpop.permute.xlu0 %2292
  %2294 = vrot.lane.b32.xlu0 %v2210, 96
  %v2295 = vpop.permute.xlu0 %2294
  %2296 = vrot.lane.b32.xlu0 %v2211, 96
  %v2297 = vpop.permute.xlu0 %2296
  %2298 = vrot.lane.b32.xlu0 %v2212, 96
  %v2299 = vpop.permute.xlu0 %2298
  %2300 = vrot.lane.b32.xlu0 %v2213, 96
  %v2301 = vpop.permute.xlu0 %2300
  %2302 = vrot.lane.b32.xlu0 %v2214, 96
  %v2303 = vpop.permute.xlu0 %2302
  %2304 = vrot.lane.b32.xlu0 %v2215, 96
  %v2305 = vpop.permute.xlu0 %2304
  %2306 = vrot.lane.b32.xlu0 %v2216, 96
  %v2307 = vpop.permute.xlu0 %2306
  %2308 = vrot.lane.b32.xlu0 %v2217, 96
  %v2309 = vpop.permute.xlu0 %2308
  %2310 = vrot.lane.b32.xlu0 %v2218, 96
  %v2311 = vpop.permute.xlu0 %2310
  %2312 = vrot.lane.b32.xlu0 %v2219, 96
  %v2313 = vpop.permute.xlu0 %2312
  %2314 = vrot.lane.b32.xlu0 %v2220, 96
  %v2315 = vpop.permute.xlu0 %2314
  %2316 = vrot.lane.b32.xlu0 %v2221, 96
  %v2317 = vpop.permute.xlu0 %2316
  %v2350 = vsel %vm375, %v2255, 0.0
  %2351 = vadd.xlane.f32.xlu0 %v2350
  %v2352 = vpop.xlane.xlu0 %2351
  %v2353 = vsel %vm375, %v2257, 0.0
  %2354 = vadd.xlane.f32.xlu0 %v2353
  %v2355 = vpop.xlane.xlu0 %2354
  %v2356 = vsel %vm375, %v2259, 0.0
  %2357 = vadd.xlane.f32.xlu0 %v2356
  %v2358 = vpop.xlane.xlu0 %2357
  %v2359 = vsel %vm375, %v2261, 0.0
  %2360 = vadd.xlane.f32.xlu0 %v2359
  %v2361 = vpop.xlane.xlu0 %2360
  %v2362 = vsel %vm375, %v2263, 0.0
  %2363 = vadd.xlane.f32.xlu0 %v2362
  %v2364 = vpop.xlane.xlu0 %2363
  %v2365 = vsel %vm375, %v2265, 0.0
  %2366 = vadd.xlane.f32.xlu0 %v2365
  %v2367 = vpop.xlane.xlu0 %2366
  %v2368 = vsel %vm375, %v2267, 0.0
  %2369 = vadd.xlane.f32.xlu0 %v2368
  %v2370 = vpop.xlane.xlu0 %2369
  %v2371 = vsel %vm375, %v2269, 0.0
  %2372 = vadd.xlane.f32.xlu0 %v2371
  %v2373 = vpop.xlane.xlu0 %2372
  %v2374 = vsel %vm375, %v2271, 0.0
  %2375 = vadd.xlane.f32.xlu0 %v2374
  %v2376 = vpop.xlane.xlu0 %2375
  %v2377 = vsel %vm375, %v2273, 0.0
  %2378 = vadd.xlane.f32.xlu0 %v2377
  %v2379 = vpop.xlane.xlu0 %2378
  %v2380 = vsel %vm375, %v2275, 0.0
  %2381 = vadd.xlane.f32.xlu0 %v2380
  %v2382 = vpop.xlane.xlu0 %2381
  %v2383 = vsel %vm375, %v2277, 0.0
  %2384 = vadd.xlane.f32.xlu0 %v2383
  %v2385 = vpop.xlane.xlu0 %2384
  %v2386 = vsel %vm375, %v2279, 0.0
  %2387 = vadd.xlane.f32.xlu0 %v2386
  %v2388 = vpop.xlane.xlu0 %2387
  %v2389 = vsel %vm375, %v2281, 0.0
  %2390 = vadd.xlane.f32.xlu0 %v2389
  %v2391 = vpop.xlane.xlu0 %2390
  %v2392 = vsel %vm375, %v2283, 0.0
  %2393 = vadd.xlane.f32.xlu0 %v2392
  %v2394 = vpop.xlane.xlu0 %2393
  %v2395 = vsel %vm375, %v2285, 0.0
  %2396 = vadd.xlane.f32.xlu0 %v2395
  %v2397 = vpop.xlane.xlu0 %2396
  %v2398 = vsel %vm375, %v2287, 0.0
  %2399 = vadd.xlane.f32.xlu0 %v2398
  %v2400 = vpop.xlane.xlu0 %2399
  %v2401 = vsel %vm375, %v2289, 0.0
  %2402 = vadd.xlane.f32.xlu0 %v2401
  %v2403 = vpop.xlane.xlu0 %2402
  %v2404 = vsel %vm375, %v2291, 0.0
  %2405 = vadd.xlane.f32.xlu0 %v2404
  %v2406 = vpop.xlane.xlu0 %2405
  %v2407 = vsel %vm375, %v2293, 0.0
  %2408 = vadd.xlane.f32.xlu0 %v2407
  %v2409 = vpop.xlane.xlu0 %2408
  %v2410 = vsel %vm375, %v2295, 0.0
  %2411 = vadd.xlane.f32.xlu0 %v2410
  %v2412 = vpop.xlane.xlu0 %2411
  %v2413 = vsel %vm375, %v2297, 0.0
  %2414 = vadd.xlane.f32.xlu0 %v2413
  %v2415 = vpop.xlane.xlu0 %2414
  %v2416 = vsel %vm375, %v2299, 0.0
  %2417 = vadd.xlane.f32.xlu0 %v2416
  %v2418 = vpop.xlane.xlu0 %2417
  %v2419 = vsel %vm375, %v2301, 0.0
  %2420 = vadd.xlane.f32.xlu0 %v2419
  %v2421 = vpop.xlane.xlu0 %2420
  %v2422 = vsel %vm375, %v2303, 0.0
  %2423 = vadd.xlane.f32.xlu0 %v2422
  %v2424 = vpop.xlane.xlu0 %2423
  %v2425 = vsel %vm375, %v2305, 0.0
  %2426 = vadd.xlane.f32.xlu0 %v2425
  %v2427 = vpop.xlane.xlu0 %2426
  %v2428 = vsel %vm375, %v2307, 0.0
  %2429 = vadd.xlane.f32.xlu0 %v2428
  %v2430 = vpop.xlane.xlu0 %2429
  %v2431 = vsel %vm375, %v2309, 0.0
  %2432 = vadd.xlane.f32.xlu0 %v2431
  %v2433 = vpop.xlane.xlu0 %2432
  %v2434 = vsel %vm375, %v2311, 0.0
  %2435 = vadd.xlane.f32.xlu0 %v2434
  %v2436 = vpop.xlane.xlu0 %2435
  %v2437 = vsel %vm375, %v2313, 0.0
  %2438 = vadd.xlane.f32.xlu0 %v2437
  %v2439 = vpop.xlane.xlu0 %2438
  %v2440 = vsel %vm375, %v2315, 0.0
  %2441 = vadd.xlane.f32.xlu0 %v2440
  %v2442 = vpop.xlane.xlu0 %2441
  %v2443 = vsel %vm375, %v2317, 0.0
  %2444 = vadd.xlane.f32.xlu0 %v2443
  %v2445 = vpop.xlane.xlu0 %2444
  %v2446 = vadd.f32 %v2352, %v480
  %v2447 = vadd.f32 %v2355, %v484
  %v2448 = vadd.f32 %v2358, %v491
  %v2449 = vadd.f32 %v2361, %v495
  %v2450 = vadd.f32 %v2364, %v502
  %v2451 = vadd.f32 %v2367, %v506
  %v2452 = vadd.f32 %v2370, %v513
  %v2453 = vadd.f32 %v2373, %v517
  %v2454 = vadd.f32 %v2376, %v524
  %v2455 = vadd.f32 %v2379, %v528
  %v2456 = vadd.f32 %v2382, %v535
  %v2457 = vadd.f32 %v2385, %v539
  %v2458 = vadd.f32 %v2388, %v546
  %v2459 = vadd.f32 %v2391, %v550
  %v2460 = vadd.f32 %v2394, %v557
  %v2461 = vadd.f32 %v2397, %v561
  %v2462 = vadd.f32 %v2400, %v568
  %v2463 = vadd.f32 %v2403, %v572
  %v2464 = vadd.f32 %v2406, %v579
  %v2465 = vadd.f32 %v2409, %v583
  %v2466 = vadd.f32 %v2412, %v590
  %v2467 = vadd.f32 %v2415, %v594
  %v2468 = vadd.f32 %v2418, %v601
  %v2469 = vadd.f32 %v2421, %v605
  %v2470 = vadd.f32 %v2424, %v612
  %v2471 = vadd.f32 %v2427, %v616
  %v2472 = vadd.f32 %v2430, %v623
  %v2473 = vadd.f32 %v2433, %v627
  %v2474 = vadd.f32 %v2436, %v634
  %v2475 = vadd.f32 %v2439, %v638
  %v2476 = vadd.f32 %v2442, %v645
  %v2477 = vadd.f32 %v2445, %v649
  %s2478 = scalar_lea.vmem [#allocation2], 16
  %v2479 = vld [vmem:[%s2478] sm:$0xff]
  %v2480 = vld [vmem:[%s2478 + $0x8] sm:$0xff]
  %2513 = vset.pattern.permute.xlu0 0
  %2514 = vperm.xlu0 %2513, %v2446
  %v2515 = vpop.permute.xlu0 %2514
  %2516 = vset.pattern.permute.xlu0 0
  %2517 = vperm.xlu0 %2516, %v2447
  %v2518 = vpop.permute.xlu0 %2517
  %2519 = vset.pattern.permute.xlu0 0
  %2520 = vperm.xlu0 %2519, %v2448
  %v2521 = vpop.permute.xlu0 %2520
  %2522 = vset.pattern.permute.xlu0 0
  %2523 = vperm.xlu0 %2522, %v2449
  %v2524 = vpop.permute.xlu0 %2523
  %2525 = vset.pattern.permute.xlu0 0
  %2526 = vperm.xlu0 %2525, %v2450
  %v2527 = vpop.permute.xlu0 %2526
  %2528 = vset.pattern.permute.xlu0 0
  %2529 = vperm.xlu0 %2528, %v2451
  %v2530 = vpop.permute.xlu0 %2529
  %2531 = vset.pattern.permute.xlu0 0
  %2532 = vperm.xlu0 %2531, %v2452
  %v2533 = vpop.permute.xlu0 %2532
  %2534 = vset.pattern.permute.xlu0 0
  %2535 = vperm.xlu0 %2534, %v2453
  %v2536 = vpop.permute.xlu0 %2535
  %2537 = vset.pattern.permute.xlu0 0
  %2538 = vperm.xlu0 %2537, %v2454
  %v2539 = vpop.permute.xlu0 %2538
  %2540 = vset.pattern.permute.xlu0 0
  %2541 = vperm.xlu0 %2540, %v2455
  %v2542 = vpop.permute.xlu0 %2541
  %2543 = vset.pattern.permute.xlu0 0
  %2544 = vperm.xlu0 %2543, %v2456
  %v2545 = vpop.permute.xlu0 %2544
  %2546 = vset.pattern.permute.xlu0 0
  %2547 = vperm.xlu0 %2546, %v2457
  %v2548 = vpop.permute.xlu0 %2547
  %2549 = vset.pattern.permute.xlu0 0
  %2550 = vperm.xlu0 %2549, %v2458
  %v2551 = vpop.permute.xlu0 %2550
  %2552 = vset.pattern.permute.xlu0 0
  %2553 = vperm.xlu0 %2552, %v2459
  %v2554 = vpop.permute.xlu0 %2553
  %2555 = vset.pattern.permute.xlu0 0
  %2556 = vperm.xlu0 %2555, %v2460
  %v2557 = vpop.permute.xlu0 %2556
  %2558 = vset.pattern.permute.xlu0 0
  %2559 = vperm.xlu0 %2558, %v2461
  %v2560 = vpop.permute.xlu0 %2559
  %2561 = vset.pattern.permute.xlu0 0
  %2562 = vperm.xlu0 %2561, %v2462
  %v2563 = vpop.permute.xlu0 %2562
  %2564 = vset.pattern.permute.xlu0 0
  %2565 = vperm.xlu0 %2564, %v2463
  %v2566 = vpop.permute.xlu0 %2565
  %2567 = vset.pattern.permute.xlu0 0
  %2568 = vperm.xlu0 %2567, %v2464
  %v2569 = vpop.permute.xlu0 %2568
  %2570 = vset.pattern.permute.xlu0 0
  %2571 = vperm.xlu0 %2570, %v2465
  %v2572 = vpop.permute.xlu0 %2571
  %2573 = vset.pattern.permute.xlu0 0
  %2574 = vperm.xlu0 %2573, %v2466
  %v2575 = vpop.permute.xlu0 %2574
  %2576 = vset.pattern.permute.xlu0 0
  %2577 = vperm.xlu0 %2576, %v2467
  %v2578 = vpop.permute.xlu0 %2577
  %2579 = vset.pattern.permute.xlu0 0
  %2580 = vperm.xlu0 %2579, %v2468
  %v2581 = vpop.permute.xlu0 %2580
  %2582 = vset.pattern.permute.xlu0 0
  %2583 = vperm.xlu0 %2582, %v2469
  %v2584 = vpop.permute.xlu0 %2583
  %2585 = vset.pattern.permute.xlu0 0
  %2586 = vperm.xlu0 %2585, %v2470
  %v2587 = vpop.permute.xlu0 %2586
  %2588 = vset.pattern.permute.xlu0 0
  %2589 = vperm.xlu0 %2588, %v2471
  %v2590 = vpop.permute.xlu0 %2589
  %2591 = vset.pattern.permute.xlu0 0
  %2592 = vperm.xlu0 %2591, %v2472
  %v2593 = vpop.permute.xlu0 %2592
  %2594 = vset.pattern.permute.xlu0 0
  %2595 = vperm.xlu0 %2594, %v2473
  %v2596 = vpop.permute.xlu0 %2595
  %2597 = vset.pattern.permute.xlu0 0
  %2598 = vperm.xlu0 %2597, %v2474
  %v2599 = vpop.permute.xlu0 %2598
  %2600 = vset.pattern.permute.xlu0 0
  %2601 = vperm.xlu0 %2600, %v2475
  %v2602 = vpop.permute.xlu0 %2601
  %2603 = vset.pattern.permute.xlu0 0
  %2604 = vperm.xlu0 %2603, %v2476
  %v2605 = vpop.permute.xlu0 %2604
  %2606 = vset.pattern.permute.xlu0 0
  %2607 = vperm.xlu0 %2606, %v2477
  %v2608 = vpop.permute.xlu0 %2607
  %v2609 = vlaneseq
  %v2610 = vshrl.u32 %v2609, 7
  %v2611 = vsub.s32 %v845, %v2610
  %v2612 = vrot.slane %v2515, %v2611
  %v2613 = vlaneseq
  %v2614 = vshrl.u32 %v2613, 7
  %v2615 = vsub.s32 %v850, %v2614
  %v2616 = vrot.slane %v2518, %v2615
  %v2617 = vsel %vm855, %v2616, %v2612
  %v2618 = vlaneseq
  %v2619 = vshrl.u32 %v2618, 7
  %v2620 = vsub.s32 %v845, %v2619
  %v2621 = vrot.slane %v2521, %v2620
  %v2622 = vlaneseq
  %v2623 = vshrl.u32 %v2622, 7
  %v2624 = vsub.s32 %v850, %v2623
  %v2625 = vrot.slane %v2524, %v2624
  %v2626 = vsel %vm855, %v2625, %v2621
  %v2627 = vlaneseq
  %v2628 = vshrl.u32 %v2627, 7
  %v2629 = vsub.s32 %v845, %v2628
  %v2630 = vrot.slane %v2527, %v2629
  %v2631 = vlaneseq
  %v2632 = vshrl.u32 %v2631, 7
  %v2633 = vsub.s32 %v850, %v2632
  %v2634 = vrot.slane %v2530, %v2633
  %v2635 = vsel %vm855, %v2634, %v2630
  %v2636 = vlaneseq
  %v2637 = vshrl.u32 %v2636, 7
  %v2638 = vsub.s32 %v845, %v2637
  %v2639 = vrot.slane %v2533, %v2638
  %v2640 = vlaneseq
  %v2641 = vshrl.u32 %v2640, 7
  %v2642 = vsub.s32 %v850, %v2641
  %v2643 = vrot.slane %v2536, %v2642
  %v2644 = vsel %vm855, %v2643, %v2639
  %v2645 = vlaneseq
  %v2646 = vshrl.u32 %v2645, 7
  %v2647 = vsub.s32 %v845, %v2646
  %v2648 = vrot.slane %v2539, %v2647
  %v2649 = vlaneseq
  %v2650 = vshrl.u32 %v2649, 7
  %v2651 = vsub.s32 %v850, %v2650
  %v2652 = vrot.slane %v2542, %v2651
  %v2653 = vsel %vm855, %v2652, %v2648
  %v2654 = vlaneseq
  %v2655 = vshrl.u32 %v2654, 7
  %v2656 = vsub.s32 %v845, %v2655
  %v2657 = vrot.slane %v2545, %v2656
  %v2658 = vlaneseq
  %v2659 = vshrl.u32 %v2658, 7
  %v2660 = vsub.s32 %v850, %v2659
  %v2661 = vrot.slane %v2548, %v2660
  %v2662 = vsel %vm855, %v2661, %v2657
  %v2663 = vlaneseq
  %v2664 = vshrl.u32 %v2663, 7
  %v2665 = vsub.s32 %v845, %v2664
  %v2666 = vrot.slane %v2551, %v2665
  %v2667 = vlaneseq
  %v2668 = vshrl.u32 %v2667, 7
  %v2669 = vsub.s32 %v850, %v2668
  %v2670 = vrot.slane %v2554, %v2669
  %v2671 = vsel %vm855, %v2670, %v2666
  %v2672 = vlaneseq
  %v2673 = vshrl.u32 %v2672, 7
  %v2674 = vsub.s32 %v845, %v2673
  %v2675 = vrot.slane %v2557, %v2674
  %v2676 = vlaneseq
  %v2677 = vshrl.u32 %v2676, 7
  %v2678 = vsub.s32 %v850, %v2677
  %v2679 = vrot.slane %v2560, %v2678
  %v2680 = vsel %vm855, %v2679, %v2675
  %v2681 = vlaneseq
  %v2682 = vshrl.u32 %v2681, 7
  %v2683 = vsub.s32 %v845, %v2682
  %v2684 = vrot.slane %v2563, %v2683
  %v2685 = vlaneseq
  %v2686 = vshrl.u32 %v2685, 7
  %v2687 = vsub.s32 %v850, %v2686
  %v2688 = vrot.slane %v2566, %v2687
  %v2689 = vsel %vm855, %v2688, %v2684
  %v2690 = vlaneseq
  %v2691 = vshrl.u32 %v2690, 7
  %v2692 = vsub.s32 %v845, %v2691
  %v2693 = vrot.slane %v2569, %v2692
  %v2694 = vlaneseq
  %v2695 = vshrl.u32 %v2694, 7
  %v2696 = vsub.s32 %v850, %v2695
  %v2697 = vrot.slane %v2572, %v2696
  %v2698 = vsel %vm855, %v2697, %v2693
  %v2699 = vlaneseq
  %v2700 = vshrl.u32 %v2699, 7
  %v2701 = vsub.s32 %v845, %v2700
  %v2702 = vrot.slane %v2575, %v2701
  %v2703 = vlaneseq
  %v2704 = vshrl.u32 %v2703, 7
  %v2705 = vsub.s32 %v850, %v2704
  %v2706 = vrot.slane %v2578, %v2705
  %v2707 = vsel %vm855, %v2706, %v2702
  %v2708 = vlaneseq
  %v2709 = vshrl.u32 %v2708, 7
  %v2710 = vsub.s32 %v845, %v2709
  %v2711 = vrot.slane %v2581, %v2710
  %v2712 = vlaneseq
  %v2713 = vshrl.u32 %v2712, 7
  %v2714 = vsub.s32 %v850, %v2713
  %v2715 = vrot.slane %v2584, %v2714
  %v2716 = vsel %vm855, %v2715, %v2711
  %v2717 = vlaneseq
  %v2718 = vshrl.u32 %v2717, 7
  %v2719 = vsub.s32 %v845, %v2718
  %v2720 = vrot.slane %v2587, %v2719
  %v2721 = vlaneseq
  %v2722 = vshrl.u32 %v2721, 7
  %v2723 = vsub.s32 %v850, %v2722
  %v2724 = vrot.slane %v2590, %v2723
  %v2725 = vsel %vm855, %v2724, %v2720
  %v2726 = vlaneseq
  %v2727 = vshrl.u32 %v2726, 7
  %v2728 = vsub.s32 %v845, %v2727
  %v2729 = vrot.slane %v2593, %v2728
  %v2730 = vlaneseq
  %v2731 = vshrl.u32 %v2730, 7
  %v2732 = vsub.s32 %v850, %v2731
  %v2733 = vrot.slane %v2596, %v2732
  %v2734 = vsel %vm855, %v2733, %v2729
  %v2735 = vlaneseq
  %v2736 = vshrl.u32 %v2735, 7
  %v2737 = vsub.s32 %v845, %v2736
  %v2738 = vrot.slane %v2599, %v2737
  %v2739 = vlaneseq
  %v2740 = vshrl.u32 %v2739, 7
  %v2741 = vsub.s32 %v850, %v2740
  %v2742 = vrot.slane %v2602, %v2741
  %v2743 = vsel %vm855, %v2742, %v2738
  %v2744 = vlaneseq
  %v2745 = vshrl.u32 %v2744, 7
  %v2746 = vsub.s32 %v845, %v2745
  %v2747 = vrot.slane %v2605, %v2746
  %v2748 = vlaneseq
  %v2749 = vshrl.u32 %v2748, 7
  %v2750 = vsub.s32 %v850, %v2749
  %v2751 = vrot.slane %v2608, %v2750
  %v2752 = vsel %vm855, %v2751, %v2747
  %v2753 = vsel %vm992, %v2626, %v2617
  %v2754 = vsel %vm994, %v2635, %v2753
  %v2755 = vsel %vm996, %v2644, %v2754
  %v2756 = vsel %vm998, %v2653, %v2755
  %v2757 = vsel %vm1000, %v2662, %v2756
  %v2758 = vsel %vm1002, %v2671, %v2757
  %v2759 = vsel %vm1004, %v2680, %v2758
  %v2760 = vsel %vm992, %v2698, %v2689
  %v2761 = vsel %vm994, %v2707, %v2760
  %v2762 = vsel %vm996, %v2716, %v2761
  %v2763 = vsel %vm998, %v2725, %v2762
  %v2764 = vsel %vm1000, %v2734, %v2763
  %v2765 = vsel %vm1002, %v2743, %v2764
  %v2766 = vsel %vm1004, %v2752, %v2765
  %v2769 = vsel %vm1015, %v2759, -inf
  %2770 = vmax.xlane.f32.xlu0 %v2769
  %v2771 = vpop.xlane.xlu0 %2770
  %v2772 = vsel %vm1015, %v2766, -inf
  %2773 = vmax.xlane.f32.xlu0 %v2772
  %v2774 = vpop.xlane.xlu0 %2773
  %v2775 = vmax.f32 %v2479, %v2771
  %v2776 = vmax.f32 %v2480, %v2774
  %v2777 = vsub.f32 %v2479, %v2775
  %v2778 = vsub.f32 %v2480, %v2776
  %v2779 = vmul.f32 %v2777, 1.442695
  %v2780 = vpow.pop %v2779
  %v2781 = vmul.f32 %v2778, 1.442695
  %v2782 = vpow.pop %v2781
  %2784 = vset.pattern.permute.xlu0 0
  %2785 = vperm.xlu0 %2784, %v2775
  %v2786 = vpop.permute.xlu0 %2785
  %2788 = vset.pattern.permute.xlu0 0
  %2789 = vperm.xlu0 %2788, %v2776
  %v2790 = vpop.permute.xlu0 %2789
  %v2791 = vlaneseq
  %v2792 = vshrl.u32 %v2791, 7
  %v2793 = vsub.s32 0, %v2792
  %v2794 = vrot.slane %v2786, %v2793
  %v2795 = vlaneseq
  %v2796 = vshrl.u32 %v2795, 7
  %v2797 = vsub.s32 1, %v2796
  %v2798 = vrot.slane %v2786, %v2797
  %v2799 = vlaneseq
  %v2800 = vshrl.u32 %v2799, 7
  %v2801 = vsub.s32 2, %v2800
  %v2802 = vrot.slane %v2786, %v2801
  %v2803 = vlaneseq
  %v2804 = vshrl.u32 %v2803, 7
  %v2805 = vsub.s32 3, %v2804
  %v2806 = vrot.slane %v2786, %v2805
  %v2807 = vlaneseq
  %v2808 = vshrl.u32 %v2807, 7
  %v2809 = vsub.s32 4, %v2808
  %v2810 = vrot.slane %v2786, %v2809
  %v2811 = vlaneseq
  %v2812 = vshrl.u32 %v2811, 7
  %v2813 = vsub.s32 5, %v2812
  %v2814 = vrot.slane %v2786, %v2813
  %v2815 = vlaneseq
  %v2816 = vshrl.u32 %v2815, 7
  %v2817 = vsub.s32 6, %v2816
  %v2818 = vrot.slane %v2786, %v2817
  %v2819 = vlaneseq
  %v2820 = vshrl.u32 %v2819, 7
  %v2821 = vsub.s32 7, %v2820
  %v2822 = vrot.slane %v2786, %v2821
  %v2823 = vlaneseq
  %v2824 = vshrl.u32 %v2823, 7
  %v2825 = vsub.s32 0, %v2824
  %v2826 = vrot.slane %v2790, %v2825
  %v2827 = vlaneseq
  %v2828 = vshrl.u32 %v2827, 7
  %v2829 = vsub.s32 1, %v2828
  %v2830 = vrot.slane %v2790, %v2829
  %v2831 = vlaneseq
  %v2832 = vshrl.u32 %v2831, 7
  %v2833 = vsub.s32 2, %v2832
  %v2834 = vrot.slane %v2790, %v2833
  %v2835 = vlaneseq
  %v2836 = vshrl.u32 %v2835, 7
  %v2837 = vsub.s32 3, %v2836
  %v2838 = vrot.slane %v2790, %v2837
  %v2839 = vlaneseq
  %v2840 = vshrl.u32 %v2839, 7
  %v2841 = vsub.s32 4, %v2840
  %v2842 = vrot.slane %v2790, %v2841
  %v2843 = vlaneseq
  %v2844 = vshrl.u32 %v2843, 7
  %v2845 = vsub.s32 5, %v2844
  %v2846 = vrot.slane %v2790, %v2845
  %v2847 = vlaneseq
  %v2848 = vshrl.u32 %v2847, 7
  %v2849 = vsub.s32 6, %v2848
  %v2850 = vrot.slane %v2790, %v2849
  %v2851 = vlaneseq
  %v2852 = vshrl.u32 %v2851, 7
  %v2853 = vsub.s32 7, %v2852
  %v2854 = vrot.slane %v2790, %v2853
  %v2871 = vsub.f32 %v2446, %v2794
  %v2872 = vsub.f32 %v2447, %v2794
  %v2873 = vsub.f32 %v2448, %v2798
  %v2874 = vsub.f32 %v2449, %v2798
  %v2875 = vsub.f32 %v2450, %v2802
  %v2876 = vsub.f32 %v2451, %v2802
  %v2877 = vsub.f32 %v2452, %v2806
  %v2878 = vsub.f32 %v2453, %v2806
  %v2879 = vsub.f32 %v2454, %v2810
  %v2880 = vsub.f32 %v2455, %v2810
  %v2881 = vsub.f32 %v2456, %v2814
  %v2882 = vsub.f32 %v2457, %v2814
  %v2883 = vsub.f32 %v2458, %v2818
  %v2884 = vsub.f32 %v2459, %v2818
  %v2885 = vsub.f32 %v2460, %v2822
  %v2886 = vsub.f32 %v2461, %v2822
  %v2887 = vsub.f32 %v2462, %v2826
  %v2888 = vsub.f32 %v2463, %v2826
  %v2889 = vsub.f32 %v2464, %v2830
  %v2890 = vsub.f32 %v2465, %v2830
  %v2891 = vsub.f32 %v2466, %v2834
  %v2892 = vsub.f32 %v2467, %v2834
  %v2893 = vsub.f32 %v2468, %v2838
  %v2894 = vsub.f32 %v2469, %v2838
  %v2895 = vsub.f32 %v2470, %v2842
  %v2896 = vsub.f32 %v2471, %v2842
  %v2897 = vsub.f32 %v2472, %v2846
  %v2898 = vsub.f32 %v2473, %v2846
  %v2899 = vsub.f32 %v2474, %v2850
  %v2900 = vsub.f32 %v2475, %v2850
  %v2901 = vsub.f32 %v2476, %v2854
  %v2902 = vsub.f32 %v2477, %v2854
  %v2903 = vmul.f32 %v2871, 1.442695
  %v2904 = vpow.pop %v2903
  %v2905 = vmul.f32 %v2872, 1.442695
  %v2906 = vpow.pop %v2905
  %v2907 = vmul.f32 %v2873, 1.442695
  %v2908 = vpow.pop %v2907
  %v2909 = vmul.f32 %v2874, 1.442695
  %v2910 = vpow.pop %v2909
  %v2911 = vmul.f32 %v2875, 1.442695
  %v2912 = vpow.pop %v2911
  %v2913 = vmul.f32 %v2876, 1.442695
  %v2914 = vpow.pop %v2913
  %v2915 = vmul.f32 %v2877, 1.442695
  %v2916 = vpow.pop %v2915
  %v2917 = vmul.f32 %v2878, 1.442695
  %v2918 = vpow.pop %v2917
  %v2919 = vmul.f32 %v2879, 1.442695
  %v2920 = vpow.pop %v2919
  %v2921 = vmul.f32 %v2880, 1.442695
  %v2922 = vpow.pop %v2921
  %v2923 = vmul.f32 %v2881, 1.442695
  %v2924 = vpow.pop %v2923
  %v2925 = vmul.f32 %v2882, 1.442695
  %v2926 = vpow.pop %v2925
  %v2927 = vmul.f32 %v2883, 1.442695
  %v2928 = vpow.pop %v2927
  %v2929 = vmul.f32 %v2884, 1.442695
  %v2930 = vpow.pop %v2929
  %v2931 = vmul.f32 %v2885, 1.442695
  %v2932 = vpow.pop %v2931
  %v2933 = vmul.f32 %v2886, 1.442695
  %v2934 = vpow.pop %v2933
  %v2935 = vmul.f32 %v2887, 1.442695
  %v2936 = vpow.pop %v2935
  %v2937 = vmul.f32 %v2888, 1.442695
  %v2938 = vpow.pop %v2937
  %v2939 = vmul.f32 %v2889, 1.442695
  %v2940 = vpow.pop %v2939
  %v2941 = vmul.f32 %v2890, 1.442695
  %v2942 = vpow.pop %v2941
  %v2943 = vmul.f32 %v2891, 1.442695
  %v2944 = vpow.pop %v2943
  %v2945 = vmul.f32 %v2892, 1.442695
  %v2946 = vpow.pop %v2945
  %v2947 = vmul.f32 %v2893, 1.442695
  %v2948 = vpow.pop %v2947
  %v2949 = vmul.f32 %v2894, 1.442695
  %v2950 = vpow.pop %v2949
  %v2951 = vmul.f32 %v2895, 1.442695
  %v2952 = vpow.pop %v2951
  %v2953 = vmul.f32 %v2896, 1.442695
  %v2954 = vpow.pop %v2953
  %v2955 = vmul.f32 %v2897, 1.442695
  %v2956 = vpow.pop %v2955
  %v2957 = vmul.f32 %v2898, 1.442695
  %v2958 = vpow.pop %v2957
  %v2959 = vmul.f32 %v2899, 1.442695
  %v2960 = vpow.pop %v2959
  %v2961 = vmul.f32 %v2900, 1.442695
  %v2962 = vpow.pop %v2961
  %v2963 = vmul.f32 %v2901, 1.442695
  %v2964 = vpow.pop %v2963
  %v2965 = vmul.f32 %v2902, 1.442695
  %v2966 = vpow.pop %v2965
  %s2967 = scalar_lea.vmem [#allocation3], 16
  %v2968 = vld [vmem:[%s2967] sm:$0xff]
  %v2969 = vld [vmem:[%s2967 + $0x8] sm:$0xff]
  %v2970 = vmul.f32 %v2780, %v2968
  %v2971 = vmul.f32 %v2782, %v2969
  %3004 = vset.pattern.permute.xlu0 0
  %3005 = vperm.xlu0 %3004, %v2904
  %v3006 = vpop.permute.xlu0 %3005
  %3007 = vset.pattern.permute.xlu0 0
  %3008 = vperm.xlu0 %3007, %v2906
  %v3009 = vpop.permute.xlu0 %3008
  %3010 = vset.pattern.permute.xlu0 0
  %3011 = vperm.xlu0 %3010, %v2908
  %v3012 = vpop.permute.xlu0 %3011
  %3013 = vset.pattern.permute.xlu0 0
  %3014 = vperm.xlu0 %3013, %v2910
  %v3015 = vpop.permute.xlu0 %3014
  %3016 = vset.pattern.permute.xlu0 0
  %3017 = vperm.xlu0 %3016, %v2912
  %v3018 = vpop.permute.xlu0 %3017
  %3019 = vset.pattern.permute.xlu0 0
  %3020 = vperm.xlu0 %3019, %v2914
  %v3021 = vpop.permute.xlu0 %3020
  %3022 = vset.pattern.permute.xlu0 0
  %3023 = vperm.xlu0 %3022, %v2916
  %v3024 = vpop.permute.xlu0 %3023
  %3025 = vset.pattern.permute.xlu0 0
  %3026 = vperm.xlu0 %3025, %v2918
  %v3027 = vpop.permute.xlu0 %3026
  %3028 = vset.pattern.permute.xlu0 0
  %3029 = vperm.xlu0 %3028, %v2920
  %v3030 = vpop.permute.xlu0 %3029
  %3031 = vset.pattern.permute.xlu0 0
  %3032 = vperm.xlu0 %3031, %v2922
  %v3033 = vpop.permute.xlu0 %3032
  %3034 = vset.pattern.permute.xlu0 0
  %3035 = vperm.xlu0 %3034, %v2924
  %v3036 = vpop.permute.xlu0 %3035
  %3037 = vset.pattern.permute.xlu0 0
  %3038 = vperm.xlu0 %3037, %v2926
  %v3039 = vpop.permute.xlu0 %3038
  %3040 = vset.pattern.permute.xlu0 0
  %3041 = vperm.xlu0 %3040, %v2928
  %v3042 = vpop.permute.xlu0 %3041
  %3043 = vset.pattern.permute.xlu0 0
  %3044 = vperm.xlu0 %3043, %v2930
  %v3045 = vpop.permute.xlu0 %3044
  %3046 = vset.pattern.permute.xlu0 0
  %3047 = vperm.xlu0 %3046, %v2932
  %v3048 = vpop.permute.xlu0 %3047
  %3049 = vset.pattern.permute.xlu0 0
  %3050 = vperm.xlu0 %3049, %v2934
  %v3051 = vpop.permute.xlu0 %3050
  %3052 = vset.pattern.permute.xlu0 0
  %3053 = vperm.xlu0 %3052, %v2936
  %v3054 = vpop.permute.xlu0 %3053
  %3055 = vset.pattern.permute.xlu0 0
  %3056 = vperm.xlu0 %3055, %v2938
  %v3057 = vpop.permute.xlu0 %3056
  %3058 = vset.pattern.permute.xlu0 0
  %3059 = vperm.xlu0 %3058, %v2940
  %v3060 = vpop.permute.xlu0 %3059
  %3061 = vset.pattern.permute.xlu0 0
  %3062 = vperm.xlu0 %3061, %v2942
  %v3063 = vpop.permute.xlu0 %3062
  %3064 = vset.pattern.permute.xlu0 0
  %3065 = vperm.xlu0 %3064, %v2944
  %v3066 = vpop.permute.xlu0 %3065
  %3067 = vset.pattern.permute.xlu0 0
  %3068 = vperm.xlu0 %3067, %v2946
  %v3069 = vpop.permute.xlu0 %3068
  %3070 = vset.pattern.permute.xlu0 0
  %3071 = vperm.xlu0 %3070, %v2948
  %v3072 = vpop.permute.xlu0 %3071
  %3073 = vset.pattern.permute.xlu0 0
  %3074 = vperm.xlu0 %3073, %v2950
  %v3075 = vpop.permute.xlu0 %3074
  %3076 = vset.pattern.permute.xlu0 0
  %3077 = vperm.xlu0 %3076, %v2952
  %v3078 = vpop.permute.xlu0 %3077
  %3079 = vset.pattern.permute.xlu0 0
  %3080 = vperm.xlu0 %3079, %v2954
  %v3081 = vpop.permute.xlu0 %3080
  %3082 = vset.pattern.permute.xlu0 0
  %3083 = vperm.xlu0 %3082, %v2956
  %v3084 = vpop.permute.xlu0 %3083
  %3085 = vset.pattern.permute.xlu0 0
  %3086 = vperm.xlu0 %3085, %v2958
  %v3087 = vpop.permute.xlu0 %3086
  %3088 = vset.pattern.permute.xlu0 0
  %3089 = vperm.xlu0 %3088, %v2960
  %v3090 = vpop.permute.xlu0 %3089
  %3091 = vset.pattern.permute.xlu0 0
  %3092 = vperm.xlu0 %3091, %v2962
  %v3093 = vpop.permute.xlu0 %3092
  %3094 = vset.pattern.permute.xlu0 0
  %3095 = vperm.xlu0 %3094, %v2964
  %v3096 = vpop.permute.xlu0 %3095
  %3097 = vset.pattern.permute.xlu0 0
  %3098 = vperm.xlu0 %3097, %v2966
  %v3099 = vpop.permute.xlu0 %3098
  %v3100 = vlaneseq
  %v3101 = vshrl.u32 %v3100, 7
  %v3102 = vsub.s32 %v845, %v3101
  %v3103 = vrot.slane %v3006, %v3102
  %v3104 = vlaneseq
  %v3105 = vshrl.u32 %v3104, 7
  %v3106 = vsub.s32 %v850, %v3105
  %v3107 = vrot.slane %v3009, %v3106
  %v3108 = vsel %vm855, %v3107, %v3103
  %v3109 = vlaneseq
  %v3110 = vshrl.u32 %v3109, 7
  %v3111 = vsub.s32 %v845, %v3110
  %v3112 = vrot.slane %v3012, %v3111
  %v3113 = vlaneseq
  %v3114 = vshrl.u32 %v3113, 7
  %v3115 = vsub.s32 %v850, %v3114
  %v3116 = vrot.slane %v3015, %v3115
  %v3117 = vsel %vm855, %v3116, %v3112
  %v3118 = vlaneseq
  %v3119 = vshrl.u32 %v3118, 7
  %v3120 = vsub.s32 %v845, %v3119
  %v3121 = vrot.slane %v3018, %v3120
  %v3122 = vlaneseq
  %v3123 = vshrl.u32 %v3122, 7
  %v3124 = vsub.s32 %v850, %v3123
  %v3125 = vrot.slane %v3021, %v3124
  %v3126 = vsel %vm855, %v3125, %v3121
  %v3127 = vlaneseq
  %v3128 = vshrl.u32 %v3127, 7
  %v3129 = vsub.s32 %v845, %v3128
  %v3130 = vrot.slane %v3024, %v3129
  %v3131 = vlaneseq
  %v3132 = vshrl.u32 %v3131, 7
  %v3133 = vsub.s32 %v850, %v3132
  %v3134 = vrot.slane %v3027, %v3133
  %v3135 = vsel %vm855, %v3134, %v3130
  %v3136 = vlaneseq
  %v3137 = vshrl.u32 %v3136, 7
  %v3138 = vsub.s32 %v845, %v3137
  %v3139 = vrot.slane %v3030, %v3138
  %v3140 = vlaneseq
  %v3141 = vshrl.u32 %v3140, 7
  %v3142 = vsub.s32 %v850, %v3141
  %v3143 = vrot.slane %v3033, %v3142
  %v3144 = vsel %vm855, %v3143, %v3139
  %v3145 = vlaneseq
  %v3146 = vshrl.u32 %v3145, 7
  %v3147 = vsub.s32 %v845, %v3146
  %v3148 = vrot.slane %v3036, %v3147
  %v3149 = vlaneseq
  %v3150 = vshrl.u32 %v3149, 7
  %v3151 = vsub.s32 %v850, %v3150
  %v3152 = vrot.slane %v3039, %v3151
  %v3153 = vsel %vm855, %v3152, %v3148
  %v3154 = vlaneseq
  %v3155 = vshrl.u32 %v3154, 7
  %v3156 = vsub.s32 %v845, %v3155
  %v3157 = vrot.slane %v3042, %v3156
  %v3158 = vlaneseq
  %v3159 = vshrl.u32 %v3158, 7
  %v3160 = vsub.s32 %v850, %v3159
  %v3161 = vrot.slane %v3045, %v3160
  %v3162 = vsel %vm855, %v3161, %v3157
  %v3163 = vlaneseq
  %v3164 = vshrl.u32 %v3163, 7
  %v3165 = vsub.s32 %v845, %v3164
  %v3166 = vrot.slane %v3048, %v3165
  %v3167 = vlaneseq
  %v3168 = vshrl.u32 %v3167, 7
  %v3169 = vsub.s32 %v850, %v3168
  %v3170 = vrot.slane %v3051, %v3169
  %v3171 = vsel %vm855, %v3170, %v3166
  %v3172 = vlaneseq
  %v3173 = vshrl.u32 %v3172, 7
  %v3174 = vsub.s32 %v845, %v3173
  %v3175 = vrot.slane %v3054, %v3174
  %v3176 = vlaneseq
  %v3177 = vshrl.u32 %v3176, 7
  %v3178 = vsub.s32 %v850, %v3177
  %v3179 = vrot.slane %v3057, %v3178
  %v3180 = vsel %vm855, %v3179, %v3175
  %v3181 = vlaneseq
  %v3182 = vshrl.u32 %v3181, 7
  %v3183 = vsub.s32 %v845, %v3182
  %v3184 = vrot.slane %v3060, %v3183
  %v3185 = vlaneseq
  %v3186 = vshrl.u32 %v3185, 7
  %v3187 = vsub.s32 %v850, %v3186
  %v3188 = vrot.slane %v3063, %v3187
  %v3189 = vsel %vm855, %v3188, %v3184
  %v3190 = vlaneseq
  %v3191 = vshrl.u32 %v3190, 7
  %v3192 = vsub.s32 %v845, %v3191
  %v3193 = vrot.slane %v3066, %v3192
  %v3194 = vlaneseq
  %v3195 = vshrl.u32 %v3194, 7
  %v3196 = vsub.s32 %v850, %v3195
  %v3197 = vrot.slane %v3069, %v3196
  %v3198 = vsel %vm855, %v3197, %v3193
  %v3199 = vlaneseq
  %v3200 = vshrl.u32 %v3199, 7
  %v3201 = vsub.s32 %v845, %v3200
  %v3202 = vrot.slane %v3072, %v3201
  %v3203 = vlaneseq
  %v3204 = vshrl.u32 %v3203, 7
  %v3205 = vsub.s32 %v850, %v3204
  %v3206 = vrot.slane %v3075, %v3205
  %v3207 = vsel %vm855, %v3206, %v3202
  %v3208 = vlaneseq
  %v3209 = vshrl.u32 %v3208, 7
  %v3210 = vsub.s32 %v845, %v3209
  %v3211 = vrot.slane %v3078, %v3210
  %v3212 = vlaneseq
  %v3213 = vshrl.u32 %v3212, 7
  %v3214 = vsub.s32 %v850, %v3213
  %v3215 = vrot.slane %v3081, %v3214
  %v3216 = vsel %vm855, %v3215, %v3211
  %v3217 = vlaneseq
  %v3218 = vshrl.u32 %v3217, 7
  %v3219 = vsub.s32 %v845, %v3218
  %v3220 = vrot.slane %v3084, %v3219
  %v3221 = vlaneseq
  %v3222 = vshrl.u32 %v3221, 7
  %v3223 = vsub.s32 %v850, %v3222
  %v3224 = vrot.slane %v3087, %v3223
  %v3225 = vsel %vm855, %v3224, %v3220
  %v3226 = vlaneseq
  %v3227 = vshrl.u32 %v3226, 7
  %v3228 = vsub.s32 %v845, %v3227
  %v3229 = vrot.slane %v3090, %v3228
  %v3230 = vlaneseq
  %v3231 = vshrl.u32 %v3230, 7
  %v3232 = vsub.s32 %v850, %v3231
  %v3233 = vrot.slane %v3093, %v3232
  %v3234 = vsel %vm855, %v3233, %v3229
  %v3235 = vlaneseq
  %v3236 = vshrl.u32 %v3235, 7
  %v3237 = vsub.s32 %v845, %v3236
  %v3238 = vrot.slane %v3096, %v3237
  %v3239 = vlaneseq
  %v3240 = vshrl.u32 %v3239, 7
  %v3241 = vsub.s32 %v850, %v3240
  %v3242 = vrot.slane %v3099, %v3241
  %v3243 = vsel %vm855, %v3242, %v3238
  %v3244 = vsel %vm992, %v3117, %v3108
  %v3245 = vsel %vm994, %v3126, %v3244
  %v3246 = vsel %vm996, %v3135, %v3245
  %v3247 = vsel %vm998, %v3144, %v3246
  %v3248 = vsel %vm1000, %v3153, %v3247
  %v3249 = vsel %vm1002, %v3162, %v3248
  %v3250 = vsel %vm1004, %v3171, %v3249
  %v3251 = vsel %vm992, %v3189, %v3180
  %v3252 = vsel %vm994, %v3198, %v3251
  %v3253 = vsel %vm996, %v3207, %v3252
  %v3254 = vsel %vm998, %v3216, %v3253
  %v3255 = vsel %vm1000, %v3225, %v3254
  %v3256 = vsel %vm1002, %v3234, %v3255
  %v3257 = vsel %vm1004, %v3243, %v3256
  %v3260 = vsel %vm1015, %v3250, 0.0
  %3261 = vadd.xlane.f32.xlu0 %v3260
  %v3262 = vpop.xlane.xlu0 %3261
  %v3263 = vsel %vm1015, %v3257, 0.0
  %3264 = vadd.xlane.f32.xlu0 %v3263
  %v3265 = vpop.xlane.xlu0 %3264
  %v3266 = vadd.f32 %v2970, %v3262
  %v3267 = vadd.f32 %v2971, %v3265
  %3268 = vst.msk [vmem:[%s2967] sm:$0xff] %vm1514, %v3266
  %3269 = vst.msk [vmem:[%s2967 + $0x8] sm:$0xff] %vm1514, %v3267
  %s3270 = scalar_lea.vmem [#allocation4], 16
  %v3271 = vld [vmem:[%s3270] sm:$0xff]
  %v3272 = vld [vmem:[%s3270 + $0x8] sm:$0xff]
  %3274 = vset.pattern.permute.xlu0 0
  %3275 = vperm.xlu0 %3274, %v2780
  %v3276 = vpop.permute.xlu0 %3275
  %3279 = vset.pattern.permute.xlu0 0
  %3280 = vperm.xlu0 %3279, %v2782
  %v3281 = vpop.permute.xlu0 %3280
  %v3283 = vmul.f32 %v3276, %v3271
  %v3284 = vmul.f32 %v3281, %v3272
  %v3285 = vpack.c.bf16 %v2906, %v2904
  %v3286 = vpack.c.bf16 %v2910, %v2908
  %v3287 = vpack.c.bf16 %v2914, %v2912
  %v3288 = vpack.c.bf16 %v2918, %v2916
  %v3289 = vpack.c.bf16 %v2922, %v2920
  %v3290 = vpack.c.bf16 %v2926, %v2924
  %v3291 = vpack.c.bf16 %v2930, %v2928
  %v3292 = vpack.c.bf16 %v2934, %v2932
  %v3293 = vpack.c.bf16 %v2938, %v2936
  %v3294 = vpack.c.bf16 %v2942, %v2940
  %v3295 = vpack.c.bf16 %v2946, %v2944
  %v3296 = vpack.c.bf16 %v2950, %v2948
  %v3297 = vpack.c.bf16 %v2954, %v2952
  %v3298 = vpack.c.bf16 %v2958, %v2956
  %v3299 = vpack.c.bf16 %v2962, %v2960
  %v3300 = vpack.c.bf16 %v2966, %v2964
  %v3317 = vunpack.c.l.b16 %v3285
  %v3318 = vunpack.c.h.b16 %v3285
  %v3319 = vunpack.c.l.b16 %v3286
  %v3320 = vunpack.c.h.b16 %v3286
  %v3321 = vunpack.c.l.b16 %v3287
  %v3322 = vunpack.c.h.b16 %v3287
  %v3323 = vunpack.c.l.b16 %v3288
  %v3324 = vunpack.c.h.b16 %v3288
  %v3325 = vunpack.c.l.b16 %v3289
  %v3326 = vunpack.c.h.b16 %v3289
  %v3327 = vunpack.c.l.b16 %v3290
  %v3328 = vunpack.c.h.b16 %v3290
  %v3329 = vunpack.c.l.b16 %v3291
  %v3330 = vunpack.c.h.b16 %v3291
  %v3331 = vunpack.c.l.b16 %v3292
  %v3332 = vunpack.c.h.b16 %v3292
  %v3333 = vunpack.c.l.b16 %v3293
  %v3334 = vunpack.c.h.b16 %v3293
  %v3335 = vunpack.c.l.b16 %v3294
  %v3336 = vunpack.c.h.b16 %v3294
  %v3337 = vunpack.c.l.b16 %v3295
  %v3338 = vunpack.c.h.b16 %v3295
  %v3339 = vunpack.c.l.b16 %v3296
  %v3340 = vunpack.c.h.b16 %v3296
  %v3341 = vunpack.c.l.b16 %v3297
  %v3342 = vunpack.c.h.b16 %v3297
  %v3343 = vunpack.c.l.b16 %v3298
  %v3344 = vunpack.c.h.b16 %v3298
  %v3345 = vunpack.c.l.b16 %v3299
  %v3346 = vunpack.c.h.b16 %v3299
  %v3347 = vunpack.c.l.b16 %v3300
  %v3348 = vunpack.c.h.b16 %v3300
  %3349 = vset.pattern.permute.xlu0 0
  %3350 = vperm.xlu0 %3349, %v3317
  %v3351 = vpop.permute.xlu0 %3350
  %3352 = vset.pattern.permute.xlu0 0
  %3353 = vperm.xlu0 %3352, %v3318
  %v3354 = vpop.permute.xlu0 %3353
  %3355 = vset.pattern.permute.xlu0 0
  %3356 = vperm.xlu0 %3355, %v3319
  %v3357 = vpop.permute.xlu0 %3356
  %3358 = vset.pattern.permute.xlu0 0
  %3359 = vperm.xlu0 %3358, %v3320
  %v3360 = vpop.permute.xlu0 %3359
  %3361 = vset.pattern.permute.xlu0 0
  %3362 = vperm.xlu0 %3361, %v3321
  %v3363 = vpop.permute.xlu0 %3362
  %3364 = vset.pattern.permute.xlu0 0
  %3365 = vperm.xlu0 %3364, %v3322
  %v3366 = vpop.permute.xlu0 %3365
  %3367 = vset.pattern.permute.xlu0 0
  %3368 = vperm.xlu0 %3367, %v3323
  %v3369 = vpop.permute.xlu0 %3368
  %3370 = vset.pattern.permute.xlu0 0
  %3371 = vperm.xlu0 %3370, %v3324
  %v3372 = vpop.permute.xlu0 %3371
  %3373 = vset.pattern.permute.xlu0 0
  %3374 = vperm.xlu0 %3373, %v3325
  %v3375 = vpop.permute.xlu0 %3374
  %3376 = vset.pattern.permute.xlu0 0
  %3377 = vperm.xlu0 %3376, %v3326
  %v3378 = vpop.permute.xlu0 %3377
  %3379 = vset.pattern.permute.xlu0 0
  %3380 = vperm.xlu0 %3379, %v3327
  %v3381 = vpop.permute.xlu0 %3380
  %3382 = vset.pattern.permute.xlu0 0
  %3383 = vperm.xlu0 %3382, %v3328
  %v3384 = vpop.permute.xlu0 %3383
  %3385 = vset.pattern.permute.xlu0 0
  %3386 = vperm.xlu0 %3385, %v3329
  %v3387 = vpop.permute.xlu0 %3386
  %3388 = vset.pattern.permute.xlu0 0
  %3389 = vperm.xlu0 %3388, %v3330
  %v3390 = vpop.permute.xlu0 %3389
  %3391 = vset.pattern.permute.xlu0 0
  %3392 = vperm.xlu0 %3391, %v3331
  %v3393 = vpop.permute.xlu0 %3392
  %3394 = vset.pattern.permute.xlu0 0
  %3395 = vperm.xlu0 %3394, %v3332
  %v3396 = vpop.permute.xlu0 %3395
  %3397 = vset.pattern.permute.xlu0 0
  %3398 = vperm.xlu0 %3397, %v3333
  %v3399 = vpop.permute.xlu0 %3398
  %3400 = vset.pattern.permute.xlu0 0
  %3401 = vperm.xlu0 %3400, %v3334
  %v3402 = vpop.permute.xlu0 %3401
  %3403 = vset.pattern.permute.xlu0 0
  %3404 = vperm.xlu0 %3403, %v3335
  %v3405 = vpop.permute.xlu0 %3404
  %3406 = vset.pattern.permute.xlu0 0
  %3407 = vperm.xlu0 %3406, %v3336
  %v3408 = vpop.permute.xlu0 %3407
  %3409 = vset.pattern.permute.xlu0 0
  %3410 = vperm.xlu0 %3409, %v3337
  %v3411 = vpop.permute.xlu0 %3410
  %3412 = vset.pattern.permute.xlu0 0
  %3413 = vperm.xlu0 %3412, %v3338
  %v3414 = vpop.permute.xlu0 %3413
  %3415 = vset.pattern.permute.xlu0 0
  %3416 = vperm.xlu0 %3415, %v3339
  %v3417 = vpop.permute.xlu0 %3416
  %3418 = vset.pattern.permute.xlu0 0
  %3419 = vperm.xlu0 %3418, %v3340
  %v3420 = vpop.permute.xlu0 %3419
  %3421 = vset.pattern.permute.xlu0 0
  %3422 = vperm.xlu0 %3421, %v3341
  %v3423 = vpop.permute.xlu0 %3422
  %3424 = vset.pattern.permute.xlu0 0
  %3425 = vperm.xlu0 %3424, %v3342
  %v3426 = vpop.permute.xlu0 %3425
  %3427 = vset.pattern.permute.xlu0 0
  %3428 = vperm.xlu0 %3427, %v3343
  %v3429 = vpop.permute.xlu0 %3428
  %3430 = vset.pattern.permute.xlu0 0
  %3431 = vperm.xlu0 %3430, %v3344
  %v3432 = vpop.permute.xlu0 %3431
  %3433 = vset.pattern.permute.xlu0 0
  %3434 = vperm.xlu0 %3433, %v3345
  %v3435 = vpop.permute.xlu0 %3434
  %3436 = vset.pattern.permute.xlu0 0
  %3437 = vperm.xlu0 %3436, %v3346
  %v3438 = vpop.permute.xlu0 %3437
  %3439 = vset.pattern.permute.xlu0 0
  %3440 = vperm.xlu0 %3439, %v3347
  %v3441 = vpop.permute.xlu0 %3440
  %3442 = vset.pattern.permute.xlu0 0
  %3443 = vperm.xlu0 %3442, %v3348
  %v3444 = vpop.permute.xlu0 %3443
  %v3445 = vlaneseq
  %v3446 = vshrl.u32 %v3445, 7
  %v3447 = vsub.s32 %v845, %v3446
  %v3448 = vrot.slane %v3351, %v3447
  %v3449 = vlaneseq
  %v3450 = vshrl.u32 %v3449, 7
  %v3451 = vsub.s32 %v850, %v3450
  %v3452 = vrot.slane %v3354, %v3451
  %v3453 = vsel %vm855, %v3452, %v3448
  %v3454 = vlaneseq
  %v3455 = vshrl.u32 %v3454, 7
  %v3456 = vsub.s32 %v845, %v3455
  %v3457 = vrot.slane %v3357, %v3456
  %v3458 = vlaneseq
  %v3459 = vshrl.u32 %v3458, 7
  %v3460 = vsub.s32 %v850, %v3459
  %v3461 = vrot.slane %v3360, %v3460
  %v3462 = vsel %vm855, %v3461, %v3457
  %v3463 = vlaneseq
  %v3464 = vshrl.u32 %v3463, 7
  %v3465 = vsub.s32 %v845, %v3464
  %v3466 = vrot.slane %v3363, %v3465
  %v3467 = vlaneseq
  %v3468 = vshrl.u32 %v3467, 7
  %v3469 = vsub.s32 %v850, %v3468
  %v3470 = vrot.slane %v3366, %v3469
  %v3471 = vsel %vm855, %v3470, %v3466
  %v3472 = vlaneseq
  %v3473 = vshrl.u32 %v3472, 7
  %v3474 = vsub.s32 %v845, %v3473
  %v3475 = vrot.slane %v3369, %v3474
  %v3476 = vlaneseq
  %v3477 = vshrl.u32 %v3476, 7
  %v3478 = vsub.s32 %v850, %v3477
  %v3479 = vrot.slane %v3372, %v3478
  %v3480 = vsel %vm855, %v3479, %v3475
  %v3481 = vlaneseq
  %v3482 = vshrl.u32 %v3481, 7
  %v3483 = vsub.s32 %v845, %v3482
  %v3484 = vrot.slane %v3375, %v3483
  %v3485 = vlaneseq
  %v3486 = vshrl.u32 %v3485, 7
  %v3487 = vsub.s32 %v850, %v3486
  %v3488 = vrot.slane %v3378, %v3487
  %v3489 = vsel %vm855, %v3488, %v3484
  %v3490 = vlaneseq
  %v3491 = vshrl.u32 %v3490, 7
  %v3492 = vsub.s32 %v845, %v3491
  %v3493 = vrot.slane %v3381, %v3492
  %v3494 = vlaneseq
  %v3495 = vshrl.u32 %v3494, 7
  %v3496 = vsub.s32 %v850, %v3495
  %v3497 = vrot.slane %v3384, %v3496
  %v3498 = vsel %vm855, %v3497, %v3493
  %v3499 = vlaneseq
  %v3500 = vshrl.u32 %v3499, 7
  %v3501 = vsub.s32 %v845, %v3500
  %v3502 = vrot.slane %v3387, %v3501
  %v3503 = vlaneseq
  %v3504 = vshrl.u32 %v3503, 7
  %v3505 = vsub.s32 %v850, %v3504
  %v3506 = vrot.slane %v3390, %v3505
  %v3507 = vsel %vm855, %v3506, %v3502
  %v3508 = vlaneseq
  %v3509 = vshrl.u32 %v3508, 7
  %v3510 = vsub.s32 %v845, %v3509
  %v3511 = vrot.slane %v3393, %v3510
  %v3512 = vlaneseq
  %v3513 = vshrl.u32 %v3512, 7
  %v3514 = vsub.s32 %v850, %v3513
  %v3515 = vrot.slane %v3396, %v3514
  %v3516 = vsel %vm855, %v3515, %v3511
  %v3517 = vlaneseq
  %v3518 = vshrl.u32 %v3517, 7
  %v3519 = vsub.s32 %v845, %v3518
  %v3520 = vrot.slane %v3399, %v3519
  %v3521 = vlaneseq
  %v3522 = vshrl.u32 %v3521, 7
  %v3523 = vsub.s32 %v850, %v3522
  %v3524 = vrot.slane %v3402, %v3523
  %v3525 = vsel %vm855, %v3524, %v3520
  %v3526 = vlaneseq
  %v3527 = vshrl.u32 %v3526, 7
  %v3528 = vsub.s32 %v845, %v3527
  %v3529 = vrot.slane %v3405, %v3528
  %v3530 = vlaneseq
  %v3531 = vshrl.u32 %v3530, 7
  %v3532 = vsub.s32 %v850, %v3531
  %v3533 = vrot.slane %v3408, %v3532
  %v3534 = vsel %vm855, %v3533, %v3529
  %v3535 = vlaneseq
  %v3536 = vshrl.u32 %v3535, 7
  %v3537 = vsub.s32 %v845, %v3536
  %v3538 = vrot.slane %v3411, %v3537
  %v3539 = vlaneseq
  %v3540 = vshrl.u32 %v3539, 7
  %v3541 = vsub.s32 %v850, %v3540
  %v3542 = vrot.slane %v3414, %v3541
  %v3543 = vsel %vm855, %v3542, %v3538
  %v3544 = vlaneseq
  %v3545 = vshrl.u32 %v3544, 7
  %v3546 = vsub.s32 %v845, %v3545
  %v3547 = vrot.slane %v3417, %v3546
  %v3548 = vlaneseq
  %v3549 = vshrl.u32 %v3548, 7
  %v3550 = vsub.s32 %v850, %v3549
  %v3551 = vrot.slane %v3420, %v3550
  %v3552 = vsel %vm855, %v3551, %v3547
  %v3553 = vlaneseq
  %v3554 = vshrl.u32 %v3553, 7
  %v3555 = vsub.s32 %v845, %v3554
  %v3556 = vrot.slane %v3423, %v3555
  %v3557 = vlaneseq
  %v3558 = vshrl.u32 %v3557, 7
  %v3559 = vsub.s32 %v850, %v3558
  %v3560 = vrot.slane %v3426, %v3559
  %v3561 = vsel %vm855, %v3560, %v3556
  %v3562 = vlaneseq
  %v3563 = vshrl.u32 %v3562, 7
  %v3564 = vsub.s32 %v845, %v3563
  %v3565 = vrot.slane %v3429, %v3564
  %v3566 = vlaneseq
  %v3567 = vshrl.u32 %v3566, 7
  %v3568 = vsub.s32 %v850, %v3567
  %v3569 = vrot.slane %v3432, %v3568
  %v3570 = vsel %vm855, %v3569, %v3565
  %v3571 = vlaneseq
  %v3572 = vshrl.u32 %v3571, 7
  %v3573 = vsub.s32 %v845, %v3572
  %v3574 = vrot.slane %v3435, %v3573
  %v3575 = vlaneseq
  %v3576 = vshrl.u32 %v3575, 7
  %v3577 = vsub.s32 %v850, %v3576
  %v3578 = vrot.slane %v3438, %v3577
  %v3579 = vsel %vm855, %v3578, %v3574
  %v3580 = vlaneseq
  %v3581 = vshrl.u32 %v3580, 7
  %v3582 = vsub.s32 %v845, %v3581
  %v3583 = vrot.slane %v3441, %v3582
  %v3584 = vlaneseq
  %v3585 = vshrl.u32 %v3584, 7
  %v3586 = vsub.s32 %v850, %v3585
  %v3587 = vrot.slane %v3444, %v3586
  %v3588 = vsel %vm855, %v3587, %v3583
  %v3589 = vsel %vm992, %v3462, %v3453
  %v3590 = vsel %vm994, %v3471, %v3589
  %v3591 = vsel %vm996, %v3480, %v3590
  %v3592 = vsel %vm998, %v3489, %v3591
  %v3593 = vsel %vm1000, %v3498, %v3592
  %v3594 = vsel %vm1002, %v3507, %v3593
  %v3595 = vsel %vm1004, %v3516, %v3594
  %v3596 = vsel %vm992, %v3534, %v3525
  %v3597 = vsel %vm994, %v3543, %v3596
  %v3598 = vsel %vm996, %v3552, %v3597
  %v3599 = vsel %vm998, %v3561, %v3598
  %v3600 = vsel %vm1000, %v3570, %v3599
  %v3601 = vsel %vm1002, %v3579, %v3600
  %v3602 = vsel %vm1004, %v3588, %v3601
  %v3603 = vpack.c.b16 %v3602, %v3595
  %3605 = vrot.lane.b32.xlu0 %v57, 96
  %v3606 = vpop.permute.xlu0 %3605
  %v3609 = vsel %vm1015, %v3603, 0
  %3611 = vmatprep.subr.bf16.mxu0 0
  %3612 = vmatpush1.bf16.msra.mxu0 0
  %3613 = vmatprep.subr.bf16.mxu0 0
  %3614 = vmatpush1.bf16.msra.mxu0 0
  %3615 = vmatprep.subr.bf16.mxu0 0
  %3616 = vmatpush1.bf16.msra.mxu0 0
  %3617 = vmatprep.subr.bf16.mxu0 0
  %3618 = vmatpush1.bf16.msra.mxu0 0
  %3619 = vmatprep.subr.bf16.mxu0 0
  %3620 = vmatpush1.bf16.msra.mxu0 0
  %3621 = vmatprep.subr.bf16.mxu0 0
  %3622 = vmatpush1.bf16.msra.mxu0 0
  %3623 = vmatprep.subr.bf16.mxu0 0
  %3624 = vmatpush1.bf16.msra.mxu0 0
  %3625 = vmatprep.subr.bf16.mxu0 0
  %3626 = vmatpush1.bf16.msra.mxu0 %v3606
  %3627 = vmatprep.subr.bf16.mxu0 0
  %3628 = vmatpush2.bf16.msra.mxu0 0
  %3629 = vmatprep.subr.bf16.mxu0 0
  %3630 = vmatpush2.bf16.msra.mxu0 0
  %3631 = vmatprep.subr.bf16.mxu0 0
  %3632 = vmatpush2.bf16.msra.mxu0 0
  %3633 = vmatprep.subr.bf16.mxu0 0
  %3634 = vmatpush2.bf16.msra.mxu0 0
  %3635 = vmatprep.subr.bf16.mxu0 0
  %3636 = vmatpush2.bf16.msra.mxu0 0
  %3637 = vmatprep.subr.bf16.mxu0 0
  %3638 = vmatpush2.bf16.msra.mxu0 0
  %3639 = vmatprep.subr.bf16.mxu0 0
  %3640 = vmatpush2.bf16.msra.mxu0 0
  %3641 = vmatprep.subr.bf16.mxu0 0
  %3642 = vmatpush2.bf16.msra.mxu0 0
  %3643 = vmatprep.mubr.bf16.mxu0 0
  %3644 = vmatmul.mubr.bf16.gmra.mxu0 %v3609
  %v3645 = vpop.f32.mrf.mxu0
  %v3646 = vadd.f32 0.0, %v3645
  %v3647 = vpop.f32.mrf.mxu0
  %v3648 = vpop.f32.mrf.mxu0
  %v3649 = vadd.f32 0.0, %v3648
  %v3650 = vpop.f32.mrf.mxu0
  %3651 = vdwg.mxu0
  %v3652 = vadd.f32 %v3283, %v3646
  %v3653 = vadd.f32 %v3284, %v3649
  %3654 = vst.msk [vmem:[%s3270] sm:$0xff] %vm375, %v3652
  %3655 = vst.msk [vmem:[%s3270 + $0x8] sm:$0xff] %vm375, %v3653
  %3656 = vst.msk [vmem:[%s2478] sm:$0xff] %vm1514, %v2775
  %3657 = vst.msk [vmem:[%s2478 + $0x8] sm:$0xff] %vm1514, %v2776
  %v3658 = vld [vmem:[%s1] sm:$0xff]
  %v3659 = vld [vmem:[%s1 + $0x10] sm:$0xff]
  %v3660 = vld [vmem:[%s0 + $0x8] sm:$0xff]
  %v3661 = vld [vmem:[%s0 + $0x18] sm:$0xff]
  %s3662 = scalar_lea.vmem %s2, 2
  %v3663 = vld [vmem:[%s3662] sm:$0x1]
  %v3666 = vcombine.high %v3660, %v3660
  %v3668 = vunpack.c.l.s4 1966171168
  %v3669 = vunpack.c.0.s8 %v3668
  %v3670 = vlaneseq
  %v3671 = vshrl.u32 %v3670, 7
  %v3672 = vsub.s32 %v3669, %v3671
  %v3673 = vrot.slane %v3660, %v3672
  %v3675 = vunpack.c.l.s4 1966171168
  %v3676 = vunpack.c.0.s8 %v3675
  %v3677 = vlaneseq
  %v3678 = vshrl.u32 %v3677, 7
  %v3679 = vsub.s32 %v3676, %v3678
  %v3680 = vrot.slane %v3666, %v3679
  %v3681 = vcombine.high %v3673, %v3673
  %v3682 = vcombine.high %v3680, %v3680
  %v3684 = vunpack.c.l.s4 1966171168
  %v3685 = vunpack.c.0.s8 %v3684
  %v3686 = vlaneseq
  %v3687 = vshrl.u32 %v3686, 7
  %v3688 = vsub.s32 %v3685, %v3687
  %v3689 = vrot.slane %v3673, %v3688
  %v3691 = vunpack.c.l.s4 1966171168
  %v3692 = vunpack.c.0.s8 %v3691
  %v3693 = vlaneseq
  %v3694 = vshrl.u32 %v3693, 7
  %v3695 = vsub.s32 %v3692, %v3694
  %v3696 = vrot.slane %v3680, %v3695
  %v3698 = vunpack.c.l.s4 1966171168
  %v3699 = vunpack.c.0.s8 %v3698
  %v3700 = vlaneseq
  %v3701 = vshrl.u32 %v3700, 7
  %v3702 = vsub.s32 %v3699, %v3701
  %v3703 = vrot.slane %v3681, %v3702
  %v3705 = vunpack.c.l.s4 1966171168
  %v3706 = vunpack.c.0.s8 %v3705
  %v3707 = vlaneseq
  %v3708 = vshrl.u32 %v3707, 7
  %v3709 = vsub.s32 %v3706, %v3708
  %v3710 = vrot.slane %v3682, %v3709
  %v3711 = vcombine.high %v3689, %v3689
  %v3712 = vcombine.high %v3696, %v3696
  %v3713 = vcombine.high %v3703, %v3703
  %v3714 = vcombine.high %v3710, %v3710
  %v3715 = vcombine.high %v3661, %v3661
  %v3717 = vunpack.c.l.s4 1966171168
  %v3718 = vunpack.c.0.s8 %v3717
  %v3719 = vlaneseq
  %v3720 = vshrl.u32 %v3719, 7
  %v3721 = vsub.s32 %v3718, %v3720
  %v3722 = vrot.slane %v3661, %v3721
  %v3724 = vunpack.c.l.s4 1966171168
  %v3725 = vunpack.c.0.s8 %v3724
  %v3726 = vlaneseq
  %v3727 = vshrl.u32 %v3726, 7
  %v3728 = vsub.s32 %v3725, %v3727
  %v3729 = vrot.slane %v3715, %v3728
  %v3730 = vcombine.high %v3722, %v3722
  %v3731 = vcombine.high %v3729, %v3729
  %v3733 = vunpack.c.l.s4 1966171168
  %v3734 = vunpack.c.0.s8 %v3733
  %v3735 = vlaneseq
  %v3736 = vshrl.u32 %v3735, 7
  %v3737 = vsub.s32 %v3734, %v3736
  %v3738 = vrot.slane %v3722, %v3737
  %v3740 = vunpack.c.l.s4 1966171168
  %v3741 = vunpack.c.0.s8 %v3740
  %v3742 = vlaneseq
  %v3743 = vshrl.u32 %v3742, 7
  %v3744 = vsub.s32 %v3741, %v3743
  %v3745 = vrot.slane %v3729, %v3744
  %v3747 = vunpack.c.l.s4 1966171168
  %v3748 = vunpack.c.0.s8 %v3747
  %v3749 = vlaneseq
  %v3750 = vshrl.u32 %v3749, 7
  %v3751 = vsub.s32 %v3748, %v3750
  %v3752 = vrot.slane %v3730, %v3751
  %v3754 = vunpack.c.l.s4 1966171168
  %v3755 = vunpack.c.0.s8 %v3754
  %v3756 = vlaneseq
  %v3757 = vshrl.u32 %v3756, 7
  %v3758 = vsub.s32 %v3755, %v3757
  %v3759 = vrot.slane %v3731, %v3758
  %v3760 = vcombine.high %v3738, %v3738
  %v3761 = vcombine.high %v3745, %v3745
  %v3762 = vcombine.high %v3752, %v3752
  %v3763 = vcombine.high %v3759, %v3759
  %v3764 = vlaneseq
  %v3765 = vshrl.u32 %v3764, 7
  %v3766 = vsub.s32 0, %v3765
  %v3767 = vrot.slane %v3689, %v3766
  %v3768 = vlaneseq
  %v3769 = vshrl.u32 %v3768, 7
  %v3770 = vsub.s32 0, %v3769
  %v3771 = vrot.slane %v3703, %v3770
  %v3772 = vlaneseq
  %v3773 = vshrl.u32 %v3772, 7
  %v3774 = vsub.s32 0, %v3773
  %v3775 = vrot.slane %v3711, %v3774
  %v3776 = vlaneseq
  %v3777 = vshrl.u32 %v3776, 7
  %v3778 = vsub.s32 0, %v3777
  %v3779 = vrot.slane %v3713, %v3778
  %v3780 = vlaneseq
  %v3781 = vshrl.u32 %v3780, 7
  %v3782 = vsub.s32 0, %v3781
  %v3783 = vrot.slane %v3696, %v3782
  %v3784 = vlaneseq
  %v3785 = vshrl.u32 %v3784, 7
  %v3786 = vsub.s32 0, %v3785
  %v3787 = vrot.slane %v3710, %v3786
  %v3788 = vlaneseq
  %v3789 = vshrl.u32 %v3788, 7
  %v3790 = vsub.s32 0, %v3789
  %v3791 = vrot.slane %v3712, %v3790
  %v3792 = vlaneseq
  %v3793 = vshrl.u32 %v3792, 7
  %v3794 = vsub.s32 0, %v3793
  %v3795 = vrot.slane %v3714, %v3794
  %v3796 = vlaneseq
  %v3797 = vshrl.u32 %v3796, 7
  %v3798 = vsub.s32 0, %v3797
  %v3799 = vrot.slane %v3738, %v3798
  %v3800 = vlaneseq
  %v3801 = vshrl.u32 %v3800, 7
  %v3802 = vsub.s32 0, %v3801
  %v3803 = vrot.slane %v3752, %v3802
  %v3804 = vlaneseq
  %v3805 = vshrl.u32 %v3804, 7
  %v3806 = vsub.s32 0, %v3805
  %v3807 = vrot.slane %v3760, %v3806
  %v3808 = vlaneseq
  %v3809 = vshrl.u32 %v3808, 7
  %v3810 = vsub.s32 0, %v3809
  %v3811 = vrot.slane %v3762, %v3810
  %v3812 = vlaneseq
  %v3813 = vshrl.u32 %v3812, 7
  %v3814 = vsub.s32 0, %v3813
  %v3815 = vrot.slane %v3745, %v3814
  %v3816 = vlaneseq
  %v3817 = vshrl.u32 %v3816, 7
  %v3818 = vsub.s32 0, %v3817
  %v3819 = vrot.slane %v3759, %v3818
  %v3820 = vlaneseq
  %v3821 = vshrl.u32 %v3820, 7
  %v3822 = vsub.s32 0, %v3821
  %v3823 = vrot.slane %v3761, %v3822
  %v3824 = vlaneseq
  %v3825 = vshrl.u32 %v3824, 7
  %v3826 = vsub.s32 0, %v3825
  %v3827 = vrot.slane %v3763, %v3826
  %v3844 = vadd.f32 %v3767, %v3658
  %v3845 = vadd.f32 %v3767, %v3659
  %v3846 = vadd.f32 %v3771, %v3658
  %v3847 = vadd.f32 %v3771, %v3659
  %v3848 = vadd.f32 %v3775, %v3658
  %v3849 = vadd.f32 %v3775, %v3659
  %v3850 = vadd.f32 %v3779, %v3658
  %v3851 = vadd.f32 %v3779, %v3659
  %v3852 = vadd.f32 %v3783, %v3658
  %v3853 = vadd.f32 %v3783, %v3659
  %v3854 = vadd.f32 %v3787, %v3658
  %v3855 = vadd.f32 %v3787, %v3659
  %v3856 = vadd.f32 %v3791, %v3658
  %v3857 = vadd.f32 %v3791, %v3659
  %v3858 = vadd.f32 %v3795, %v3658
  %v3859 = vadd.f32 %v3795, %v3659
  %v3860 = vadd.f32 %v3799, %v3658
  %v3861 = vadd.f32 %v3799, %v3659
  %v3862 = vadd.f32 %v3803, %v3658
  %v3863 = vadd.f32 %v3803, %v3659
  %v3864 = vadd.f32 %v3807, %v3658
  %v3865 = vadd.f32 %v3807, %v3659
  %v3866 = vadd.f32 %v3811, %v3658
  %v3867 = vadd.f32 %v3811, %v3659
  %v3868 = vadd.f32 %v3815, %v3658
  %v3869 = vadd.f32 %v3815, %v3659
  %v3870 = vadd.f32 %v3819, %v3658
  %v3871 = vadd.f32 %v3819, %v3659
  %v3872 = vadd.f32 %v3823, %v3658
  %v3873 = vadd.f32 %v3823, %v3659
  %v3874 = vadd.f32 %v3827, %v3658
  %v3875 = vadd.f32 %v3827, %v3659
  %v3876 = vmul.f32 %v3844, 0.2
  %v3877 = vmul.f32 %v3845, 0.2
  %v3878 = vmul.f32 %v3846, 0.2
  %v3879 = vmul.f32 %v3847, 0.2
  %v3880 = vmul.f32 %v3848, 0.2
  %v3881 = vmul.f32 %v3849, 0.2
  %v3882 = vmul.f32 %v3850, 0.2
  %v3883 = vmul.f32 %v3851, 0.2
  %v3884 = vmul.f32 %v3852, 0.2
  %v3885 = vmul.f32 %v3853, 0.2
  %v3886 = vmul.f32 %v3854, 0.2
  %v3887 = vmul.f32 %v3855, 0.2
  %v3888 = vmul.f32 %v3856, 0.2
  %v3889 = vmul.f32 %v3857, 0.2
  %v3890 = vmul.f32 %v3858, 0.2
  %v3891 = vmul.f32 %v3859, 0.2
  %v3892 = vmul.f32 %v3860, 0.2
  %v3893 = vmul.f32 %v3861, 0.2
  %v3894 = vmul.f32 %v3862, 0.2
  %v3895 = vmul.f32 %v3863, 0.2
  %v3896 = vmul.f32 %v3864, 0.2
  %v3897 = vmul.f32 %v3865, 0.2
  %v3898 = vmul.f32 %v3866, 0.2
  %v3899 = vmul.f32 %v3867, 0.2
  %v3900 = vmul.f32 %v3868, 0.2
  %v3901 = vmul.f32 %v3869, 0.2
  %v3902 = vmul.f32 %v3870, 0.2
  %v3903 = vmul.f32 %v3871, 0.2
  %v3904 = vmul.f32 %v3872, 0.2
  %v3905 = vmul.f32 %v3873, 0.2
  %v3906 = vmul.f32 %v3874, 0.2
  %v3907 = vmul.f32 %v3875, 0.2
  %v3908 = vmax.f32 %v3844, %v3876
  %v3909 = vmax.f32 %v3845, %v3877
  %v3910 = vmax.f32 %v3846, %v3878
  %v3911 = vmax.f32 %v3847, %v3879
  %v3912 = vmax.f32 %v3848, %v3880
  %v3913 = vmax.f32 %v3849, %v3881
  %v3914 = vmax.f32 %v3850, %v3882
  %v3915 = vmax.f32 %v3851, %v3883
  %v3916 = vmax.f32 %v3852, %v3884
  %v3917 = vmax.f32 %v3853, %v3885
  %v3918 = vmax.f32 %v3854, %v3886
  %v3919 = vmax.f32 %v3855, %v3887
  %v3920 = vmax.f32 %v3856, %v3888
  %v3921 = vmax.f32 %v3857, %v3889
  %v3922 = vmax.f32 %v3858, %v3890
  %v3923 = vmax.f32 %v3859, %v3891
  %v3924 = vmax.f32 %v3860, %v3892
  %v3925 = vmax.f32 %v3861, %v3893
  %v3926 = vmax.f32 %v3862, %v3894
  %v3927 = vmax.f32 %v3863, %v3895
  %v3928 = vmax.f32 %v3864, %v3896
  %v3929 = vmax.f32 %v3865, %v3897
  %v3930 = vmax.f32 %v3866, %v3898
  %v3931 = vmax.f32 %v3867, %v3899
  %v3932 = vmax.f32 %v3868, %v3900
  %v3933 = vmax.f32 %v3869, %v3901
  %v3934 = vmax.f32 %v3870, %v3902
  %v3935 = vmax.f32 %v3871, %v3903
  %v3936 = vmax.f32 %v3872, %v3904
  %v3937 = vmax.f32 %v3873, %v3905
  %v3938 = vmax.f32 %v3874, %v3906
  %v3939 = vmax.f32 %v3875, %v3907
  %v3941 = vlaneseq
  %v3942 = vshrl.u32 %v3941, 7
  %v3943 = vsub.s32 0, %v3942
  %v3944 = vrot.slane %v3663, %v3943
  %3945 = vrot.lane.b32.xlu0 %v3944, 64
  %v3946 = vpop.permute.xlu0 %3945
  %v3948 = vmul.f32 %v3908, %v3946
  %v3949 = vmul.f32 %v3909, %v3946
  %v3950 = vmul.f32 %v3910, %v3946
  %v3951 = vmul.f32 %v3911, %v3946
  %v3952 = vmul.f32 %v3912, %v3946
  %v3953 = vmul.f32 %v3913, %v3946
  %v3954 = vmul.f32 %v3914, %v3946
  %v3955 = vmul.f32 %v3915, %v3946
  %v3956 = vmul.f32 %v3916, %v3946
  %v3957 = vmul.f32 %v3917, %v3946
  %v3958 = vmul.f32 %v3918, %v3946
  %v3959 = vmul.f32 %v3919, %v3946
  %v3960 = vmul.f32 %v3920, %v3946
  %v3961 = vmul.f32 %v3921, %v3946
  %v3962 = vmul.f32 %v3922, %v3946
  %v3963 = vmul.f32 %v3923, %v3946
  %v3964 = vmul.f32 %v3924, %v3946
  %v3965 = vmul.f32 %v3925, %v3946
  %v3966 = vmul.f32 %v3926, %v3946
  %v3967 = vmul.f32 %v3927, %v3946
  %v3968 = vmul.f32 %v3928, %v3946
  %v3969 = vmul.f32 %v3929, %v3946
  %v3970 = vmul.f32 %v3930, %v3946
  %v3971 = vmul.f32 %v3931, %v3946
  %v3972 = vmul.f32 %v3932, %v3946
  %v3973 = vmul.f32 %v3933, %v3946
  %v3974 = vmul.f32 %v3934, %v3946
  %v3975 = vmul.f32 %v3935, %v3946
  %v3976 = vmul.f32 %v3936, %v3946
  %v3977 = vmul.f32 %v3937, %v3946
  %v3978 = vmul.f32 %v3938, %v3946
  %v3979 = vmul.f32 %v3939, %v3946
  %4012 = vrot.lane.b32.xlu0 %v3948, 64
  %v4013 = vpop.permute.xlu0 %4012
  %4014 = vrot.lane.b32.xlu0 %v3949, 64
  %v4015 = vpop.permute.xlu0 %4014
  %4016 = vrot.lane.b32.xlu0 %v3950, 64
  %v4017 = vpop.permute.xlu0 %4016
  %4018 = vrot.lane.b32.xlu0 %v3951, 64
  %v4019 = vpop.permute.xlu0 %4018
  %4020 = vrot.lane.b32.xlu0 %v3952, 64
  %v4021 = vpop.permute.xlu0 %4020
  %4022 = vrot.lane.b32.xlu0 %v3953, 64
  %v4023 = vpop.permute.xlu0 %4022
  %4024 = vrot.lane.b32.xlu0 %v3954, 64
  %v4025 = vpop.permute.xlu0 %4024
  %4026 = vrot.lane.b32.xlu0 %v3955, 64
  %v4027 = vpop.permute.xlu0 %4026
  %4028 = vrot.lane.b32.xlu0 %v3956, 64
  %v4029 = vpop.permute.xlu0 %4028
  %4030 = vrot.lane.b32.xlu0 %v3957, 64
  %v4031 = vpop.permute.xlu0 %4030
  %4032 = vrot.lane.b32.xlu0 %v3958, 64
  %v4033 = vpop.permute.xlu0 %4032
  %4034 = vrot.lane.b32.xlu0 %v3959, 64
  %v4035 = vpop.permute.xlu0 %4034
  %4036 = vrot.lane.b32.xlu0 %v3960, 64
  %v4037 = vpop.permute.xlu0 %4036
  %4038 = vrot.lane.b32.xlu0 %v3961, 64
  %v4039 = vpop.permute.xlu0 %4038
  %4040 = vrot.lane.b32.xlu0 %v3962, 64
  %v4041 = vpop.permute.xlu0 %4040
  %4042 = vrot.lane.b32.xlu0 %v3963, 64
  %v4043 = vpop.permute.xlu0 %4042
  %4044 = vrot.lane.b32.xlu0 %v3964, 64
  %v4045 = vpop.permute.xlu0 %4044
  %4046 = vrot.lane.b32.xlu0 %v3965, 64
  %v4047 = vpop.permute.xlu0 %4046
  %4048 = vrot.lane.b32.xlu0 %v3966, 64
  %v4049 = vpop.permute.xlu0 %4048
  %4050 = vrot.lane.b32.xlu0 %v3967, 64
  %v4051 = vpop.permute.xlu0 %4050
  %4052 = vrot.lane.b32.xlu0 %v3968, 64
  %v4053 = vpop.permute.xlu0 %4052
  %4054 = vrot.lane.b32.xlu0 %v3969, 64
  %v4055 = vpop.permute.xlu0 %4054
  %4056 = vrot.lane.b32.xlu0 %v3970, 64
  %v4057 = vpop.permute.xlu0 %4056
  %4058 = vrot.lane.b32.xlu0 %v3971, 64
  %v4059 = vpop.permute.xlu0 %4058
  %4060 = vrot.lane.b32.xlu0 %v3972, 64
  %v4061 = vpop.permute.xlu0 %4060
  %4062 = vrot.lane.b32.xlu0 %v3973, 64
  %v4063 = vpop.permute.xlu0 %4062
  %4064 = vrot.lane.b32.xlu0 %v3974, 64
  %v4065 = vpop.permute.xlu0 %4064
  %4066 = vrot.lane.b32.xlu0 %v3975, 64
  %v4067 = vpop.permute.xlu0 %4066
  %4068 = vrot.lane.b32.xlu0 %v3976, 64
  %v4069 = vpop.permute.xlu0 %4068
  %4070 = vrot.lane.b32.xlu0 %v3977, 64
  %v4071 = vpop.permute.xlu0 %4070
  %4072 = vrot.lane.b32.xlu0 %v3978, 64
  %v4073 = vpop.permute.xlu0 %4072
  %4074 = vrot.lane.b32.xlu0 %v3979, 64
  %v4075 = vpop.permute.xlu0 %4074
  %v4108 = vsel %vm375, %v4013, 0.0
  %4109 = vadd.xlane.f32.xlu0 %v4108
  %v4110 = vpop.xlane.xlu0 %4109
  %v4111 = vsel %vm375, %v4015, 0.0
  %4112 = vadd.xlane.f32.xlu0 %v4111
  %v4113 = vpop.xlane.xlu0 %4112
  %v4114 = vsel %vm375, %v4017, 0.0
  %4115 = vadd.xlane.f32.xlu0 %v4114
  %v4116 = vpop.xlane.xlu0 %4115
  %v4117 = vsel %vm375, %v4019, 0.0
  %4118 = vadd.xlane.f32.xlu0 %v4117
  %v4119 = vpop.xlane.xlu0 %4118
  %v4120 = vsel %vm375, %v4021, 0.0
  %4121 = vadd.xlane.f32.xlu0 %v4120
  %v4122 = vpop.xlane.xlu0 %4121
  %v4123 = vsel %vm375, %v4023, 0.0
  %4124 = vadd.xlane.f32.xlu0 %v4123
  %v4125 = vpop.xlane.xlu0 %4124
  %v4126 = vsel %vm375, %v4025, 0.0
  %4127 = vadd.xlane.f32.xlu0 %v4126
  %v4128 = vpop.xlane.xlu0 %4127
  %v4129 = vsel %vm375, %v4027, 0.0
  %4130 = vadd.xlane.f32.xlu0 %v4129
  %v4131 = vpop.xlane.xlu0 %4130
  %v4132 = vsel %vm375, %v4029, 0.0
  %4133 = vadd.xlane.f32.xlu0 %v4132
  %v4134 = vpop.xlane.xlu0 %4133
  %v4135 = vsel %vm375, %v4031, 0.0
  %4136 = vadd.xlane.f32.xlu0 %v4135
  %v4137 = vpop.xlane.xlu0 %4136
  %v4138 = vsel %vm375, %v4033, 0.0
  %4139 = vadd.xlane.f32.xlu0 %v4138
  %v4140 = vpop.xlane.xlu0 %4139
  %v4141 = vsel %vm375, %v4035, 0.0
  %4142 = vadd.xlane.f32.xlu0 %v4141
  %v4143 = vpop.xlane.xlu0 %4142
  %v4144 = vsel %vm375, %v4037, 0.0
  %4145 = vadd.xlane.f32.xlu0 %v4144
  %v4146 = vpop.xlane.xlu0 %4145
  %v4147 = vsel %vm375, %v4039, 0.0
  %4148 = vadd.xlane.f32.xlu0 %v4147
  %v4149 = vpop.xlane.xlu0 %4148
  %v4150 = vsel %vm375, %v4041, 0.0
  %4151 = vadd.xlane.f32.xlu0 %v4150
  %v4152 = vpop.xlane.xlu0 %4151
  %v4153 = vsel %vm375, %v4043, 0.0
  %4154 = vadd.xlane.f32.xlu0 %v4153
  %v4155 = vpop.xlane.xlu0 %4154
  %v4156 = vsel %vm375, %v4045, 0.0
  %4157 = vadd.xlane.f32.xlu0 %v4156
  %v4158 = vpop.xlane.xlu0 %4157
  %v4159 = vsel %vm375, %v4047, 0.0
  %4160 = vadd.xlane.f32.xlu0 %v4159
  %v4161 = vpop.xlane.xlu0 %4160
  %v4162 = vsel %vm375, %v4049, 0.0
  %4163 = vadd.xlane.f32.xlu0 %v4162
  %v4164 = vpop.xlane.xlu0 %4163
  %v4165 = vsel %vm375, %v4051, 0.0
  %4166 = vadd.xlane.f32.xlu0 %v4165
  %v4167 = vpop.xlane.xlu0 %4166
  %v4168 = vsel %vm375, %v4053, 0.0
  %4169 = vadd.xlane.f32.xlu0 %v4168
  %v4170 = vpop.xlane.xlu0 %4169
  %v4171 = vsel %vm375, %v4055, 0.0
  %4172 = vadd.xlane.f32.xlu0 %v4171
  %v4173 = vpop.xlane.xlu0 %4172
  %v4174 = vsel %vm375, %v4057, 0.0
  %4175 = vadd.xlane.f32.xlu0 %v4174
  %v4176 = vpop.xlane.xlu0 %4175
  %v4177 = vsel %vm375, %v4059, 0.0
  %4178 = vadd.xlane.f32.xlu0 %v4177
  %v4179 = vpop.xlane.xlu0 %4178
  %v4180 = vsel %vm375, %v4061, 0.0
  %4181 = vadd.xlane.f32.xlu0 %v4180
  %v4182 = vpop.xlane.xlu0 %4181
  %v4183 = vsel %vm375, %v4063, 0.0
  %4184 = vadd.xlane.f32.xlu0 %v4183
  %v4185 = vpop.xlane.xlu0 %4184
  %v4186 = vsel %vm375, %v4065, 0.0
  %4187 = vadd.xlane.f32.xlu0 %v4186
  %v4188 = vpop.xlane.xlu0 %4187
  %v4189 = vsel %vm375, %v4067, 0.0
  %4190 = vadd.xlane.f32.xlu0 %v4189
  %v4191 = vpop.xlane.xlu0 %4190
  %v4192 = vsel %vm375, %v4069, 0.0
  %4193 = vadd.xlane.f32.xlu0 %v4192
  %v4194 = vpop.xlane.xlu0 %4193
  %v4195 = vsel %vm375, %v4071, 0.0
  %4196 = vadd.xlane.f32.xlu0 %v4195
  %v4197 = vpop.xlane.xlu0 %4196
  %v4198 = vsel %vm375, %v4073, 0.0
  %4199 = vadd.xlane.f32.xlu0 %v4198
  %v4200 = vpop.xlane.xlu0 %4199
  %v4201 = vsel %vm375, %v4075, 0.0
  %4202 = vadd.xlane.f32.xlu0 %v4201
  %v4203 = vpop.xlane.xlu0 %4202
  %v4204 = vadd.f32 %v4110, %v480
  %v4205 = vadd.f32 %v4113, %v484
  %v4206 = vadd.f32 %v4116, %v491
  %v4207 = vadd.f32 %v4119, %v495
  %v4208 = vadd.f32 %v4122, %v502
  %v4209 = vadd.f32 %v4125, %v506
  %v4210 = vadd.f32 %v4128, %v513
  %v4211 = vadd.f32 %v4131, %v517
  %v4212 = vadd.f32 %v4134, %v524
  %v4213 = vadd.f32 %v4137, %v528
  %v4214 = vadd.f32 %v4140, %v535
  %v4215 = vadd.f32 %v4143, %v539
  %v4216 = vadd.f32 %v4146, %v546
  %v4217 = vadd.f32 %v4149, %v550
  %v4218 = vadd.f32 %v4152, %v557
  %v4219 = vadd.f32 %v4155, %v561
  %v4220 = vadd.f32 %v4158, %v568
  %v4221 = vadd.f32 %v4161, %v572
  %v4222 = vadd.f32 %v4164, %v579
  %v4223 = vadd.f32 %v4167, %v583
  %v4224 = vadd.f32 %v4170, %v590
  %v4225 = vadd.f32 %v4173, %v594
  %v4226 = vadd.f32 %v4176, %v601
  %v4227 = vadd.f32 %v4179, %v605
  %v4228 = vadd.f32 %v4182, %v612
  %v4229 = vadd.f32 %v4185, %v616
  %v4230 = vadd.f32 %v4188, %v623
  %v4231 = vadd.f32 %v4191, %v627
  %v4232 = vadd.f32 %v4194, %v634
  %v4233 = vadd.f32 %v4197, %v638
  %v4234 = vadd.f32 %v4200, %v645
  %v4235 = vadd.f32 %v4203, %v649
  %s4236 = scalar_lea.vmem [#allocation2], 32
  %v4237 = vld [vmem:[%s4236] sm:$0xff]
  %v4238 = vld [vmem:[%s4236 + $0x8] sm:$0xff]
  %4271 = vset.pattern.permute.xlu0 0
  %4272 = vperm.xlu0 %4271, %v4204
  %v4273 = vpop.permute.xlu0 %4272
  %4274 = vset.pattern.permute.xlu0 0
  %4275 = vperm.xlu0 %4274, %v4205
  %v4276 = vpop.permute.xlu0 %4275
  %4277 = vset.pattern.permute.xlu0 0
  %4278 = vperm.xlu0 %4277, %v4206
  %v4279 = vpop.permute.xlu0 %4278
  %4280 = vset.pattern.permute.xlu0 0
  %4281 = vperm.xlu0 %4280, %v4207
  %v4282 = vpop.permute.xlu0 %4281
  %4283 = vset.pattern.permute.xlu0 0
  %4284 = vperm.xlu0 %4283, %v4208
  %v4285 = vpop.permute.xlu0 %4284
  %4286 = vset.pattern.permute.xlu0 0
  %4287 = vperm.xlu0 %4286, %v4209
  %v4288 = vpop.permute.xlu0 %4287
  %4289 = vset.pattern.permute.xlu0 0
  %4290 = vperm.xlu0 %4289, %v4210
  %v4291 = vpop.permute.xlu0 %4290
  %4292 = vset.pattern.permute.xlu0 0
  %4293 = vperm.xlu0 %4292, %v4211
  %v4294 = vpop.permute.xlu0 %4293
  %4295 = vset.pattern.permute.xlu0 0
  %4296 = vperm.xlu0 %4295, %v4212
  %v4297 = vpop.permute.xlu0 %4296
  %4298 = vset.pattern.permute.xlu0 0
  %4299 = vperm.xlu0 %4298, %v4213
  %v4300 = vpop.permute.xlu0 %4299
  %4301 = vset.pattern.permute.xlu0 0
  %4302 = vperm.xlu0 %4301, %v4214
  %v4303 = vpop.permute.xlu0 %4302
  %4304 = vset.pattern.permute.xlu0 0
  %4305 = vperm.xlu0 %4304, %v4215
  %v4306 = vpop.permute.xlu0 %4305
  %4307 = vset.pattern.permute.xlu0 0
  %4308 = vperm.xlu0 %4307, %v4216
  %v4309 = vpop.permute.xlu0 %4308
  %4310 = vset.pattern.permute.xlu0 0
  %4311 = vperm.xlu0 %4310, %v4217
  %v4312 = vpop.permute.xlu0 %4311
  %4313 = vset.pattern.permute.xlu0 0
  %4314 = vperm.xlu0 %4313, %v4218
  %v4315 = vpop.permute.xlu0 %4314
  %4316 = vset.pattern.permute.xlu0 0
  %4317 = vperm.xlu0 %4316, %v4219
  %v4318 = vpop.permute.xlu0 %4317
  %4319 = vset.pattern.permute.xlu0 0
  %4320 = vperm.xlu0 %4319, %v4220
  %v4321 = vpop.permute.xlu0 %4320
  %4322 = vset.pattern.permute.xlu0 0
  %4323 = vperm.xlu0 %4322, %v4221
  %v4324 = vpop.permute.xlu0 %4323
  %4325 = vset.pattern.permute.xlu0 0
  %4326 = vperm.xlu0 %4325, %v4222
  %v4327 = vpop.permute.xlu0 %4326
  %4328 = vset.pattern.permute.xlu0 0
  %4329 = vperm.xlu0 %4328, %v4223
  %v4330 = vpop.permute.xlu0 %4329
  %4331 = vset.pattern.permute.xlu0 0
  %4332 = vperm.xlu0 %4331, %v4224
  %v4333 = vpop.permute.xlu0 %4332
  %4334 = vset.pattern.permute.xlu0 0
  %4335 = vperm.xlu0 %4334, %v4225
  %v4336 = vpop.permute.xlu0 %4335
  %4337 = vset.pattern.permute.xlu0 0
  %4338 = vperm.xlu0 %4337, %v4226
  %v4339 = vpop.permute.xlu0 %4338
  %4340 = vset.pattern.permute.xlu0 0
  %4341 = vperm.xlu0 %4340, %v4227
  %v4342 = vpop.permute.xlu0 %4341
  %4343 = vset.pattern.permute.xlu0 0
  %4344 = vperm.xlu0 %4343, %v4228
  %v4345 = vpop.permute.xlu0 %4344
  %4346 = vset.pattern.permute.xlu0 0
  %4347 = vperm.xlu0 %4346, %v4229
  %v4348 = vpop.permute.xlu0 %4347
  %4349 = vset.pattern.permute.xlu0 0
  %4350 = vperm.xlu0 %4349, %v4230
  %v4351 = vpop.permute.xlu0 %4350
  %4352 = vset.pattern.permute.xlu0 0
  %4353 = vperm.xlu0 %4352, %v4231
  %v4354 = vpop.permute.xlu0 %4353
  %4355 = vset.pattern.permute.xlu0 0
  %4356 = vperm.xlu0 %4355, %v4232
  %v4357 = vpop.permute.xlu0 %4356
  %4358 = vset.pattern.permute.xlu0 0
  %4359 = vperm.xlu0 %4358, %v4233
  %v4360 = vpop.permute.xlu0 %4359
  %4361 = vset.pattern.permute.xlu0 0
  %4362 = vperm.xlu0 %4361, %v4234
  %v4363 = vpop.permute.xlu0 %4362
  %4364 = vset.pattern.permute.xlu0 0
  %4365 = vperm.xlu0 %4364, %v4235
  %v4366 = vpop.permute.xlu0 %4365
  %v4367 = vlaneseq
  %v4368 = vshrl.u32 %v4367, 7
  %v4369 = vsub.s32 %v845, %v4368
  %v4370 = vrot.slane %v4273, %v4369
  %v4371 = vlaneseq
  %v4372 = vshrl.u32 %v4371, 7
  %v4373 = vsub.s32 %v850, %v4372
  %v4374 = vrot.slane %v4276, %v4373
  %v4375 = vsel %vm855, %v4374, %v4370
  %v4376 = vlaneseq
  %v4377 = vshrl.u32 %v4376, 7
  %v4378 = vsub.s32 %v845, %v4377
  %v4379 = vrot.slane %v4279, %v4378
  %v4380 = vlaneseq
  %v4381 = vshrl.u32 %v4380, 7
  %v4382 = vsub.s32 %v850, %v4381
  %v4383 = vrot.slane %v4282, %v4382
  %v4384 = vsel %vm855, %v4383, %v4379
  %v4385 = vlaneseq
  %v4386 = vshrl.u32 %v4385, 7
  %v4387 = vsub.s32 %v845, %v4386
  %v4388 = vrot.slane %v4285, %v4387
  %v4389 = vlaneseq
  %v4390 = vshrl.u32 %v4389, 7
  %v4391 = vsub.s32 %v850, %v4390
  %v4392 = vrot.slane %v4288, %v4391
  %v4393 = vsel %vm855, %v4392, %v4388
  %v4394 = vlaneseq
  %v4395 = vshrl.u32 %v4394, 7
  %v4396 = vsub.s32 %v845, %v4395
  %v4397 = vrot.slane %v4291, %v4396
  %v4398 = vlaneseq
  %v4399 = vshrl.u32 %v4398, 7
  %v4400 = vsub.s32 %v850, %v4399
  %v4401 = vrot.slane %v4294, %v4400
  %v4402 = vsel %vm855, %v4401, %v4397
  %v4403 = vlaneseq
  %v4404 = vshrl.u32 %v4403, 7
  %v4405 = vsub.s32 %v845, %v4404
  %v4406 = vrot.slane %v4297, %v4405
  %v4407 = vlaneseq
  %v4408 = vshrl.u32 %v4407, 7
  %v4409 = vsub.s32 %v850, %v4408
  %v4410 = vrot.slane %v4300, %v4409
  %v4411 = vsel %vm855, %v4410, %v4406
  %v4412 = vlaneseq
  %v4413 = vshrl.u32 %v4412, 7
  %v4414 = vsub.s32 %v845, %v4413
  %v4415 = vrot.slane %v4303, %v4414
  %v4416 = vlaneseq
  %v4417 = vshrl.u32 %v4416, 7
  %v4418 = vsub.s32 %v850, %v4417
  %v4419 = vrot.slane %v4306, %v4418
  %v4420 = vsel %vm855, %v4419, %v4415
  %v4421 = vlaneseq
  %v4422 = vshrl.u32 %v4421, 7
  %v4423 = vsub.s32 %v845, %v4422
  %v4424 = vrot.slane %v4309, %v4423
  %v4425 = vlaneseq
  %v4426 = vshrl.u32 %v4425, 7
  %v4427 = vsub.s32 %v850, %v4426
  %v4428 = vrot.slane %v4312, %v4427
  %v4429 = vsel %vm855, %v4428, %v4424
  %v4430 = vlaneseq
  %v4431 = vshrl.u32 %v4430, 7
  %v4432 = vsub.s32 %v845, %v4431
  %v4433 = vrot.slane %v4315, %v4432
  %v4434 = vlaneseq
  %v4435 = vshrl.u32 %v4434, 7
  %v4436 = vsub.s32 %v850, %v4435
  %v4437 = vrot.slane %v4318, %v4436
  %v4438 = vsel %vm855, %v4437, %v4433
  %v4439 = vlaneseq
  %v4440 = vshrl.u32 %v4439, 7
  %v4441 = vsub.s32 %v845, %v4440
  %v4442 = vrot.slane %v4321, %v4441
  %v4443 = vlaneseq
  %v4444 = vshrl.u32 %v4443, 7
  %v4445 = vsub.s32 %v850, %v4444
  %v4446 = vrot.slane %v4324, %v4445
  %v4447 = vsel %vm855, %v4446, %v4442
  %v4448 = vlaneseq
  %v4449 = vshrl.u32 %v4448, 7
  %v4450 = vsub.s32 %v845, %v4449
  %v4451 = vrot.slane %v4327, %v4450
  %v4452 = vlaneseq
  %v4453 = vshrl.u32 %v4452, 7
  %v4454 = vsub.s32 %v850, %v4453
  %v4455 = vrot.slane %v4330, %v4454
  %v4456 = vsel %vm855, %v4455, %v4451
  %v4457 = vlaneseq
  %v4458 = vshrl.u32 %v4457, 7
  %v4459 = vsub.s32 %v845, %v4458
  %v4460 = vrot.slane %v4333, %v4459
  %v4461 = vlaneseq
  %v4462 = vshrl.u32 %v4461, 7
  %v4463 = vsub.s32 %v850, %v4462
  %v4464 = vrot.slane %v4336, %v4463
  %v4465 = vsel %vm855, %v4464, %v4460
  %v4466 = vlaneseq
  %v4467 = vshrl.u32 %v4466, 7
  %v4468 = vsub.s32 %v845, %v4467
  %v4469 = vrot.slane %v4339, %v4468
  %v4470 = vlaneseq
  %v4471 = vshrl.u32 %v4470, 7
  %v4472 = vsub.s32 %v850, %v4471
  %v4473 = vrot.slane %v4342, %v4472
  %v4474 = vsel %vm855, %v4473, %v4469
  %v4475 = vlaneseq
  %v4476 = vshrl.u32 %v4475, 7
  %v4477 = vsub.s32 %v845, %v4476
  %v4478 = vrot.slane %v4345, %v4477
  %v4479 = vlaneseq
  %v4480 = vshrl.u32 %v4479, 7
  %v4481 = vsub.s32 %v850, %v4480
  %v4482 = vrot.slane %v4348, %v4481
  %v4483 = vsel %vm855, %v4482, %v4478
  %v4484 = vlaneseq
  %v4485 = vshrl.u32 %v4484, 7
  %v4486 = vsub.s32 %v845, %v4485
  %v4487 = vrot.slane %v4351, %v4486
  %v4488 = vlaneseq
  %v4489 = vshrl.u32 %v4488, 7
  %v4490 = vsub.s32 %v850, %v4489
  %v4491 = vrot.slane %v4354, %v4490
  %v4492 = vsel %vm855, %v4491, %v4487
  %v4493 = vlaneseq
  %v4494 = vshrl.u32 %v4493, 7
  %v4495 = vsub.s32 %v845, %v4494
  %v4496 = vrot.slane %v4357, %v4495
  %v4497 = vlaneseq
  %v4498 = vshrl.u32 %v4497, 7
  %v4499 = vsub.s32 %v850, %v4498
  %v4500 = vrot.slane %v4360, %v4499
  %v4501 = vsel %vm855, %v4500, %v4496
  %v4502 = vlaneseq
  %v4503 = vshrl.u32 %v4502, 7
  %v4504 = vsub.s32 %v845, %v4503
  %v4505 = vrot.slane %v4363, %v4504
  %v4506 = vlaneseq
  %v4507 = vshrl.u32 %v4506, 7
  %v4508 = vsub.s32 %v850, %v4507
  %v4509 = vrot.slane %v4366, %v4508
  %v4510 = vsel %vm855, %v4509, %v4505
  %v4511 = vsel %vm992, %v4384, %v4375
  %v4512 = vsel %vm994, %v4393, %v4511
  %v4513 = vsel %vm996, %v4402, %v4512
  %v4514 = vsel %vm998, %v4411, %v4513
  %v4515 = vsel %vm1000, %v4420, %v4514
  %v4516 = vsel %vm1002, %v4429, %v4515
  %v4517 = vsel %vm1004, %v4438, %v4516
  %v4518 = vsel %vm992, %v4456, %v4447
  %v4519 = vsel %vm994, %v4465, %v4518
  %v4520 = vsel %vm996, %v4474, %v4519
  %v4521 = vsel %vm998, %v4483, %v4520
  %v4522 = vsel %vm1000, %v4492, %v4521
  %v4523 = vsel %vm1002, %v4501, %v4522
  %v4524 = vsel %vm1004, %v4510, %v4523
  %v4527 = vsel %vm1015, %v4517, -inf
  %4528 = vmax.xlane.f32.xlu0 %v4527
  %v4529 = vpop.xlane.xlu0 %4528
  %v4530 = vsel %vm1015, %v4524, -inf
  %4531 = vmax.xlane.f32.xlu0 %v4530
  %v4532 = vpop.xlane.xlu0 %4531
  %v4533 = vmax.f32 %v4237, %v4529
  %v4534 = vmax.f32 %v4238, %v4532
  %v4535 = vsub.f32 %v4237, %v4533
  %v4536 = vsub.f32 %v4238, %v4534
  %v4537 = vmul.f32 %v4535, 1.442695
  %v4538 = vpow.pop %v4537
  %v4539 = vmul.f32 %v4536, 1.442695
  %v4540 = vpow.pop %v4539
  %4542 = vset.pattern.permute.xlu0 0
  %4543 = vperm.xlu0 %4542, %v4533
  %v4544 = vpop.permute.xlu0 %4543
  %4546 = vset.pattern.permute.xlu0 0
  %4547 = vperm.xlu0 %4546, %v4534
  %v4548 = vpop.permute.xlu0 %4547
  %v4549 = vlaneseq
  %v4550 = vshrl.u32 %v4549, 7
  %v4551 = vsub.s32 0, %v4550
  %v4552 = vrot.slane %v4544, %v4551
  %v4553 = vlaneseq
  %v4554 = vshrl.u32 %v4553, 7
  %v4555 = vsub.s32 1, %v4554
  %v4556 = vrot.slane %v4544, %v4555
  %v4557 = vlaneseq
  %v4558 = vshrl.u32 %v4557, 7
  %v4559 = vsub.s32 2, %v4558
  %v4560 = vrot.slane %v4544, %v4559
  %v4561 = vlaneseq
  %v4562 = vshrl.u32 %v4561, 7
  %v4563 = vsub.s32 3, %v4562
  %v4564 = vrot.slane %v4544, %v4563
  %v4565 = vlaneseq
  %v4566 = vshrl.u32 %v4565, 7
  %v4567 = vsub.s32 4, %v4566
  %v4568 = vrot.slane %v4544, %v4567
  %v4569 = vlaneseq
  %v4570 = vshrl.u32 %v4569, 7
  %v4571 = vsub.s32 5, %v4570
  %v4572 = vrot.slane %v4544, %v4571
  %v4573 = vlaneseq
  %v4574 = vshrl.u32 %v4573, 7
  %v4575 = vsub.s32 6, %v4574
  %v4576 = vrot.slane %v4544, %v4575
  %v4577 = vlaneseq
  %v4578 = vshrl.u32 %v4577, 7
  %v4579 = vsub.s32 7, %v4578
  %v4580 = vrot.slane %v4544, %v4579
  %v4581 = vlaneseq
  %v4582 = vshrl.u32 %v4581, 7
  %v4583 = vsub.s32 0, %v4582
  %v4584 = vrot.slane %v4548, %v4583
  %v4585 = vlaneseq
  %v4586 = vshrl.u32 %v4585, 7
  %v4587 = vsub.s32 1, %v4586
  %v4588 = vrot.slane %v4548, %v4587
  %v4589 = vlaneseq
  %v4590 = vshrl.u32 %v4589, 7
  %v4591 = vsub.s32 2, %v4590
  %v4592 = vrot.slane %v4548, %v4591
  %v4593 = vlaneseq
  %v4594 = vshrl.u32 %v4593, 7
  %v4595 = vsub.s32 3, %v4594
  %v4596 = vrot.slane %v4548, %v4595
  %v4597 = vlaneseq
  %v4598 = vshrl.u32 %v4597, 7
  %v4599 = vsub.s32 4, %v4598
  %v4600 = vrot.slane %v4548, %v4599
  %v4601 = vlaneseq
  %v4602 = vshrl.u32 %v4601, 7
  %v4603 = vsub.s32 5, %v4602
  %v4604 = vrot.slane %v4548, %v4603
  %v4605 = vlaneseq
  %v4606 = vshrl.u32 %v4605, 7
  %v4607 = vsub.s32 6, %v4606
  %v4608 = vrot.slane %v4548, %v4607
  %v4609 = vlaneseq
  %v4610 = vshrl.u32 %v4609, 7
  %v4611 = vsub.s32 7, %v4610
  %v4612 = vrot.slane %v4548, %v4611
  %v4629 = vsub.f32 %v4204, %v4552
  %v4630 = vsub.f32 %v4205, %v4552
  %v4631 = vsub.f32 %v4206, %v4556
  %v4632 = vsub.f32 %v4207, %v4556
  %v4633 = vsub.f32 %v4208, %v4560
  %v4634 = vsub.f32 %v4209, %v4560
  %v4635 = vsub.f32 %v4210, %v4564
  %v4636 = vsub.f32 %v4211, %v4564
  %v4637 = vsub.f32 %v4212, %v4568
  %v4638 = vsub.f32 %v4213, %v4568
  %v4639 = vsub.f32 %v4214, %v4572
  %v4640 = vsub.f32 %v4215, %v4572
  %v4641 = vsub.f32 %v4216, %v4576
  %v4642 = vsub.f32 %v4217, %v4576
  %v4643 = vsub.f32 %v4218, %v4580
  %v4644 = vsub.f32 %v4219, %v4580
  %v4645 = vsub.f32 %v4220, %v4584
  %v4646 = vsub.f32 %v4221, %v4584
  %v4647 = vsub.f32 %v4222, %v4588
  %v4648 = vsub.f32 %v4223, %v4588
  %v4649 = vsub.f32 %v4224, %v4592
  %v4650 = vsub.f32 %v4225, %v4592
  %v4651 = vsub.f32 %v4226, %v4596
  %v4652 = vsub.f32 %v4227, %v4596
  %v4653 = vsub.f32 %v4228, %v4600
  %v4654 = vsub.f32 %v4229, %v4600
  %v4655 = vsub.f32 %v4230, %v4604
  %v4656 = vsub.f32 %v4231, %v4604
  %v4657 = vsub.f32 %v4232, %v4608
  %v4658 = vsub.f32 %v4233, %v4608
  %v4659 = vsub.f32 %v4234, %v4612
  %v4660 = vsub.f32 %v4235, %v4612
  %v4661 = vmul.f32 %v4629, 1.442695
  %v4662 = vpow.pop %v4661
  %v4663 = vmul.f32 %v4630, 1.442695
  %v4664 = vpow.pop %v4663
  %v4665 = vmul.f32 %v4631, 1.442695
  %v4666 = vpow.pop %v4665
  %v4667 = vmul.f32 %v4632, 1.442695
  %v4668 = vpow.pop %v4667
  %v4669 = vmul.f32 %v4633, 1.442695
  %v4670 = vpow.pop %v4669
  %v4671 = vmul.f32 %v4634, 1.442695
  %v4672 = vpow.pop %v4671
  %v4673 = vmul.f32 %v4635, 1.442695
  %v4674 = vpow.pop %v4673
  %v4675 = vmul.f32 %v4636, 1.442695
  %v4676 = vpow.pop %v4675
  %v4677 = vmul.f32 %v4637, 1.442695
  %v4678 = vpow.pop %v4677
  %v4679 = vmul.f32 %v4638, 1.442695
  %v4680 = vpow.pop %v4679
  %v4681 = vmul.f32 %v4639, 1.442695
  %v4682 = vpow.pop %v4681
  %v4683 = vmul.f32 %v4640, 1.442695
  %v4684 = vpow.pop %v4683
  %v4685 = vmul.f32 %v4641, 1.442695
  %v4686 = vpow.pop %v4685
  %v4687 = vmul.f32 %v4642, 1.442695
  %v4688 = vpow.pop %v4687
  %v4689 = vmul.f32 %v4643, 1.442695
  %v4690 = vpow.pop %v4689
  %v4691 = vmul.f32 %v4644, 1.442695
  %v4692 = vpow.pop %v4691
  %v4693 = vmul.f32 %v4645, 1.442695
  %v4694 = vpow.pop %v4693
  %v4695 = vmul.f32 %v4646, 1.442695
  %v4696 = vpow.pop %v4695
  %v4697 = vmul.f32 %v4647, 1.442695
  %v4698 = vpow.pop %v4697
  %v4699 = vmul.f32 %v4648, 1.442695
  %v4700 = vpow.pop %v4699
  %v4701 = vmul.f32 %v4649, 1.442695
  %v4702 = vpow.pop %v4701
  %v4703 = vmul.f32 %v4650, 1.442695
  %v4704 = vpow.pop %v4703
  %v4705 = vmul.f32 %v4651, 1.442695
  %v4706 = vpow.pop %v4705
  %v4707 = vmul.f32 %v4652, 1.442695
  %v4708 = vpow.pop %v4707
  %v4709 = vmul.f32 %v4653, 1.442695
  %v4710 = vpow.pop %v4709
  %v4711 = vmul.f32 %v4654, 1.442695
  %v4712 = vpow.pop %v4711
  %v4713 = vmul.f32 %v4655, 1.442695
  %v4714 = vpow.pop %v4713
  %v4715 = vmul.f32 %v4656, 1.442695
  %v4716 = vpow.pop %v4715
  %v4717 = vmul.f32 %v4657, 1.442695
  %v4718 = vpow.pop %v4717
  %v4719 = vmul.f32 %v4658, 1.442695
  %v4720 = vpow.pop %v4719
  %v4721 = vmul.f32 %v4659, 1.442695
  %v4722 = vpow.pop %v4721
  %v4723 = vmul.f32 %v4660, 1.442695
  %v4724 = vpow.pop %v4723
  %s4725 = scalar_lea.vmem [#allocation3], 32
  %v4726 = vld [vmem:[%s4725] sm:$0xff]
  %v4727 = vld [vmem:[%s4725 + $0x8] sm:$0xff]
  %v4728 = vmul.f32 %v4538, %v4726
  %v4729 = vmul.f32 %v4540, %v4727
  %4762 = vset.pattern.permute.xlu0 0
  %4763 = vperm.xlu0 %4762, %v4662
  %v4764 = vpop.permute.xlu0 %4763
  %4765 = vset.pattern.permute.xlu0 0
  %4766 = vperm.xlu0 %4765, %v4664
  %v4767 = vpop.permute.xlu0 %4766
  %4768 = vset.pattern.permute.xlu0 0
  %4769 = vperm.xlu0 %4768, %v4666
  %v4770 = vpop.permute.xlu0 %4769
  %4771 = vset.pattern.permute.xlu0 0
  %4772 = vperm.xlu0 %4771, %v4668
  %v4773 = vpop.permute.xlu0 %4772
  %4774 = vset.pattern.permute.xlu0 0
  %4775 = vperm.xlu0 %4774, %v4670
  %v4776 = vpop.permute.xlu0 %4775
  %4777 = vset.pattern.permute.xlu0 0
  %4778 = vperm.xlu0 %4777, %v4672
  %v4779 = vpop.permute.xlu0 %4778
  %4780 = vset.pattern.permute.xlu0 0
  %4781 = vperm.xlu0 %4780, %v4674
  %v4782 = vpop.permute.xlu0 %4781
  %4783 = vset.pattern.permute.xlu0 0
  %4784 = vperm.xlu0 %4783, %v4676
  %v4785 = vpop.permute.xlu0 %4784
  %4786 = vset.pattern.permute.xlu0 0
  %4787 = vperm.xlu0 %4786, %v4678
  %v4788 = vpop.permute.xlu0 %4787
  %4789 = vset.pattern.permute.xlu0 0
  %4790 = vperm.xlu0 %4789, %v4680
  %v4791 = vpop.permute.xlu0 %4790
  %4792 = vset.pattern.permute.xlu0 0
  %4793 = vperm.xlu0 %4792, %v4682
  %v4794 = vpop.permute.xlu0 %4793
  %4795 = vset.pattern.permute.xlu0 0
  %4796 = vperm.xlu0 %4795, %v4684
  %v4797 = vpop.permute.xlu0 %4796
  %4798 = vset.pattern.permute.xlu0 0
  %4799 = vperm.xlu0 %4798, %v4686
  %v4800 = vpop.permute.xlu0 %4799
  %4801 = vset.pattern.permute.xlu0 0
  %4802 = vperm.xlu0 %4801, %v4688
  %v4803 = vpop.permute.xlu0 %4802
  %4804 = vset.pattern.permute.xlu0 0
  %4805 = vperm.xlu0 %4804, %v4690
  %v4806 = vpop.permute.xlu0 %4805
  %4807 = vset.pattern.permute.xlu0 0
  %4808 = vperm.xlu0 %4807, %v4692
  %v4809 = vpop.permute.xlu0 %4808
  %4810 = vset.pattern.permute.xlu0 0
  %4811 = vperm.xlu0 %4810, %v4694
  %v4812 = vpop.permute.xlu0 %4811
  %4813 = vset.pattern.permute.xlu0 0
  %4814 = vperm.xlu0 %4813, %v4696
  %v4815 = vpop.permute.xlu0 %4814
  %4816 = vset.pattern.permute.xlu0 0
  %4817 = vperm.xlu0 %4816, %v4698
  %v4818 = vpop.permute.xlu0 %4817
  %4819 = vset.pattern.permute.xlu0 0
  %4820 = vperm.xlu0 %4819, %v4700
  %v4821 = vpop.permute.xlu0 %4820
  %4822 = vset.pattern.permute.xlu0 0
  %4823 = vperm.xlu0 %4822, %v4702
  %v4824 = vpop.permute.xlu0 %4823
  %4825 = vset.pattern.permute.xlu0 0
  %4826 = vperm.xlu0 %4825, %v4704
  %v4827 = vpop.permute.xlu0 %4826
  %4828 = vset.pattern.permute.xlu0 0
  %4829 = vperm.xlu0 %4828, %v4706
  %v4830 = vpop.permute.xlu0 %4829
  %4831 = vset.pattern.permute.xlu0 0
  %4832 = vperm.xlu0 %4831, %v4708
  %v4833 = vpop.permute.xlu0 %4832
  %4834 = vset.pattern.permute.xlu0 0
  %4835 = vperm.xlu0 %4834, %v4710
  %v4836 = vpop.permute.xlu0 %4835
  %4837 = vset.pattern.permute.xlu0 0
  %4838 = vperm.xlu0 %4837, %v4712
  %v4839 = vpop.permute.xlu0 %4838
  %4840 = vset.pattern.permute.xlu0 0
  %4841 = vperm.xlu0 %4840, %v4714
  %v4842 = vpop.permute.xlu0 %4841
  %4843 = vset.pattern.permute.xlu0 0
  %4844 = vperm.xlu0 %4843, %v4716
  %v4845 = vpop.permute.xlu0 %4844
  %4846 = vset.pattern.permute.xlu0 0
  %4847 = vperm.xlu0 %4846, %v4718
  %v4848 = vpop.permute.xlu0 %4847
  %4849 = vset.pattern.permute.xlu0 0
  %4850 = vperm.xlu0 %4849, %v4720
  %v4851 = vpop.permute.xlu0 %4850
  %4852 = vset.pattern.permute.xlu0 0
  %4853 = vperm.xlu0 %4852, %v4722
  %v4854 = vpop.permute.xlu0 %4853
  %4855 = vset.pattern.permute.xlu0 0
  %4856 = vperm.xlu0 %4855, %v4724
  %v4857 = vpop.permute.xlu0 %4856
  %v4858 = vlaneseq
  %v4859 = vshrl.u32 %v4858, 7
  %v4860 = vsub.s32 %v845, %v4859
  %v4861 = vrot.slane %v4764, %v4860
  %v4862 = vlaneseq
  %v4863 = vshrl.u32 %v4862, 7
  %v4864 = vsub.s32 %v850, %v4863
  %v4865 = vrot.slane %v4767, %v4864
  %v4866 = vsel %vm855, %v4865, %v4861
  %v4867 = vlaneseq
  %v4868 = vshrl.u32 %v4867, 7
  %v4869 = vsub.s32 %v845, %v4868
  %v4870 = vrot.slane %v4770, %v4869
  %v4871 = vlaneseq
  %v4872 = vshrl.u32 %v4871, 7
  %v4873 = vsub.s32 %v850, %v4872
  %v4874 = vrot.slane %v4773, %v4873
  %v4875 = vsel %vm855, %v4874, %v4870
  %v4876 = vlaneseq
  %v4877 = vshrl.u32 %v4876, 7
  %v4878 = vsub.s32 %v845, %v4877
  %v4879 = vrot.slane %v4776, %v4878
  %v4880 = vlaneseq
  %v4881 = vshrl.u32 %v4880, 7
  %v4882 = vsub.s32 %v850, %v4881
  %v4883 = vrot.slane %v4779, %v4882
  %v4884 = vsel %vm855, %v4883, %v4879
  %v4885 = vlaneseq
  %v4886 = vshrl.u32 %v4885, 7
  %v4887 = vsub.s32 %v845, %v4886
  %v4888 = vrot.slane %v4782, %v4887
  %v4889 = vlaneseq
  %v4890 = vshrl.u32 %v4889, 7
  %v4891 = vsub.s32 %v850, %v4890
  %v4892 = vrot.slane %v4785, %v4891
  %v4893 = vsel %vm855, %v4892, %v4888
  %v4894 = vlaneseq
  %v4895 = vshrl.u32 %v4894, 7
  %v4896 = vsub.s32 %v845, %v4895
  %v4897 = vrot.slane %v4788, %v4896
  %v4898 = vlaneseq
  %v4899 = vshrl.u32 %v4898, 7
  %v4900 = vsub.s32 %v850, %v4899
  %v4901 = vrot.slane %v4791, %v4900
  %v4902 = vsel %vm855, %v4901, %v4897
  %v4903 = vlaneseq
  %v4904 = vshrl.u32 %v4903, 7
  %v4905 = vsub.s32 %v845, %v4904
  %v4906 = vrot.slane %v4794, %v4905
  %v4907 = vlaneseq
  %v4908 = vshrl.u32 %v4907, 7
  %v4909 = vsub.s32 %v850, %v4908
  %v4910 = vrot.slane %v4797, %v4909
  %v4911 = vsel %vm855, %v4910, %v4906
  %v4912 = vlaneseq
  %v4913 = vshrl.u32 %v4912, 7
  %v4914 = vsub.s32 %v845, %v4913
  %v4915 = vrot.slane %v4800, %v4914
  %v4916 = vlaneseq
  %v4917 = vshrl.u32 %v4916, 7
  %v4918 = vsub.s32 %v850, %v4917
  %v4919 = vrot.slane %v4803, %v4918
  %v4920 = vsel %vm855, %v4919, %v4915
  %v4921 = vlaneseq
  %v4922 = vshrl.u32 %v4921, 7
  %v4923 = vsub.s32 %v845, %v4922
  %v4924 = vrot.slane %v4806, %v4923
  %v4925 = vlaneseq
  %v4926 = vshrl.u32 %v4925, 7
  %v4927 = vsub.s32 %v850, %v4926
  %v4928 = vrot.slane %v4809, %v4927
  %v4929 = vsel %vm855, %v4928, %v4924
  %v4930 = vlaneseq
  %v4931 = vshrl.u32 %v4930, 7
  %v4932 = vsub.s32 %v845, %v4931
  %v4933 = vrot.slane %v4812, %v4932
  %v4934 = vlaneseq
  %v4935 = vshrl.u32 %v4934, 7
  %v4936 = vsub.s32 %v850, %v4935
  %v4937 = vrot.slane %v4815, %v4936
  %v4938 = vsel %vm855, %v4937, %v4933
  %v4939 = vlaneseq
  %v4940 = vshrl.u32 %v4939, 7
  %v4941 = vsub.s32 %v845, %v4940
  %v4942 = vrot.slane %v4818, %v4941
  %v4943 = vlaneseq
  %v4944 = vshrl.u32 %v4943, 7
  %v4945 = vsub.s32 %v850, %v4944
  %v4946 = vrot.slane %v4821, %v4945
  %v4947 = vsel %vm855, %v4946, %v4942
  %v4948 = vlaneseq
  %v4949 = vshrl.u32 %v4948, 7
  %v4950 = vsub.s32 %v845, %v4949
  %v4951 = vrot.slane %v4824, %v4950
  %v4952 = vlaneseq
  %v4953 = vshrl.u32 %v4952, 7
  %v4954 = vsub.s32 %v850, %v4953
  %v4955 = vrot.slane %v4827, %v4954
  %v4956 = vsel %vm855, %v4955, %v4951
  %v4957 = vlaneseq
  %v4958 = vshrl.u32 %v4957, 7
  %v4959 = vsub.s32 %v845, %v4958
  %v4960 = vrot.slane %v4830, %v4959
  %v4961 = vlaneseq
  %v4962 = vshrl.u32 %v4961, 7
  %v4963 = vsub.s32 %v850, %v4962
  %v4964 = vrot.slane %v4833, %v4963
  %v4965 = vsel %vm855, %v4964, %v4960
  %v4966 = vlaneseq
  %v4967 = vshrl.u32 %v4966, 7
  %v4968 = vsub.s32 %v845, %v4967
  %v4969 = vrot.slane %v4836, %v4968
  %v4970 = vlaneseq
  %v4971 = vshrl.u32 %v4970, 7
  %v4972 = vsub.s32 %v850, %v4971
  %v4973 = vrot.slane %v4839, %v4972
  %v4974 = vsel %vm855, %v4973, %v4969
  %v4975 = vlaneseq
  %v4976 = vshrl.u32 %v4975, 7
  %v4977 = vsub.s32 %v845, %v4976
  %v4978 = vrot.slane %v4842, %v4977
  %v4979 = vlaneseq
  %v4980 = vshrl.u32 %v4979, 7
  %v4981 = vsub.s32 %v850, %v4980
  %v4982 = vrot.slane %v4845, %v4981
  %v4983 = vsel %vm855, %v4982, %v4978
  %v4984 = vlaneseq
  %v4985 = vshrl.u32 %v4984, 7
  %v4986 = vsub.s32 %v845, %v4985
  %v4987 = vrot.slane %v4848, %v4986
  %v4988 = vlaneseq
  %v4989 = vshrl.u32 %v4988, 7
  %v4990 = vsub.s32 %v850, %v4989
  %v4991 = vrot.slane %v4851, %v4990
  %v4992 = vsel %vm855, %v4991, %v4987
  %v4993 = vlaneseq
  %v4994 = vshrl.u32 %v4993, 7
  %v4995 = vsub.s32 %v845, %v4994
  %v4996 = vrot.slane %v4854, %v4995
  %v4997 = vlaneseq
  %v4998 = vshrl.u32 %v4997, 7
  %v4999 = vsub.s32 %v850, %v4998
  %v5000 = vrot.slane %v4857, %v4999
  %v5001 = vsel %vm855, %v5000, %v4996
  %v5002 = vsel %vm992, %v4875, %v4866
  %v5003 = vsel %vm994, %v4884, %v5002
  %v5004 = vsel %vm996, %v4893, %v5003
  %v5005 = vsel %vm998, %v4902, %v5004
  %v5006 = vsel %vm1000, %v4911, %v5005
  %v5007 = vsel %vm1002, %v4920, %v5006
  %v5008 = vsel %vm1004, %v4929, %v5007
  %v5009 = vsel %vm992, %v4947, %v4938
  %v5010 = vsel %vm994, %v4956, %v5009
  %v5011 = vsel %vm996, %v4965, %v5010
  %v5012 = vsel %vm998, %v4974, %v5011
  %v5013 = vsel %vm1000, %v4983, %v5012
  %v5014 = vsel %vm1002, %v4992, %v5013
  %v5015 = vsel %vm1004, %v5001, %v5014
  %v5018 = vsel %vm1015, %v5008, 0.0
  %5019 = vadd.xlane.f32.xlu0 %v5018
  %v5020 = vpop.xlane.xlu0 %5019
  %v5021 = vsel %vm1015, %v5015, 0.0
  %5022 = vadd.xlane.f32.xlu0 %v5021
  %v5023 = vpop.xlane.xlu0 %5022
  %v5024 = vadd.f32 %v4728, %v5020
  %v5025 = vadd.f32 %v4729, %v5023
  %5026 = vst.msk [vmem:[%s4725] sm:$0xff] %vm1514, %v5024
  %5027 = vst.msk [vmem:[%s4725 + $0x8] sm:$0xff] %vm1514, %v5025
  %s5028 = scalar_lea.vmem [#allocation4], 32
  %v5029 = vld [vmem:[%s5028] sm:$0xff]
  %v5030 = vld [vmem:[%s5028 + $0x8] sm:$0xff]
  %5032 = vset.pattern.permute.xlu0 0
  %5033 = vperm.xlu0 %5032, %v4538
  %v5034 = vpop.permute.xlu0 %5033
  %5037 = vset.pattern.permute.xlu0 0
  %5038 = vperm.xlu0 %5037, %v4540
  %v5039 = vpop.permute.xlu0 %5038
  %v5041 = vmul.f32 %v5034, %v5029
  %v5042 = vmul.f32 %v5039, %v5030
  %v5043 = vpack.c.bf16 %v4664, %v4662
  %v5044 = vpack.c.bf16 %v4668, %v4666
  %v5045 = vpack.c.bf16 %v4672, %v4670
  %v5046 = vpack.c.bf16 %v4676, %v4674
  %v5047 = vpack.c.bf16 %v4680, %v4678
  %v5048 = vpack.c.bf16 %v4684, %v4682
  %v5049 = vpack.c.bf16 %v4688, %v4686
  %v5050 = vpack.c.bf16 %v4692, %v4690
  %v5051 = vpack.c.bf16 %v4696, %v4694
  %v5052 = vpack.c.bf16 %v4700, %v4698
  %v5053 = vpack.c.bf16 %v4704, %v4702
  %v5054 = vpack.c.bf16 %v4708, %v4706
  %v5055 = vpack.c.bf16 %v4712, %v4710
  %v5056 = vpack.c.bf16 %v4716, %v4714
  %v5057 = vpack.c.bf16 %v4720, %v4718
  %v5058 = vpack.c.bf16 %v4724, %v4722
  %v5075 = vunpack.c.l.b16 %v5043
  %v5076 = vunpack.c.h.b16 %v5043
  %v5077 = vunpack.c.l.b16 %v5044
  %v5078 = vunpack.c.h.b16 %v5044
  %v5079 = vunpack.c.l.b16 %v5045
  %v5080 = vunpack.c.h.b16 %v5045
  %v5081 = vunpack.c.l.b16 %v5046
  %v5082 = vunpack.c.h.b16 %v5046
  %v5083 = vunpack.c.l.b16 %v5047
  %v5084 = vunpack.c.h.b16 %v5047
  %v5085 = vunpack.c.l.b16 %v5048
  %v5086 = vunpack.c.h.b16 %v5048
  %v5087 = vunpack.c.l.b16 %v5049
  %v5088 = vunpack.c.h.b16 %v5049
  %v5089 = vunpack.c.l.b16 %v5050
  %v5090 = vunpack.c.h.b16 %v5050
  %v5091 = vunpack.c.l.b16 %v5051
  %v5092 = vunpack.c.h.b16 %v5051
  %v5093 = vunpack.c.l.b16 %v5052
  %v5094 = vunpack.c.h.b16 %v5052
  %v5095 = vunpack.c.l.b16 %v5053
  %v5096 = vunpack.c.h.b16 %v5053
  %v5097 = vunpack.c.l.b16 %v5054
  %v5098 = vunpack.c.h.b16 %v5054
  %v5099 = vunpack.c.l.b16 %v5055
  %v5100 = vunpack.c.h.b16 %v5055
  %v5101 = vunpack.c.l.b16 %v5056
  %v5102 = vunpack.c.h.b16 %v5056
  %v5103 = vunpack.c.l.b16 %v5057
  %v5104 = vunpack.c.h.b16 %v5057
  %v5105 = vunpack.c.l.b16 %v5058
  %v5106 = vunpack.c.h.b16 %v5058
  %5107 = vset.pattern.permute.xlu0 0
  %5108 = vperm.xlu0 %5107, %v5075
  %v5109 = vpop.permute.xlu0 %5108
  %5110 = vset.pattern.permute.xlu0 0
  %5111 = vperm.xlu0 %5110, %v5076
  %v5112 = vpop.permute.xlu0 %5111
  %5113 = vset.pattern.permute.xlu0 0
  %5114 = vperm.xlu0 %5113, %v5077
  %v5115 = vpop.permute.xlu0 %5114
  %5116 = vset.pattern.permute.xlu0 0
  %5117 = vperm.xlu0 %5116, %v5078
  %v5118 = vpop.permute.xlu0 %5117
  %5119 = vset.pattern.permute.xlu0 0
  %5120 = vperm.xlu0 %5119, %v5079
  %v5121 = vpop.permute.xlu0 %5120
  %5122 = vset.pattern.permute.xlu0 0
  %5123 = vperm.xlu0 %5122, %v5080
  %v5124 = vpop.permute.xlu0 %5123
  %5125 = vset.pattern.permute.xlu0 0
  %5126 = vperm.xlu0 %5125, %v5081
  %v5127 = vpop.permute.xlu0 %5126
  %5128 = vset.pattern.permute.xlu0 0
  %5129 = vperm.xlu0 %5128, %v5082
  %v5130 = vpop.permute.xlu0 %5129
  %5131 = vset.pattern.permute.xlu0 0
  %5132 = vperm.xlu0 %5131, %v5083
  %v5133 = vpop.permute.xlu0 %5132
  %5134 = vset.pattern.permute.xlu0 0
  %5135 = vperm.xlu0 %5134, %v5084
  %v5136 = vpop.permute.xlu0 %5135
  %5137 = vset.pattern.permute.xlu0 0
  %5138 = vperm.xlu0 %5137, %v5085
  %v5139 = vpop.permute.xlu0 %5138
  %5140 = vset.pattern.permute.xlu0 0
  %5141 = vperm.xlu0 %5140, %v5086
  %v5142 = vpop.permute.xlu0 %5141
  %5143 = vset.pattern.permute.xlu0 0
  %5144 = vperm.xlu0 %5143, %v5087
  %v5145 = vpop.permute.xlu0 %5144
  %5146 = vset.pattern.permute.xlu0 0
  %5147 = vperm.xlu0 %5146, %v5088
  %v5148 = vpop.permute.xlu0 %5147
  %5149 = vset.pattern.permute.xlu0 0
  %5150 = vperm.xlu0 %5149, %v5089
  %v5151 = vpop.permute.xlu0 %5150
  %5152 = vset.pattern.permute.xlu0 0
  %5153 = vperm.xlu0 %5152, %v5090
  %v5154 = vpop.permute.xlu0 %5153
  %5155 = vset.pattern.permute.xlu0 0
  %5156 = vperm.xlu0 %5155, %v5091
  %v5157 = vpop.permute.xlu0 %5156
  %5158 = vset.pattern.permute.xlu0 0
  %5159 = vperm.xlu0 %5158, %v5092
  %v5160 = vpop.permute.xlu0 %5159
  %5161 = vset.pattern.permute.xlu0 0
  %5162 = vperm.xlu0 %5161, %v5093
  %v5163 = vpop.permute.xlu0 %5162
  %5164 = vset.pattern.permute.xlu0 0
  %5165 = vperm.xlu0 %5164, %v5094
  %v5166 = vpop.permute.xlu0 %5165
  %5167 = vset.pattern.permute.xlu0 0
  %5168 = vperm.xlu0 %5167, %v5095
  %v5169 = vpop.permute.xlu0 %5168
  %5170 = vset.pattern.permute.xlu0 0
  %5171 = vperm.xlu0 %5170, %v5096
  %v5172 = vpop.permute.xlu0 %5171
  %5173 = vset.pattern.permute.xlu0 0
  %5174 = vperm.xlu0 %5173, %v5097
  %v5175 = vpop.permute.xlu0 %5174
  %5176 = vset.pattern.permute.xlu0 0
  %5177 = vperm.xlu0 %5176, %v5098
  %v5178 = vpop.permute.xlu0 %5177
  %5179 = vset.pattern.permute.xlu0 0
  %5180 = vperm.xlu0 %5179, %v5099
  %v5181 = vpop.permute.xlu0 %5180
  %5182 = vset.pattern.permute.xlu0 0
  %5183 = vperm.xlu0 %5182, %v5100
  %v5184 = vpop.permute.xlu0 %5183
  %5185 = vset.pattern.permute.xlu0 0
  %5186 = vperm.xlu0 %5185, %v5101
  %v5187 = vpop.permute.xlu0 %5186
  %5188 = vset.pattern.permute.xlu0 0
  %5189 = vperm.xlu0 %5188, %v5102
  %v5190 = vpop.permute.xlu0 %5189
  %5191 = vset.pattern.permute.xlu0 0
  %5192 = vperm.xlu0 %5191, %v5103
  %v5193 = vpop.permute.xlu0 %5192
  %5194 = vset.pattern.permute.xlu0 0
  %5195 = vperm.xlu0 %5194, %v5104
  %v5196 = vpop.permute.xlu0 %5195
  %5197 = vset.pattern.permute.xlu0 0
  %5198 = vperm.xlu0 %5197, %v5105
  %v5199 = vpop.permute.xlu0 %5198
  %5200 = vset.pattern.permute.xlu0 0
  %5201 = vperm.xlu0 %5200, %v5106
  %v5202 = vpop.permute.xlu0 %5201
  %v5203 = vlaneseq
  %v5204 = vshrl.u32 %v5203, 7
  %v5205 = vsub.s32 %v845, %v5204
  %v5206 = vrot.slane %v5109, %v5205
  %v5207 = vlaneseq
  %v5208 = vshrl.u32 %v5207, 7
  %v5209 = vsub.s32 %v850, %v5208
  %v5210 = vrot.slane %v5112, %v5209
  %v5211 = vsel %vm855, %v5210, %v5206
  %v5212 = vlaneseq
  %v5213 = vshrl.u32 %v5212, 7
  %v5214 = vsub.s32 %v845, %v5213
  %v5215 = vrot.slane %v5115, %v5214
  %v5216 = vlaneseq
  %v5217 = vshrl.u32 %v5216, 7
  %v5218 = vsub.s32 %v850, %v5217
  %v5219 = vrot.slane %v5118, %v5218
  %v5220 = vsel %vm855, %v5219, %v5215
  %v5221 = vlaneseq
  %v5222 = vshrl.u32 %v5221, 7
  %v5223 = vsub.s32 %v845, %v5222
  %v5224 = vrot.slane %v5121, %v5223
  %v5225 = vlaneseq
  %v5226 = vshrl.u32 %v5225, 7
  %v5227 = vsub.s32 %v850, %v5226
  %v5228 = vrot.slane %v5124, %v5227
  %v5229 = vsel %vm855, %v5228, %v5224
  %v5230 = vlaneseq
  %v5231 = vshrl.u32 %v5230, 7
  %v5232 = vsub.s32 %v845, %v5231
  %v5233 = vrot.slane %v5127, %v5232
  %v5234 = vlaneseq
  %v5235 = vshrl.u32 %v5234, 7
  %v5236 = vsub.s32 %v850, %v5235
  %v5237 = vrot.slane %v5130, %v5236
  %v5238 = vsel %vm855, %v5237, %v5233
  %v5239 = vlaneseq
  %v5240 = vshrl.u32 %v5239, 7
  %v5241 = vsub.s32 %v845, %v5240
  %v5242 = vrot.slane %v5133, %v5241
  %v5243 = vlaneseq
  %v5244 = vshrl.u32 %v5243, 7
  %v5245 = vsub.s32 %v850, %v5244
  %v5246 = vrot.slane %v5136, %v5245
  %v5247 = vsel %vm855, %v5246, %v5242
  %v5248 = vlaneseq
  %v5249 = vshrl.u32 %v5248, 7
  %v5250 = vsub.s32 %v845, %v5249
  %v5251 = vrot.slane %v5139, %v5250
  %v5252 = vlaneseq
  %v5253 = vshrl.u32 %v5252, 7
  %v5254 = vsub.s32 %v850, %v5253
  %v5255 = vrot.slane %v5142, %v5254
  %v5256 = vsel %vm855, %v5255, %v5251
  %v5257 = vlaneseq
  %v5258 = vshrl.u32 %v5257, 7
  %v5259 = vsub.s32 %v845, %v5258
  %v5260 = vrot.slane %v5145, %v5259
  %v5261 = vlaneseq
  %v5262 = vshrl.u32 %v5261, 7
  %v5263 = vsub.s32 %v850, %v5262
  %v5264 = vrot.slane %v5148, %v5263
  %v5265 = vsel %vm855, %v5264, %v5260
  %v5266 = vlaneseq
  %v5267 = vshrl.u32 %v5266, 7
  %v5268 = vsub.s32 %v845, %v5267
  %v5269 = vrot.slane %v5151, %v5268
  %v5270 = vlaneseq
  %v5271 = vshrl.u32 %v5270, 7
  %v5272 = vsub.s32 %v850, %v5271
  %v5273 = vrot.slane %v5154, %v5272
  %v5274 = vsel %vm855, %v5273, %v5269
  %v5275 = vlaneseq
  %v5276 = vshrl.u32 %v5275, 7
  %v5277 = vsub.s32 %v845, %v5276
  %v5278 = vrot.slane %v5157, %v5277
  %v5279 = vlaneseq
  %v5280 = vshrl.u32 %v5279, 7
  %v5281 = vsub.s32 %v850, %v5280
  %v5282 = vrot.slane %v5160, %v5281
  %v5283 = vsel %vm855, %v5282, %v5278
  %v5284 = vlaneseq
  %v5285 = vshrl.u32 %v5284, 7
  %v5286 = vsub.s32 %v845, %v5285
  %v5287 = vrot.slane %v5163, %v5286
  %v5288 = vlaneseq
  %v5289 = vshrl.u32 %v5288, 7
  %v5290 = vsub.s32 %v850, %v5289
  %v5291 = vrot.slane %v5166, %v5290
  %v5292 = vsel %vm855, %v5291, %v5287
  %v5293 = vlaneseq
  %v5294 = vshrl.u32 %v5293, 7
  %v5295 = vsub.s32 %v845, %v5294
  %v5296 = vrot.slane %v5169, %v5295
  %v5297 = vlaneseq
  %v5298 = vshrl.u32 %v5297, 7
  %v5299 = vsub.s32 %v850, %v5298
  %v5300 = vrot.slane %v5172, %v5299
  %v5301 = vsel %vm855, %v5300, %v5296
  %v5302 = vlaneseq
  %v5303 = vshrl.u32 %v5302, 7
  %v5304 = vsub.s32 %v845, %v5303
  %v5305 = vrot.slane %v5175, %v5304
  %v5306 = vlaneseq
  %v5307 = vshrl.u32 %v5306, 7
  %v5308 = vsub.s32 %v850, %v5307
  %v5309 = vrot.slane %v5178, %v5308
  %v5310 = vsel %vm855, %v5309, %v5305
  %v5311 = vlaneseq
  %v5312 = vshrl.u32 %v5311, 7
  %v5313 = vsub.s32 %v845, %v5312
  %v5314 = vrot.slane %v5181, %v5313
  %v5315 = vlaneseq
  %v5316 = vshrl.u32 %v5315, 7
  %v5317 = vsub.s32 %v850, %v5316
  %v5318 = vrot.slane %v5184, %v5317
  %v5319 = vsel %vm855, %v5318, %v5314
  %v5320 = vlaneseq
  %v5321 = vshrl.u32 %v5320, 7
  %v5322 = vsub.s32 %v845, %v5321
  %v5323 = vrot.slane %v5187, %v5322
  %v5324 = vlaneseq
  %v5325 = vshrl.u32 %v5324, 7
  %v5326 = vsub.s32 %v850, %v5325
  %v5327 = vrot.slane %v5190, %v5326
  %v5328 = vsel %vm855, %v5327, %v5323
  %v5329 = vlaneseq
  %v5330 = vshrl.u32 %v5329, 7
  %v5331 = vsub.s32 %v845, %v5330
  %v5332 = vrot.slane %v5193, %v5331
  %v5333 = vlaneseq
  %v5334 = vshrl.u32 %v5333, 7
  %v5335 = vsub.s32 %v850, %v5334
  %v5336 = vrot.slane %v5196, %v5335
  %v5337 = vsel %vm855, %v5336, %v5332
  %v5338 = vlaneseq
  %v5339 = vshrl.u32 %v5338, 7
  %v5340 = vsub.s32 %v845, %v5339
  %v5341 = vrot.slane %v5199, %v5340
  %v5342 = vlaneseq
  %v5343 = vshrl.u32 %v5342, 7
  %v5344 = vsub.s32 %v850, %v5343
  %v5345 = vrot.slane %v5202, %v5344
  %v5346 = vsel %vm855, %v5345, %v5341
  %v5347 = vsel %vm992, %v5220, %v5211
  %v5348 = vsel %vm994, %v5229, %v5347
  %v5349 = vsel %vm996, %v5238, %v5348
  %v5350 = vsel %vm998, %v5247, %v5349
  %v5351 = vsel %vm1000, %v5256, %v5350
  %v5352 = vsel %vm1002, %v5265, %v5351
  %v5353 = vsel %vm1004, %v5274, %v5352
  %v5354 = vsel %vm992, %v5292, %v5283
  %v5355 = vsel %vm994, %v5301, %v5354
  %v5356 = vsel %vm996, %v5310, %v5355
  %v5357 = vsel %vm998, %v5319, %v5356
  %v5358 = vsel %vm1000, %v5328, %v5357
  %v5359 = vsel %vm1002, %v5337, %v5358
  %v5360 = vsel %vm1004, %v5346, %v5359
  %v5361 = vpack.c.b16 %v5360, %v5353
  %5362 = vrot.lane.b32.xlu0 %v57, 64
  %v5363 = vpop.permute.xlu0 %5362
  %v5366 = vsel %vm1015, %v5361, 0
  %5368 = vmatprep.subr.bf16.mxu0 0
  %5369 = vmatpush1.bf16.msra.mxu0 0
  %5370 = vmatprep.subr.bf16.mxu0 0
  %5371 = vmatpush1.bf16.msra.mxu0 0
  %5372 = vmatprep.subr.bf16.mxu0 0
  %5373 = vmatpush1.bf16.msra.mxu0 0
  %5374 = vmatprep.subr.bf16.mxu0 0
  %5375 = vmatpush1.bf16.msra.mxu0 0
  %5376 = vmatprep.subr.bf16.mxu0 0
  %5377 = vmatpush1.bf16.msra.mxu0 0
  %5378 = vmatprep.subr.bf16.mxu0 0
  %5379 = vmatpush1.bf16.msra.mxu0 0
  %5380 = vmatprep.subr.bf16.mxu0 0
  %5381 = vmatpush1.bf16.msra.mxu0 0
  %5382 = vmatprep.subr.bf16.mxu0 0
  %5383 = vmatpush1.bf16.msra.mxu0 %v5363
  %5384 = vmatprep.subr.bf16.mxu0 0
  %5385 = vmatpush2.bf16.msra.mxu0 0
  %5386 = vmatprep.subr.bf16.mxu0 0
  %5387 = vmatpush2.bf16.msra.mxu0 0
  %5388 = vmatprep.subr.bf16.mxu0 0
  %5389 = vmatpush2.bf16.msra.mxu0 0
  %5390 = vmatprep.subr.bf16.mxu0 0
  %5391 = vmatpush2.bf16.msra.mxu0 0
  %5392 = vmatprep.subr.bf16.mxu0 0
  %5393 = vmatpush2.bf16.msra.mxu0 0
  %5394 = vmatprep.subr.bf16.mxu0 0
  %5395 = vmatpush2.bf16.msra.mxu0 0
  %5396 = vmatprep.subr.bf16.mxu0 0
  %5397 = vmatpush2.bf16.msra.mxu0 0
  %5398 = vmatprep.subr.bf16.mxu0 0
  %5399 = vmatpush2.bf16.msra.mxu0 0
  %5400 = vmatprep.mubr.bf16.mxu0 0
  %5401 = vmatmul.mubr.bf16.gmra.mxu0 %v5366
  %v5402 = vpop.f32.mrf.mxu0
  %v5403 = vadd.f32 0.0, %v5402
  %v5404 = vpop.f32.mrf.mxu0
  %v5405 = vpop.f32.mrf.mxu0
  %v5406 = vadd.f32 0.0, %v5405
  %v5407 = vpop.f32.mrf.mxu0
  %5408 = vdwg.mxu0
  %v5409 = vadd.f32 %v5041, %v5403
  %v5410 = vadd.f32 %v5042, %v5406
  %5411 = vst.msk [vmem:[%s5028] sm:$0xff] %vm375, %v5409
  %5412 = vst.msk [vmem:[%s5028 + $0x8] sm:$0xff] %vm375, %v5410
  %5413 = vst.msk [vmem:[%s4236] sm:$0xff] %vm1514, %v4533
  %5414 = vst.msk [vmem:[%s4236 + $0x8] sm:$0xff] %vm1514, %v4534
  %v5415 = vld [vmem:[%s1] sm:$0xff]
  %v5416 = vld [vmem:[%s1 + $0x10] sm:$0xff]
  %v5417 = vld [vmem:[%s0 + $0x8] sm:$0xff]
  %v5418 = vld [vmem:[%s0 + $0x18] sm:$0xff]
  %s5419 = scalar_lea.vmem %s2, 3
  %v5420 = vld [vmem:[%s5419] sm:$0x1]
  %v5423 = vcombine.high %v5417, %v5417
  %v5425 = vunpack.c.l.s4 1966171168
  %v5426 = vunpack.c.0.s8 %v5425
  %v5427 = vlaneseq
  %v5428 = vshrl.u32 %v5427, 7
  %v5429 = vsub.s32 %v5426, %v5428
  %v5430 = vrot.slane %v5417, %v5429
  %v5432 = vunpack.c.l.s4 1966171168
  %v5433 = vunpack.c.0.s8 %v5432
  %v5434 = vlaneseq
  %v5435 = vshrl.u32 %v5434, 7
  %v5436 = vsub.s32 %v5433, %v5435
  %v5437 = vrot.slane %v5423, %v5436
  %v5438 = vcombine.high %v5430, %v5430
  %v5439 = vcombine.high %v5437, %v5437
  %v5441 = vunpack.c.l.s4 1966171168
  %v5442 = vunpack.c.0.s8 %v5441
  %v5443 = vlaneseq
  %v5444 = vshrl.u32 %v5443, 7
  %v5445 = vsub.s32 %v5442, %v5444
  %v5446 = vrot.slane %v5430, %v5445
  %v5448 = vunpack.c.l.s4 1966171168
  %v5449 = vunpack.c.0.s8 %v5448
  %v5450 = vlaneseq
  %v5451 = vshrl.u32 %v5450, 7
  %v5452 = vsub.s32 %v5449, %v5451
  %v5453 = vrot.slane %v5437, %v5452
  %v5455 = vunpack.c.l.s4 1966171168
  %v5456 = vunpack.c.0.s8 %v5455
  %v5457 = vlaneseq
  %v5458 = vshrl.u32 %v5457, 7
  %v5459 = vsub.s32 %v5456, %v5458
  %v5460 = vrot.slane %v5438, %v5459
  %v5462 = vunpack.c.l.s4 1966171168
  %v5463 = vunpack.c.0.s8 %v5462
  %v5464 = vlaneseq
  %v5465 = vshrl.u32 %v5464, 7
  %v5466 = vsub.s32 %v5463, %v5465
  %v5467 = vrot.slane %v5439, %v5466
  %v5468 = vcombine.high %v5446, %v5446
  %v5469 = vcombine.high %v5453, %v5453
  %v5470 = vcombine.high %v5460, %v5460
  %v5471 = vcombine.high %v5467, %v5467
  %v5472 = vcombine.high %v5418, %v5418
  %v5474 = vunpack.c.l.s4 1966171168
  %v5475 = vunpack.c.0.s8 %v5474
  %v5476 = vlaneseq
  %v5477 = vshrl.u32 %v5476, 7
  %v5478 = vsub.s32 %v5475, %v5477
  %v5479 = vrot.slane %v5418, %v5478
  %v5481 = vunpack.c.l.s4 1966171168
  %v5482 = vunpack.c.0.s8 %v5481
  %v5483 = vlaneseq
  %v5484 = vshrl.u32 %v5483, 7
  %v5485 = vsub.s32 %v5482, %v5484
  %v5486 = vrot.slane %v5472, %v5485
  %v5487 = vcombine.high %v5479, %v5479
  %v5488 = vcombine.high %v5486, %v5486
  %v5490 = vunpack.c.l.s4 1966171168
  %v5491 = vunpack.c.0.s8 %v5490
  %v5492 = vlaneseq
  %v5493 = vshrl.u32 %v5492, 7
  %v5494 = vsub.s32 %v5491, %v5493
  %v5495 = vrot.slane %v5479, %v5494
  %v5497 = vunpack.c.l.s4 1966171168
  %v5498 = vunpack.c.0.s8 %v5497
  %v5499 = vlaneseq
  %v5500 = vshrl.u32 %v5499, 7
  %v5501 = vsub.s32 %v5498, %v5500
  %v5502 = vrot.slane %v5486, %v5501
  %v5504 = vunpack.c.l.s4 1966171168
  %v5505 = vunpack.c.0.s8 %v5504
  %v5506 = vlaneseq
  %v5507 = vshrl.u32 %v5506, 7
  %v5508 = vsub.s32 %v5505, %v5507
  %v5509 = vrot.slane %v5487, %v5508
  %v5511 = vunpack.c.l.s4 1966171168
  %v5512 = vunpack.c.0.s8 %v5511
  %v5513 = vlaneseq
  %v5514 = vshrl.u32 %v5513, 7
  %v5515 = vsub.s32 %v5512, %v5514
  %v5516 = vrot.slane %v5488, %v5515
  %v5517 = vcombine.high %v5495, %v5495
  %v5518 = vcombine.high %v5502, %v5502
  %v5519 = vcombine.high %v5509, %v5509
  %v5520 = vcombine.high %v5516, %v5516
  %v5521 = vlaneseq
  %v5522 = vshrl.u32 %v5521, 7
  %v5523 = vsub.s32 0, %v5522
  %v5524 = vrot.slane %v5446, %v5523
  %v5525 = vlaneseq
  %v5526 = vshrl.u32 %v5525, 7
  %v5527 = vsub.s32 0, %v5526
  %v5528 = vrot.slane %v5460, %v5527
  %v5529 = vlaneseq
  %v5530 = vshrl.u32 %v5529, 7
  %v5531 = vsub.s32 0, %v5530
  %v5532 = vrot.slane %v5468, %v5531
  %v5533 = vlaneseq
  %v5534 = vshrl.u32 %v5533, 7
  %v5535 = vsub.s32 0, %v5534
  %v5536 = vrot.slane %v5470, %v5535
  %v5537 = vlaneseq
  %v5538 = vshrl.u32 %v5537, 7
  %v5539 = vsub.s32 0, %v5538
  %v5540 = vrot.slane %v5453, %v5539
  %v5541 = vlaneseq
  %v5542 = vshrl.u32 %v5541, 7
  %v5543 = vsub.s32 0, %v5542
  %v5544 = vrot.slane %v5467, %v5543
  %v5545 = vlaneseq
  %v5546 = vshrl.u32 %v5545, 7
  %v5547 = vsub.s32 0, %v5546
  %v5548 = vrot.slane %v5469, %v5547
  %v5549 = vlaneseq
  %v5550 = vshrl.u32 %v5549, 7
  %v5551 = vsub.s32 0, %v5550
  %v5552 = vrot.slane %v5471, %v5551
  %v5553 = vlaneseq
  %v5554 = vshrl.u32 %v5553, 7
  %v5555 = vsub.s32 0, %v5554
  %v5556 = vrot.slane %v5495, %v5555
  %v5557 = vlaneseq
  %v5558 = vshrl.u32 %v5557, 7
  %v5559 = vsub.s32 0, %v5558
  %v5560 = vrot.slane %v5509, %v5559
  %v5561 = vlaneseq
  %v5562 = vshrl.u32 %v5561, 7
  %v5563 = vsub.s32 0, %v5562
  %v5564 = vrot.slane %v5517, %v5563
  %v5565 = vlaneseq
  %v5566 = vshrl.u32 %v5565, 7
  %v5567 = vsub.s32 0, %v5566
  %v5568 = vrot.slane %v5519, %v5567
  %v5569 = vlaneseq
  %v5570 = vshrl.u32 %v5569, 7
  %v5571 = vsub.s32 0, %v5570
  %v5572 = vrot.slane %v5502, %v5571
  %v5573 = vlaneseq
  %v5574 = vshrl.u32 %v5573, 7
  %v5575 = vsub.s32 0, %v5574
  %v5576 = vrot.slane %v5516, %v5575
  %v5577 = vlaneseq
  %v5578 = vshrl.u32 %v5577, 7
  %v5579 = vsub.s32 0, %v5578
  %v5580 = vrot.slane %v5518, %v5579
  %v5581 = vlaneseq
  %v5582 = vshrl.u32 %v5581, 7
  %v5583 = vsub.s32 0, %v5582
  %v5584 = vrot.slane %v5520, %v5583
  %v5601 = vadd.f32 %v5524, %v5415
  %v5602 = vadd.f32 %v5524, %v5416
  %v5603 = vadd.f32 %v5528, %v5415
  %v5604 = vadd.f32 %v5528, %v5416
  %v5605 = vadd.f32 %v5532, %v5415
  %v5606 = vadd.f32 %v5532, %v5416
  %v5607 = vadd.f32 %v5536, %v5415
  %v5608 = vadd.f32 %v5536, %v5416
  %v5609 = vadd.f32 %v5540, %v5415
  %v5610 = vadd.f32 %v5540, %v5416
  %v5611 = vadd.f32 %v5544, %v5415
  %v5612 = vadd.f32 %v5544, %v5416
  %v5613 = vadd.f32 %v5548, %v5415
  %v5614 = vadd.f32 %v5548, %v5416
  %v5615 = vadd.f32 %v5552, %v5415
  %v5616 = vadd.f32 %v5552, %v5416
  %v5617 = vadd.f32 %v5556, %v5415
  %v5618 = vadd.f32 %v5556, %v5416
  %v5619 = vadd.f32 %v5560, %v5415
  %v5620 = vadd.f32 %v5560, %v5416
  %v5621 = vadd.f32 %v5564, %v5415
  %v5622 = vadd.f32 %v5564, %v5416
  %v5623 = vadd.f32 %v5568, %v5415
  %v5624 = vadd.f32 %v5568, %v5416
  %v5625 = vadd.f32 %v5572, %v5415
  %v5626 = vadd.f32 %v5572, %v5416
  %v5627 = vadd.f32 %v5576, %v5415
  %v5628 = vadd.f32 %v5576, %v5416
  %v5629 = vadd.f32 %v5580, %v5415
  %v5630 = vadd.f32 %v5580, %v5416
  %v5631 = vadd.f32 %v5584, %v5415
  %v5632 = vadd.f32 %v5584, %v5416
  %v5633 = vmul.f32 %v5601, 0.2
  %v5634 = vmul.f32 %v5602, 0.2
  %v5635 = vmul.f32 %v5603, 0.2
  %v5636 = vmul.f32 %v5604, 0.2
  %v5637 = vmul.f32 %v5605, 0.2
  %v5638 = vmul.f32 %v5606, 0.2
  %v5639 = vmul.f32 %v5607, 0.2
  %v5640 = vmul.f32 %v5608, 0.2
  %v5641 = vmul.f32 %v5609, 0.2
  %v5642 = vmul.f32 %v5610, 0.2
  %v5643 = vmul.f32 %v5611, 0.2
  %v5644 = vmul.f32 %v5612, 0.2
  %v5645 = vmul.f32 %v5613, 0.2
  %v5646 = vmul.f32 %v5614, 0.2
  %v5647 = vmul.f32 %v5615, 0.2
  %v5648 = vmul.f32 %v5616, 0.2
  %v5649 = vmul.f32 %v5617, 0.2
  %v5650 = vmul.f32 %v5618, 0.2
  %v5651 = vmul.f32 %v5619, 0.2
  %v5652 = vmul.f32 %v5620, 0.2
  %v5653 = vmul.f32 %v5621, 0.2
  %v5654 = vmul.f32 %v5622, 0.2
  %v5655 = vmul.f32 %v5623, 0.2
  %v5656 = vmul.f32 %v5624, 0.2
  %v5657 = vmul.f32 %v5625, 0.2
  %v5658 = vmul.f32 %v5626, 0.2
  %v5659 = vmul.f32 %v5627, 0.2
  %v5660 = vmul.f32 %v5628, 0.2
  %v5661 = vmul.f32 %v5629, 0.2
  %v5662 = vmul.f32 %v5630, 0.2
  %v5663 = vmul.f32 %v5631, 0.2
  %v5664 = vmul.f32 %v5632, 0.2
  %v5665 = vmax.f32 %v5601, %v5633
  %v5666 = vmax.f32 %v5602, %v5634
  %v5667 = vmax.f32 %v5603, %v5635
  %v5668 = vmax.f32 %v5604, %v5636
  %v5669 = vmax.f32 %v5605, %v5637
  %v5670 = vmax.f32 %v5606, %v5638
  %v5671 = vmax.f32 %v5607, %v5639
  %v5672 = vmax.f32 %v5608, %v5640
  %v5673 = vmax.f32 %v5609, %v5641
  %v5674 = vmax.f32 %v5610, %v5642
  %v5675 = vmax.f32 %v5611, %v5643
  %v5676 = vmax.f32 %v5612, %v5644
  %v5677 = vmax.f32 %v5613, %v5645
  %v5678 = vmax.f32 %v5614, %v5646
  %v5679 = vmax.f32 %v5615, %v5647
  %v5680 = vmax.f32 %v5616, %v5648
  %v5681 = vmax.f32 %v5617, %v5649
  %v5682 = vmax.f32 %v5618, %v5650
  %v5683 = vmax.f32 %v5619, %v5651
  %v5684 = vmax.f32 %v5620, %v5652
  %v5685 = vmax.f32 %v5621, %v5653
  %v5686 = vmax.f32 %v5622, %v5654
  %v5687 = vmax.f32 %v5623, %v5655
  %v5688 = vmax.f32 %v5624, %v5656
  %v5689 = vmax.f32 %v5625, %v5657
  %v5690 = vmax.f32 %v5626, %v5658
  %v5691 = vmax.f32 %v5627, %v5659
  %v5692 = vmax.f32 %v5628, %v5660
  %v5693 = vmax.f32 %v5629, %v5661
  %v5694 = vmax.f32 %v5630, %v5662
  %v5695 = vmax.f32 %v5631, %v5663
  %v5696 = vmax.f32 %v5632, %v5664
  %v5698 = vlaneseq
  %v5699 = vshrl.u32 %v5698, 7
  %v5700 = vsub.s32 0, %v5699
  %v5701 = vrot.slane %v5420, %v5700
  %5702 = vrot.lane.b32.xlu0 %v5701, 96
  %v5703 = vpop.permute.xlu0 %5702
  %v5705 = vmul.f32 %v5665, %v5703
  %v5706 = vmul.f32 %v5666, %v5703
  %v5707 = vmul.f32 %v5667, %v5703
  %v5708 = vmul.f32 %v5668, %v5703
  %v5709 = vmul.f32 %v5669, %v5703
  %v5710 = vmul.f32 %v5670, %v5703
  %v5711 = vmul.f32 %v5671, %v5703
  %v5712 = vmul.f32 %v5672, %v5703
  %v5713 = vmul.f32 %v5673, %v5703
  %v5714 = vmul.f32 %v5674, %v5703
  %v5715 = vmul.f32 %v5675, %v5703
  %v5716 = vmul.f32 %v5676, %v5703
  %v5717 = vmul.f32 %v5677, %v5703
  %v5718 = vmul.f32 %v5678, %v5703
  %v5719 = vmul.f32 %v5679, %v5703
  %v5720 = vmul.f32 %v5680, %v5703
  %v5721 = vmul.f32 %v5681, %v5703
  %v5722 = vmul.f32 %v5682, %v5703
  %v5723 = vmul.f32 %v5683, %v5703
  %v5724 = vmul.f32 %v5684, %v5703
  %v5725 = vmul.f32 %v5685, %v5703
  %v5726 = vmul.f32 %v5686, %v5703
  %v5727 = vmul.f32 %v5687, %v5703
  %v5728 = vmul.f32 %v5688, %v5703
  %v5729 = vmul.f32 %v5689, %v5703
  %v5730 = vmul.f32 %v5690, %v5703
  %v5731 = vmul.f32 %v5691, %v5703
  %v5732 = vmul.f32 %v5692, %v5703
  %v5733 = vmul.f32 %v5693, %v5703
  %v5734 = vmul.f32 %v5694, %v5703
  %v5735 = vmul.f32 %v5695, %v5703
  %v5736 = vmul.f32 %v5696, %v5703
  %5769 = vrot.lane.b32.xlu0 %v5705, 32
  %v5770 = vpop.permute.xlu0 %5769
  %5771 = vrot.lane.b32.xlu0 %v5706, 32
  %v5772 = vpop.permute.xlu0 %5771
  %5773 = vrot.lane.b32.xlu0 %v5707, 32
  %v5774 = vpop.permute.xlu0 %5773
  %5775 = vrot.lane.b32.xlu0 %v5708, 32
  %v5776 = vpop.permute.xlu0 %5775
  %5777 = vrot.lane.b32.xlu0 %v5709, 32
  %v5778 = vpop.permute.xlu0 %5777
  %5779 = vrot.lane.b32.xlu0 %v5710, 32
  %v5780 = vpop.permute.xlu0 %5779
  %5781 = vrot.lane.b32.xlu0 %v5711, 32
  %v5782 = vpop.permute.xlu0 %5781
  %5783 = vrot.lane.b32.xlu0 %v5712, 32
  %v5784 = vpop.permute.xlu0 %5783
  %5785 = vrot.lane.b32.xlu0 %v5713, 32
  %v5786 = vpop.permute.xlu0 %5785
  %5787 = vrot.lane.b32.xlu0 %v5714, 32
  %v5788 = vpop.permute.xlu0 %5787
  %5789 = vrot.lane.b32.xlu0 %v5715, 32
  %v5790 = vpop.permute.xlu0 %5789
  %5791 = vrot.lane.b32.xlu0 %v5716, 32
  %v5792 = vpop.permute.xlu0 %5791
  %5793 = vrot.lane.b32.xlu0 %v5717, 32
  %v5794 = vpop.permute.xlu0 %5793
  %5795 = vrot.lane.b32.xlu0 %v5718, 32
  %v5796 = vpop.permute.xlu0 %5795
  %5797 = vrot.lane.b32.xlu0 %v5719, 32
  %v5798 = vpop.permute.xlu0 %5797
  %5799 = vrot.lane.b32.xlu0 %v5720, 32
  %v5800 = vpop.permute.xlu0 %5799
  %5801 = vrot.lane.b32.xlu0 %v5721, 32
  %v5802 = vpop.permute.xlu0 %5801
  %5803 = vrot.lane.b32.xlu0 %v5722, 32
  %v5804 = vpop.permute.xlu0 %5803
  %5805 = vrot.lane.b32.xlu0 %v5723, 32
  %v5806 = vpop.permute.xlu0 %5805
  %5807 = vrot.lane.b32.xlu0 %v5724, 32
  %v5808 = vpop.permute.xlu0 %5807
  %5809 = vrot.lane.b32.xlu0 %v5725, 32
  %v5810 = vpop.permute.xlu0 %5809
  %5811 = vrot.lane.b32.xlu0 %v5726, 32
  %v5812 = vpop.permute.xlu0 %5811
  %5813 = vrot.lane.b32.xlu0 %v5727, 32
  %v5814 = vpop.permute.xlu0 %5813
  %5815 = vrot.lane.b32.xlu0 %v5728, 32
  %v5816 = vpop.permute.xlu0 %5815
  %5817 = vrot.lane.b32.xlu0 %v5729, 32
  %v5818 = vpop.permute.xlu0 %5817
  %5819 = vrot.lane.b32.xlu0 %v5730, 32
  %v5820 = vpop.permute.xlu0 %5819
  %5821 = vrot.lane.b32.xlu0 %v5731, 32
  %v5822 = vpop.permute.xlu0 %5821
  %5823 = vrot.lane.b32.xlu0 %v5732, 32
  %v5824 = vpop.permute.xlu0 %5823
  %5825 = vrot.lane.b32.xlu0 %v5733, 32
  %v5826 = vpop.permute.xlu0 %5825
  %5827 = vrot.lane.b32.xlu0 %v5734, 32
  %v5828 = vpop.permute.xlu0 %5827
  %5829 = vrot.lane.b32.xlu0 %v5735, 32
  %v5830 = vpop.permute.xlu0 %5829
  %5831 = vrot.lane.b32.xlu0 %v5736, 32
  %v5832 = vpop.permute.xlu0 %5831
  %v5865 = vsel %vm375, %v5770, 0.0
  %5866 = vadd.xlane.f32.xlu0 %v5865
  %v5867 = vpop.xlane.xlu0 %5866
  %v5868 = vsel %vm375, %v5772, 0.0
  %5869 = vadd.xlane.f32.xlu0 %v5868
  %v5870 = vpop.xlane.xlu0 %5869
  %v5871 = vsel %vm375, %v5774, 0.0
  %5872 = vadd.xlane.f32.xlu0 %v5871
  %v5873 = vpop.xlane.xlu0 %5872
  %v5874 = vsel %vm375, %v5776, 0.0
  %5875 = vadd.xlane.f32.xlu0 %v5874
  %v5876 = vpop.xlane.xlu0 %5875
  %v5877 = vsel %vm375, %v5778, 0.0
  %5878 = vadd.xlane.f32.xlu0 %v5877
  %v5879 = vpop.xlane.xlu0 %5878
  %v5880 = vsel %vm375, %v5780, 0.0
  %5881 = vadd.xlane.f32.xlu0 %v5880
  %v5882 = vpop.xlane.xlu0 %5881
  %v5883 = vsel %vm375, %v5782, 0.0
  %5884 = vadd.xlane.f32.xlu0 %v5883
  %v5885 = vpop.xlane.xlu0 %5884
  %v5886 = vsel %vm375, %v5784, 0.0
  %5887 = vadd.xlane.f32.xlu0 %v5886
  %v5888 = vpop.xlane.xlu0 %5887
  %v5889 = vsel %vm375, %v5786, 0.0
  %5890 = vadd.xlane.f32.xlu0 %v5889
  %v5891 = vpop.xlane.xlu0 %5890
  %v5892 = vsel %vm375, %v5788, 0.0
  %5893 = vadd.xlane.f32.xlu0 %v5892
  %v5894 = vpop.xlane.xlu0 %5893
  %v5895 = vsel %vm375, %v5790, 0.0
  %5896 = vadd.xlane.f32.xlu0 %v5895
  %v5897 = vpop.xlane.xlu0 %5896
  %v5898 = vsel %vm375, %v5792, 0.0
  %5899 = vadd.xlane.f32.xlu0 %v5898
  %v5900 = vpop.xlane.xlu0 %5899
  %v5901 = vsel %vm375, %v5794, 0.0
  %5902 = vadd.xlane.f32.xlu0 %v5901
  %v5903 = vpop.xlane.xlu0 %5902
  %v5904 = vsel %vm375, %v5796, 0.0
  %5905 = vadd.xlane.f32.xlu0 %v5904
  %v5906 = vpop.xlane.xlu0 %5905
  %v5907 = vsel %vm375, %v5798, 0.0
  %5908 = vadd.xlane.f32.xlu0 %v5907
  %v5909 = vpop.xlane.xlu0 %5908
  %v5910 = vsel %vm375, %v5800, 0.0
  %5911 = vadd.xlane.f32.xlu0 %v5910
  %v5912 = vpop.xlane.xlu0 %5911
  %v5913 = vsel %vm375, %v5802, 0.0
  %5914 = vadd.xlane.f32.xlu0 %v5913
  %v5915 = vpop.xlane.xlu0 %5914
  %v5916 = vsel %vm375, %v5804, 0.0
  %5917 = vadd.xlane.f32.xlu0 %v5916
  %v5918 = vpop.xlane.xlu0 %5917
  %v5919 = vsel %vm375, %v5806, 0.0
  %5920 = vadd.xlane.f32.xlu0 %v5919
  %v5921 = vpop.xlane.xlu0 %5920
  %v5922 = vsel %vm375, %v5808, 0.0
  %5923 = vadd.xlane.f32.xlu0 %v5922
  %v5924 = vpop.xlane.xlu0 %5923
  %v5925 = vsel %vm375, %v5810, 0.0
  %5926 = vadd.xlane.f32.xlu0 %v5925
  %v5927 = vpop.xlane.xlu0 %5926
  %v5928 = vsel %vm375, %v5812, 0.0
  %5929 = vadd.xlane.f32.xlu0 %v5928
  %v5930 = vpop.xlane.xlu0 %5929
  %v5931 = vsel %vm375, %v5814, 0.0
  %5932 = vadd.xlane.f32.xlu0 %v5931
  %v5933 = vpop.xlane.xlu0 %5932
  %v5934 = vsel %vm375, %v5816, 0.0
  %5935 = vadd.xlane.f32.xlu0 %v5934
  %v5936 = vpop.xlane.xlu0 %5935
  %v5937 = vsel %vm375, %v5818, 0.0
  %5938 = vadd.xlane.f32.xlu0 %v5937
  %v5939 = vpop.xlane.xlu0 %5938
  %v5940 = vsel %vm375, %v5820, 0.0
  %5941 = vadd.xlane.f32.xlu0 %v5940
  %v5942 = vpop.xlane.xlu0 %5941
  %v5943 = vsel %vm375, %v5822, 0.0
  %5944 = vadd.xlane.f32.xlu0 %v5943
  %v5945 = vpop.xlane.xlu0 %5944
  %v5946 = vsel %vm375, %v5824, 0.0
  %5947 = vadd.xlane.f32.xlu0 %v5946
  %v5948 = vpop.xlane.xlu0 %5947
  %v5949 = vsel %vm375, %v5826, 0.0
  %5950 = vadd.xlane.f32.xlu0 %v5949
  %v5951 = vpop.xlane.xlu0 %5950
  %v5952 = vsel %vm375, %v5828, 0.0
  %5953 = vadd.xlane.f32.xlu0 %v5952
  %v5954 = vpop.xlane.xlu0 %5953
  %v5955 = vsel %vm375, %v5830, 0.0
  %5956 = vadd.xlane.f32.xlu0 %v5955
  %v5957 = vpop.xlane.xlu0 %5956
  %v5958 = vsel %vm375, %v5832, 0.0
  %5959 = vadd.xlane.f32.xlu0 %v5958
  %v5960 = vpop.xlane.xlu0 %5959
  %v5961 = vadd.f32 %v5867, %v480
  %v5962 = vadd.f32 %v5870, %v484
  %v5963 = vadd.f32 %v5873, %v491
  %v5964 = vadd.f32 %v5876, %v495
  %v5965 = vadd.f32 %v5879, %v502
  %v5966 = vadd.f32 %v5882, %v506
  %v5967 = vadd.f32 %v5885, %v513
  %v5968 = vadd.f32 %v5888, %v517
  %v5969 = vadd.f32 %v5891, %v524
  %v5970 = vadd.f32 %v5894, %v528
  %v5971 = vadd.f32 %v5897, %v535
  %v5972 = vadd.f32 %v5900, %v539
  %v5973 = vadd.f32 %v5903, %v546
  %v5974 = vadd.f32 %v5906, %v550
  %v5975 = vadd.f32 %v5909, %v557
  %v5976 = vadd.f32 %v5912, %v561
  %v5977 = vadd.f32 %v5915, %v568
  %v5978 = vadd.f32 %v5918, %v572
  %v5979 = vadd.f32 %v5921, %v579
  %v5980 = vadd.f32 %v5924, %v583
  %v5981 = vadd.f32 %v5927, %v590
  %v5982 = vadd.f32 %v5930, %v594
  %v5983 = vadd.f32 %v5933, %v601
  %v5984 = vadd.f32 %v5936, %v605
  %v5985 = vadd.f32 %v5939, %v612
  %v5986 = vadd.f32 %v5942, %v616
  %v5987 = vadd.f32 %v5945, %v623
  %v5988 = vadd.f32 %v5948, %v627
  %v5989 = vadd.f32 %v5951, %v634
  %v5990 = vadd.f32 %v5954, %v638
  %v5991 = vadd.f32 %v5957, %v645
  %v5992 = vadd.f32 %v5960, %v649
  %s5993 = scalar_lea.vmem [#allocation2], 48
  %v5994 = vld [vmem:[%s5993] sm:$0xff]
  %v5995 = vld [vmem:[%s5993 + $0x8] sm:$0xff]
  %6028 = vset.pattern.permute.xlu0 0
  %6029 = vperm.xlu0 %6028, %v5961
  %v6030 = vpop.permute.xlu0 %6029
  %6031 = vset.pattern.permute.xlu0 0
  %6032 = vperm.xlu0 %6031, %v5962
  %v6033 = vpop.permute.xlu0 %6032
  %6034 = vset.pattern.permute.xlu0 0
  %6035 = vperm.xlu0 %6034, %v5963
  %v6036 = vpop.permute.xlu0 %6035
  %6037 = vset.pattern.permute.xlu0 0
  %6038 = vperm.xlu0 %6037, %v5964
  %v6039 = vpop.permute.xlu0 %6038
  %6040 = vset.pattern.permute.xlu0 0
  %6041 = vperm.xlu0 %6040, %v5965
  %v6042 = vpop.permute.xlu0 %6041
  %6043 = vset.pattern.permute.xlu0 0
  %6044 = vperm.xlu0 %6043, %v5966
  %v6045 = vpop.permute.xlu0 %6044
  %6046 = vset.pattern.permute.xlu0 0
  %6047 = vperm.xlu0 %6046, %v5967
  %v6048 = vpop.permute.xlu0 %6047
  %6049 = vset.pattern.permute.xlu0 0
  %6050 = vperm.xlu0 %6049, %v5968
  %v6051 = vpop.permute.xlu0 %6050
  %6052 = vset.pattern.permute.xlu0 0
  %6053 = vperm.xlu0 %6052, %v5969
  %v6054 = vpop.permute.xlu0 %6053
  %6055 = vset.pattern.permute.xlu0 0
  %6056 = vperm.xlu0 %6055, %v5970
  %v6057 = vpop.permute.xlu0 %6056
  %6058 = vset.pattern.permute.xlu0 0
  %6059 = vperm.xlu0 %6058, %v5971
  %v6060 = vpop.permute.xlu0 %6059
  %6061 = vset.pattern.permute.xlu0 0
  %6062 = vperm.xlu0 %6061, %v5972
  %v6063 = vpop.permute.xlu0 %6062
  %6064 = vset.pattern.permute.xlu0 0
  %6065 = vperm.xlu0 %6064, %v5973
  %v6066 = vpop.permute.xlu0 %6065
  %6067 = vset.pattern.permute.xlu0 0
  %6068 = vperm.xlu0 %6067, %v5974
  %v6069 = vpop.permute.xlu0 %6068
  %6070 = vset.pattern.permute.xlu0 0
  %6071 = vperm.xlu0 %6070, %v5975
  %v6072 = vpop.permute.xlu0 %6071
  %6073 = vset.pattern.permute.xlu0 0
  %6074 = vperm.xlu0 %6073, %v5976
  %v6075 = vpop.permute.xlu0 %6074
  %6076 = vset.pattern.permute.xlu0 0
  %6077 = vperm.xlu0 %6076, %v5977
  %v6078 = vpop.permute.xlu0 %6077
  %6079 = vset.pattern.permute.xlu0 0
  %6080 = vperm.xlu0 %6079, %v5978
  %v6081 = vpop.permute.xlu0 %6080
  %6082 = vset.pattern.permute.xlu0 0
  %6083 = vperm.xlu0 %6082, %v5979
  %v6084 = vpop.permute.xlu0 %6083
  %6085 = vset.pattern.permute.xlu0 0
  %6086 = vperm.xlu0 %6085, %v5980
  %v6087 = vpop.permute.xlu0 %6086
  %6088 = vset.pattern.permute.xlu0 0
  %6089 = vperm.xlu0 %6088, %v5981
  %v6090 = vpop.permute.xlu0 %6089
  %6091 = vset.pattern.permute.xlu0 0
  %6092 = vperm.xlu0 %6091, %v5982
  %v6093 = vpop.permute.xlu0 %6092
  %6094 = vset.pattern.permute.xlu0 0
  %6095 = vperm.xlu0 %6094, %v5983
  %v6096 = vpop.permute.xlu0 %6095
  %6097 = vset.pattern.permute.xlu0 0
  %6098 = vperm.xlu0 %6097, %v5984
  %v6099 = vpop.permute.xlu0 %6098
  %6100 = vset.pattern.permute.xlu0 0
  %6101 = vperm.xlu0 %6100, %v5985
  %v6102 = vpop.permute.xlu0 %6101
  %6103 = vset.pattern.permute.xlu0 0
  %6104 = vperm.xlu0 %6103, %v5986
  %v6105 = vpop.permute.xlu0 %6104
  %6106 = vset.pattern.permute.xlu0 0
  %6107 = vperm.xlu0 %6106, %v5987
  %v6108 = vpop.permute.xlu0 %6107
  %6109 = vset.pattern.permute.xlu0 0
  %6110 = vperm.xlu0 %6109, %v5988
  %v6111 = vpop.permute.xlu0 %6110
  %6112 = vset.pattern.permute.xlu0 0
  %6113 = vperm.xlu0 %6112, %v5989
  %v6114 = vpop.permute.xlu0 %6113
  %6115 = vset.pattern.permute.xlu0 0
  %6116 = vperm.xlu0 %6115, %v5990
  %v6117 = vpop.permute.xlu0 %6116
  %6118 = vset.pattern.permute.xlu0 0
  %6119 = vperm.xlu0 %6118, %v5991
  %v6120 = vpop.permute.xlu0 %6119
  %6121 = vset.pattern.permute.xlu0 0
  %6122 = vperm.xlu0 %6121, %v5992
  %v6123 = vpop.permute.xlu0 %6122
  %v6124 = vlaneseq
  %v6125 = vshrl.u32 %v6124, 7
  %v6126 = vsub.s32 %v845, %v6125
  %v6127 = vrot.slane %v6030, %v6126
  %v6128 = vlaneseq
  %v6129 = vshrl.u32 %v6128, 7
  %v6130 = vsub.s32 %v850, %v6129
  %v6131 = vrot.slane %v6033, %v6130
  %v6132 = vsel %vm855, %v6131, %v6127
  %v6133 = vlaneseq
  %v6134 = vshrl.u32 %v6133, 7
  %v6135 = vsub.s32 %v845, %v6134
  %v6136 = vrot.slane %v6036, %v6135
  %v6137 = vlaneseq
  %v6138 = vshrl.u32 %v6137, 7
  %v6139 = vsub.s32 %v850, %v6138
  %v6140 = vrot.slane %v6039, %v6139
  %v6141 = vsel %vm855, %v6140, %v6136
  %v6142 = vlaneseq
  %v6143 = vshrl.u32 %v6142, 7
  %v6144 = vsub.s32 %v845, %v6143
  %v6145 = vrot.slane %v6042, %v6144
  %v6146 = vlaneseq
  %v6147 = vshrl.u32 %v6146, 7
  %v6148 = vsub.s32 %v850, %v6147
  %v6149 = vrot.slane %v6045, %v6148
  %v6150 = vsel %vm855, %v6149, %v6145
  %v6151 = vlaneseq
  %v6152 = vshrl.u32 %v6151, 7
  %v6153 = vsub.s32 %v845, %v6152
  %v6154 = vrot.slane %v6048, %v6153
  %v6155 = vlaneseq
  %v6156 = vshrl.u32 %v6155, 7
  %v6157 = vsub.s32 %v850, %v6156
  %v6158 = vrot.slane %v6051, %v6157
  %v6159 = vsel %vm855, %v6158, %v6154
  %v6160 = vlaneseq
  %v6161 = vshrl.u32 %v6160, 7
  %v6162 = vsub.s32 %v845, %v6161
  %v6163 = vrot.slane %v6054, %v6162
  %v6164 = vlaneseq
  %v6165 = vshrl.u32 %v6164, 7
  %v6166 = vsub.s32 %v850, %v6165
  %v6167 = vrot.slane %v6057, %v6166
  %v6168 = vsel %vm855, %v6167, %v6163
  %v6169 = vlaneseq
  %v6170 = vshrl.u32 %v6169, 7
  %v6171 = vsub.s32 %v845, %v6170
  %v6172 = vrot.slane %v6060, %v6171
  %v6173 = vlaneseq
  %v6174 = vshrl.u32 %v6173, 7
  %v6175 = vsub.s32 %v850, %v6174
  %v6176 = vrot.slane %v6063, %v6175
  %v6177 = vsel %vm855, %v6176, %v6172
  %v6178 = vlaneseq
  %v6179 = vshrl.u32 %v6178, 7
  %v6180 = vsub.s32 %v845, %v6179
  %v6181 = vrot.slane %v6066, %v6180
  %v6182 = vlaneseq
  %v6183 = vshrl.u32 %v6182, 7
  %v6184 = vsub.s32 %v850, %v6183
  %v6185 = vrot.slane %v6069, %v6184
  %v6186 = vsel %vm855, %v6185, %v6181
  %v6187 = vlaneseq
  %v6188 = vshrl.u32 %v6187, 7
  %v6189 = vsub.s32 %v845, %v6188
  %v6190 = vrot.slane %v6072, %v6189
  %v6191 = vlaneseq
  %v6192 = vshrl.u32 %v6191, 7
  %v6193 = vsub.s32 %v850, %v6192
  %v6194 = vrot.slane %v6075, %v6193
  %v6195 = vsel %vm855, %v6194, %v6190
  %v6196 = vlaneseq
  %v6197 = vshrl.u32 %v6196, 7
  %v6198 = vsub.s32 %v845, %v6197
  %v6199 = vrot.slane %v6078, %v6198
  %v6200 = vlaneseq
  %v6201 = vshrl.u32 %v6200, 7
  %v6202 = vsub.s32 %v850, %v6201
  %v6203 = vrot.slane %v6081, %v6202
  %v6204 = vsel %vm855, %v6203, %v6199
  %v6205 = vlaneseq
  %v6206 = vshrl.u32 %v6205, 7
  %v6207 = vsub.s32 %v845, %v6206
  %v6208 = vrot.slane %v6084, %v6207
  %v6209 = vlaneseq
  %v6210 = vshrl.u32 %v6209, 7
  %v6211 = vsub.s32 %v850, %v6210
  %v6212 = vrot.slane %v6087, %v6211
  %v6213 = vsel %vm855, %v6212, %v6208
  %v6214 = vlaneseq
  %v6215 = vshrl.u32 %v6214, 7
  %v6216 = vsub.s32 %v845, %v6215
  %v6217 = vrot.slane %v6090, %v6216
  %v6218 = vlaneseq
  %v6219 = vshrl.u32 %v6218, 7
  %v6220 = vsub.s32 %v850, %v6219
  %v6221 = vrot.slane %v6093, %v6220
  %v6222 = vsel %vm855, %v6221, %v6217
  %v6223 = vlaneseq
  %v6224 = vshrl.u32 %v6223, 7
  %v6225 = vsub.s32 %v845, %v6224
  %v6226 = vrot.slane %v6096, %v6225
  %v6227 = vlaneseq
  %v6228 = vshrl.u32 %v6227, 7
  %v6229 = vsub.s32 %v850, %v6228
  %v6230 = vrot.slane %v6099, %v6229
  %v6231 = vsel %vm855, %v6230, %v6226
  %v6232 = vlaneseq
  %v6233 = vshrl.u32 %v6232, 7
  %v6234 = vsub.s32 %v845, %v6233
  %v6235 = vrot.slane %v6102, %v6234
  %v6236 = vlaneseq
  %v6237 = vshrl.u32 %v6236, 7
  %v6238 = vsub.s32 %v850, %v6237
  %v6239 = vrot.slane %v6105, %v6238
  %v6240 = vsel %vm855, %v6239, %v6235
  %v6241 = vlaneseq
  %v6242 = vshrl.u32 %v6241, 7
  %v6243 = vsub.s32 %v845, %v6242
  %v6244 = vrot.slane %v6108, %v6243
  %v6245 = vlaneseq
  %v6246 = vshrl.u32 %v6245, 7
  %v6247 = vsub.s32 %v850, %v6246
  %v6248 = vrot.slane %v6111, %v6247
  %v6249 = vsel %vm855, %v6248, %v6244
  %v6250 = vlaneseq
  %v6251 = vshrl.u32 %v6250, 7
  %v6252 = vsub.s32 %v845, %v6251
  %v6253 = vrot.slane %v6114, %v6252
  %v6254 = vlaneseq
  %v6255 = vshrl.u32 %v6254, 7
  %v6256 = vsub.s32 %v850, %v6255
  %v6257 = vrot.slane %v6117, %v6256
  %v6258 = vsel %vm855, %v6257, %v6253
  %v6259 = vlaneseq
  %v6260 = vshrl.u32 %v6259, 7
  %v6261 = vsub.s32 %v845, %v6260
  %v6262 = vrot.slane %v6120, %v6261
  %v6263 = vlaneseq
  %v6264 = vshrl.u32 %v6263, 7
  %v6265 = vsub.s32 %v850, %v6264
  %v6266 = vrot.slane %v6123, %v6265
  %v6267 = vsel %vm855, %v6266, %v6262
  %v6268 = vsel %vm992, %v6141, %v6132
  %v6269 = vsel %vm994, %v6150, %v6268
  %v6270 = vsel %vm996, %v6159, %v6269
  %v6271 = vsel %vm998, %v6168, %v6270
  %v6272 = vsel %vm1000, %v6177, %v6271
  %v6273 = vsel %vm1002, %v6186, %v6272
  %v6274 = vsel %vm1004, %v6195, %v6273
  %v6275 = vsel %vm992, %v6213, %v6204
  %v6276 = vsel %vm994, %v6222, %v6275
  %v6277 = vsel %vm996, %v6231, %v6276
  %v6278 = vsel %vm998, %v6240, %v6277
  %v6279 = vsel %vm1000, %v6249, %v6278
  %v6280 = vsel %vm1002, %v6258, %v6279
  %v6281 = vsel %vm1004, %v6267, %v6280
  %v6284 = vsel %vm1015, %v6274, -inf
  %6285 = vmax.xlane.f32.xlu0 %v6284
  %v6286 = vpop.xlane.xlu0 %6285
  %v6287 = vsel %vm1015, %v6281, -inf
  %6288 = vmax.xlane.f32.xlu0 %v6287
  %v6289 = vpop.xlane.xlu0 %6288
  %v6290 = vmax.f32 %v5994, %v6286
  %v6291 = vmax.f32 %v5995, %v6289
  %v6292 = vsub.f32 %v5994, %v6290
  %v6293 = vsub.f32 %v5995, %v6291
  %v6294 = vmul.f32 %v6292, 1.442695
  %v6295 = vpow.pop %v6294
  %v6296 = vmul.f32 %v6293, 1.442695
  %v6297 = vpow.pop %v6296
  %6299 = vset.pattern.permute.xlu0 0
  %6300 = vperm.xlu0 %6299, %v6290
  %v6301 = vpop.permute.xlu0 %6300
  %6303 = vset.pattern.permute.xlu0 0
  %6304 = vperm.xlu0 %6303, %v6291
  %v6305 = vpop.permute.xlu0 %6304
  %v6306 = vlaneseq
  %v6307 = vshrl.u32 %v6306, 7
  %v6308 = vsub.s32 0, %v6307
  %v6309 = vrot.slane %v6301, %v6308
  %v6310 = vlaneseq
  %v6311 = vshrl.u32 %v6310, 7
  %v6312 = vsub.s32 1, %v6311
  %v6313 = vrot.slane %v6301, %v6312
  %v6314 = vlaneseq
  %v6315 = vshrl.u32 %v6314, 7
  %v6316 = vsub.s32 2, %v6315
  %v6317 = vrot.slane %v6301, %v6316
  %v6318 = vlaneseq
  %v6319 = vshrl.u32 %v6318, 7
  %v6320 = vsub.s32 3, %v6319
  %v6321 = vrot.slane %v6301, %v6320
  %v6322 = vlaneseq
  %v6323 = vshrl.u32 %v6322, 7
  %v6324 = vsub.s32 4, %v6323
  %v6325 = vrot.slane %v6301, %v6324
  %v6326 = vlaneseq
  %v6327 = vshrl.u32 %v6326, 7
  %v6328 = vsub.s32 5, %v6327
  %v6329 = vrot.slane %v6301, %v6328
  %v6330 = vlaneseq
  %v6331 = vshrl.u32 %v6330, 7
  %v6332 = vsub.s32 6, %v6331
  %v6333 = vrot.slane %v6301, %v6332
  %v6334 = vlaneseq
  %v6335 = vshrl.u32 %v6334, 7
  %v6336 = vsub.s32 7, %v6335
  %v6337 = vrot.slane %v6301, %v6336
  %v6338 = vlaneseq
  %v6339 = vshrl.u32 %v6338, 7
  %v6340 = vsub.s32 0, %v6339
  %v6341 = vrot.slane %v6305, %v6340
  %v6342 = vlaneseq
  %v6343 = vshrl.u32 %v6342, 7
  %v6344 = vsub.s32 1, %v6343
  %v6345 = vrot.slane %v6305, %v6344
  %v6346 = vlaneseq
  %v6347 = vshrl.u32 %v6346, 7
  %v6348 = vsub.s32 2, %v6347
  %v6349 = vrot.slane %v6305, %v6348
  %v6350 = vlaneseq
  %v6351 = vshrl.u32 %v6350, 7
  %v6352 = vsub.s32 3, %v6351
  %v6353 = vrot.slane %v6305, %v6352
  %v6354 = vlaneseq
  %v6355 = vshrl.u32 %v6354, 7
  %v6356 = vsub.s32 4, %v6355
  %v6357 = vrot.slane %v6305, %v6356
  %v6358 = vlaneseq
  %v6359 = vshrl.u32 %v6358, 7
  %v6360 = vsub.s32 5, %v6359
  %v6361 = vrot.slane %v6305, %v6360
  %v6362 = vlaneseq
  %v6363 = vshrl.u32 %v6362, 7
  %v6364 = vsub.s32 6, %v6363
  %v6365 = vrot.slane %v6305, %v6364
  %v6366 = vlaneseq
  %v6367 = vshrl.u32 %v6366, 7
  %v6368 = vsub.s32 7, %v6367
  %v6369 = vrot.slane %v6305, %v6368
  %v6386 = vsub.f32 %v5961, %v6309
  %v6387 = vsub.f32 %v5962, %v6309
  %v6388 = vsub.f32 %v5963, %v6313
  %v6389 = vsub.f32 %v5964, %v6313
  %v6390 = vsub.f32 %v5965, %v6317
  %v6391 = vsub.f32 %v5966, %v6317
  %v6392 = vsub.f32 %v5967, %v6321
  %v6393 = vsub.f32 %v5968, %v6321
  %v6394 = vsub.f32 %v5969, %v6325
  %v6395 = vsub.f32 %v5970, %v6325
  %v6396 = vsub.f32 %v5971, %v6329
  %v6397 = vsub.f32 %v5972, %v6329
  %v6398 = vsub.f32 %v5973, %v6333
  %v6399 = vsub.f32 %v5974, %v6333
  %v6400 = vsub.f32 %v5975, %v6337
  %v6401 = vsub.f32 %v5976, %v6337
  %v6402 = vsub.f32 %v5977, %v6341
  %v6403 = vsub.f32 %v5978, %v6341
  %v6404 = vsub.f32 %v5979, %v6345
  %v6405 = vsub.f32 %v5980, %v6345
  %v6406 = vsub.f32 %v5981, %v6349
  %v6407 = vsub.f32 %v5982, %v6349
  %v6408 = vsub.f32 %v5983, %v6353
  %v6409 = vsub.f32 %v5984, %v6353
  %v6410 = vsub.f32 %v5985, %v6357
  %v6411 = vsub.f32 %v5986, %v6357
  %v6412 = vsub.f32 %v5987, %v6361
  %v6413 = vsub.f32 %v5988, %v6361
  %v6414 = vsub.f32 %v5989, %v6365
  %v6415 = vsub.f32 %v5990, %v6365
  %v6416 = vsub.f32 %v5991, %v6369
  %v6417 = vsub.f32 %v5992, %v6369
  %v6418 = vmul.f32 %v6386, 1.442695
  %v6419 = vpow.pop %v6418
  %v6420 = vmul.f32 %v6387, 1.442695
  %v6421 = vpow.pop %v6420
  %v6422 = vmul.f32 %v6388, 1.442695
  %v6423 = vpow.pop %v6422
  %v6424 = vmul.f32 %v6389, 1.442695
  %v6425 = vpow.pop %v6424
  %v6426 = vmul.f32 %v6390, 1.442695
  %v6427 = vpow.pop %v6426
  %v6428 = vmul.f32 %v6391, 1.442695
  %v6429 = vpow.pop %v6428
  %v6430 = vmul.f32 %v6392, 1.442695
  %v6431 = vpow.pop %v6430
  %v6432 = vmul.f32 %v6393, 1.442695
  %v6433 = vpow.pop %v6432
  %v6434 = vmul.f32 %v6394, 1.442695
  %v6435 = vpow.pop %v6434
  %v6436 = vmul.f32 %v6395, 1.442695
  %v6437 = vpow.pop %v6436
  %v6438 = vmul.f32 %v6396, 1.442695
  %v6439 = vpow.pop %v6438
  %v6440 = vmul.f32 %v6397, 1.442695
  %v6441 = vpow.pop %v6440
  %v6442 = vmul.f32 %v6398, 1.442695
  %v6443 = vpow.pop %v6442
  %v6444 = vmul.f32 %v6399, 1.442695
  %v6445 = vpow.pop %v6444
  %v6446 = vmul.f32 %v6400, 1.442695
  %v6447 = vpow.pop %v6446
  %v6448 = vmul.f32 %v6401, 1.442695
  %v6449 = vpow.pop %v6448
  %v6450 = vmul.f32 %v6402, 1.442695
  %v6451 = vpow.pop %v6450
  %v6452 = vmul.f32 %v6403, 1.442695
  %v6453 = vpow.pop %v6452
  %v6454 = vmul.f32 %v6404, 1.442695
  %v6455 = vpow.pop %v6454
  %v6456 = vmul.f32 %v6405, 1.442695
  %v6457 = vpow.pop %v6456
  %v6458 = vmul.f32 %v6406, 1.442695
  %v6459 = vpow.pop %v6458
  %v6460 = vmul.f32 %v6407, 1.442695
  %v6461 = vpow.pop %v6460
  %v6462 = vmul.f32 %v6408, 1.442695
  %v6463 = vpow.pop %v6462
  %v6464 = vmul.f32 %v6409, 1.442695
  %v6465 = vpow.pop %v6464
  %v6466 = vmul.f32 %v6410, 1.442695
  %v6467 = vpow.pop %v6466
  %v6468 = vmul.f32 %v6411, 1.442695
  %v6469 = vpow.pop %v6468
  %v6470 = vmul.f32 %v6412, 1.442695
  %v6471 = vpow.pop %v6470
  %v6472 = vmul.f32 %v6413, 1.442695
  %v6473 = vpow.pop %v6472
  %v6474 = vmul.f32 %v6414, 1.442695
  %v6475 = vpow.pop %v6474
  %v6476 = vmul.f32 %v6415, 1.442695
  %v6477 = vpow.pop %v6476
  %v6478 = vmul.f32 %v6416, 1.442695
  %v6479 = vpow.pop %v6478
  %v6480 = vmul.f32 %v6417, 1.442695
  %v6481 = vpow.pop %v6480
  %s6482 = scalar_lea.vmem [#allocation3], 48
  %v6483 = vld [vmem:[%s6482] sm:$0xff]
  %v6484 = vld [vmem:[%s6482 + $0x8] sm:$0xff]
  %v6485 = vmul.f32 %v6295, %v6483
  %v6486 = vmul.f32 %v6297, %v6484
  %6519 = vset.pattern.permute.xlu0 0
  %6520 = vperm.xlu0 %6519, %v6419
  %v6521 = vpop.permute.xlu0 %6520
  %6522 = vset.pattern.permute.xlu0 0
  %6523 = vperm.xlu0 %6522, %v6421
  %v6524 = vpop.permute.xlu0 %6523
  %6525 = vset.pattern.permute.xlu0 0
  %6526 = vperm.xlu0 %6525, %v6423
  %v6527 = vpop.permute.xlu0 %6526
  %6528 = vset.pattern.permute.xlu0 0
  %6529 = vperm.xlu0 %6528, %v6425
  %v6530 = vpop.permute.xlu0 %6529
  %6531 = vset.pattern.permute.xlu0 0
  %6532 = vperm.xlu0 %6531, %v6427
  %v6533 = vpop.permute.xlu0 %6532
  %6534 = vset.pattern.permute.xlu0 0
  %6535 = vperm.xlu0 %6534, %v6429
  %v6536 = vpop.permute.xlu0 %6535
  %6537 = vset.pattern.permute.xlu0 0
  %6538 = vperm.xlu0 %6537, %v6431
  %v6539 = vpop.permute.xlu0 %6538
  %6540 = vset.pattern.permute.xlu0 0
  %6541 = vperm.xlu0 %6540, %v6433
  %v6542 = vpop.permute.xlu0 %6541
  %6543 = vset.pattern.permute.xlu0 0
  %6544 = vperm.xlu0 %6543, %v6435
  %v6545 = vpop.permute.xlu0 %6544
  %6546 = vset.pattern.permute.xlu0 0
  %6547 = vperm.xlu0 %6546, %v6437
  %v6548 = vpop.permute.xlu0 %6547
  %6549 = vset.pattern.permute.xlu0 0
  %6550 = vperm.xlu0 %6549, %v6439
  %v6551 = vpop.permute.xlu0 %6550
  %6552 = vset.pattern.permute.xlu0 0
  %6553 = vperm.xlu0 %6552, %v6441
  %v6554 = vpop.permute.xlu0 %6553
  %6555 = vset.pattern.permute.xlu0 0
  %6556 = vperm.xlu0 %6555, %v6443
  %v6557 = vpop.permute.xlu0 %6556
  %6558 = vset.pattern.permute.xlu0 0
  %6559 = vperm.xlu0 %6558, %v6445
  %v6560 = vpop.permute.xlu0 %6559
  %6561 = vset.pattern.permute.xlu0 0
  %6562 = vperm.xlu0 %6561, %v6447
  %v6563 = vpop.permute.xlu0 %6562
  %6564 = vset.pattern.permute.xlu0 0
  %6565 = vperm.xlu0 %6564, %v6449
  %v6566 = vpop.permute.xlu0 %6565
  %6567 = vset.pattern.permute.xlu0 0
  %6568 = vperm.xlu0 %6567, %v6451
  %v6569 = vpop.permute.xlu0 %6568
  %6570 = vset.pattern.permute.xlu0 0
  %6571 = vperm.xlu0 %6570, %v6453
  %v6572 = vpop.permute.xlu0 %6571
  %6573 = vset.pattern.permute.xlu0 0
  %6574 = vperm.xlu0 %6573, %v6455
  %v6575 = vpop.permute.xlu0 %6574
  %6576 = vset.pattern.permute.xlu0 0
  %6577 = vperm.xlu0 %6576, %v6457
  %v6578 = vpop.permute.xlu0 %6577
  %6579 = vset.pattern.permute.xlu0 0
  %6580 = vperm.xlu0 %6579, %v6459
  %v6581 = vpop.permute.xlu0 %6580
  %6582 = vset.pattern.permute.xlu0 0
  %6583 = vperm.xlu0 %6582, %v6461
  %v6584 = vpop.permute.xlu0 %6583
  %6585 = vset.pattern.permute.xlu0 0
  %6586 = vperm.xlu0 %6585, %v6463
  %v6587 = vpop.permute.xlu0 %6586
  %6588 = vset.pattern.permute.xlu0 0
  %6589 = vperm.xlu0 %6588, %v6465
  %v6590 = vpop.permute.xlu0 %6589
  %6591 = vset.pattern.permute.xlu0 0
  %6592 = vperm.xlu0 %6591, %v6467
  %v6593 = vpop.permute.xlu0 %6592
  %6594 = vset.pattern.permute.xlu0 0
  %6595 = vperm.xlu0 %6594, %v6469
  %v6596 = vpop.permute.xlu0 %6595
  %6597 = vset.pattern.permute.xlu0 0
  %6598 = vperm.xlu0 %6597, %v6471
  %v6599 = vpop.permute.xlu0 %6598
  %6600 = vset.pattern.permute.xlu0 0
  %6601 = vperm.xlu0 %6600, %v6473
  %v6602 = vpop.permute.xlu0 %6601
  %6603 = vset.pattern.permute.xlu0 0
  %6604 = vperm.xlu0 %6603, %v6475
  %v6605 = vpop.permute.xlu0 %6604
  %6606 = vset.pattern.permute.xlu0 0
  %6607 = vperm.xlu0 %6606, %v6477
  %v6608 = vpop.permute.xlu0 %6607
  %6609 = vset.pattern.permute.xlu0 0
  %6610 = vperm.xlu0 %6609, %v6479
  %v6611 = vpop.permute.xlu0 %6610
  %6612 = vset.pattern.permute.xlu0 0
  %6613 = vperm.xlu0 %6612, %v6481
  %v6614 = vpop.permute.xlu0 %6613
  %v6615 = vlaneseq
  %v6616 = vshrl.u32 %v6615, 7
  %v6617 = vsub.s32 %v845, %v6616
  %v6618 = vrot.slane %v6521, %v6617
  %v6619 = vlaneseq
  %v6620 = vshrl.u32 %v6619, 7
  %v6621 = vsub.s32 %v850, %v6620
  %v6622 = vrot.slane %v6524, %v6621
  %v6623 = vsel %vm855, %v6622, %v6618
  %v6624 = vlaneseq
  %v6625 = vshrl.u32 %v6624, 7
  %v6626 = vsub.s32 %v845, %v6625
  %v6627 = vrot.slane %v6527, %v6626
  %v6628 = vlaneseq
  %v6629 = vshrl.u32 %v6628, 7
  %v6630 = vsub.s32 %v850, %v6629
  %v6631 = vrot.slane %v6530, %v6630
  %v6632 = vsel %vm855, %v6631, %v6627
  %v6633 = vlaneseq
  %v6634 = vshrl.u32 %v6633, 7
  %v6635 = vsub.s32 %v845, %v6634
  %v6636 = vrot.slane %v6533, %v6635
  %v6637 = vlaneseq
  %v6638 = vshrl.u32 %v6637, 7
  %v6639 = vsub.s32 %v850, %v6638
  %v6640 = vrot.slane %v6536, %v6639
  %v6641 = vsel %vm855, %v6640, %v6636
  %v6642 = vlaneseq
  %v6643 = vshrl.u32 %v6642, 7
  %v6644 = vsub.s32 %v845, %v6643
  %v6645 = vrot.slane %v6539, %v6644
  %v6646 = vlaneseq
  %v6647 = vshrl.u32 %v6646, 7
  %v6648 = vsub.s32 %v850, %v6647
  %v6649 = vrot.slane %v6542, %v6648
  %v6650 = vsel %vm855, %v6649, %v6645
  %v6651 = vlaneseq
  %v6652 = vshrl.u32 %v6651, 7
  %v6653 = vsub.s32 %v845, %v6652
  %v6654 = vrot.slane %v6545, %v6653
  %v6655 = vlaneseq
  %v6656 = vshrl.u32 %v6655, 7
  %v6657 = vsub.s32 %v850, %v6656
  %v6658 = vrot.slane %v6548, %v6657
  %v6659 = vsel %vm855, %v6658, %v6654
  %v6660 = vlaneseq
  %v6661 = vshrl.u32 %v6660, 7
  %v6662 = vsub.s32 %v845, %v6661
  %v6663 = vrot.slane %v6551, %v6662
  %v6664 = vlaneseq
  %v6665 = vshrl.u32 %v6664, 7
  %v6666 = vsub.s32 %v850, %v6665
  %v6667 = vrot.slane %v6554, %v6666
  %v6668 = vsel %vm855, %v6667, %v6663
  %v6669 = vlaneseq
  %v6670 = vshrl.u32 %v6669, 7
  %v6671 = vsub.s32 %v845, %v6670
  %v6672 = vrot.slane %v6557, %v6671
  %v6673 = vlaneseq
  %v6674 = vshrl.u32 %v6673, 7
  %v6675 = vsub.s32 %v850, %v6674
  %v6676 = vrot.slane %v6560, %v6675
  %v6677 = vsel %vm855, %v6676, %v6672
  %v6678 = vlaneseq
  %v6679 = vshrl.u32 %v6678, 7
  %v6680 = vsub.s32 %v845, %v6679
  %v6681 = vrot.slane %v6563, %v6680
  %v6682 = vlaneseq
  %v6683 = vshrl.u32 %v6682, 7
  %v6684 = vsub.s32 %v850, %v6683
  %v6685 = vrot.slane %v6566, %v6684
  %v6686 = vsel %vm855, %v6685, %v6681
  %v6687 = vlaneseq
  %v6688 = vshrl.u32 %v6687, 7
  %v6689 = vsub.s32 %v845, %v6688
  %v6690 = vrot.slane %v6569, %v6689
  %v6691 = vlaneseq
  %v6692 = vshrl.u32 %v6691, 7
  %v6693 = vsub.s32 %v850, %v6692
  %v6694 = vrot.slane %v6572, %v6693
  %v6695 = vsel %vm855, %v6694, %v6690
  %v6696 = vlaneseq
  %v6697 = vshrl.u32 %v6696, 7
  %v6698 = vsub.s32 %v845, %v6697
  %v6699 = vrot.slane %v6575, %v6698
  %v6700 = vlaneseq
  %v6701 = vshrl.u32 %v6700, 7
  %v6702 = vsub.s32 %v850, %v6701
  %v6703 = vrot.slane %v6578, %v6702
  %v6704 = vsel %vm855, %v6703, %v6699
  %v6705 = vlaneseq
  %v6706 = vshrl.u32 %v6705, 7
  %v6707 = vsub.s32 %v845, %v6706
  %v6708 = vrot.slane %v6581, %v6707
  %v6709 = vlaneseq
  %v6710 = vshrl.u32 %v6709, 7
  %v6711 = vsub.s32 %v850, %v6710
  %v6712 = vrot.slane %v6584, %v6711
  %v6713 = vsel %vm855, %v6712, %v6708
  %v6714 = vlaneseq
  %v6715 = vshrl.u32 %v6714, 7
  %v6716 = vsub.s32 %v845, %v6715
  %v6717 = vrot.slane %v6587, %v6716
  %v6718 = vlaneseq
  %v6719 = vshrl.u32 %v6718, 7
  %v6720 = vsub.s32 %v850, %v6719
  %v6721 = vrot.slane %v6590, %v6720
  %v6722 = vsel %vm855, %v6721, %v6717
  %v6723 = vlaneseq
  %v6724 = vshrl.u32 %v6723, 7
  %v6725 = vsub.s32 %v845, %v6724
  %v6726 = vrot.slane %v6593, %v6725
  %v6727 = vlaneseq
  %v6728 = vshrl.u32 %v6727, 7
  %v6729 = vsub.s32 %v850, %v6728
  %v6730 = vrot.slane %v6596, %v6729
  %v6731 = vsel %vm855, %v6730, %v6726
  %v6732 = vlaneseq
  %v6733 = vshrl.u32 %v6732, 7
  %v6734 = vsub.s32 %v845, %v6733
  %v6735 = vrot.slane %v6599, %v6734
  %v6736 = vlaneseq
  %v6737 = vshrl.u32 %v6736, 7
  %v6738 = vsub.s32 %v850, %v6737
  %v6739 = vrot.slane %v6602, %v6738
  %v6740 = vsel %vm855, %v6739, %v6735
  %v6741 = vlaneseq
  %v6742 = vshrl.u32 %v6741, 7
  %v6743 = vsub.s32 %v845, %v6742
  %v6744 = vrot.slane %v6605, %v6743
  %v6745 = vlaneseq
  %v6746 = vshrl.u32 %v6745, 7
  %v6747 = vsub.s32 %v850, %v6746
  %v6748 = vrot.slane %v6608, %v6747
  %v6749 = vsel %vm855, %v6748, %v6744
  %v6750 = vlaneseq
  %v6751 = vshrl.u32 %v6750, 7
  %v6752 = vsub.s32 %v845, %v6751
  %v6753 = vrot.slane %v6611, %v6752
  %v6754 = vlaneseq
  %v6755 = vshrl.u32 %v6754, 7
  %v6756 = vsub.s32 %v850, %v6755
  %v6757 = vrot.slane %v6614, %v6756
  %v6758 = vsel %vm855, %v6757, %v6753
  %v6759 = vsel %vm992, %v6632, %v6623
  %v6760 = vsel %vm994, %v6641, %v6759
  %v6761 = vsel %vm996, %v6650, %v6760
  %v6762 = vsel %vm998, %v6659, %v6761
  %v6763 = vsel %vm1000, %v6668, %v6762
  %v6764 = vsel %vm1002, %v6677, %v6763
  %v6765 = vsel %vm1004, %v6686, %v6764
  %v6766 = vsel %vm992, %v6704, %v6695
  %v6767 = vsel %vm994, %v6713, %v6766
  %v6768 = vsel %vm996, %v6722, %v6767
  %v6769 = vsel %vm998, %v6731, %v6768
  %v6770 = vsel %vm1000, %v6740, %v6769
  %v6771 = vsel %vm1002, %v6749, %v6770
  %v6772 = vsel %vm1004, %v6758, %v6771
  %v6775 = vsel %vm1015, %v6765, 0.0
  %6776 = vadd.xlane.f32.xlu0 %v6775
  %v6777 = vpop.xlane.xlu0 %6776
  %v6778 = vsel %vm1015, %v6772, 0.0
  %6779 = vadd.xlane.f32.xlu0 %v6778
  %v6780 = vpop.xlane.xlu0 %6779
  %v6781 = vadd.f32 %v6485, %v6777
  %v6782 = vadd.f32 %v6486, %v6780
  %6783 = vst.msk [vmem:[%s6482] sm:$0xff] %vm1514, %v6781
  %6784 = vst.msk [vmem:[%s6482 + $0x8] sm:$0xff] %vm1514, %v6782
  %s6785 = scalar_lea.vmem [#allocation4], 48
  %v6786 = vld [vmem:[%s6785] sm:$0xff]
  %v6787 = vld [vmem:[%s6785 + $0x8] sm:$0xff]
  %6789 = vset.pattern.permute.xlu0 0
  %6790 = vperm.xlu0 %6789, %v6295
  %v6791 = vpop.permute.xlu0 %6790
  %6794 = vset.pattern.permute.xlu0 0
  %6795 = vperm.xlu0 %6794, %v6297
  %v6796 = vpop.permute.xlu0 %6795
  %v6798 = vmul.f32 %v6791, %v6786
  %v6799 = vmul.f32 %v6796, %v6787
  %v6800 = vpack.c.bf16 %v6421, %v6419
  %v6801 = vpack.c.bf16 %v6425, %v6423
  %v6802 = vpack.c.bf16 %v6429, %v6427
  %v6803 = vpack.c.bf16 %v6433, %v6431
  %v6804 = vpack.c.bf16 %v6437, %v6435
  %v6805 = vpack.c.bf16 %v6441, %v6439
  %v6806 = vpack.c.bf16 %v6445, %v6443
  %v6807 = vpack.c.bf16 %v6449, %v6447
  %v6808 = vpack.c.bf16 %v6453, %v6451
  %v6809 = vpack.c.bf16 %v6457, %v6455
  %v6810 = vpack.c.bf16 %v6461, %v6459
  %v6811 = vpack.c.bf16 %v6465, %v6463
  %v6812 = vpack.c.bf16 %v6469, %v6467
  %v6813 = vpack.c.bf16 %v6473, %v6471
  %v6814 = vpack.c.bf16 %v6477, %v6475
  %v6815 = vpack.c.bf16 %v6481, %v6479
  %v6832 = vunpack.c.l.b16 %v6800
  %v6833 = vunpack.c.h.b16 %v6800
  %v6834 = vunpack.c.l.b16 %v6801
  %v6835 = vunpack.c.h.b16 %v6801
  %v6836 = vunpack.c.l.b16 %v6802
  %v6837 = vunpack.c.h.b16 %v6802
  %v6838 = vunpack.c.l.b16 %v6803
  %v6839 = vunpack.c.h.b16 %v6803
  %v6840 = vunpack.c.l.b16 %v6804
  %v6841 = vunpack.c.h.b16 %v6804
  %v6842 = vunpack.c.l.b16 %v6805
  %v6843 = vunpack.c.h.b16 %v6805
  %v6844 = vunpack.c.l.b16 %v6806
  %v6845 = vunpack.c.h.b16 %v6806
  %v6846 = vunpack.c.l.b16 %v6807
  %v6847 = vunpack.c.h.b16 %v6807
  %v6848 = vunpack.c.l.b16 %v6808
  %v6849 = vunpack.c.h.b16 %v6808
  %v6850 = vunpack.c.l.b16 %v6809
  %v6851 = vunpack.c.h.b16 %v6809
  %v6852 = vunpack.c.l.b16 %v6810
  %v6853 = vunpack.c.h.b16 %v6810
  %v6854 = vunpack.c.l.b16 %v6811
  %v6855 = vunpack.c.h.b16 %v6811
  %v6856 = vunpack.c.l.b16 %v6812
  %v6857 = vunpack.c.h.b16 %v6812
  %v6858 = vunpack.c.l.b16 %v6813
  %v6859 = vunpack.c.h.b16 %v6813
  %v6860 = vunpack.c.l.b16 %v6814
  %v6861 = vunpack.c.h.b16 %v6814
  %v6862 = vunpack.c.l.b16 %v6815
  %v6863 = vunpack.c.h.b16 %v6815
  %6864 = vset.pattern.permute.xlu0 0
  %6865 = vperm.xlu0 %6864, %v6832
  %v6866 = vpop.permute.xlu0 %6865
  %6867 = vset.pattern.permute.xlu0 0
  %6868 = vperm.xlu0 %6867, %v6833
  %v6869 = vpop.permute.xlu0 %6868
  %6870 = vset.pattern.permute.xlu0 0
  %6871 = vperm.xlu0 %6870, %v6834
  %v6872 = vpop.permute.xlu0 %6871
  %6873 = vset.pattern.permute.xlu0 0
  %6874 = vperm.xlu0 %6873, %v6835
  %v6875 = vpop.permute.xlu0 %6874
  %6876 = vset.pattern.permute.xlu0 0
  %6877 = vperm.xlu0 %6876, %v6836
  %v6878 = vpop.permute.xlu0 %6877
  %6879 = vset.pattern.permute.xlu0 0
  %6880 = vperm.xlu0 %6879, %v6837
  %v6881 = vpop.permute.xlu0 %6880
  %6882 = vset.pattern.permute.xlu0 0
  %6883 = vperm.xlu0 %6882, %v6838
  %v6884 = vpop.permute.xlu0 %6883
  %6885 = vset.pattern.permute.xlu0 0
  %6886 = vperm.xlu0 %6885, %v6839
  %v6887 = vpop.permute.xlu0 %6886
  %6888 = vset.pattern.permute.xlu0 0
  %6889 = vperm.xlu0 %6888, %v6840
  %v6890 = vpop.permute.xlu0 %6889
  %6891 = vset.pattern.permute.xlu0 0
  %6892 = vperm.xlu0 %6891, %v6841
  %v6893 = vpop.permute.xlu0 %6892
  %6894 = vset.pattern.permute.xlu0 0
  %6895 = vperm.xlu0 %6894, %v6842
  %v6896 = vpop.permute.xlu0 %6895
  %6897 = vset.pattern.permute.xlu0 0
  %6898 = vperm.xlu0 %6897, %v6843
  %v6899 = vpop.permute.xlu0 %6898
  %6900 = vset.pattern.permute.xlu0 0
  %6901 = vperm.xlu0 %6900, %v6844
  %v6902 = vpop.permute.xlu0 %6901
  %6903 = vset.pattern.permute.xlu0 0
  %6904 = vperm.xlu0 %6903, %v6845
  %v6905 = vpop.permute.xlu0 %6904
  %6906 = vset.pattern.permute.xlu0 0
  %6907 = vperm.xlu0 %6906, %v6846
  %v6908 = vpop.permute.xlu0 %6907
  %6909 = vset.pattern.permute.xlu0 0
  %6910 = vperm.xlu0 %6909, %v6847
  %v6911 = vpop.permute.xlu0 %6910
  %6912 = vset.pattern.permute.xlu0 0
  %6913 = vperm.xlu0 %6912, %v6848
  %v6914 = vpop.permute.xlu0 %6913
  %6915 = vset.pattern.permute.xlu0 0
  %6916 = vperm.xlu0 %6915, %v6849
  %v6917 = vpop.permute.xlu0 %6916
  %6918 = vset.pattern.permute.xlu0 0
  %6919 = vperm.xlu0 %6918, %v6850
  %v6920 = vpop.permute.xlu0 %6919
  %6921 = vset.pattern.permute.xlu0 0
  %6922 = vperm.xlu0 %6921, %v6851
  %v6923 = vpop.permute.xlu0 %6922
  %6924 = vset.pattern.permute.xlu0 0
  %6925 = vperm.xlu0 %6924, %v6852
  %v6926 = vpop.permute.xlu0 %6925
  %6927 = vset.pattern.permute.xlu0 0
  %6928 = vperm.xlu0 %6927, %v6853
  %v6929 = vpop.permute.xlu0 %6928
  %6930 = vset.pattern.permute.xlu0 0
  %6931 = vperm.xlu0 %6930, %v6854
  %v6932 = vpop.permute.xlu0 %6931
  %6933 = vset.pattern.permute.xlu0 0
  %6934 = vperm.xlu0 %6933, %v6855
  %v6935 = vpop.permute.xlu0 %6934
  %6936 = vset.pattern.permute.xlu0 0
  %6937 = vperm.xlu0 %6936, %v6856
  %v6938 = vpop.permute.xlu0 %6937
  %6939 = vset.pattern.permute.xlu0 0
  %6940 = vperm.xlu0 %6939, %v6857
  %v6941 = vpop.permute.xlu0 %6940
  %6942 = vset.pattern.permute.xlu0 0
  %6943 = vperm.xlu0 %6942, %v6858
  %v6944 = vpop.permute.xlu0 %6943
  %6945 = vset.pattern.permute.xlu0 0
  %6946 = vperm.xlu0 %6945, %v6859
  %v6947 = vpop.permute.xlu0 %6946
  %6948 = vset.pattern.permute.xlu0 0
  %6949 = vperm.xlu0 %6948, %v6860
  %v6950 = vpop.permute.xlu0 %6949
  %6951 = vset.pattern.permute.xlu0 0
  %6952 = vperm.xlu0 %6951, %v6861
  %v6953 = vpop.permute.xlu0 %6952
  %6954 = vset.pattern.permute.xlu0 0
  %6955 = vperm.xlu0 %6954, %v6862
  %v6956 = vpop.permute.xlu0 %6955
  %6957 = vset.pattern.permute.xlu0 0
  %6958 = vperm.xlu0 %6957, %v6863
  %v6959 = vpop.permute.xlu0 %6958
  %v6960 = vlaneseq
  %v6961 = vshrl.u32 %v6960, 7
  %v6962 = vsub.s32 %v845, %v6961
  %v6963 = vrot.slane %v6866, %v6962
  %v6964 = vlaneseq
  %v6965 = vshrl.u32 %v6964, 7
  %v6966 = vsub.s32 %v850, %v6965
  %v6967 = vrot.slane %v6869, %v6966
  %v6968 = vsel %vm855, %v6967, %v6963
  %v6969 = vlaneseq
  %v6970 = vshrl.u32 %v6969, 7
  %v6971 = vsub.s32 %v845, %v6970
  %v6972 = vrot.slane %v6872, %v6971
  %v6973 = vlaneseq
  %v6974 = vshrl.u32 %v6973, 7
  %v6975 = vsub.s32 %v850, %v6974
  %v6976 = vrot.slane %v6875, %v6975
  %v6977 = vsel %vm855, %v6976, %v6972
  %v6978 = vlaneseq
  %v6979 = vshrl.u32 %v6978, 7
  %v6980 = vsub.s32 %v845, %v6979
  %v6981 = vrot.slane %v6878, %v6980
  %v6982 = vlaneseq
  %v6983 = vshrl.u32 %v6982, 7
  %v6984 = vsub.s32 %v850, %v6983
  %v6985 = vrot.slane %v6881, %v6984
  %v6986 = vsel %vm855, %v6985, %v6981
  %v6987 = vlaneseq
  %v6988 = vshrl.u32 %v6987, 7
  %v6989 = vsub.s32 %v845, %v6988
  %v6990 = vrot.slane %v6884, %v6989
  %v6991 = vlaneseq
  %v6992 = vshrl.u32 %v6991, 7
  %v6993 = vsub.s32 %v850, %v6992
  %v6994 = vrot.slane %v6887, %v6993
  %v6995 = vsel %vm855, %v6994, %v6990
  %v6996 = vlaneseq
  %v6997 = vshrl.u32 %v6996, 7
  %v6998 = vsub.s32 %v845, %v6997
  %v6999 = vrot.slane %v6890, %v6998
  %v7000 = vlaneseq
  %v7001 = vshrl.u32 %v7000, 7
  %v7002 = vsub.s32 %v850, %v7001
  %v7003 = vrot.slane %v6893, %v7002
  %v7004 = vsel %vm855, %v7003, %v6999
  %v7005 = vlaneseq
  %v7006 = vshrl.u32 %v7005, 7
  %v7007 = vsub.s32 %v845, %v7006
  %v7008 = vrot.slane %v6896, %v7007
  %v7009 = vlaneseq
  %v7010 = vshrl.u32 %v7009, 7
  %v7011 = vsub.s32 %v850, %v7010
  %v7012 = vrot.slane %v6899, %v7011
  %v7013 = vsel %vm855, %v7012, %v7008
  %v7014 = vlaneseq
  %v7015 = vshrl.u32 %v7014, 7
  %v7016 = vsub.s32 %v845, %v7015
  %v7017 = vrot.slane %v6902, %v7016
  %v7018 = vlaneseq
  %v7019 = vshrl.u32 %v7018, 7
  %v7020 = vsub.s32 %v850, %v7019
  %v7021 = vrot.slane %v6905, %v7020
  %v7022 = vsel %vm855, %v7021, %v7017
  %v7023 = vlaneseq
  %v7024 = vshrl.u32 %v7023, 7
  %v7025 = vsub.s32 %v845, %v7024
  %v7026 = vrot.slane %v6908, %v7025
  %v7027 = vlaneseq
  %v7028 = vshrl.u32 %v7027, 7
  %v7029 = vsub.s32 %v850, %v7028
  %v7030 = vrot.slane %v6911, %v7029
  %v7031 = vsel %vm855, %v7030, %v7026
  %v7032 = vlaneseq
  %v7033 = vshrl.u32 %v7032, 7
  %v7034 = vsub.s32 %v845, %v7033
  %v7035 = vrot.slane %v6914, %v7034
  %v7036 = vlaneseq
  %v7037 = vshrl.u32 %v7036, 7
  %v7038 = vsub.s32 %v850, %v7037
  %v7039 = vrot.slane %v6917, %v7038
  %v7040 = vsel %vm855, %v7039, %v7035
  %v7041 = vlaneseq
  %v7042 = vshrl.u32 %v7041, 7
  %v7043 = vsub.s32 %v845, %v7042
  %v7044 = vrot.slane %v6920, %v7043
  %v7045 = vlaneseq
  %v7046 = vshrl.u32 %v7045, 7
  %v7047 = vsub.s32 %v850, %v7046
  %v7048 = vrot.slane %v6923, %v7047
  %v7049 = vsel %vm855, %v7048, %v7044
  %v7050 = vlaneseq
  %v7051 = vshrl.u32 %v7050, 7
  %v7052 = vsub.s32 %v845, %v7051
  %v7053 = vrot.slane %v6926, %v7052
  %v7054 = vlaneseq
  %v7055 = vshrl.u32 %v7054, 7
  %v7056 = vsub.s32 %v850, %v7055
  %v7057 = vrot.slane %v6929, %v7056
  %v7058 = vsel %vm855, %v7057, %v7053
  %v7059 = vlaneseq
  %v7060 = vshrl.u32 %v7059, 7
  %v7061 = vsub.s32 %v845, %v7060
  %v7062 = vrot.slane %v6932, %v7061
  %v7063 = vlaneseq
  %v7064 = vshrl.u32 %v7063, 7
  %v7065 = vsub.s32 %v850, %v7064
  %v7066 = vrot.slane %v6935, %v7065
  %v7067 = vsel %vm855, %v7066, %v7062
  %v7068 = vlaneseq
  %v7069 = vshrl.u32 %v7068, 7
  %v7070 = vsub.s32 %v845, %v7069
  %v7071 = vrot.slane %v6938, %v7070
  %v7072 = vlaneseq
  %v7073 = vshrl.u32 %v7072, 7
  %v7074 = vsub.s32 %v850, %v7073
  %v7075 = vrot.slane %v6941, %v7074
  %v7076 = vsel %vm855, %v7075, %v7071
  %v7077 = vlaneseq
  %v7078 = vshrl.u32 %v7077, 7
  %v7079 = vsub.s32 %v845, %v7078
  %v7080 = vrot.slane %v6944, %v7079
  %v7081 = vlaneseq
  %v7082 = vshrl.u32 %v7081, 7
  %v7083 = vsub.s32 %v850, %v7082
  %v7084 = vrot.slane %v6947, %v7083
  %v7085 = vsel %vm855, %v7084, %v7080
  %v7086 = vlaneseq
  %v7087 = vshrl.u32 %v7086, 7
  %v7088 = vsub.s32 %v845, %v7087
  %v7089 = vrot.slane %v6950, %v7088
  %v7090 = vlaneseq
  %v7091 = vshrl.u32 %v7090, 7
  %v7092 = vsub.s32 %v850, %v7091
  %v7093 = vrot.slane %v6953, %v7092
  %v7094 = vsel %vm855, %v7093, %v7089
  %v7095 = vlaneseq
  %v7096 = vshrl.u32 %v7095, 7
  %v7097 = vsub.s32 %v845, %v7096
  %v7098 = vrot.slane %v6956, %v7097
  %v7099 = vlaneseq
  %v7100 = vshrl.u32 %v7099, 7
  %v7101 = vsub.s32 %v850, %v7100
  %v7102 = vrot.slane %v6959, %v7101
  %v7103 = vsel %vm855, %v7102, %v7098
  %v7104 = vsel %vm992, %v6977, %v6968
  %v7105 = vsel %vm994, %v6986, %v7104
  %v7106 = vsel %vm996, %v6995, %v7105
  %v7107 = vsel %vm998, %v7004, %v7106
  %v7108 = vsel %vm1000, %v7013, %v7107
  %v7109 = vsel %vm1002, %v7022, %v7108
  %v7110 = vsel %vm1004, %v7031, %v7109
  %v7111 = vsel %vm992, %v7049, %v7040
  %v7112 = vsel %vm994, %v7058, %v7111
  %v7113 = vsel %vm996, %v7067, %v7112
  %v7114 = vsel %vm998, %v7076, %v7113
  %v7115 = vsel %vm1000, %v7085, %v7114
  %v7116 = vsel %vm1002, %v7094, %v7115
  %v7117 = vsel %vm1004, %v7103, %v7116
  %v7118 = vpack.c.b16 %v7117, %v7110
  %7119 = vrot.lane.b32.xlu0 %v57, 32
  %v7120 = vpop.permute.xlu0 %7119
  %v7123 = vsel %vm1015, %v7118, 0
  %7125 = vmatprep.subr.bf16.mxu0 0
  %7126 = vmatpush1.bf16.msra.mxu0 0
  %7127 = vmatprep.subr.bf16.mxu0 0
  %7128 = vmatpush1.bf16.msra.mxu0 0
  %7129 = vmatprep.subr.bf16.mxu0 0
  %7130 = vmatpush1.bf16.msra.mxu0 0
  %7131 = vmatprep.subr.bf16.mxu0 0
  %7132 = vmatpush1.bf16.msra.mxu0 0
  %7133 = vmatprep.subr.bf16.mxu0 0
  %7134 = vmatpush1.bf16.msra.mxu0 0
  %7135 = vmatprep.subr.bf16.mxu0 0
  %7136 = vmatpush1.bf16.msra.mxu0 0
  %7137 = vmatprep.subr.bf16.mxu0 0
  %7138 = vmatpush1.bf16.msra.mxu0 0
  %7139 = vmatprep.subr.bf16.mxu0 0
  %7140 = vmatpush1.bf16.msra.mxu0 %v7120
  %7141 = vmatprep.subr.bf16.mxu0 0
  %7142 = vmatpush2.bf16.msra.mxu0 0
  %7143 = vmatprep.subr.bf16.mxu0 0
  %7144 = vmatpush2.bf16.msra.mxu0 0
  %7145 = vmatprep.subr.bf16.mxu0 0
  %7146 = vmatpush2.bf16.msra.mxu0 0
  %7147 = vmatprep.subr.bf16.mxu0 0
  %7148 = vmatpush2.bf16.msra.mxu0 0
  %7149 = vmatprep.subr.bf16.mxu0 0
  %7150 = vmatpush2.bf16.msra.mxu0 0
  %7151 = vmatprep.subr.bf16.mxu0 0
  %7152 = vmatpush2.bf16.msra.mxu0 0
  %7153 = vmatprep.subr.bf16.mxu0 0
  %7154 = vmatpush2.bf16.msra.mxu0 0
  %7155 = vmatprep.subr.bf16.mxu0 0
  %7156 = vmatpush2.bf16.msra.mxu0 0
  %7157 = vmatprep.mubr.bf16.mxu0 0
  %7158 = vmatmul.mubr.bf16.gmra.mxu0 %v7123
  %v7159 = vpop.f32.mrf.mxu0
  %v7160 = vadd.f32 0.0, %v7159
  %v7161 = vpop.f32.mrf.mxu0
  %v7162 = vpop.f32.mrf.mxu0
  %v7163 = vadd.f32 0.0, %v7162
  %v7164 = vpop.f32.mrf.mxu0
  %7165 = vdwg.mxu0
  %v7166 = vadd.f32 %v6798, %v7160
  %v7167 = vadd.f32 %v6799, %v7163
  %7168 = vst.msk [vmem:[%s6785] sm:$0xff] %vm375, %v7166
  %7169 = vst.msk [vmem:[%s6785 + $0x8] sm:$0xff] %vm375, %v7167
  %7170 = vst.msk [vmem:[%s5993] sm:$0xff] %vm1514, %v6290
  %7171 = vst.msk [vmem:[%s5993 + $0x8] sm:$0xff] %vm1514, %v6291
  // Predicated region
  $region26: #{net_cell_forward.10} parent=0 // pred_check
    %p7172 = pneg %p21
  $region27: #{net_cell_forward.10} parent=0 // pred_check_branch
    %7174 = sbr.rel (%p7172) target = $region29
  $region28: #{net_cell_forward.10} parent=0 // pred_region
    %v7175 = vld [vmem:[#allocation3] sm:$0xff]
    %v7176 = vld [vmem:[#allocation3 + $0x8] sm:$0xff]
    %v7177 = vrcp.pop %v7175
    %v7178 = vrcp.pop %v7176
    %v7179 = vld [vmem:[#allocation4] sm:$0xff]
    %v7180 = vld [vmem:[#allocation4 + $0x8] sm:$0xff]
    %7182 = vset.pattern.permute.xlu0 0
    %7183 = vperm.xlu0 %7182, %v7177
    %v7184 = vpop.permute.xlu0 %7183
    %7187 = vset.pattern.permute.xlu0 0
    %7188 = vperm.xlu0 %7187, %v7178
    %v7189 = vpop.permute.xlu0 %7188
    %v7191 = vmul.f32 %v7179, %v7184
    %v7192 = vmul.f32 %v7180, %v7189
    %v7193 = vld [vmem:[%s3] sm:$0x1]
    %v7195 = vlaneseq
    %v7196 = vshrl.u32 %v7195, 7
    %v7197 = vsub.s32 0, %v7196
    %v7198 = vrot.slane %v7193, %v7197
    %v7200 = vadd.f32 %v7191, %v7198
    %v7201 = vadd.f32 %v7192, %v7198
    %7202 = vst.msk [vmem:[%s5] sm:$0xff] %vm375, %v7200
    %7203 = vst.msk [vmem:[%s5 + $0x8] sm:$0xff] %vm375, %v7201
    %v7204 = vld [vmem:[%s2967] sm:$0xff]
    %v7205 = vld [vmem:[%s2967 + $0x8] sm:$0xff]
    %v7206 = vrcp.pop %v7204
    %v7207 = vrcp.pop %v7205
    %v7208 = vld [vmem:[%s3270] sm:$0xff]
    %v7209 = vld [vmem:[%s3270 + $0x8] sm:$0xff]
    %7211 = vset.pattern.permute.xlu0 0
    %7212 = vperm.xlu0 %7211, %v7206
    %v7213 = vpop.permute.xlu0 %7212
    %7216 = vset.pattern.permute.xlu0 0
    %7217 = vperm.xlu0 %7216, %v7207
    %v7218 = vpop.permute.xlu0 %7217
    %v7220 = vmul.f32 %v7208, %v7213
    %v7221 = vmul.f32 %v7209, %v7218
    %s7222 = scalar_lea.vmem %s3, 1
    %v7223 = vld [vmem:[%s7222] sm:$0x1]
    %v7225 = vlaneseq
    %v7226 = vshrl.u32 %v7225, 7
    %v7227 = vsub.s32 0, %v7226
    %v7228 = vrot.slane %v7223, %v7227
    %v7230 = vadd.f32 %v7220, %v7228
    %v7231 = vadd.f32 %v7221, %v7228
    %7234 = vrot.lane.b32.xlu0 %v7230, 32
    %v7235 = vpop.permute.xlu0 %7234
    %7236 = vrot.lane.b32.xlu0 %v7231, 32
    %v7237 = vpop.permute.xlu0 %7236
    %vm7240 = vcmask 523520
    %7241 = vst.msk [vmem:[%s5] sm:$0xff] %vm7240, %v7235
    %7242 = vst.msk [vmem:[%s5 + $0x8] sm:$0xff] %vm7240, %v7237
    %v7243 = vld [vmem:[%s4725] sm:$0xff]
    %v7244 = vld [vmem:[%s4725 + $0x8] sm:$0xff]
    %v7245 = vrcp.pop %v7243
    %v7246 = vrcp.pop %v7244
    %v7247 = vld [vmem:[%s5028] sm:$0xff]
    %v7248 = vld [vmem:[%s5028 + $0x8] sm:$0xff]
    %7250 = vset.pattern.permute.xlu0 0
    %7251 = vperm.xlu0 %7250, %v7245
    %v7252 = vpop.permute.xlu0 %7251
    %7255 = vset.pattern.permute.xlu0 0
    %7256 = vperm.xlu0 %7255, %v7246
    %v7257 = vpop.permute.xlu0 %7256
    %v7259 = vmul.f32 %v7247, %v7252
    %v7260 = vmul.f32 %v7248, %v7257
    %s7261 = scalar_lea.vmem %s3, 2
    %v7262 = vld [vmem:[%s7261] sm:$0x1]
    %v7264 = vlaneseq
    %v7265 = vshrl.u32 %v7264, 7
    %v7266 = vsub.s32 0, %v7265
    %v7267 = vrot.slane %v7262, %v7266
    %v7269 = vadd.f32 %v7259, %v7267
    %v7270 = vadd.f32 %v7260, %v7267
    %7273 = vrot.lane.b32.xlu0 %v7269, 64
    %v7274 = vpop.permute.xlu0 %7273
    %7275 = vrot.lane.b32.xlu0 %v7270, 64
    %v7276 = vpop.permute.xlu0 %7275
    %vm7279 = vcmask 785920
    %7280 = vst.msk [vmem:[%s5] sm:$0xff] %vm7279, %v7274
    %7281 = vst.msk [vmem:[%s5 + $0x8] sm:$0xff] %vm7279, %v7276
    %v7282 = vld [vmem:[%s6482] sm:$0xff]
    %v7283 = vld [vmem:[%s6482 + $0x8] sm:$0xff]
    %v7284 = vrcp.pop %v7282
    %v7285 = vrcp.pop %v7283
    %v7286 = vld [vmem:[%s6785] sm:$0xff]
    %v7287 = vld [vmem:[%s6785 + $0x8] sm:$0xff]
    %7289 = vset.pattern.permute.xlu0 0
    %7290 = vperm.xlu0 %7289, %v7284
    %v7291 = vpop.permute.xlu0 %7290
    %7294 = vset.pattern.permute.xlu0 0
    %7295 = vperm.xlu0 %7294, %v7285
    %v7296 = vpop.permute.xlu0 %7295
    %v7298 = vmul.f32 %v7286, %v7291
    %v7299 = vmul.f32 %v7287, %v7296
    %s7300 = scalar_lea.vmem %s3, 3
    %v7301 = vld [vmem:[%s7300] sm:$0x1]
    %v7303 = vlaneseq
    %v7304 = vshrl.u32 %v7303, 7
    %v7305 = vsub.s32 0, %v7304
    %v7306 = vrot.slane %v7301, %v7305
    %v7308 = vadd.f32 %v7298, %v7306
    %v7309 = vadd.f32 %v7299, %v7306
    %7312 = vrot.lane.b32.xlu0 %v7308, 96
    %v7313 = vpop.permute.xlu0 %7312
    %7314 = vrot.lane.b32.xlu0 %v7309, 96
    %v7315 = vpop.permute.xlu0 %7314
    %vm7318 = vcmask 1048320
    %7319 = vst.msk [vmem:[%s5] sm:$0xff] %vm7318, %v7313
    %7320 = vst.msk [vmem:[%s5 + $0x8] sm:$0xff] %vm7318, %v7315
  $region29: #{net_cell_forward.10} parent=0 // pred_fallthru
    _
  // Predicated region
  $region30: #{net_cell_forward.10} parent=0 // pred_check
    _
  $region31: #{net_cell_forward.10} parent=0 // pred_check_branch
    %7322 = sbr.rel (0) target = $region33
  $region32: #{net_cell_forward.10} parent=0 // pred_region
    _
  $region33: #{net_cell_forward.10} parent=0 // pred_fallthru
    _
  // Predicated region
  $region34: #{net_cell_forward.10} parent=0 // pred_check
    _
  $region35: #{net_cell_forward.10} parent=0 // pred_check_branch
    %7324 = sbr.rel (0) target = $region37
  $region36: #{net_cell_forward.10} parent=0 // pred_region
    _
  $region37: #{net_cell_forward.10} parent=0 // pred_fallthru
    _

</llo_original>
